<compile_context>
chip_gen: v7x
topology: tpu7x:2x2x1
jax: 0.10.0
libtpu: 0.0.40
codegen_flags: <defaults>
</compile_context>

<pallas_src>
import jax
import jax.numpy as jnp
from jax.experimental import pallas as pl
from jax.experimental.pallas import tpu as pltpu

C_IN = 4        # Conv1d(4, 64, kernel_size=3, padding=1)
C_HID = 64
L = 64          # fc1 = Linear(64 * 64, 256)  =>  sequence length must be 64
HIDDEN = 256
N_POLICY = 4
HEAD_PAD = 8    # fused policy(4) + value(1) head, padded to 8 columns
H_BLK = 128     # HIDDEN pipelining block
BN_EPS = 1e-5


# ------------------------------ fused kernel ------------------------------
def _schurnet_kernel(x1_ref, w1_ref, b1_ref, w2_ref, b2_ref,
                     wf1_ref, bf1_ref, wh_ref, bh_ref,
                     policy_ref, value_ref,
                     h2_sc, f_sc):
    j = pl.program_id(0)
    h_blk = wf1_ref.shape[2]
    n_b = h2_sc.shape[1]                       # batch size packed on the lane axis

    # ---- phase 0: conv1+bn1+relu -> conv2+bn2+relu, lane-packed (C, B*L) ----
    @pl.when(j == 0)
    def _conv_stage():
        # conv1 (im2col'd in the wrapper): (C_HID, 3*C_IN) @ (3*C_IN, B*L)
        h1 = jnp.dot(w1_ref[...], x1_ref[...],
                     preferred_element_type=jnp.float32)
        h1 = jnp.maximum(h1 + b1_ref[...], 0.0)                 # (C_HID, B*L) f32

        # conv2 taps via XLU roll + per-batch boundary masks (padding=1)
        n_lanes = h1.shape[1]
        pos = jax.lax.broadcasted_iota(jnp.int32, h1.shape, 1) % L
        left = jnp.where(pos == 0, 0.0,
                         pltpu.roll(h1, shift=1, axis=1))            # x[l-1]
        right = jnp.where(pos == L - 1, 0.0,
                          pltpu.roll(h1, shift=n_lanes - 1, axis=1))  # x[l+1]
        x2 = jnp.concatenate([left, h1, right], axis=0).astype(jnp.bfloat16)

        # conv2 (im2col): (C_HID, 3*C_HID) @ (3*C_HID, B*L)
        h2 = jnp.dot(w2_ref[...], x2, preferred_element_type=jnp.float32)
        h2 = jnp.maximum(h2 + b2_ref[...], 0.0)                 # (C_HID, B*L) f32

        # stash as (C, B, L) bf16; scratch persists across grid steps
        h2_bf = h2.astype(jnp.bfloat16)
        for b in range(n_b):
            h2_sc[:, b, :] = h2_bf[:, b * L:(b + 1) * L]

    # ---- every step: one HIDDEN-block of fc1 (weight block is pipelined) ----
    # f[b, h] = sum_{c,l} h2[b, c, l] * fc1_w[h, c*L + l]; the channel-major
    # flatten is folded into wf1's (C, L, HIDDEN) layout built in the wrapper.
    y = jnp.einsum("cbl,clh->cbh", h2_sc[...], wf1_ref[...],
                   preferred_element_type=jnp.float32)          # (C, B, h_blk)
    f_chunk = jnp.maximum(jnp.sum(y, axis=0) + bf1_ref[...], 0.0)
    off = pl.multiple_of(j * h_blk, h_blk)
    f_sc[:, pl.ds(off, h_blk)] = f_chunk

    # ---- last step: fused policy/value head ----
    @pl.when(j == pl.num_programs(0) - 1)
    def _heads():
        f = f_sc[...].astype(jnp.bfloat16)                      # (B, HIDDEN)
        z = jnp.dot(f, wh_ref[...],
                    preferred_element_type=jnp.float32) + bh_ref[...]
        logits = z[:, :N_POLICY]
        m = jnp.max(logits, axis=-1, keepdims=True)
        e = jnp.exp(logits - m)
        policy_ref[...] = e / jnp.sum(e, axis=-1, keepdims=True)
        value_ref[...] = jnp.tanh(z[:, N_POLICY:N_POLICY + 1])


# ------------------------------ wrapper ------------------------------
def schurnet_forward(x, p):
    B = x.shape[0]
    assert x.shape[1] == C_IN and x.shape[2] == L

    # fold eval-mode BatchNorm1d into the conv weights/bias:  y = a*conv(x) + c
    a1 = p["bn1_gamma"] / jnp.sqrt(p["bn1_var"] + BN_EPS)
    w1 = p["conv1_w"] * a1[:, None, None]
    b1 = a1 * (p["conv1_b"] - p["bn1_mean"]) + p["bn1_beta"]
    a2 = p["bn2_gamma"] / jnp.sqrt(p["bn2_var"] + BN_EPS)
    w2 = p["conv2_w"] * a2[:, None, None]
    b2 = a2 * (p["conv2_b"] - p["bn2_mean"]) + p["bn2_beta"]

    # im2col conv weights: W[o, k*C_in + i] = w[o, i, k]
    w1_cat = jnp.transpose(w1, (0, 2, 1)).reshape(C_HID, 3 * C_IN).astype(jnp.bfloat16)
    w2_cat = jnp.transpose(w2, (0, 2, 1)).reshape(C_HID, 3 * C_HID).astype(jnp.bfloat16)

    # conv1 input: im2col'd + lane-packed.  X1[k*C_in+i, b*L+l] = xpad[b, i, l+k]
    xpad = jnp.pad(x, ((0, 0), (0, 0), (1, 1)))
    taps = jnp.stack([xpad[:, :, k:k + L] for k in range(3)], axis=1)   # (B,3,Cin,L)
    x1 = jnp.transpose(taps, (1, 2, 0, 3)).reshape(3 * C_IN, B * L).astype(jnp.bfloat16)

    # fc1 weight in (C, L, HIDDEN) layout:  wf1[c, l, h] = fc1_w[h, c*L + l]
    wf1 = jnp.transpose(p["fc1_w"].reshape(HIDDEN, C_HID, L), (1, 2, 0)).astype(jnp.bfloat16)
    bf1 = p["fc1_b"][None, :]                                   # (1, HIDDEN) f32

    # fused policy/value head: cols [0:4] policy, col 4 value, rest zero
    wh = jnp.zeros((HIDDEN, HEAD_PAD), jnp.float32)
    wh = wh.at[:, :N_POLICY].set(p["fcp_w"].T)
    wh = wh.at[:, N_POLICY].set(p["fcv_w"][0])
    wh = wh.astype(jnp.bfloat16)
    bh = jnp.zeros((1, HEAD_PAD), jnp.float32)
    bh = bh.at[0, :N_POLICY].set(p["fcp_b"])
    bh = bh.at[0, N_POLICY].set(p["fcv_b"][0])

    n_h = HIDDEN // H_BLK
    policy, value = pl.pallas_call(
        _schurnet_kernel,
        out_shape=(jax.ShapeDtypeStruct((B, N_POLICY), jnp.float32),
                   jax.ShapeDtypeStruct((B, 1), jnp.float32)),
        grid=(n_h,),
        in_specs=[
            pl.BlockSpec((3 * C_IN, B * L), lambda j: (0, 0)),        # x1
            pl.BlockSpec((C_HID, 3 * C_IN), lambda j: (0, 0)),        # w1 (im2col)
            pl.BlockSpec((C_HID, 1), lambda j: (0, 0)),               # b1 (BN folded)
            pl.BlockSpec((C_HID, 3 * C_HID), lambda j: (0, 0)),       # w2 (im2col)
            pl.BlockSpec((C_HID, 1), lambda j: (0, 0)),               # b2 (BN folded)
            pl.BlockSpec((C_HID, L, H_BLK), lambda j: (0, 0, j)),     # wf1 (pipelined)
            pl.BlockSpec((1, H_BLK), lambda j: (0, j)),               # fc1 bias block
            pl.BlockSpec((HIDDEN, HEAD_PAD), lambda j: (0, 0)),       # fused head W
            pl.BlockSpec((1, HEAD_PAD), lambda j: (0, 0)),            # fused head b
        ],
        out_specs=(pl.BlockSpec((B, N_POLICY), lambda j: (0, 0)),
                   pl.BlockSpec((B, 1), lambda j: (0, 0))),
        scratch_shapes=[pltpu.VMEM((C_HID, B, L), jnp.bfloat16),      # conv output
                        pltpu.VMEM((B, HIDDEN), jnp.float32)],        # fc1 output
        compiler_params=pltpu.CompilerParams(
            dimension_semantics=("arbitrary",)),
        # TODO(synk): at real serving batch sizes, add a leading "parallel" batch
        # grid axis (v7x dual TensorCore) and widen the lane packing toward 256.
    )(x1, w1_cat, b1[:, None], w2_cat, b2[:, None], wf1, bf1, wh, bh)
    return policy, value


# ------------------------------ parameters ------------------------------
def init_params(key):
    ks = jax.random.split(key, 20)
    p = {}
    p["conv1_w"] = 0.20 * jax.random.normal(ks[0], (C_HID, C_IN, 3), jnp.float32)
    p["conv1_b"] = 0.10 * jax.random.normal(ks[1], (C_HID,), jnp.float32)
    p["bn1_gamma"] = 1.0 + 0.1 * jax.random.normal(ks[2], (C_HID,), jnp.float32)
    p["bn1_beta"] = 0.1 * jax.random.normal(ks[3], (C_HID,), jnp.float32)
    p["bn1_mean"] = 0.05 * jax.random.normal(ks[4], (C_HID,), jnp.float32)
    p["bn1_var"] = 0.5 + jnp.abs(0.3 * jax.random.normal(ks[5], (C_HID,), jnp.float32))
    p["conv2_w"] = 0.08 * jax.random.normal(ks[6], (C_HID, C_HID, 3), jnp.float32)
    p["conv2_b"] = 0.10 * jax.random.normal(ks[7], (C_HID,), jnp.float32)
    p["bn2_gamma"] = 1.0 + 0.1 * jax.random.normal(ks[8], (C_HID,), jnp.float32)
    p["bn2_beta"] = 0.1 * jax.random.normal(ks[9], (C_HID,), jnp.float32)
    p["bn2_mean"] = 0.05 * jax.random.normal(ks[10], (C_HID,), jnp.float32)
    p["bn2_var"] = 0.5 + jnp.abs(0.3 * jax.random.normal(ks[11], (C_HID,), jnp.float32))
    p["fc1_w"] = 0.02 * jax.random.normal(ks[12], (HIDDEN, C_HID * L), jnp.float32)
    p["fc1_b"] = 0.05 * jax.random.normal(ks[13], (HIDDEN,), jnp.float32)
    p["fcp_w"] = 0.05 * jax.random.normal(ks[14], (N_POLICY, HIDDEN), jnp.float32)
    p["fcp_b"] = 0.05 * jax.random.normal(ks[15], (N_POLICY,), jnp.float32)
    p["fcv_w"] = 0.05 * jax.random.normal(ks[16], (1, HIDDEN), jnp.float32)
    p["fcv_b"] = 0.05 * jax.random.normal(ks[17], (1,), jnp.float32)
    return p


# ------------------------------ pure-JAX reference ------------------------------
def reference_forward(x, p):
    def conv1d(xx, w, b):
        xp = jnp.pad(xx, ((0, 0), (0, 0), (1, 1)))
        Lx = xx.shape[-1]
        out = sum(jnp.einsum("oi,bil->bol", w[:, :, k], xp[:, :, k:k + Lx])
                  for k in range(3))
        return out + b[None, :, None]

    def bn(xx, g, be, m, v):
        return (g[None, :, None] * (xx - m[None, :, None])
                / jnp.sqrt(v + BN_EPS)[None, :, None] + be[None, :, None])

    h = jax.nn.relu(bn(conv1d(x, p["conv1_w"], p["conv1_b"]),
                       p["bn1_gamma"], p["bn1_beta"], p["bn1_mean"], p["bn1_var"]))
    h = jax.nn.relu(bn(conv1d(h, p["conv2_w"], p["conv2_b"]),
                       p["bn2_gamma"], p["bn2_beta"], p["bn2_mean"], p["bn2_var"]))
    flat = h.reshape(x.shape[0], -1)
    f = jax.nn.relu(flat @ p["fc1_w"].T + p["fc1_b"])
    policy = jax.nn.softmax(f @ p["fcp_w"].T + p["fcp_b"], axis=-1)
    value = jnp.tanh(f @ p["fcv_w"].T + p["fcv_b"])
    return policy, value


if __name__ == "__main__":
    key = jax.random.PRNGKey(0)
    pkey, xkey = jax.random.split(key)
    params = init_params(pkey)

    B = 2
    x = jax.random.normal(xkey, (B, C_IN, L), jnp.float32)   # (2, 4, 64), NCL

    policy, value = jax.block_until_ready(schurnet_forward(x, params))
    ref_policy, ref_value = reference_forward(x, params)

    assert policy.shape == (B, N_POLICY) and value.shape == (B, 1)
    ok = (jnp.allclose(policy, ref_policy, atol=2e-2, rtol=2e-2) and
          jnp.allclose(value, ref_value, atol=2e-2, rtol=2e-2) and
          jnp.allclose(jnp.sum(policy, axis=-1), 1.0, atol=1e-4))
    if not bool(ok):
        raise AssertionError("Pallas output mismatch vs pure-JAX reference")
    print("KERNEL_OK")
</pallas_src>

<mosaic_0001>
module attributes {stable_mosaic.version = 11 : i64} {
  func.func @_schurnet_kernel(%arg0: i32, %arg1: memref<12x128xbf16, #tpu.memory_space<vmem>>, %arg2: memref<64x12xbf16, #tpu.memory_space<vmem>>, %arg3: memref<64x1xf32, #tpu.memory_space<vmem>>, %arg4: memref<64x192xbf16, #tpu.memory_space<vmem>>, %arg5: memref<64x1xf32, #tpu.memory_space<vmem>>, %arg6: memref<64x64x128xbf16, #tpu.memory_space<vmem>>, %arg7: memref<1x128xf32, #tpu.memory_space<vmem>>, %arg8: memref<256x8xbf16, #tpu.memory_space<vmem>>, %arg9: memref<1x8xf32, #tpu.memory_space<vmem>>, %arg10: memref<2x4xf32, #tpu.memory_space<vmem>>, %arg11: memref<2x1xf32, #tpu.memory_space<vmem>>, %arg12: memref<64x2x64xbf16, #tpu.memory_space<vmem>>, %arg13: memref<2x256xf32, #tpu.memory_space<vmem>>) attributes {dimension_semantics = [#tpu.dimension_semantics<arbitrary>], iteration_bounds = array<i64: 2>, scalar_prefetch = 0 : i64, scratch_operands = 2 : i64, tpu.core_type = #tpu.core_type<tc>, window_params = [{pipeline_mode = #tpu.pipeline_mode<synchronous>, transform_indices = @transform_0, window_bounds = array<i64: 12, 128>}, {pipeline_mode = #tpu.pipeline_mode<synchronous>, transform_indices = @transform_1, window_bounds = array<i64: 64, 12>}, {pipeline_mode = #tpu.pipeline_mode<synchronous>, transform_indices = @transform_2, window_bounds = array<i64: 64, 1>}, {pipeline_mode = #tpu.pipeline_mode<synchronous>, transform_indices = @transform_3, window_bounds = array<i64: 64, 192>}, {pipeline_mode = #tpu.pipeline_mode<synchronous>, transform_indices = @transform_4, window_bounds = array<i64: 64, 1>}, {transform_indices = @transform_5, window_bounds = array<i64: 64, 64, 128>}, {transform_indices = @transform_6, window_bounds = array<i64: 1, 128>}, {pipeline_mode = #tpu.pipeline_mode<synchronous>, transform_indices = @transform_7, window_bounds = array<i64: 256, 8>}, {pipeline_mode = #tpu.pipeline_mode<synchronous>, transform_indices = @transform_8, window_bounds = array<i64: 1, 8>}, {pipeline_mode = #tpu.pipeline_mode<synchronous>, transform_indices = @transform_9, window_bounds = array<i64: 2, 4>}, {pipeline_mode = #tpu.pipeline_mode<synchronous>, transform_indices = @transform_10, window_bounds = array<i64: 2, 1>}]} {
    %c0_i32 = arith.constant 0 : i32
    %0 = arith.cmpi eq, %arg0, %c0_i32 : i32
    %1 = arith.extui %0 : i1 to i32
    %c0_i32_0 = arith.constant 0 : i32
    %2 = arith.cmpi ne, %1, %c0_i32_0 : i32
    scf.if %2 {
      %c0_12 = arith.constant 0 : index
      %c0_13 = arith.constant 0 : index
      %19 = vector.load %arg2[%c0_12, %c0_13] : memref<64x12xbf16, #tpu.memory_space<vmem>>, vector<64x12xbf16>
      %c0_14 = arith.constant 0 : index
      %c0_15 = arith.constant 0 : index
      %20 = vector.load %arg1[%c0_14, %c0_15] : memref<12x128xbf16, #tpu.memory_space<vmem>>, vector<12x128xbf16>
      %cst_16 = arith.constant dense<0.000000e+00> : vector<64x128xf32>
      %21 = tpu.matmul %19, %20, %cst_16 {dimension_numbers = #tpu.dot_dimension_numbers<[1], [0], [0], [1], [0, 0, 1, 1], [], []>} : vector<64x12xbf16>, vector<12x128xbf16>, vector<64x128xf32> -> vector<64x128xf32>
      %c0_17 = arith.constant 0 : index
      %c0_18 = arith.constant 0 : index
      %22 = vector.load %arg3[%c0_17, %c0_18] : memref<64x1xf32, #tpu.memory_space<vmem>>, vector<64x1xf32>
      %23 = vector.broadcast %22 : vector<64x1xf32> to vector<64x128xf32>
      %24 = arith.addf %21, %23 : vector<64x128xf32>
      %cst_19 = arith.constant 0.000000e+00 : f32
      %25 = vector.broadcast %cst_19 : f32 to vector<64x128xf32>
      %26 = arith.maximumf %24, %25 : vector<64x128xf32>
      %27 = tpu.iota {dimensions = array<i32: 1>} : vector<64x128xi32>
      %c64_i32 = arith.constant 64 : i32
      %c0_i32_20 = arith.constant 0 : i32
      %28 = arith.cmpi eq, %c64_i32, %c0_i32_20 : i32
      %c1_i32_21 = arith.constant 1 : i32
      %29 = arith.select %28, %c1_i32_21, %c64_i32 : i32
      %30 = vector.broadcast %29 : i32 to vector<64x128xi32>
      %31 = arith.remsi %27, %30 : vector<64x128xi32>
      %c0_i32_22 = arith.constant 0 : i32
      %32 = vector.broadcast %c0_i32_22 : i32 to vector<64x128xi32>
      %33 = arith.cmpi ne, %31, %32 : vector<64x128xi32>
      %c0_i32_23 = arith.constant 0 : i32
      %34 = vector.broadcast %c0_i32_23 : i32 to vector<64x128xi32>
      %35 = arith.cmpi slt, %31, %34 : vector<64x128xi32>
      %c0_i32_24 = arith.constant 0 : i32
      %36 = arith.cmpi slt, %29, %c0_i32_24 : i32
      %37 = vector.broadcast %36 : i1 to vector<64x128xi1>
      %38 = vector.broadcast %37 : vector<64x128xi1> to vector<64x128xi1>
      %39 = arith.xori %35, %38 : vector<64x128xi1>
      %40 = arith.andi %39, %33 : vector<64x128xi1>
      %41 = vector.broadcast %29 : i32 to vector<64x128xi32>
      %42 = arith.addi %31, %41 : vector<64x128xi32>
      %43 = arith.select %40, %42, %31 : vector<64x128xi1>, vector<64x128xi32>
      %c0_i32_25 = arith.constant 0 : i32
      %44 = vector.broadcast %c0_i32_25 : i32 to vector<64x128xi32>
      %45 = arith.cmpi eq, %43, %44 : vector<64x128xi32>
      %c1_i32_26 = arith.constant 1 : i32
      %46 = tpu.dynamic_rotate %26 by %c1_i32_26 dim 1 : vector<64x128xf32>, i32 -> vector<64x128xf32>
      %cst_27 = arith.constant 0.000000e+00 : f32
      %47 = vector.broadcast %cst_27 : f32 to vector<64x128xf32>
      %48 = arith.select %45, %47, %46 : vector<64x128xi1>, vector<64x128xf32>
      %c63_i32 = arith.constant 63 : i32
      %49 = vector.broadcast %c63_i32 : i32 to vector<64x128xi32>
      %50 = arith.cmpi eq, %43, %49 : vector<64x128xi32>
      %c127_i32 = arith.constant 127 : i32
      %51 = tpu.dynamic_rotate %26 by %c127_i32 dim 1 : vector<64x128xf32>, i32 -> vector<64x128xf32>
      %cst_28 = arith.constant 0.000000e+00 : f32
      %52 = vector.broadcast %cst_28 : f32 to vector<64x128xf32>
      %53 = arith.select %50, %52, %51 : vector<64x128xi1>, vector<64x128xf32>
      %54 = tpu.concatenate %48, %26, %53 in 0 : vector<64x128xf32>, vector<64x128xf32>, vector<64x128xf32> -> vector<192x128xf32>
      %55 = arith.truncf %54 : vector<192x128xf32> to vector<192x128xbf16>
      %c0_29 = arith.constant 0 : index
      %c0_30 = arith.constant 0 : index
      %56 = vector.load %arg4[%c0_29, %c0_30] : memref<64x192xbf16, #tpu.memory_space<vmem>>, vector<64x192xbf16>
      %cst_31 = arith.constant dense<0.000000e+00> : vector<64x128xf32>
      %57 = tpu.matmul %56, %55, %cst_31 {dimension_numbers = #tpu.dot_dimension_numbers<[1], [0], [0], [1], [0, 0, 1, 1], [], []>} : vector<64x192xbf16>, vector<192x128xbf16>, vector<64x128xf32> -> vector<64x128xf32>
      %c0_32 = arith.constant 0 : index
      %c0_33 = arith.constant 0 : index
      %58 = vector.load %arg5[%c0_32, %c0_33] : memref<64x1xf32, #tpu.memory_space<vmem>>, vector<64x1xf32>
      %59 = vector.broadcast %58 : vector<64x1xf32> to vector<64x128xf32>
      %60 = arith.addf %57, %59 : vector<64x128xf32>
      %cst_34 = arith.constant 0.000000e+00 : f32
      %61 = vector.broadcast %cst_34 : f32 to vector<64x128xf32>
      %62 = arith.maximumf %60, %61 : vector<64x128xf32>
      %63 = arith.truncf %62 : vector<64x128xf32> to vector<64x128xbf16>
      %64 = vector.extract_strided_slice %63 {offsets = [0, 0], sizes = [64, 64], strides = [1, 1]} : vector<64x128xbf16> to vector<64x64xbf16>
      %c0_35 = arith.constant 0 : index
      %c0_36 = arith.constant 0 : index
      %c0_37 = arith.constant 0 : index
      %65 = vector.load %arg12[%c0_35, %c0_36, %c0_37] : memref<64x2x64xbf16, #tpu.memory_space<vmem>>, vector<64x1x64xbf16>
      %66 = vector.shape_cast %65 : vector<64x1x64xbf16> to vector<64x64xbf16>
      %67 = vector.shape_cast %64 : vector<64x64xbf16> to vector<64x1x64xbf16>
      tpu.vector_store %arg12[%c0_35, %c0_36, %c0_37], %67 {strides = array<i32>} : memref<64x2x64xbf16, #tpu.memory_space<vmem>>, vector<64x1x64xbf16>,
      %68 = vector.extract_strided_slice %63 {offsets = [0, 64], sizes = [64, 64], strides = [1, 1]} : vector<64x128xbf16> to vector<64x64xbf16>
      %c0_38 = arith.constant 0 : index
      %c1 = arith.constant 1 : index
      %c0_39 = arith.constant 0 : index
      %69 = vector.load %arg12[%c0_38, %c1, %c0_39] : memref<64x2x64xbf16, #tpu.memory_space<vmem>>, vector<64x1x64xbf16>
      %70 = vector.shape_cast %69 : vector<64x1x64xbf16> to vector<64x64xbf16>
      %71 = vector.shape_cast %68 : vector<64x64xbf16> to vector<64x1x64xbf16>
      tpu.vector_store %arg12[%c0_38, %c1, %c0_39], %71 {strides = array<i32>} : memref<64x2x64xbf16, #tpu.memory_space<vmem>>, vector<64x1x64xbf16>,
    } else {
    }
    %c0 = arith.constant 0 : index
    %c0_1 = arith.constant 0 : index
    %c0_2 = arith.constant 0 : index
    %3 = vector.load %arg12[%c0, %c0_1, %c0_2] : memref<64x2x64xbf16, #tpu.memory_space<vmem>>, vector<64x2x64xbf16>
    %c0_3 = arith.constant 0 : index
    %c0_4 = arith.constant 0 : index
    %c0_5 = arith.constant 0 : index
    %4 = vector.load %arg6[%c0_3, %c0_4, %c0_5] : memref<64x64x128xbf16, #tpu.memory_space<vmem>>, vector<64x64x128xbf16>
    "tpu.trace_start"() <{level = 10 : i32, message = "cbl,clh->cbh"}> : () -> ()
    %cst = arith.constant dense<0.000000e+00> : vector<64x2x128xf32>
    %5 = tpu.matmul %3, %4, %cst {dimension_numbers = #tpu.dot_dimension_numbers<[2], [1], [1], [2], [0, 0, 0, 1, 1, 2], [0], [0]>} : vector<64x2x64xbf16>, vector<64x64x128xbf16>, vector<64x2x128xf32> -> vector<64x2x128xf32>
    "tpu.trace_stop"() : () -> ()
    %cst_6 = arith.constant dense<0.000000e+00> : vector<2x128xf32>
    %6 = vector.multi_reduction <add>, %5, %cst_6 [0] : vector<64x2x128xf32> to vector<2x128xf32>
    %c0_7 = arith.constant 0 : index
    %c0_8 = arith.constant 0 : index
    %7 = vector.load %arg7[%c0_7, %c0_8] : memref<1x128xf32, #tpu.memory_space<vmem>>, vector<1x128xf32>
    %8 = vector.broadcast %7 : vector<1x128xf32> to vector<2x128xf32>
    %9 = arith.addf %6, %8 : vector<2x128xf32>
    %cst_9 = arith.constant 0.000000e+00 : f32
    %10 = vector.broadcast %cst_9 : f32 to vector<2x128xf32>
    %11 = arith.maximumf %9, %10 : vector<2x128xf32>
    %c128_i32 = arith.constant 128 : i32
    %12 = arith.muli %arg0, %c128_i32 : i32
    %13 = tpu.assume_multiple %12, 128 : i32
    %c0_10 = arith.constant 0 : index
    %14 = arith.index_cast %13 : i32 to index
    %15 = vector.load %arg13[%c0_10, %14] : memref<2x256xf32, #tpu.memory_space<vmem>>, vector<2x128xf32>
    tpu.vector_store %arg13[%c0_10, %14], %11 {strides = array<i32>} : memref<2x256xf32, #tpu.memory_space<vmem>>, vector<2x128xf32>,
    %c1_i32 = arith.constant 1 : i32
    %16 = arith.cmpi eq, %arg0, %c1_i32 : i32
    %17 = arith.extui %16 : i1 to i32
    %c0_i32_11 = arith.constant 0 : i32
    %18 = arith.cmpi ne, %17, %c0_i32_11 : i32
    scf.if %18 {
      %c0_12 = arith.constant 0 : index
      %c0_13 = arith.constant 0 : index
      %19 = vector.load %arg13[%c0_12, %c0_13] : memref<2x256xf32, #tpu.memory_space<vmem>>, vector<2x256xf32>
      %20 = arith.truncf %19 : vector<2x256xf32> to vector<2x256xbf16>
      %c0_14 = arith.constant 0 : index
      %c0_15 = arith.constant 0 : index
      %21 = vector.load %arg8[%c0_14, %c0_15] : memref<256x8xbf16, #tpu.memory_space<vmem>>, vector<256x8xbf16>
      %cst_16 = arith.constant dense<0.000000e+00> : vector<2x8xf32>
      %22 = tpu.matmul %20, %21, %cst_16 {dimension_numbers = #tpu.dot_dimension_numbers<[1], [0], [0], [1], [0, 0, 1, 1], [], []>} : vector<2x256xbf16>, vector<256x8xbf16>, vector<2x8xf32> -> vector<2x8xf32>
      %c0_17 = arith.constant 0 : index
      %c0_18 = arith.constant 0 : index
      %23 = vector.load %arg9[%c0_17, %c0_18] : memref<1x8xf32, #tpu.memory_space<vmem>>, vector<1x8xf32>
      %24 = vector.broadcast %23 : vector<1x8xf32> to vector<2x8xf32>
      %25 = arith.addf %22, %24 : vector<2x8xf32>
      %26 = vector.extract_strided_slice %25 {offsets = [0, 0], sizes = [2, 4], strides = [1, 1]} : vector<2x8xf32> to vector<2x4xf32>
      %cst_19 = arith.constant dense<0xFF800000> : vector<2xf32>
      %27 = vector.multi_reduction <maximumf>, %26, %cst_19 [1] : vector<2x4xf32> to vector<2xf32>
      %28 = vector.shape_cast %27 : vector<2xf32> to vector<2x1xf32>
      %29 = vector.broadcast %28 : vector<2x1xf32> to vector<2x4xf32>
      %30 = arith.subf %26, %29 : vector<2x4xf32>
      %31 = math.exp %30 : vector<2x4xf32>
      %cst_20 = arith.constant dense<0.000000e+00> : vector<2xf32>
      %32 = vector.multi_reduction <add>, %31, %cst_20 [1] : vector<2x4xf32> to vector<2xf32>
      %33 = vector.shape_cast %32 : vector<2xf32> to vector<2x1xf32>
      %34 = vector.broadcast %33 : vector<2x1xf32> to vector<2x4xf32>
      %35 = arith.divf %31, %34 : vector<2x4xf32>
      %c0_21 = arith.constant 0 : index
      %c0_22 = arith.constant 0 : index
      %36 = vector.load %arg10[%c0_21, %c0_22] : memref<2x4xf32, #tpu.memory_space<vmem>>, vector<2x4xf32>
      tpu.vector_store %arg10[%c0_21, %c0_22], %35 {strides = array<i32>} : memref<2x4xf32, #tpu.memory_space<vmem>>, vector<2x4xf32>,
      %37 = vector.extract_strided_slice %25 {offsets = [0, 4], sizes = [2, 1], strides = [1, 1]} : vector<2x8xf32> to vector<2x1xf32>
      %38 = math.tanh %37 : vector<2x1xf32>
      %c0_23 = arith.constant 0 : index
      %c0_24 = arith.constant 0 : index
      %39 = vector.load %arg11[%c0_23, %c0_24] : memref<2x1xf32, #tpu.memory_space<vmem>>, vector<2x1xf32>
      tpu.vector_store %arg11[%c0_23, %c0_24], %38 {strides = array<i32>} : memref<2x1xf32, #tpu.memory_space<vmem>>, vector<2x1xf32>,
    } else {
    }
    return
  }
  func.func @transform_0(%arg0: i32) -> (i32, i32) {
    %c0_i32 = arith.constant 0 : i32
    %c0_i32_0 = arith.constant 0 : i32
    %c0_i32_1 = arith.constant 0 : i32
    return %c0_i32, %c0_i32_0 : i32, i32
  }
  func.func @transform_1(%arg0: i32) -> (i32, i32) {
    %c0_i32 = arith.constant 0 : i32
    %c0_i32_0 = arith.constant 0 : i32
    %c0_i32_1 = arith.constant 0 : i32
    return %c0_i32, %c0_i32_0 : i32, i32
  }
  func.func @transform_2(%arg0: i32) -> (i32, i32) {
    %c0_i32 = arith.constant 0 : i32
    %c0_i32_0 = arith.constant 0 : i32
    %c0_i32_1 = arith.constant 0 : i32
    return %c0_i32, %c0_i32_0 : i32, i32
  }
  func.func @transform_3(%arg0: i32) -> (i32, i32) {
    %c0_i32 = arith.constant 0 : i32
    %c0_i32_0 = arith.constant 0 : i32
    %c0_i32_1 = arith.constant 0 : i32
    return %c0_i32, %c0_i32_0 : i32, i32
  }
  func.func @transform_4(%arg0: i32) -> (i32, i32) {
    %c0_i32 = arith.constant 0 : i32
    %c0_i32_0 = arith.constant 0 : i32
    %c0_i32_1 = arith.constant 0 : i32
    return %c0_i32, %c0_i32_0 : i32, i32
  }
  func.func @transform_5(%arg0: i32) -> (i32, i32, i32) {
    %c0_i32 = arith.constant 0 : i32
    %c0_i32_0 = arith.constant 0 : i32
    %c0_i32_1 = arith.constant 0 : i32
    return %c0_i32, %c0_i32_0, %arg0 : i32, i32, i32
  }
  func.func @transform_6(%arg0: i32) -> (i32, i32) {
    %c0_i32 = arith.constant 0 : i32
    %c0_i32_0 = arith.constant 0 : i32
    return %c0_i32, %arg0 : i32, i32
  }
  func.func @transform_7(%arg0: i32) -> (i32, i32) {
    %c0_i32 = arith.constant 0 : i32
    %c0_i32_0 = arith.constant 0 : i32
    %c0_i32_1 = arith.constant 0 : i32
    return %c0_i32, %c0_i32_0 : i32, i32
  }
  func.func @transform_8(%arg0: i32) -> (i32, i32) {
    %c0_i32 = arith.constant 0 : i32
    %c0_i32_0 = arith.constant 0 : i32
    %c0_i32_1 = arith.constant 0 : i32
    return %c0_i32, %c0_i32_0 : i32, i32
  }
  func.func @transform_9(%arg0: i32) -> (i32, i32) {
    %c0_i32 = arith.constant 0 : i32
    %c0_i32_0 = arith.constant 0 : i32
    %c0_i32_1 = arith.constant 0 : i32
    return %c0_i32, %c0_i32_0 : i32, i32
  }
  func.func @transform_10(%arg0: i32) -> (i32, i32) {
    %c0_i32 = arith.constant 0 : i32
    %c0_i32_0 = arith.constant 0 : i32
    %c0_i32_1 = arith.constant 0 : i32
    return %c0_i32, %c0_i32_0 : i32, i32
  }
}

</mosaic_0001>

<llo_original>
// kernel: tpu_custom_call.1
$region0: #{tpu_custom_call.1}
  #allocation0 [shape = 'u32[]', space=smem, size = 0x4, offset = 0x4, fixed_abs, tag = 'smem constant byte address 0x4 - core index']
  #allocation1 [shape = 'u32[144,128]{1,0:T(1,128)}', space=vmem, size = 0x12000, scoped, tag = 'internal scratch']
  #allocation2 [shape = 'bf16[64,2,64]{2,1,0:T(2,128)(2,1)}', space=vmem, size = 0x8000, scoped, tag = 'scratch operand']
  #allocation3 [shape = 'f32[2,256]{1,0:T(2,128)}', space=vmem, size = 0x800, scoped, tag = 'scratch operand']
  %s0 = inlined_call_operand.hbm [shape: bf16[12,128], index: 0, kind: input, shape index: {}]
  %s1 = inlined_call_operand.vmem [shape: bf16[64,12], index: 1, kind: input, shape index: {}]
  %s2 = inlined_call_operand.vmem [shape: f32[64,1], index: 2, kind: input, shape index: {}]
  %s3 = inlined_call_operand.hbm [shape: bf16[64,192], index: 3, kind: input, shape index: {}]
  %s4 = inlined_call_operand.vmem [shape: f32[64,1], index: 4, kind: input, shape index: {}]
  %s5 = inlined_call_operand.hbm [shape: bf16[64,64,256], index: 5, kind: input, shape index: {}]
  %s6 = inlined_call_operand.hbm [shape: f32[1,256], index: 6, kind: input, shape index: {}]
  %s7 = inlined_call_operand.vmem [shape: bf16[256,8], index: 7, kind: input, shape index: {}]
  %s8 = inlined_call_operand.hbm [shape: f32[1,8], index: 8, kind: input, shape index: {}]
  %s9 = inlined_call_operand.hbm [shape: f32[2,4], index: 9, kind: output, shape index: {0}]
  %s10 = inlined_call_operand.vmem [shape: f32[2,1], index: 10, kind: output, shape index: {1}]
  %11 = xla_tuple %s9, %s10
  %s12 = sld [smem:[#allocation0]]
  $region105: #{tpu_custom_call.1} parent=0
    _
  %s14 = ssub.s32 1, %s12
  %s15 = scalar_select 0, %s14, %s12
  $region1: #{tpu_custom_call.1} parent=0
    #allocation4 [shape = 'u8[4096]{0}', space=vmem, size = 0x1000, scoped, tag = 'input window, operand 0, single buffered']
    #allocation5 [shape = 's32[2]{0}', space=sflag, size = 0x8, scoped, tag = 'scoped memory for tpu_custom_call.1']
    #allocation6 [shape = 's32[2]{0}', space=sflag, size = 0x8, scoped, tag = 'scoped memory for tpu_custom_call.1']
    #allocation7 [shape = 'u8[32768]{0}', space=vmem, size = 0x8000, scoped, tag = 'input window, operand 3, single buffered']
    #allocation8 [shape = 's32[1]{0}', space=sflag, size = 0x4, scoped, tag = 'scoped memory for tpu_custom_call.1']
    #allocation9 [shape = 'u8[2097152]{0}', space=vmem, size = 0x200000, scoped, tag = 'input window, operand 5']
    #allocation10 [shape = 'u8[1024]{0}', space=vmem, size = 0x400, scoped, tag = 'input window, operand 6']
    #allocation11 [shape = 'u8[512]{0}', space=vmem, size = 0x400, scoped, tag = 'input window, operand 8, single buffered']
    #allocation12 [shape = 'u8[1024]{0}', space=vmem, size = 0x400, scoped, tag = 'output window, operand 0, single buffered']
    %16 = vsyncpa [#allocation5], 0
    %17 = vsyncpa [#allocation8], 0
    %18 = vsyncpa [#allocation6], 0
    loop: start=0, step=1, limit=4
    $region2: #{tpu_custom_call.1} parent=1 // loop_pre_header
      _
    $region3: #{tpu_custom_call.1} parent=1 // loop_header
      %s20 = sphi 0, %s24
      %p21 = scmp.ge.s32.totalorder %s20, 4
      %s28 = sphi 0, %s28
      %s30 = sphi 0, %s28
      %s31 = sphi 0, %s30
      %s45 = sphi 0, %s31
      %s49 = sphi 0, %s49
      %s51 = sphi 0, %s49
      %s52 = sphi 0, %s51
      %s66 = sphi 0, %s52
      %s70 = sphi 0, %s70
      %s72 = sphi 0, %s70
      %s73 = sphi 0, %s72
      %s87 = sphi 0, %s73
      %s91 = sphi 0, %s91
      %s93 = sphi 0, %s91
      %s94 = sphi 0, %s93
      %s108 = sphi 0, %s94
      %s112 = sphi 0, %s112
      %s114 = sphi 0, %s112
      %s115 = sphi 0, %s114
      %s129 = sphi 0, %s115
      %s135 = sphi 0, %s137
      %s138 = sphi 0, %s135
      %s139 = sphi 0, %s138
      %s155 = sphi 0, %s139
      %s161 = sphi 0, %s163
      %s164 = sphi 0, %s161
      %s165 = sphi 0, %s164
      %s181 = sphi 0, %s165
      %s185 = sphi 0, %s185
      %s187 = sphi 0, %s185
      %s188 = sphi 0, %s187
      %s202 = sphi 0, %s188
      %s206 = sphi 0, %s206
      %s208 = sphi 0, %s206
      %s209 = sphi 0, %s208
      %s223 = sphi 0, %s209
      %s227 = sphi 0, %s227
      %s229 = sphi 0, %s227
      %s230 = sphi 0, %s229
      %s244 = sphi 0, %s230
      %s248 = sphi 0, %s248
      %s250 = sphi 0, %s248
      %s251 = sphi 0, %s250
      %s265 = sphi 0, %s251
    $region4: #{tpu_custom_call.1} parent=1 // loop_header_branch
      %23 = sbr.rel (%p21) target = $region8
    $region5: #{tpu_custom_call.1} parent=1 // loop_body
      %s25 = ssub.s32 %s20, 1
      %s26 = ssub.s32 %s20, 2
      %s27 = sadd.s32 %s20, 1
      %s29 = sadd.s32 %s28, 1
      %p32 = scmp.eq.s32.totalorder %s20, 1
      %p33 = scmp.ne.s32.totalorder %s28, %s30
      %p34 = scmp.eq.s32.totalorder %s20, 0
      %p35 = por %p33, %p34
      %p36 = scmp.ne.s32.totalorder %s28, %s30
      %p37 = scmp.eq.s32.totalorder %s25, 1
      %p38 = por %p36, %p37
      %p39 = scmp.ne.s32.totalorder %s30, %s31
      %p40 = scmp.eq.s32.totalorder %s25, 0
      %p41 = por %p39, %p40
      %p42 = scmp.ne.s32.totalorder %s30, %s31
      %p43 = scmp.eq.s32.totalorder %s26, 1
      %p44 = por %p42, %p43
      %p46 = scmp.ne.s32.totalorder %s31, %s45
      %p47 = scmp.eq.s32.totalorder %s26, 0
      %p48 = por %p46, %p47
      %s50 = sadd.s32 %s49, 1
      %p53 = scmp.eq.s32.totalorder %s20, 1
      %p54 = scmp.ne.s32.totalorder %s49, %s51
      %p55 = scmp.eq.s32.totalorder %s20, 0
      %p56 = por %p54, %p55
      %p57 = scmp.ne.s32.totalorder %s49, %s51
      %p58 = scmp.eq.s32.totalorder %s25, 1
      %p59 = por %p57, %p58
      %p60 = scmp.ne.s32.totalorder %s51, %s52
      %p61 = scmp.eq.s32.totalorder %s25, 0
      %p62 = por %p60, %p61
      %p63 = scmp.ne.s32.totalorder %s51, %s52
      %p64 = scmp.eq.s32.totalorder %s26, 1
      %p65 = por %p63, %p64
      %p67 = scmp.ne.s32.totalorder %s52, %s66
      %p68 = scmp.eq.s32.totalorder %s26, 0
      %p69 = por %p67, %p68
      %s71 = sadd.s32 %s70, 1
      %p74 = scmp.eq.s32.totalorder %s20, 1
      %p75 = scmp.ne.s32.totalorder %s70, %s72
      %p76 = scmp.eq.s32.totalorder %s20, 0
      %p77 = por %p75, %p76
      %p78 = scmp.ne.s32.totalorder %s70, %s72
      %p79 = scmp.eq.s32.totalorder %s25, 1
      %p80 = por %p78, %p79
      %p81 = scmp.ne.s32.totalorder %s72, %s73
      %p82 = scmp.eq.s32.totalorder %s25, 0
      %p83 = por %p81, %p82
      %p84 = scmp.ne.s32.totalorder %s72, %s73
      %p85 = scmp.eq.s32.totalorder %s26, 1
      %p86 = por %p84, %p85
      %p88 = scmp.ne.s32.totalorder %s73, %s87
      %p89 = scmp.eq.s32.totalorder %s26, 0
      %p90 = por %p88, %p89
      %s92 = sadd.s32 %s91, 1
      %p95 = scmp.eq.s32.totalorder %s20, 1
      %p96 = scmp.ne.s32.totalorder %s91, %s93
      %p97 = scmp.eq.s32.totalorder %s20, 0
      %p98 = por %p96, %p97
      %p99 = scmp.ne.s32.totalorder %s91, %s93
      %p100 = scmp.eq.s32.totalorder %s25, 1
      %p101 = por %p99, %p100
      %p102 = scmp.ne.s32.totalorder %s93, %s94
      %p103 = scmp.eq.s32.totalorder %s25, 0
      %p104 = por %p102, %p103
      %p105 = scmp.ne.s32.totalorder %s93, %s94
      %p106 = scmp.eq.s32.totalorder %s26, 1
      %p107 = por %p105, %p106
      %p109 = scmp.ne.s32.totalorder %s94, %s108
      %p110 = scmp.eq.s32.totalorder %s26, 0
      %p111 = por %p109, %p110
      %s113 = sadd.s32 %s112, 1
      %p116 = scmp.eq.s32.totalorder %s20, 1
      %p117 = scmp.ne.s32.totalorder %s112, %s114
      %p118 = scmp.eq.s32.totalorder %s20, 0
      %p119 = por %p117, %p118
      %p120 = scmp.ne.s32.totalorder %s112, %s114
      %p121 = scmp.eq.s32.totalorder %s25, 1
      %p122 = por %p120, %p121
      %p123 = scmp.ne.s32.totalorder %s114, %s115
      %p124 = scmp.eq.s32.totalorder %s25, 0
      %p125 = por %p123, %p124
      %p126 = scmp.ne.s32.totalorder %s114, %s115
      %p127 = scmp.eq.s32.totalorder %s26, 1
      %p128 = por %p126, %p127
      %p130 = scmp.ne.s32.totalorder %s115, %s129
      %p131 = scmp.eq.s32.totalorder %s26, 0
      %p132 = por %p130, %p131
      %s133 = ssub.s32 %s20, %s27
      %p134 = scmp.eq.s32.totalorder %s133, 0
      %s136 = sadd.s32 %s135, 1
      %s137 = scalar_select %p134, %s135, %s136
      %p140 = pneg %p134
      %p141 = scmp.eq.s32.totalorder %s20, 1
      %p142 = por %p140, %p141
      %p143 = scmp.ne.s32.totalorder %s135, %s138
      %p144 = scmp.eq.s32.totalorder %s20, 0
      %p145 = por %p143, %p144
      %p146 = scmp.ne.s32.totalorder %s135, %s138
      %p147 = scmp.eq.s32.totalorder %s25, 1
      %p148 = por %p146, %p147
      %p149 = scmp.ne.s32.totalorder %s138, %s139
      %p150 = scmp.eq.s32.totalorder %s25, 0
      %p151 = por %p149, %p150
      %p152 = scmp.ne.s32.totalorder %s138, %s139
      %p153 = scmp.eq.s32.totalorder %s26, 1
      %p154 = por %p152, %p153
      %p156 = scmp.ne.s32.totalorder %s139, %s155
      %p157 = scmp.eq.s32.totalorder %s26, 0
      %p158 = por %p156, %p157
      %s159 = ssub.s32 %s20, %s27
      %p160 = scmp.eq.s32.totalorder %s159, 0
      %s162 = sadd.s32 %s161, 1
      %s163 = scalar_select %p160, %s161, %s162
      %p166 = pneg %p160
      %p167 = scmp.eq.s32.totalorder %s20, 1
      %p168 = por %p166, %p167
      %p169 = scmp.ne.s32.totalorder %s161, %s164
      %p170 = scmp.eq.s32.totalorder %s20, 0
      %p171 = por %p169, %p170
      %p172 = scmp.ne.s32.totalorder %s161, %s164
      %p173 = scmp.eq.s32.totalorder %s25, 1
      %p174 = por %p172, %p173
      %p175 = scmp.ne.s32.totalorder %s164, %s165
      %p176 = scmp.eq.s32.totalorder %s25, 0
      %p177 = por %p175, %p176
      %p178 = scmp.ne.s32.totalorder %s164, %s165
      %p179 = scmp.eq.s32.totalorder %s26, 1
      %p180 = por %p178, %p179
      %p182 = scmp.ne.s32.totalorder %s165, %s181
      %p183 = scmp.eq.s32.totalorder %s26, 0
      %p184 = por %p182, %p183
      %s186 = sadd.s32 %s185, 1
      %p189 = scmp.eq.s32.totalorder %s20, 1
      %p190 = scmp.ne.s32.totalorder %s185, %s187
      %p191 = scmp.eq.s32.totalorder %s20, 0
      %p192 = por %p190, %p191
      %p193 = scmp.ne.s32.totalorder %s185, %s187
      %p194 = scmp.eq.s32.totalorder %s25, 1
      %p195 = por %p193, %p194
      %p196 = scmp.ne.s32.totalorder %s187, %s188
      %p197 = scmp.eq.s32.totalorder %s25, 0
      %p198 = por %p196, %p197
      %p199 = scmp.ne.s32.totalorder %s187, %s188
      %p200 = scmp.eq.s32.totalorder %s26, 1
      %p201 = por %p199, %p200
      %p203 = scmp.ne.s32.totalorder %s188, %s202
      %p204 = scmp.eq.s32.totalorder %s26, 0
      %p205 = por %p203, %p204
      %s207 = sadd.s32 %s206, 1
      %p210 = scmp.eq.s32.totalorder %s20, 1
      %p211 = scmp.ne.s32.totalorder %s206, %s208
      %p212 = scmp.eq.s32.totalorder %s20, 0
      %p213 = por %p211, %p212
      %p214 = scmp.ne.s32.totalorder %s206, %s208
      %p215 = scmp.eq.s32.totalorder %s25, 1
      %p216 = por %p214, %p215
      %p217 = scmp.ne.s32.totalorder %s208, %s209
      %p218 = scmp.eq.s32.totalorder %s25, 0
      %p219 = por %p217, %p218
      %p220 = scmp.ne.s32.totalorder %s208, %s209
      %p221 = scmp.eq.s32.totalorder %s26, 1
      %p222 = por %p220, %p221
      %p224 = scmp.ne.s32.totalorder %s209, %s223
      %p225 = scmp.eq.s32.totalorder %s26, 0
      %p226 = por %p224, %p225
      %s228 = sadd.s32 %s227, 1
      %p231 = scmp.eq.s32.totalorder %s20, 1
      %p232 = scmp.ne.s32.totalorder %s227, %s229
      %p233 = scmp.eq.s32.totalorder %s20, 0
      %p234 = por %p232, %p233
      %p235 = scmp.ne.s32.totalorder %s227, %s229
      %p236 = scmp.eq.s32.totalorder %s25, 1
      %p237 = por %p235, %p236
      %p238 = scmp.ne.s32.totalorder %s229, %s230
      %p239 = scmp.eq.s32.totalorder %s25, 0
      %p240 = por %p238, %p239
      %p241 = scmp.ne.s32.totalorder %s229, %s230
      %p242 = scmp.eq.s32.totalorder %s26, 1
      %p243 = por %p241, %p242
      %p245 = scmp.ne.s32.totalorder %s230, %s244
      %p246 = scmp.eq.s32.totalorder %s26, 0
      %p247 = por %p245, %p246
      %s249 = sadd.s32 %s248, 1
      %p252 = scmp.eq.s32.totalorder %s20, 1
      %p253 = scmp.ne.s32.totalorder %s248, %s250
      %p254 = scmp.eq.s32.totalorder %s20, 0
      %p255 = por %p253, %p254
      %p256 = scmp.ne.s32.totalorder %s248, %s250
      %p257 = scmp.eq.s32.totalorder %s25, 1
      %p258 = por %p256, %p257
      %p259 = scmp.ne.s32.totalorder %s250, %s251
      %p260 = scmp.eq.s32.totalorder %s25, 0
      %p261 = por %p259, %p260
      %p262 = scmp.ne.s32.totalorder %s250, %s251
      %p263 = scmp.eq.s32.totalorder %s26, 1
      %p264 = por %p262, %p263
      %p266 = scmp.ne.s32.totalorder %s251, %s265
      %p267 = scmp.eq.s32.totalorder %s26, 0
      %p268 = por %p266, %p267
      %p269 = scmp.le.s32.totalorder 1, %s20
      %p270 = scmp.lt.s32.totalorder %s20, 3
      %p271 = pnand %p269, %p270
      %p272 = pneg %p271
      // Predicated region
      $region9: #{tpu_custom_call.1} parent=5 // pred_check
        _
      $region10: #{tpu_custom_call.1} parent=5 // pred_check_branch
        %274 = sbr.rel (%p271) target = $region12
      $region11: #{tpu_custom_call.1} parent=5 // pred_region
        %s275 = ssub.s32 %s20, 1
        // Predicated region
        $region13: #{tpu_custom_call.1} parent=11 // pred_check
          %p276 = pneg %p41
        $region14: #{tpu_custom_call.1} parent=11 // pred_check_branch
          %278 = sbr.rel (%p276) target = $region16
        $region15: #{tpu_custom_call.1} parent=11 // pred_region
          %s280 = ssub.s32 128, 128
          %281 = vsyncadd [#allocation5], %s280
          %s282 = sshll.u32 [#allocation4], 4
          %s283 = int_to_ptr.vmem [resolvable:$true] %s282
          %288 = dma.hbm_to_vmem [thread:$0]  %s0, 128, %s283, [#allocation5], 64, 64, 4
        $region16: #{tpu_custom_call.1} parent=11 // pred_fallthru
          _
        // Predicated region
        $region17: #{tpu_custom_call.1} parent=11 // pred_check
          %p289 = pneg %p62
        $region18: #{tpu_custom_call.1} parent=11 // pred_check_branch
          %291 = sbr.rel (%p289) target = $region20
        $region19: #{tpu_custom_call.1} parent=11 // pred_region
          _
        $region20: #{tpu_custom_call.1} parent=11 // pred_fallthru
          _
        // Predicated region
        $region21: #{tpu_custom_call.1} parent=11 // pred_check
          %p292 = pneg %p83
        $region22: #{tpu_custom_call.1} parent=11 // pred_check_branch
          %294 = sbr.rel (%p292) target = $region24
        $region23: #{tpu_custom_call.1} parent=11 // pred_region
          _
        $region24: #{tpu_custom_call.1} parent=11 // pred_fallthru
          _
        // Predicated region
        $region25: #{tpu_custom_call.1} parent=11 // pred_check
          %p295 = pneg %p104
        $region26: #{tpu_custom_call.1} parent=11 // pred_check_branch
          %297 = sbr.rel (%p295) target = $region28
        $region27: #{tpu_custom_call.1} parent=11 // pred_region
          %s299 = ssub.s32 1024, 1024
          %300 = vsyncadd [#allocation8], %s299
          %s301 = sshll.u32 [#allocation7], 4
          %s302 = int_to_ptr.vmem [resolvable:$true] %s301
          %307 = dma.hbm_to_vmem [thread:$0]  %s3, 1024, %s302, [#allocation8], 128, 128, 8
        $region28: #{tpu_custom_call.1} parent=11 // pred_fallthru
          _
        // Predicated region
        $region29: #{tpu_custom_call.1} parent=11 // pred_check
          %p308 = pneg %p125
        $region30: #{tpu_custom_call.1} parent=11 // pred_check_branch
          %310 = sbr.rel (%p308) target = $region32
        $region31: #{tpu_custom_call.1} parent=11 // pred_region
          _
        $region32: #{tpu_custom_call.1} parent=11 // pred_fallthru
          _
        // Predicated region
        $region33: #{tpu_custom_call.1} parent=11 // pred_check
          %p311 = pneg %p198
        $region34: #{tpu_custom_call.1} parent=11 // pred_check_branch
          %313 = sbr.rel (%p311) target = $region36
        $region35: #{tpu_custom_call.1} parent=11 // pred_region
          _
        $region36: #{tpu_custom_call.1} parent=11 // pred_fallthru
          _
        // Predicated region
        $region37: #{tpu_custom_call.1} parent=11 // pred_check
          %p314 = pneg %p219
        $region38: #{tpu_custom_call.1} parent=11 // pred_check_branch
          %316 = sbr.rel (%p314) target = $region40
        $region39: #{tpu_custom_call.1} parent=11 // pred_region
          %s318 = ssub.s32 16, 16
          %319 = vsyncadd [#allocation8], %s318
          %s321 = sshll.u32 [#allocation11], 4
          %s322 = int_to_ptr.vmem [resolvable:$true] %s321
          %324 = dma.hbm_to_vmem [thread:$0]  %s8, 16, %s322, [#allocation8]
        $region40: #{tpu_custom_call.1} parent=11 // pred_fallthru
          _
      $region12: #{tpu_custom_call.1} parent=5 // pred_fallthru
        _
      %p325 = scmp.lt.s32.totalorder %s20, 2
      // Predicated region
      $region41: #{tpu_custom_call.1} parent=5 // pred_check
        %p326 = pneg %p325
      $region42: #{tpu_custom_call.1} parent=5 // pred_check_branch
        %328 = sbr.rel (%p326) target = $region44
      $region43: #{tpu_custom_call.1} parent=5 // pred_region
        // Predicated region
        $region45: #{tpu_custom_call.1} parent=43 // pred_check
          %p329 = pneg %p145
        $region46: #{tpu_custom_call.1} parent=43 // pred_check_branch
          %331 = sbr.rel (%p329) target = $region48
        $region47: #{tpu_custom_call.1} parent=43 // pred_region
          %s332 = sand.u32 %s20, 1
          %s333 = scalar_lea.sflag [#allocation5], %s332
          %s334 = sand.u32 %s135, 1
          %s335 = smul.addr %s334, 2048
          %s336 = scalar_lea.vmem [#allocation9], %s335
          %s338 = ssub.s32 32768, 32768
          %339 = vsyncadd %s333, %s338
          %s340 = smul.addr %s20, 64
          %s341 = scalar_lea.hbm %s5, %s340
          %s342 = sshll.u32 %s336, 4
          %s343 = int_to_ptr.vmem [resolvable:$true] %s342
          %348 = dma.hbm_to_vmem [thread:$0]  %s341, 32768, %s343, %s333, 128, 64, 4
        $region48: #{tpu_custom_call.1} parent=43 // pred_fallthru
          _
        // Predicated region
        $region49: #{tpu_custom_call.1} parent=43 // pred_check
          %p349 = pneg %p171
        $region50: #{tpu_custom_call.1} parent=43 // pred_check_branch
          %351 = sbr.rel (%p349) target = $region52
        $region51: #{tpu_custom_call.1} parent=43 // pred_region
          %s352 = sand.u32 %s20, 1
          %s353 = scalar_lea.sflag [#allocation5], %s352
          %s354 = sand.u32 %s161, 1
          %s355 = scalar_lea.vmem [#allocation10], %s354
          %s357 = ssub.s32 16, 16
          %358 = vsyncadd %s353, %s357
          %s359 = smul.addr %s20, 16
          %s360 = scalar_lea.hbm %s6, %s359
          %s362 = sshll.u32 %s355, 4
          %s363 = int_to_ptr.vmem [resolvable:$true] %s362
          %365 = dma.hbm_to_vmem [thread:$0]  %s360, 16, %s363, %s353
        $region52: #{tpu_custom_call.1} parent=43 // pred_fallthru
          _
      $region44: #{tpu_custom_call.1} parent=5 // pred_fallthru
        _
      %p366 = scmp.le.s32.totalorder 1, %s20
      %p367 = scmp.lt.s32.totalorder %s20, 3
      %p368 = pnand %p366, %p367
      %p369 = pneg %p368
      // Predicated region
      $region53: #{tpu_custom_call.1} parent=5 // pred_check
        _
      $region54: #{tpu_custom_call.1} parent=5 // pred_check_branch
        %371 = sbr.rel (%p368) target = $region56
      $region55: #{tpu_custom_call.1} parent=5 // pred_region
        %s372 = ssub.s32 %s20, 1
        // Predicated region
        $region57: #{tpu_custom_call.1} parent=55 // pred_check
          %p373 = pneg %p41
        $region58: #{tpu_custom_call.1} parent=55 // pred_check_branch
          %375 = sbr.rel (%p373) target = $region60
        $region59: #{tpu_custom_call.1} parent=55 // pred_region
          %376 = dma.done [#allocation5], 128
        $region60: #{tpu_custom_call.1} parent=55 // pred_fallthru
          _
        // Predicated region
        $region61: #{tpu_custom_call.1} parent=55 // pred_check
          %p377 = pneg %p104
        $region62: #{tpu_custom_call.1} parent=55 // pred_check_branch
          %379 = sbr.rel (%p377) target = $region64
        $region63: #{tpu_custom_call.1} parent=55 // pred_region
          %380 = dma.done [#allocation8], 1024
        $region64: #{tpu_custom_call.1} parent=55 // pred_fallthru
          _
        %s381 = sand.u32 %s25, 1
        %s382 = scalar_lea.sflag [#allocation5], %s381
        %s383 = sand.u32 %s138, 1
        %s384 = smul.addr %s383, 2048
        %s385 = scalar_lea.vmem [#allocation9], %s384
        // Predicated region
        $region65: #{tpu_custom_call.1} parent=55 // pred_check
          %p386 = pneg %p151
        $region66: #{tpu_custom_call.1} parent=55 // pred_check_branch
          %388 = sbr.rel (%p386) target = $region68
        $region67: #{tpu_custom_call.1} parent=55 // pred_region
          %389 = dma.done %s382, 32768
        $region68: #{tpu_custom_call.1} parent=55 // pred_fallthru
          _
        %s390 = sand.u32 %s25, 1
        %s391 = scalar_lea.sflag [#allocation5], %s390
        %s392 = sand.u32 %s164, 1
        %s393 = scalar_lea.vmem [#allocation10], %s392
        // Predicated region
        $region69: #{tpu_custom_call.1} parent=55 // pred_check
          %p394 = pneg %p177
        $region70: #{tpu_custom_call.1} parent=55 // pred_check_branch
          %396 = sbr.rel (%p394) target = $region72
        $region71: #{tpu_custom_call.1} parent=55 // pred_region
          %397 = dma.done %s391, 16
        $region72: #{tpu_custom_call.1} parent=55 // pred_fallthru
          _
        // Predicated region
        $region73: #{tpu_custom_call.1} parent=55 // pred_check
          %p398 = pneg %p219
        $region74: #{tpu_custom_call.1} parent=55 // pred_check_branch
          %400 = sbr.rel (%p398) target = $region76
        $region75: #{tpu_custom_call.1} parent=55 // pred_region
          %401 = dma.done [#allocation8], 16
        $region76: #{tpu_custom_call.1} parent=55 // pred_fallthru
          _
        %p402 = pneg %p41
        %p403 = pneg %p38
        %p404 = pneg %p62
        %p405 = pneg %p59
        %p406 = pneg %p83
        %p407 = pneg %p80
        %p408 = pneg %p104
        %p409 = pneg %p101
        %p410 = pneg %p125
        %p411 = pneg %p122
        %s412 = sand.u32 %s25, 1
        %s413 = scalar_lea.sflag [#allocation5], %s412
        %s414 = sand.u32 %s138, 1
        %s415 = smul.addr %s414, 2048
        %s416 = scalar_lea.vmem [#allocation9], %s415
        %p417 = pneg %p151
        %p418 = pneg %p148
        %s419 = sand.u32 %s25, 1
        %s420 = scalar_lea.sflag [#allocation5], %s419
        %s421 = sand.u32 %s164, 1
        %s422 = scalar_lea.vmem [#allocation10], %s421
        %p423 = pneg %p177
        %p424 = pneg %p174
        %p425 = pneg %p198
        %p426 = pneg %p195
        %p427 = pneg %p219
        %p428 = pneg %p216
        %p429 = pneg %p240
        %p430 = pneg %p237
        %p431 = pneg %p261
        %p432 = pneg %p258
        %p434 = scmp.eq.s32.totalorder %s25, 0
        // Predicated region
        $region77: #{tpu_custom_call.1} parent=55 // pred_check
          %p435 = pneg %p434
        $region78: #{tpu_custom_call.1} parent=55 // pred_check_branch
          %437 = sbr.rel (%p435) target = $region80
        $region79: #{tpu_custom_call.1} parent=55 // pred_region
          %v438 = vld [vmem:[%s1] sm:$0xf]
          %v439 = vld [vmem:[%s1 + $0x4] sm:$0xf]
          %v440 = vld [vmem:[%s1 + $0x8] sm:$0xf]
          %v441 = vld [vmem:[%s1 + $0xc] sm:$0xf]
          %v442 = vld [vmem:[%s1 + $0x10] sm:$0xf]
          %v443 = vld [vmem:[%s1 + $0x14] sm:$0xf]
          %v444 = vld [vmem:[%s1 + $0x18] sm:$0xf]
          %v445 = vld [vmem:[%s1 + $0x1c] sm:$0xf]
          %v446 = vld [vmem:[#allocation4] sm:$0xf]
          %v447 = vld [vmem:[#allocation4 + $0x4] sm:$0x3]
          %v448 = vld [vmem:[%s2] sm:$0xff]
          %v449 = vld [vmem:[%s2 + $0x8] sm:$0xff]
          %v450 = vld [vmem:[%s2 + $0x10] sm:$0xff]
          %v451 = vld [vmem:[%s2 + $0x18] sm:$0xff]
          %v452 = vld [vmem:[%s2 + $0x20] sm:$0xff]
          %v453 = vld [vmem:[%s2 + $0x28] sm:$0xff]
          %v454 = vld [vmem:[%s2 + $0x30] sm:$0xff]
          %v455 = vld [vmem:[%s2 + $0x38] sm:$0xff]
          %457 = vset.pattern.permute.xlu0 0
          %458 = vperm.xlu0 %457, %v448
          %v459 = vpop.permute.xlu0 %458
          %462 = vset.pattern.permute.xlu0 0
          %463 = vperm.xlu0 %462, %v449
          %v464 = vpop.permute.xlu0 %463
          %467 = vset.pattern.permute.xlu0 0
          %468 = vperm.xlu0 %467, %v450
          %v469 = vpop.permute.xlu0 %468
          %472 = vset.pattern.permute.xlu0 0
          %473 = vperm.xlu0 %472, %v451
          %v474 = vpop.permute.xlu0 %473
          %477 = vset.pattern.permute.xlu0 0
          %478 = vperm.xlu0 %477, %v452
          %v479 = vpop.permute.xlu0 %478
          %482 = vset.pattern.permute.xlu0 0
          %483 = vperm.xlu0 %482, %v453
          %v484 = vpop.permute.xlu0 %483
          %487 = vset.pattern.permute.xlu0 0
          %488 = vperm.xlu0 %487, %v454
          %v489 = vpop.permute.xlu0 %488
          %492 = vset.pattern.permute.xlu0 0
          %493 = vperm.xlu0 %492, %v455
          %v494 = vpop.permute.xlu0 %493
          %v504 = vunpack.c.l.b16 %v438
          %v505 = vunpack.c.l.b16 %v439
          %v506 = vunpack.c.l.b16 %v440
          %v507 = vunpack.c.l.b16 %v441
          %v508 = vunpack.c.l.b16 %v442
          %v509 = vunpack.c.l.b16 %v443
          %v510 = vunpack.c.l.b16 %v444
          %v511 = vunpack.c.l.b16 %v445
          %v512 = vpack.c.b16 %v505, %v504
          %v513 = vpack.c.b16 %v507, %v506
          %v514 = vpack.c.b16 %v509, %v508
          %v515 = vpack.c.b16 %v511, %v510
          %v518 = vunpack.c.l.b16 %v446
          %v519 = vunpack.c.l.b16 %v447
          %v520 = vpack.c.b16 %v519, %v518
          %vm521 = vcmask 97280
          %v523 = vsel %vm521, %v512, 0
          %v526 = vsel %vm521, %v513, 0
          %v529 = vsel %vm521, %v514, 0
          %v532 = vsel %vm521, %v515, 0
          %vm534 = vcmask 1045504
          %v536 = vsel %vm534, %v520, 0
          %538 = vmatprep.subr.bf16.mxu0 0
          %539 = vmatpush1.bf16.msra.mxu0 %v536
          %540 = vmatprep.subr.bf16.mxu0 0
          %541 = vmatpush1.bf16.msra.mxu0 0
          %542 = vmatprep.subr.bf16.mxu0 0
          %543 = vmatpush1.bf16.msra.mxu0 0
          %544 = vmatprep.subr.bf16.mxu0 0
          %545 = vmatpush1.bf16.msra.mxu0 0
          %546 = vmatprep.subr.bf16.mxu0 0
          %547 = vmatpush1.bf16.msra.mxu0 0
          %548 = vmatprep.subr.bf16.mxu0 0
          %549 = vmatpush1.bf16.msra.mxu0 0
          %550 = vmatprep.subr.bf16.mxu0 0
          %551 = vmatpush1.bf16.msra.mxu0 0
          %552 = vmatprep.subr.bf16.mxu0 0
          %553 = vmatpush1.bf16.msra.mxu0 0
          %554 = vmatprep.subr.bf16.mxu0 0
          %555 = vmatpush1.bf16.msra.mxu0 0
          %556 = vmatprep.subr.bf16.mxu0 0
          %557 = vmatpush1.bf16.msra.mxu0 0
          %558 = vmatprep.subr.bf16.mxu0 0
          %559 = vmatpush1.bf16.msra.mxu0 0
          %560 = vmatprep.subr.bf16.mxu0 0
          %561 = vmatpush1.bf16.msra.mxu0 0
          %562 = vmatprep.subr.bf16.mxu0 0
          %563 = vmatpush1.bf16.msra.mxu0 0
          %564 = vmatprep.subr.bf16.mxu0 0
          %565 = vmatpush1.bf16.msra.mxu0 0
          %566 = vmatprep.subr.bf16.mxu0 0
          %567 = vmatpush1.bf16.msra.mxu0 0
          %568 = vmatprep.subr.bf16.mxu0 0
          %569 = vmatpush1.bf16.msra.mxu0 0
          %570 = vmatprep.mubr.bf16.mxu0 0
          %571 = vmatmul.mubr.bf16.gmra.mrb[0].mxu0 %v523
          %v572 = vpop.f32.mrb[0].mxu0
          %v573 = vadd.f32 %v459, %v572
          %v574 = vpop.f32.mrb[0].mxu0
          %v575 = vpop.f32.mrb[0].mxu0
          %v576 = vadd.f32 %v464, %v575
          %v577 = vpop.f32.mrb[0].mxu0
          %578 = vmatprep.mubr.bf16.mxu0 0
          %579 = vmatmul.mubr.bf16.gmra.mrb[0].mxu0 %v526
          %v580 = vpop.f32.mrb[0].mxu0
          %v581 = vadd.f32 %v469, %v580
          %v582 = vpop.f32.mrb[0].mxu0
          %v583 = vpop.f32.mrb[0].mxu0
          %v584 = vadd.f32 %v474, %v583
          %v585 = vpop.f32.mrb[0].mxu0
          %586 = vmatprep.mubr.bf16.mxu0 0
          %587 = vmatmul.mubr.bf16.gmra.mrb[0].mxu0 %v529
          %v588 = vpop.f32.mrb[0].mxu0
          %v589 = vadd.f32 %v479, %v588
          %v590 = vpop.f32.mrb[0].mxu0
          %v591 = vpop.f32.mrb[0].mxu0
          %v592 = vadd.f32 %v484, %v591
          %v593 = vpop.f32.mrb[0].mxu0
          %594 = vmatprep.mubr.bf16.mxu0 0
          %595 = vmatmul.mubr.bf16.gmra.mrb[0].mxu0 %v532
          %v596 = vpop.f32.mrb[0].mxu0
          %v597 = vadd.f32 %v489, %v596
          %v598 = vpop.f32.mrb[0].mxu0
          %v599 = vpop.f32.mrb[0].mxu0
          %v600 = vadd.f32 %v494, %v599
          %v601 = vpop.f32.mrb[0].mxu0
          %602 = vdwg.mxu0
          %v603 = vmax.f32 %v573, 0.0
          %v604 = vmax.f32 %v576, 0.0
          %v605 = vmax.f32 %v581, 0.0
          %v606 = vmax.f32 %v584, 0.0
          %v607 = vmax.f32 %v589, 0.0
          %v608 = vmax.f32 %v592, 0.0
          %v609 = vmax.f32 %v597, 0.0
          %v610 = vmax.f32 %v600, 0.0
          %v611 = vlaneseq
          %v612 = vand.u32 %v611, 127
          %vm613 = vcmp.lt.s32.totalorder %v612, 0
          %v614 = vsub.s32 0, %v612
          %v615 = vsel %vm613, %v614, %v612
          %v616 = vshrl.u32 %v615, 6
          %v617 = vand.u32 %v615, 63
          %v618 = vsub.s32 0, %v617
          %v619 = vsel %vm613, %v618, %v617
          %vm620 = vcmp.ne.s32.totalorder %v619, 0
          %vm621 = vcmp.lt.s32.totalorder %v619, 0
          %vm622 = vmand %vm621, %vm620
          %v623 = vadd.s32 %v619, 64
          %v624 = vsel %vm622, %v623, %v619
          %vm625 = vcmp.eq.s32.totalorder %v624, 0
          %626 = vrot.lane.b32.xlu0 %v603, 1
          %v627 = vpop.permute.xlu0 %626
          %628 = vrot.lane.b32.xlu0 %v604, 1
          %v629 = vpop.permute.xlu0 %628
          %630 = vrot.lane.b32.xlu0 %v605, 1
          %v631 = vpop.permute.xlu0 %630
          %632 = vrot.lane.b32.xlu0 %v606, 1
          %v633 = vpop.permute.xlu0 %632
          %634 = vrot.lane.b32.xlu0 %v607, 1
          %v635 = vpop.permute.xlu0 %634
          %636 = vrot.lane.b32.xlu0 %v608, 1
          %v637 = vpop.permute.xlu0 %636
          %638 = vrot.lane.b32.xlu0 %v609, 1
          %v639 = vpop.permute.xlu0 %638
          %640 = vrot.lane.b32.xlu0 %v610, 1
          %v641 = vpop.permute.xlu0 %640
          %v642 = vsel %vm625, 0.0, %v627
          %v643 = vsel %vm625, 0.0, %v629
          %v644 = vsel %vm625, 0.0, %v631
          %v645 = vsel %vm625, 0.0, %v633
          %v646 = vsel %vm625, 0.0, %v635
          %v647 = vsel %vm625, 0.0, %v637
          %v648 = vsel %vm625, 0.0, %v639
          %v649 = vsel %vm625, 0.0, %v641
          %vm650 = vcmp.eq.s32.totalorder %v624, 63
          %651 = vrot.lane.b32.xlu0 %v603, 127
          %v652 = vpop.permute.xlu0 %651
          %653 = vrot.lane.b32.xlu0 %v604, 127
          %v654 = vpop.permute.xlu0 %653
          %655 = vrot.lane.b32.xlu0 %v605, 127
          %v656 = vpop.permute.xlu0 %655
          %657 = vrot.lane.b32.xlu0 %v606, 127
          %v658 = vpop.permute.xlu0 %657
          %659 = vrot.lane.b32.xlu0 %v607, 127
          %v660 = vpop.permute.xlu0 %659
          %661 = vrot.lane.b32.xlu0 %v608, 127
          %v662 = vpop.permute.xlu0 %661
          %663 = vrot.lane.b32.xlu0 %v609, 127
          %v664 = vpop.permute.xlu0 %663
          %665 = vrot.lane.b32.xlu0 %v610, 127
          %v666 = vpop.permute.xlu0 %665
          %v667 = vsel %vm650, 0.0, %v652
          %v668 = vsel %vm650, 0.0, %v654
          %v669 = vsel %vm650, 0.0, %v656
          %v670 = vsel %vm650, 0.0, %v658
          %v671 = vsel %vm650, 0.0, %v660
          %v672 = vsel %vm650, 0.0, %v662
          %v673 = vsel %vm650, 0.0, %v664
          %v674 = vsel %vm650, 0.0, %v666
          %v675 = vpack.c.bf16 %v643, %v642
          %v676 = vpack.c.bf16 %v645, %v644
          %v677 = vpack.c.bf16 %v647, %v646
          %v678 = vpack.c.bf16 %v649, %v648
          %v679 = vpack.c.bf16 %v604, %v603
          %v680 = vpack.c.bf16 %v606, %v605
          %v681 = vpack.c.bf16 %v608, %v607
          %v682 = vpack.c.bf16 %v610, %v609
          %v683 = vpack.c.bf16 %v668, %v667
          %v684 = vpack.c.bf16 %v670, %v669
          %v685 = vpack.c.bf16 %v672, %v671
          %v686 = vpack.c.bf16 %v674, %v673
          %v687 = vld [vmem:[#allocation7] sm:$0xff]
          %v688 = vld [vmem:[#allocation7 + $0x8] sm:$0xff]
          %v689 = vld [vmem:[#allocation7 + $0x10] sm:$0xff]
          %v690 = vld [vmem:[#allocation7 + $0x18] sm:$0xff]
          %v691 = vld [vmem:[#allocation7 + $0x20] sm:$0xff]
          %v692 = vld [vmem:[#allocation7 + $0x28] sm:$0xff]
          %v693 = vld [vmem:[#allocation7 + $0x30] sm:$0xff]
          %v694 = vld [vmem:[#allocation7 + $0x38] sm:$0xff]
          %v695 = vld [vmem:[%s4] sm:$0xff]
          %v696 = vld [vmem:[%s4 + $0x8] sm:$0xff]
          %v697 = vld [vmem:[%s4 + $0x10] sm:$0xff]
          %v698 = vld [vmem:[%s4 + $0x18] sm:$0xff]
          %v699 = vld [vmem:[%s4 + $0x20] sm:$0xff]
          %v700 = vld [vmem:[%s4 + $0x28] sm:$0xff]
          %v701 = vld [vmem:[%s4 + $0x30] sm:$0xff]
          %v702 = vld [vmem:[%s4 + $0x38] sm:$0xff]
          %704 = vset.pattern.permute.xlu0 0
          %705 = vperm.xlu0 %704, %v695
          %v706 = vpop.permute.xlu0 %705
          %709 = vset.pattern.permute.xlu0 0
          %710 = vperm.xlu0 %709, %v696
          %v711 = vpop.permute.xlu0 %710
          %714 = vset.pattern.permute.xlu0 0
          %715 = vperm.xlu0 %714, %v697
          %v716 = vpop.permute.xlu0 %715
          %719 = vset.pattern.permute.xlu0 0
          %720 = vperm.xlu0 %719, %v698
          %v721 = vpop.permute.xlu0 %720
          %724 = vset.pattern.permute.xlu0 0
          %725 = vperm.xlu0 %724, %v699
          %v726 = vpop.permute.xlu0 %725
          %729 = vset.pattern.permute.xlu0 0
          %730 = vperm.xlu0 %729, %v700
          %v731 = vpop.permute.xlu0 %730
          %734 = vset.pattern.permute.xlu0 0
          %735 = vperm.xlu0 %734, %v701
          %v736 = vpop.permute.xlu0 %735
          %739 = vset.pattern.permute.xlu0 0
          %740 = vperm.xlu0 %739, %v702
          %v741 = vpop.permute.xlu0 %740
          %v751 = vunpack.c.l.b16 %v687
          %v752 = vunpack.c.h.b16 %v687
          %v753 = vunpack.c.l.b16 %v688
          %v754 = vunpack.c.h.b16 %v688
          %v755 = vunpack.c.l.b16 %v689
          %v756 = vunpack.c.h.b16 %v689
          %v757 = vunpack.c.l.b16 %v690
          %v758 = vunpack.c.h.b16 %v690
          %v759 = vunpack.c.l.b16 %v691
          %v760 = vunpack.c.h.b16 %v691
          %v761 = vunpack.c.l.b16 %v692
          %v762 = vunpack.c.h.b16 %v692
          %v763 = vunpack.c.l.b16 %v693
          %v764 = vunpack.c.h.b16 %v693
          %v765 = vunpack.c.l.b16 %v694
          %v766 = vunpack.c.h.b16 %v694
          %v767 = vpack.c.b16 %v753, %v751
          %v768 = vpack.c.b16 %v754, %v752
          %v769 = vpack.c.b16 %v757, %v755
          %v770 = vpack.c.b16 %v758, %v756
          %v771 = vpack.c.b16 %v761, %v759
          %v772 = vpack.c.b16 %v762, %v760
          %v773 = vpack.c.b16 %v765, %v763
          %v774 = vpack.c.b16 %v766, %v764
          %vm779 = vcmask 523264
          %v781 = vsel %vm779, %v768, 0
          %v784 = vsel %vm779, %v770, 0
          %v787 = vsel %vm779, %v772, 0
          %v790 = vsel %vm779, %v774, 0
          %792 = vmatprep.subr.bf16.mxu0 0
          %793 = vmatpush1.bf16.msra.mxu0 %v675
          %794 = vmatprep.subr.bf16.mxu0 0
          %795 = vmatpush1.bf16.msra.mxu0 %v676
          %796 = vmatprep.subr.bf16.mxu0 0
          %797 = vmatpush1.bf16.msra.mxu0 %v677
          %798 = vmatprep.subr.bf16.mxu0 0
          %799 = vmatpush1.bf16.msra.mxu0 %v678
          %800 = vmatprep.subr.bf16.mxu0 0
          %801 = vmatpush1.bf16.msra.mxu0 %v679
          %802 = vmatprep.subr.bf16.mxu0 0
          %803 = vmatpush1.bf16.msra.mxu0 %v680
          %804 = vmatprep.subr.bf16.mxu0 0
          %805 = vmatpush1.bf16.msra.mxu0 %v681
          %806 = vmatprep.subr.bf16.mxu0 0
          %807 = vmatpush1.bf16.msra.mxu0 %v682
          %808 = vmatprep.subr.bf16.mxu0 0
          %809 = vmatpush1.bf16.msra.mxu0 %v683
          %810 = vmatprep.subr.bf16.mxu0 0
          %811 = vmatpush1.bf16.msra.mxu0 %v684
          %812 = vmatprep.subr.bf16.mxu0 0
          %813 = vmatpush1.bf16.msra.mxu0 %v685
          %814 = vmatprep.subr.bf16.mxu0 0
          %815 = vmatpush1.bf16.msra.mxu0 %v686
          %816 = vmatprep.subr.bf16.mxu0 0
          %817 = vmatpush1.bf16.msra.mxu0 0
          %818 = vmatprep.subr.bf16.mxu0 0
          %819 = vmatpush1.bf16.msra.mxu0 0
          %820 = vmatprep.subr.bf16.mxu0 0
          %821 = vmatpush1.bf16.msra.mxu0 0
          %822 = vmatprep.subr.bf16.mxu0 0
          %823 = vmatpush1.bf16.msra.mxu0 0
          %824 = vmatprep.mubr.bf16.mxu0 %v781
          %825 = vmatmul.mubr.bf16.gmra.mrb[0].mxu0 %v767
          %v826 = vpop.f32.mrb[0].mxu0
          %v827 = vadd.f32 %v706, %v826
          %v828 = vpop.f32.mrb[0].mxu0
          %v829 = vpop.f32.mrb[0].mxu0
          %v830 = vadd.f32 %v711, %v829
          %v831 = vpop.f32.mrb[0].mxu0
          %832 = vmatprep.mubr.bf16.mxu0 %v784
          %833 = vmatmul.mubr.bf16.gmra.mrb[0].mxu0 %v769
          %v834 = vpop.f32.mrb[0].mxu0
          %v835 = vadd.f32 %v716, %v834
          %v836 = vpop.f32.mrb[0].mxu0
          %v837 = vpop.f32.mrb[0].mxu0
          %v838 = vadd.f32 %v721, %v837
          %v839 = vpop.f32.mrb[0].mxu0
          %840 = vmatprep.mubr.bf16.mxu0 %v787
          %841 = vmatmul.mubr.bf16.gmra.mrb[0].mxu0 %v771
          %v842 = vpop.f32.mrb[0].mxu0
          %v843 = vadd.f32 %v726, %v842
          %v844 = vpop.f32.mrb[0].mxu0
          %v845 = vpop.f32.mrb[0].mxu0
          %v846 = vadd.f32 %v731, %v845
          %v847 = vpop.f32.mrb[0].mxu0
          %848 = vmatprep.mubr.bf16.mxu0 %v790
          %849 = vmatmul.mubr.bf16.gmra.mrb[0].mxu0 %v773
          %v850 = vpop.f32.mrb[0].mxu0
          %v851 = vadd.f32 %v736, %v850
          %v852 = vpop.f32.mrb[0].mxu0
          %v853 = vpop.f32.mrb[0].mxu0
          %v854 = vadd.f32 %v741, %v853
          %v855 = vpop.f32.mrb[0].mxu0
          %856 = vdwg.mxu0
          %v857 = vmax.f32 %v827, 0.0
          %v858 = vmax.f32 %v830, 0.0
          %v859 = vmax.f32 %v835, 0.0
          %v860 = vmax.f32 %v838, 0.0
          %v861 = vmax.f32 %v843, 0.0
          %v862 = vmax.f32 %v846, 0.0
          %v863 = vmax.f32 %v851, 0.0
          %v864 = vmax.f32 %v854, 0.0
          %v865 = vpack.c.bf16 %v858, %v857
          %v866 = vpack.c.bf16 %v860, %v859
          %v867 = vpack.c.bf16 %v862, %v861
          %v868 = vpack.c.bf16 %v864, %v863
          %v873 = vcombine.high %v865, %v865
          %v875 = vunpack.c.l.s4 1966171168
          %v876 = vunpack.c.0.s8 %v875
          %v877 = vlaneseq
          %v878 = vshrl.u32 %v877, 7
          %v879 = vsub.s32 %v876, %v878
          %v880 = vrot.slane %v865, %v879
          %v882 = vunpack.c.l.s4 1966171168
          %v883 = vunpack.c.0.s8 %v882
          %v884 = vlaneseq
          %v885 = vshrl.u32 %v884, 7
          %v886 = vsub.s32 %v883, %v885
          %v887 = vrot.slane %v873, %v886
          %v888 = vcombine.high %v880, %v880
          %v889 = vcombine.high %v887, %v887
          %v891 = vunpack.c.l.s4 1966171168
          %v892 = vunpack.c.0.s8 %v891
          %v893 = vlaneseq
          %v894 = vshrl.u32 %v893, 7
          %v895 = vsub.s32 %v892, %v894
          %v896 = vrot.slane %v880, %v895
          %v898 = vunpack.c.l.s4 1966171168
          %v899 = vunpack.c.0.s8 %v898
          %v900 = vlaneseq
          %v901 = vshrl.u32 %v900, 7
          %v902 = vsub.s32 %v899, %v901
          %v903 = vrot.slane %v887, %v902
          %v905 = vunpack.c.l.s4 1966171168
          %v906 = vunpack.c.0.s8 %v905
          %v907 = vlaneseq
          %v908 = vshrl.u32 %v907, 7
          %v909 = vsub.s32 %v906, %v908
          %v910 = vrot.slane %v888, %v909
          %v912 = vunpack.c.l.s4 1966171168
          %v913 = vunpack.c.0.s8 %v912
          %v914 = vlaneseq
          %v915 = vshrl.u32 %v914, 7
          %v916 = vsub.s32 %v913, %v915
          %v917 = vrot.slane %v889, %v916
          %v918 = vcombine.high %v896, %v896
          %v919 = vcombine.high %v903, %v903
          %v920 = vcombine.high %v910, %v910
          %v921 = vcombine.high %v917, %v917
          %v922 = vcombine.high %v866, %v866
          %v924 = vunpack.c.l.s4 1966171168
          %v925 = vunpack.c.0.s8 %v924
          %v926 = vlaneseq
          %v927 = vshrl.u32 %v926, 7
          %v928 = vsub.s32 %v925, %v927
          %v929 = vrot.slane %v866, %v928
          %v931 = vunpack.c.l.s4 1966171168
          %v932 = vunpack.c.0.s8 %v931
          %v933 = vlaneseq
          %v934 = vshrl.u32 %v933, 7
          %v935 = vsub.s32 %v932, %v934
          %v936 = vrot.slane %v922, %v935
          %v937 = vcombine.high %v929, %v929
          %v938 = vcombine.high %v936, %v936
          %v940 = vunpack.c.l.s4 1966171168
          %v941 = vunpack.c.0.s8 %v940
          %v942 = vlaneseq
          %v943 = vshrl.u32 %v942, 7
          %v944 = vsub.s32 %v941, %v943
          %v945 = vrot.slane %v929, %v944
          %v947 = vunpack.c.l.s4 1966171168
          %v948 = vunpack.c.0.s8 %v947
          %v949 = vlaneseq
          %v950 = vshrl.u32 %v949, 7
          %v951 = vsub.s32 %v948, %v950
          %v952 = vrot.slane %v936, %v951
          %v954 = vunpack.c.l.s4 1966171168
          %v955 = vunpack.c.0.s8 %v954
          %v956 = vlaneseq
          %v957 = vshrl.u32 %v956, 7
          %v958 = vsub.s32 %v955, %v957
          %v959 = vrot.slane %v937, %v958
          %v961 = vunpack.c.l.s4 1966171168
          %v962 = vunpack.c.0.s8 %v961
          %v963 = vlaneseq
          %v964 = vshrl.u32 %v963, 7
          %v965 = vsub.s32 %v962, %v964
          %v966 = vrot.slane %v938, %v965
          %v967 = vcombine.high %v945, %v945
          %v968 = vcombine.high %v952, %v952
          %v969 = vcombine.high %v959, %v959
          %v970 = vcombine.high %v966, %v966
          %v971 = vcombine.high %v867, %v867
          %v973 = vunpack.c.l.s4 1966171168
          %v974 = vunpack.c.0.s8 %v973
          %v975 = vlaneseq
          %v976 = vshrl.u32 %v975, 7
          %v977 = vsub.s32 %v974, %v976
          %v978 = vrot.slane %v867, %v977
          %v980 = vunpack.c.l.s4 1966171168
          %v981 = vunpack.c.0.s8 %v980
          %v982 = vlaneseq
          %v983 = vshrl.u32 %v982, 7
          %v984 = vsub.s32 %v981, %v983
          %v985 = vrot.slane %v971, %v984
          %v986 = vcombine.high %v978, %v978
          %v987 = vcombine.high %v985, %v985
          %v989 = vunpack.c.l.s4 1966171168
          %v990 = vunpack.c.0.s8 %v989
          %v991 = vlaneseq
          %v992 = vshrl.u32 %v991, 7
          %v993 = vsub.s32 %v990, %v992
          %v994 = vrot.slane %v978, %v993
          %v996 = vunpack.c.l.s4 1966171168
          %v997 = vunpack.c.0.s8 %v996
          %v998 = vlaneseq
          %v999 = vshrl.u32 %v998, 7
          %v1000 = vsub.s32 %v997, %v999
          %v1001 = vrot.slane %v985, %v1000
          %v1003 = vunpack.c.l.s4 1966171168
          %v1004 = vunpack.c.0.s8 %v1003
          %v1005 = vlaneseq
          %v1006 = vshrl.u32 %v1005, 7
          %v1007 = vsub.s32 %v1004, %v1006
          %v1008 = vrot.slane %v986, %v1007
          %v1010 = vunpack.c.l.s4 1966171168
          %v1011 = vunpack.c.0.s8 %v1010
          %v1012 = vlaneseq
          %v1013 = vshrl.u32 %v1012, 7
          %v1014 = vsub.s32 %v1011, %v1013
          %v1015 = vrot.slane %v987, %v1014
          %v1016 = vcombine.high %v994, %v994
          %v1017 = vcombine.high %v1001, %v1001
          %v1018 = vcombine.high %v1008, %v1008
          %v1019 = vcombine.high %v1015, %v1015
          %v1020 = vcombine.high %v868, %v868
          %v1022 = vunpack.c.l.s4 1966171168
          %v1023 = vunpack.c.0.s8 %v1022
          %v1024 = vlaneseq
          %v1025 = vshrl.u32 %v1024, 7
          %v1026 = vsub.s32 %v1023, %v1025
          %v1027 = vrot.slane %v868, %v1026
          %v1029 = vunpack.c.l.s4 1966171168
          %v1030 = vunpack.c.0.s8 %v1029
          %v1031 = vlaneseq
          %v1032 = vshrl.u32 %v1031, 7
          %v1033 = vsub.s32 %v1030, %v1032
          %v1034 = vrot.slane %v1020, %v1033
          %v1035 = vcombine.high %v1027, %v1027
          %v1036 = vcombine.high %v1034, %v1034
          %v1038 = vunpack.c.l.s4 1966171168
          %v1039 = vunpack.c.0.s8 %v1038
          %v1040 = vlaneseq
          %v1041 = vshrl.u32 %v1040, 7
          %v1042 = vsub.s32 %v1039, %v1041
          %v1043 = vrot.slane %v1027, %v1042
          %v1045 = vunpack.c.l.s4 1966171168
          %v1046 = vunpack.c.0.s8 %v1045
          %v1047 = vlaneseq
          %v1048 = vshrl.u32 %v1047, 7
          %v1049 = vsub.s32 %v1046, %v1048
          %v1050 = vrot.slane %v1034, %v1049
          %v1052 = vunpack.c.l.s4 1966171168
          %v1053 = vunpack.c.0.s8 %v1052
          %v1054 = vlaneseq
          %v1055 = vshrl.u32 %v1054, 7
          %v1056 = vsub.s32 %v1053, %v1055
          %v1057 = vrot.slane %v1035, %v1056
          %v1059 = vunpack.c.l.s4 1966171168
          %v1060 = vunpack.c.0.s8 %v1059
          %v1061 = vlaneseq
          %v1062 = vshrl.u32 %v1061, 7
          %v1063 = vsub.s32 %v1060, %v1062
          %v1064 = vrot.slane %v1036, %v1063
          %v1065 = vcombine.high %v1043, %v1043
          %v1066 = vcombine.high %v1050, %v1050
          %v1067 = vcombine.high %v1057, %v1057
          %v1068 = vcombine.high %v1064, %v1064
          %v1069 = vunpack.i.l.s16 %v896
          %v1070 = vunpack.i.h.s16 %v896
          %v1071 = vunpack.i.l.s16 %v910
          %v1072 = vunpack.i.h.s16 %v910
          %v1073 = vunpack.i.l.s16 %v918
          %v1074 = vunpack.i.h.s16 %v918
          %v1075 = vunpack.i.l.s16 %v920
          %v1076 = vunpack.i.h.s16 %v920
          %v1077 = vunpack.i.l.s16 %v903
          %v1078 = vunpack.i.h.s16 %v903
          %v1079 = vunpack.i.l.s16 %v917
          %v1080 = vunpack.i.h.s16 %v917
          %v1081 = vunpack.i.l.s16 %v919
          %v1082 = vunpack.i.h.s16 %v919
          %v1083 = vunpack.i.l.s16 %v921
          %v1084 = vunpack.i.h.s16 %v921
          %v1085 = vunpack.i.l.s16 %v945
          %v1086 = vunpack.i.h.s16 %v945
          %v1087 = vunpack.i.l.s16 %v959
          %v1088 = vunpack.i.h.s16 %v959
          %v1089 = vunpack.i.l.s16 %v967
          %v1090 = vunpack.i.h.s16 %v967
          %v1091 = vunpack.i.l.s16 %v969
          %v1092 = vunpack.i.h.s16 %v969
          %v1093 = vunpack.i.l.s16 %v952
          %v1094 = vunpack.i.h.s16 %v952
          %v1095 = vunpack.i.l.s16 %v966
          %v1096 = vunpack.i.h.s16 %v966
          %v1097 = vunpack.i.l.s16 %v968
          %v1098 = vunpack.i.h.s16 %v968
          %v1099 = vunpack.i.l.s16 %v970
          %v1100 = vunpack.i.h.s16 %v970
          %v1101 = vunpack.i.l.s16 %v994
          %v1102 = vunpack.i.h.s16 %v994
          %v1103 = vunpack.i.l.s16 %v1008
          %v1104 = vunpack.i.h.s16 %v1008
          %v1105 = vunpack.i.l.s16 %v1016
          %v1106 = vunpack.i.h.s16 %v1016
          %v1107 = vunpack.i.l.s16 %v1018
          %v1108 = vunpack.i.h.s16 %v1018
          %v1109 = vunpack.i.l.s16 %v1001
          %v1110 = vunpack.i.h.s16 %v1001
          %v1111 = vunpack.i.l.s16 %v1015
          %v1112 = vunpack.i.h.s16 %v1015
          %v1113 = vunpack.i.l.s16 %v1017
          %v1114 = vunpack.i.h.s16 %v1017
          %v1115 = vunpack.i.l.s16 %v1019
          %v1116 = vunpack.i.h.s16 %v1019
          %v1117 = vunpack.i.l.s16 %v1043
          %v1118 = vunpack.i.h.s16 %v1043
          %v1119 = vunpack.i.l.s16 %v1057
          %v1120 = vunpack.i.h.s16 %v1057
          %v1121 = vunpack.i.l.s16 %v1065
          %v1122 = vunpack.i.h.s16 %v1065
          %v1123 = vunpack.i.l.s16 %v1067
          %v1124 = vunpack.i.h.s16 %v1067
          %v1125 = vunpack.i.l.s16 %v1050
          %v1126 = vunpack.i.h.s16 %v1050
          %v1127 = vunpack.i.l.s16 %v1064
          %v1128 = vunpack.i.h.s16 %v1064
          %v1129 = vunpack.i.l.s16 %v1066
          %v1130 = vunpack.i.h.s16 %v1066
          %v1131 = vunpack.i.l.s16 %v1068
          %v1132 = vunpack.i.h.s16 %v1068
          %v1133 = vpack.i.b16 %v1069, %v1069
          %v1134 = vpack.i.b16 %v1070, %v1070
          %v1135 = vpack.i.b16 %v1071, %v1071
          %v1136 = vpack.i.b16 %v1072, %v1072
          %v1137 = vpack.i.b16 %v1073, %v1073
          %v1138 = vpack.i.b16 %v1074, %v1074
          %v1139 = vpack.i.b16 %v1075, %v1075
          %v1140 = vpack.i.b16 %v1076, %v1076
          %v1141 = vpack.i.b16 %v1077, %v1077
          %v1142 = vpack.i.b16 %v1078, %v1078
          %v1143 = vpack.i.b16 %v1079, %v1079
          %v1144 = vpack.i.b16 %v1080, %v1080
          %v1145 = vpack.i.b16 %v1081, %v1081
          %v1146 = vpack.i.b16 %v1082, %v1082
          %v1147 = vpack.i.b16 %v1083, %v1083
          %v1148 = vpack.i.b16 %v1084, %v1084
          %v1149 = vpack.i.b16 %v1085, %v1085
          %v1150 = vpack.i.b16 %v1086, %v1086
          %v1151 = vpack.i.b16 %v1087, %v1087
          %v1152 = vpack.i.b16 %v1088, %v1088
          %v1153 = vpack.i.b16 %v1089, %v1089
          %v1154 = vpack.i.b16 %v1090, %v1090
          %v1155 = vpack.i.b16 %v1091, %v1091
          %v1156 = vpack.i.b16 %v1092, %v1092
          %v1157 = vpack.i.b16 %v1093, %v1093
          %v1158 = vpack.i.b16 %v1094, %v1094
          %v1159 = vpack.i.b16 %v1095, %v1095
          %v1160 = vpack.i.b16 %v1096, %v1096
          %v1161 = vpack.i.b16 %v1097, %v1097
          %v1162 = vpack.i.b16 %v1098, %v1098
          %v1163 = vpack.i.b16 %v1099, %v1099
          %v1164 = vpack.i.b16 %v1100, %v1100
          %v1165 = vpack.i.b16 %v1101, %v1101
          %v1166 = vpack.i.b16 %v1102, %v1102
          %v1167 = vpack.i.b16 %v1103, %v1103
          %v1168 = vpack.i.b16 %v1104, %v1104
          %v1169 = vpack.i.b16 %v1105, %v1105
          %v1170 = vpack.i.b16 %v1106, %v1106
          %v1171 = vpack.i.b16 %v1107, %v1107
          %v1172 = vpack.i.b16 %v1108, %v1108
          %v1173 = vpack.i.b16 %v1109, %v1109
          %v1174 = vpack.i.b16 %v1110, %v1110
          %v1175 = vpack.i.b16 %v1111, %v1111
          %v1176 = vpack.i.b16 %v1112, %v1112
          %v1177 = vpack.i.b16 %v1113, %v1113
          %v1178 = vpack.i.b16 %v1114, %v1114
          %v1179 = vpack.i.b16 %v1115, %v1115
          %v1180 = vpack.i.b16 %v1116, %v1116
          %v1181 = vpack.i.b16 %v1117, %v1117
          %v1182 = vpack.i.b16 %v1118, %v1118
          %v1183 = vpack.i.b16 %v1119, %v1119
          %v1184 = vpack.i.b16 %v1120, %v1120
          %v1185 = vpack.i.b16 %v1121, %v1121
          %v1186 = vpack.i.b16 %v1122, %v1122
          %v1187 = vpack.i.b16 %v1123, %v1123
          %v1188 = vpack.i.b16 %v1124, %v1124
          %v1189 = vpack.i.b16 %v1125, %v1125
          %v1190 = vpack.i.b16 %v1126, %v1126
          %v1191 = vpack.i.b16 %v1127, %v1127
          %v1192 = vpack.i.b16 %v1128, %v1128
          %v1193 = vpack.i.b16 %v1129, %v1129
          %v1194 = vpack.i.b16 %v1130, %v1130
          %v1195 = vpack.i.b16 %v1131, %v1131
          %v1196 = vpack.i.b16 %v1132, %v1132
          %vm1261 = vcmask 516096
          %vm1262 = vsmask.f32 256
          %vm1263 = vmand %vm1261, %vm1262
          %v1264 = vld [vmem:[#allocation2] sm:$0x1]
          %v1265 = vsel %vm1263, %v1133, %v1264
          %1266 = vst [vmem:[#allocation2] sm:$0x1] %v1265
          %v1267 = vld [vmem:[#allocation2 + $0x1] sm:$0x1]
          %v1268 = vsel %vm1263, %v1134, %v1267
          %1269 = vst [vmem:[#allocation2 + $0x1] sm:$0x1] %v1268
          %v1270 = vld [vmem:[#allocation2 + $0x2] sm:$0x1]
          %v1271 = vsel %vm1263, %v1135, %v1270
          %1272 = vst [vmem:[#allocation2 + $0x2] sm:$0x1] %v1271
          %v1273 = vld [vmem:[#allocation2 + $0x3] sm:$0x1]
          %v1274 = vsel %vm1263, %v1136, %v1273
          %1275 = vst [vmem:[#allocation2 + $0x3] sm:$0x1] %v1274
          %v1276 = vld [vmem:[#allocation2 + $0x4] sm:$0x1]
          %v1277 = vsel %vm1263, %v1137, %v1276
          %1278 = vst [vmem:[#allocation2 + $0x4] sm:$0x1] %v1277
          %v1279 = vld [vmem:[#allocation2 + $0x5] sm:$0x1]
          %v1280 = vsel %vm1263, %v1138, %v1279
          %1281 = vst [vmem:[#allocation2 + $0x5] sm:$0x1] %v1280
          %v1282 = vld [vmem:[#allocation2 + $0x6] sm:$0x1]
          %v1283 = vsel %vm1263, %v1139, %v1282
          %1284 = vst [vmem:[#allocation2 + $0x6] sm:$0x1] %v1283
          %v1285 = vld [vmem:[#allocation2 + $0x7] sm:$0x1]
          %v1286 = vsel %vm1263, %v1140, %v1285
          %1287 = vst [vmem:[#allocation2 + $0x7] sm:$0x1] %v1286
          %v1288 = vld [vmem:[#allocation2 + $0x8] sm:$0x1]
          %v1289 = vsel %vm1263, %v1141, %v1288
          %1290 = vst [vmem:[#allocation2 + $0x8] sm:$0x1] %v1289
          %v1291 = vld [vmem:[#allocation2 + $0x9] sm:$0x1]
          %v1292 = vsel %vm1263, %v1142, %v1291
          %1293 = vst [vmem:[#allocation2 + $0x9] sm:$0x1] %v1292
          %v1294 = vld [vmem:[#allocation2 + $0xa] sm:$0x1]
          %v1295 = vsel %vm1263, %v1143, %v1294
          %1296 = vst [vmem:[#allocation2 + $0xa] sm:$0x1] %v1295
          %v1297 = vld [vmem:[#allocation2 + $0xb] sm:$0x1]
          %v1298 = vsel %vm1263, %v1144, %v1297
          %1299 = vst [vmem:[#allocation2 + $0xb] sm:$0x1] %v1298
          %v1300 = vld [vmem:[#allocation2 + $0xc] sm:$0x1]
          %v1301 = vsel %vm1263, %v1145, %v1300
          %1302 = vst [vmem:[#allocation2 + $0xc] sm:$0x1] %v1301
          %v1303 = vld [vmem:[#allocation2 + $0xd] sm:$0x1]
          %v1304 = vsel %vm1263, %v1146, %v1303
          %1305 = vst [vmem:[#allocation2 + $0xd] sm:$0x1] %v1304
          %v1306 = vld [vmem:[#allocation2 + $0xe] sm:$0x1]
          %v1307 = vsel %vm1263, %v1147, %v1306
          %1308 = vst [vmem:[#allocation2 + $0xe] sm:$0x1] %v1307
          %v1309 = vld [vmem:[#allocation2 + $0xf] sm:$0x1]
          %v1310 = vsel %vm1263, %v1148, %v1309
          %1311 = vst [vmem:[#allocation2 + $0xf] sm:$0x1] %v1310
          %v1312 = vld [vmem:[#allocation2 + $0x10] sm:$0x1]
          %v1313 = vsel %vm1263, %v1149, %v1312
          %1314 = vst [vmem:[#allocation2 + $0x10] sm:$0x1] %v1313
          %v1315 = vld [vmem:[#allocation2 + $0x11] sm:$0x1]
          %v1316 = vsel %vm1263, %v1150, %v1315
          %1317 = vst [vmem:[#allocation2 + $0x11] sm:$0x1] %v1316
          %v1318 = vld [vmem:[#allocation2 + $0x12] sm:$0x1]
          %v1319 = vsel %vm1263, %v1151, %v1318
          %1320 = vst [vmem:[#allocation2 + $0x12] sm:$0x1] %v1319
          %v1321 = vld [vmem:[#allocation2 + $0x13] sm:$0x1]
          %v1322 = vsel %vm1263, %v1152, %v1321
          %1323 = vst [vmem:[#allocation2 + $0x13] sm:$0x1] %v1322
          %v1324 = vld [vmem:[#allocation2 + $0x14] sm:$0x1]
          %v1325 = vsel %vm1263, %v1153, %v1324
          %1326 = vst [vmem:[#allocation2 + $0x14] sm:$0x1] %v1325
          %v1327 = vld [vmem:[#allocation2 + $0x15] sm:$0x1]
          %v1328 = vsel %vm1263, %v1154, %v1327
          %1329 = vst [vmem:[#allocation2 + $0x15] sm:$0x1] %v1328
          %v1330 = vld [vmem:[#allocation2 + $0x16] sm:$0x1]
          %v1331 = vsel %vm1263, %v1155, %v1330
          %1332 = vst [vmem:[#allocation2 + $0x16] sm:$0x1] %v1331
          %v1333 = vld [vmem:[#allocation2 + $0x17] sm:$0x1]
          %v1334 = vsel %vm1263, %v1156, %v1333
          %1335 = vst [vmem:[#allocation2 + $0x17] sm:$0x1] %v1334
          %v1336 = vld [vmem:[#allocation2 + $0x18] sm:$0x1]
          %v1337 = vsel %vm1263, %v1157, %v1336
          %1338 = vst [vmem:[#allocation2 + $0x18] sm:$0x1] %v1337
          %v1339 = vld [vmem:[#allocation2 + $0x19] sm:$0x1]
          %v1340 = vsel %vm1263, %v1158, %v1339
          %1341 = vst [vmem:[#allocation2 + $0x19] sm:$0x1] %v1340
          %v1342 = vld [vmem:[#allocation2 + $0x1a] sm:$0x1]
          %v1343 = vsel %vm1263, %v1159, %v1342
          %1344 = vst [vmem:[#allocation2 + $0x1a] sm:$0x1] %v1343
          %v1345 = vld [vmem:[#allocation2 + $0x1b] sm:$0x1]
          %v1346 = vsel %vm1263, %v1160, %v1345
          %1347 = vst [vmem:[#allocation2 + $0x1b] sm:$0x1] %v1346
          %v1348 = vld [vmem:[#allocation2 + $0x1c] sm:$0x1]
          %v1349 = vsel %vm1263, %v1161, %v1348
          %1350 = vst [vmem:[#allocation2 + $0x1c] sm:$0x1] %v1349
          %v1351 = vld [vmem:[#allocation2 + $0x1d] sm:$0x1]
          %v1352 = vsel %vm1263, %v1162, %v1351
          %1353 = vst [vmem:[#allocation2 + $0x1d] sm:$0x1] %v1352
          %v1354 = vld [vmem:[#allocation2 + $0x1e] sm:$0x1]
          %v1355 = vsel %vm1263, %v1163, %v1354
          %1356 = vst [vmem:[#allocation2 + $0x1e] sm:$0x1] %v1355
          %v1357 = vld [vmem:[#allocation2 + $0x1f] sm:$0x1]
          %v1358 = vsel %vm1263, %v1164, %v1357
          %1359 = vst [vmem:[#allocation2 + $0x1f] sm:$0x1] %v1358
          %v1360 = vld [vmem:[#allocation2 + $0x20] sm:$0x1]
          %v1361 = vsel %vm1263, %v1165, %v1360
          %1362 = vst [vmem:[#allocation2 + $0x20] sm:$0x1] %v1361
          %v1363 = vld [vmem:[#allocation2 + $0x21] sm:$0x1]
          %v1364 = vsel %vm1263, %v1166, %v1363
          %1365 = vst [vmem:[#allocation2 + $0x21] sm:$0x1] %v1364
          %v1366 = vld [vmem:[#allocation2 + $0x22] sm:$0x1]
          %v1367 = vsel %vm1263, %v1167, %v1366
          %1368 = vst [vmem:[#allocation2 + $0x22] sm:$0x1] %v1367
          %v1369 = vld [vmem:[#allocation2 + $0x23] sm:$0x1]
          %v1370 = vsel %vm1263, %v1168, %v1369
          %1371 = vst [vmem:[#allocation2 + $0x23] sm:$0x1] %v1370
          %v1372 = vld [vmem:[#allocation2 + $0x24] sm:$0x1]
          %v1373 = vsel %vm1263, %v1169, %v1372
          %1374 = vst [vmem:[#allocation2 + $0x24] sm:$0x1] %v1373
          %v1375 = vld [vmem:[#allocation2 + $0x25] sm:$0x1]
          %v1376 = vsel %vm1263, %v1170, %v1375
          %1377 = vst [vmem:[#allocation2 + $0x25] sm:$0x1] %v1376
          %v1378 = vld [vmem:[#allocation2 + $0x26] sm:$0x1]
          %v1379 = vsel %vm1263, %v1171, %v1378
          %1380 = vst [vmem:[#allocation2 + $0x26] sm:$0x1] %v1379
          %v1381 = vld [vmem:[#allocation2 + $0x27] sm:$0x1]
          %v1382 = vsel %vm1263, %v1172, %v1381
          %1383 = vst [vmem:[#allocation2 + $0x27] sm:$0x1] %v1382
          %v1384 = vld [vmem:[#allocation2 + $0x28] sm:$0x1]
          %v1385 = vsel %vm1263, %v1173, %v1384
          %1386 = vst [vmem:[#allocation2 + $0x28] sm:$0x1] %v1385
          %v1387 = vld [vmem:[#allocation2 + $0x29] sm:$0x1]
          %v1388 = vsel %vm1263, %v1174, %v1387
          %1389 = vst [vmem:[#allocation2 + $0x29] sm:$0x1] %v1388
          %v1390 = vld [vmem:[#allocation2 + $0x2a] sm:$0x1]
          %v1391 = vsel %vm1263, %v1175, %v1390
          %1392 = vst [vmem:[#allocation2 + $0x2a] sm:$0x1] %v1391
          %v1393 = vld [vmem:[#allocation2 + $0x2b] sm:$0x1]
          %v1394 = vsel %vm1263, %v1176, %v1393
          %1395 = vst [vmem:[#allocation2 + $0x2b] sm:$0x1] %v1394
          %v1396 = vld [vmem:[#allocation2 + $0x2c] sm:$0x1]
          %v1397 = vsel %vm1263, %v1177, %v1396
          %1398 = vst [vmem:[#allocation2 + $0x2c] sm:$0x1] %v1397
          %v1399 = vld [vmem:[#allocation2 + $0x2d] sm:$0x1]
          %v1400 = vsel %vm1263, %v1178, %v1399
          %1401 = vst [vmem:[#allocation2 + $0x2d] sm:$0x1] %v1400
          %v1402 = vld [vmem:[#allocation2 + $0x2e] sm:$0x1]
          %v1403 = vsel %vm1263, %v1179, %v1402
          %1404 = vst [vmem:[#allocation2 + $0x2e] sm:$0x1] %v1403
          %v1405 = vld [vmem:[#allocation2 + $0x2f] sm:$0x1]
          %v1406 = vsel %vm1263, %v1180, %v1405
          %1407 = vst [vmem:[#allocation2 + $0x2f] sm:$0x1] %v1406
          %v1408 = vld [vmem:[#allocation2 + $0x30] sm:$0x1]
          %v1409 = vsel %vm1263, %v1181, %v1408
          %1410 = vst [vmem:[#allocation2 + $0x30] sm:$0x1] %v1409
          %v1411 = vld [vmem:[#allocation2 + $0x31] sm:$0x1]
          %v1412 = vsel %vm1263, %v1182, %v1411
          %1413 = vst [vmem:[#allocation2 + $0x31] sm:$0x1] %v1412
          %v1414 = vld [vmem:[#allocation2 + $0x32] sm:$0x1]
          %v1415 = vsel %vm1263, %v1183, %v1414
          %1416 = vst [vmem:[#allocation2 + $0x32] sm:$0x1] %v1415
          %v1417 = vld [vmem:[#allocation2 + $0x33] sm:$0x1]
          %v1418 = vsel %vm1263, %v1184, %v1417
          %1419 = vst [vmem:[#allocation2 + $0x33] sm:$0x1] %v1418
          %v1420 = vld [vmem:[#allocation2 + $0x34] sm:$0x1]
          %v1421 = vsel %vm1263, %v1185, %v1420
          %1422 = vst [vmem:[#allocation2 + $0x34] sm:$0x1] %v1421
          %v1423 = vld [vmem:[#allocation2 + $0x35] sm:$0x1]
          %v1424 = vsel %vm1263, %v1186, %v1423
          %1425 = vst [vmem:[#allocation2 + $0x35] sm:$0x1] %v1424
          %v1426 = vld [vmem:[#allocation2 + $0x36] sm:$0x1]
          %v1427 = vsel %vm1263, %v1187, %v1426
          %1428 = vst [vmem:[#allocation2 + $0x36] sm:$0x1] %v1427
          %v1429 = vld [vmem:[#allocation2 + $0x37] sm:$0x1]
          %v1430 = vsel %vm1263, %v1188, %v1429
          %1431 = vst [vmem:[#allocation2 + $0x37] sm:$0x1] %v1430
          %v1432 = vld [vmem:[#allocation2 + $0x38] sm:$0x1]
          %v1433 = vsel %vm1263, %v1189, %v1432
          %1434 = vst [vmem:[#allocation2 + $0x38] sm:$0x1] %v1433
          %v1435 = vld [vmem:[#allocation2 + $0x39] sm:$0x1]
          %v1436 = vsel %vm1263, %v1190, %v1435
          %1437 = vst [vmem:[#allocation2 + $0x39] sm:$0x1] %v1436
          %v1438 = vld [vmem:[#allocation2 + $0x3a] sm:$0x1]
          %v1439 = vsel %vm1263, %v1191, %v1438
          %1440 = vst [vmem:[#allocation2 + $0x3a] sm:$0x1] %v1439
          %v1441 = vld [vmem:[#allocation2 + $0x3b] sm:$0x1]
          %v1442 = vsel %vm1263, %v1192, %v1441
          %1443 = vst [vmem:[#allocation2 + $0x3b] sm:$0x1] %v1442
          %v1444 = vld [vmem:[#allocation2 + $0x3c] sm:$0x1]
          %v1445 = vsel %vm1263, %v1193, %v1444
          %1446 = vst [vmem:[#allocation2 + $0x3c] sm:$0x1] %v1445
          %v1447 = vld [vmem:[#allocation2 + $0x3d] sm:$0x1]
          %v1448 = vsel %vm1263, %v1194, %v1447
          %1449 = vst [vmem:[#allocation2 + $0x3d] sm:$0x1] %v1448
          %v1450 = vld [vmem:[#allocation2 + $0x3e] sm:$0x1]
          %v1451 = vsel %vm1263, %v1195, %v1450
          %1452 = vst [vmem:[#allocation2 + $0x3e] sm:$0x1] %v1451
          %v1453 = vld [vmem:[#allocation2 + $0x3f] sm:$0x1]
          %v1454 = vsel %vm1263, %v1196, %v1453
          %1455 = vst [vmem:[#allocation2 + $0x3f] sm:$0x1] %v1454
          %1456 = vrot.lane.b32.xlu0 %v1133, 64
          %v1457 = vpop.permute.xlu0 %1456
          %1458 = vrot.lane.b32.xlu0 %v1134, 64
          %v1459 = vpop.permute.xlu0 %1458
          %1460 = vrot.lane.b32.xlu0 %v1135, 64
          %v1461 = vpop.permute.xlu0 %1460
          %1462 = vrot.lane.b32.xlu0 %v1136, 64
          %v1463 = vpop.permute.xlu0 %1462
          %1464 = vrot.lane.b32.xlu0 %v1137, 64
          %v1465 = vpop.permute.xlu0 %1464
          %1466 = vrot.lane.b32.xlu0 %v1138, 64
          %v1467 = vpop.permute.xlu0 %1466
          %1468 = vrot.lane.b32.xlu0 %v1139, 64
          %v1469 = vpop.permute.xlu0 %1468
          %1470 = vrot.lane.b32.xlu0 %v1140, 64
          %v1471 = vpop.permute.xlu0 %1470
          %1472 = vrot.lane.b32.xlu0 %v1141, 64
          %v1473 = vpop.permute.xlu0 %1472
          %1474 = vrot.lane.b32.xlu0 %v1142, 64
          %v1475 = vpop.permute.xlu0 %1474
          %1476 = vrot.lane.b32.xlu0 %v1143, 64
          %v1477 = vpop.permute.xlu0 %1476
          %1478 = vrot.lane.b32.xlu0 %v1144, 64
          %v1479 = vpop.permute.xlu0 %1478
          %1480 = vrot.lane.b32.xlu0 %v1145, 64
          %v1481 = vpop.permute.xlu0 %1480
          %1482 = vrot.lane.b32.xlu0 %v1146, 64
          %v1483 = vpop.permute.xlu0 %1482
          %1484 = vrot.lane.b32.xlu0 %v1147, 64
          %v1485 = vpop.permute.xlu0 %1484
          %1486 = vrot.lane.b32.xlu0 %v1148, 64
          %v1487 = vpop.permute.xlu0 %1486
          %1488 = vrot.lane.b32.xlu0 %v1149, 64
          %v1489 = vpop.permute.xlu0 %1488
          %1490 = vrot.lane.b32.xlu0 %v1150, 64
          %v1491 = vpop.permute.xlu0 %1490
          %1492 = vrot.lane.b32.xlu0 %v1151, 64
          %v1493 = vpop.permute.xlu0 %1492
          %1494 = vrot.lane.b32.xlu0 %v1152, 64
          %v1495 = vpop.permute.xlu0 %1494
          %1496 = vrot.lane.b32.xlu0 %v1153, 64
          %v1497 = vpop.permute.xlu0 %1496
          %1498 = vrot.lane.b32.xlu0 %v1154, 64
          %v1499 = vpop.permute.xlu0 %1498
          %1500 = vrot.lane.b32.xlu0 %v1155, 64
          %v1501 = vpop.permute.xlu0 %1500
          %1502 = vrot.lane.b32.xlu0 %v1156, 64
          %v1503 = vpop.permute.xlu0 %1502
          %1504 = vrot.lane.b32.xlu0 %v1157, 64
          %v1505 = vpop.permute.xlu0 %1504
          %1506 = vrot.lane.b32.xlu0 %v1158, 64
          %v1507 = vpop.permute.xlu0 %1506
          %1508 = vrot.lane.b32.xlu0 %v1159, 64
          %v1509 = vpop.permute.xlu0 %1508
          %1510 = vrot.lane.b32.xlu0 %v1160, 64
          %v1511 = vpop.permute.xlu0 %1510
          %1512 = vrot.lane.b32.xlu0 %v1161, 64
          %v1513 = vpop.permute.xlu0 %1512
          %1514 = vrot.lane.b32.xlu0 %v1162, 64
          %v1515 = vpop.permute.xlu0 %1514
          %1516 = vrot.lane.b32.xlu0 %v1163, 64
          %v1517 = vpop.permute.xlu0 %1516
          %1518 = vrot.lane.b32.xlu0 %v1164, 64
          %v1519 = vpop.permute.xlu0 %1518
          %1520 = vrot.lane.b32.xlu0 %v1165, 64
          %v1521 = vpop.permute.xlu0 %1520
          %1522 = vrot.lane.b32.xlu0 %v1166, 64
          %v1523 = vpop.permute.xlu0 %1522
          %1524 = vrot.lane.b32.xlu0 %v1167, 64
          %v1525 = vpop.permute.xlu0 %1524
          %1526 = vrot.lane.b32.xlu0 %v1168, 64
          %v1527 = vpop.permute.xlu0 %1526
          %1528 = vrot.lane.b32.xlu0 %v1169, 64
          %v1529 = vpop.permute.xlu0 %1528
          %1530 = vrot.lane.b32.xlu0 %v1170, 64
          %v1531 = vpop.permute.xlu0 %1530
          %1532 = vrot.lane.b32.xlu0 %v1171, 64
          %v1533 = vpop.permute.xlu0 %1532
          %1534 = vrot.lane.b32.xlu0 %v1172, 64
          %v1535 = vpop.permute.xlu0 %1534
          %1536 = vrot.lane.b32.xlu0 %v1173, 64
          %v1537 = vpop.permute.xlu0 %1536
          %1538 = vrot.lane.b32.xlu0 %v1174, 64
          %v1539 = vpop.permute.xlu0 %1538
          %1540 = vrot.lane.b32.xlu0 %v1175, 64
          %v1541 = vpop.permute.xlu0 %1540
          %1542 = vrot.lane.b32.xlu0 %v1176, 64
          %v1543 = vpop.permute.xlu0 %1542
          %1544 = vrot.lane.b32.xlu0 %v1177, 64
          %v1545 = vpop.permute.xlu0 %1544
          %1546 = vrot.lane.b32.xlu0 %v1178, 64
          %v1547 = vpop.permute.xlu0 %1546
          %1548 = vrot.lane.b32.xlu0 %v1179, 64
          %v1549 = vpop.permute.xlu0 %1548
          %1550 = vrot.lane.b32.xlu0 %v1180, 64
          %v1551 = vpop.permute.xlu0 %1550
          %1552 = vrot.lane.b32.xlu0 %v1181, 64
          %v1553 = vpop.permute.xlu0 %1552
          %1554 = vrot.lane.b32.xlu0 %v1182, 64
          %v1555 = vpop.permute.xlu0 %1554
          %1556 = vrot.lane.b32.xlu0 %v1183, 64
          %v1557 = vpop.permute.xlu0 %1556
          %1558 = vrot.lane.b32.xlu0 %v1184, 64
          %v1559 = vpop.permute.xlu0 %1558
          %1560 = vrot.lane.b32.xlu0 %v1185, 64
          %v1561 = vpop.permute.xlu0 %1560
          %1562 = vrot.lane.b32.xlu0 %v1186, 64
          %v1563 = vpop.permute.xlu0 %1562
          %1564 = vrot.lane.b32.xlu0 %v1187, 64
          %v1565 = vpop.permute.xlu0 %1564
          %1566 = vrot.lane.b32.xlu0 %v1188, 64
          %v1567 = vpop.permute.xlu0 %1566
          %1568 = vrot.lane.b32.xlu0 %v1189, 64
          %v1569 = vpop.permute.xlu0 %1568
          %1570 = vrot.lane.b32.xlu0 %v1190, 64
          %v1571 = vpop.permute.xlu0 %1570
          %1572 = vrot.lane.b32.xlu0 %v1191, 64
          %v1573 = vpop.permute.xlu0 %1572
          %1574 = vrot.lane.b32.xlu0 %v1192, 64
          %v1575 = vpop.permute.xlu0 %1574
          %1576 = vrot.lane.b32.xlu0 %v1193, 64
          %v1577 = vpop.permute.xlu0 %1576
          %1578 = vrot.lane.b32.xlu0 %v1194, 64
          %v1579 = vpop.permute.xlu0 %1578
          %1580 = vrot.lane.b32.xlu0 %v1195, 64
          %v1581 = vpop.permute.xlu0 %1580
          %1582 = vrot.lane.b32.xlu0 %v1196, 64
          %v1583 = vpop.permute.xlu0 %1582
          %vm1648 = vsmask.f32 7938
          %vm1649 = vmand %vm1261, %vm1648
          %v1650 = vld [vmem:[#allocation2] sm:$0x1]
          %v1651 = vsel %vm1649, %v1457, %v1650
          %1652 = vst [vmem:[#allocation2] sm:$0x1] %v1651
          %v1653 = vld [vmem:[#allocation2 + $0x1] sm:$0x1]
          %v1654 = vsel %vm1649, %v1459, %v1653
          %1655 = vst [vmem:[#allocation2 + $0x1] sm:$0x1] %v1654
          %v1656 = vld [vmem:[#allocation2 + $0x2] sm:$0x1]
          %v1657 = vsel %vm1649, %v1461, %v1656
          %1658 = vst [vmem:[#allocation2 + $0x2] sm:$0x1] %v1657
          %v1659 = vld [vmem:[#allocation2 + $0x3] sm:$0x1]
          %v1660 = vsel %vm1649, %v1463, %v1659
          %1661 = vst [vmem:[#allocation2 + $0x3] sm:$0x1] %v1660
          %v1662 = vld [vmem:[#allocation2 + $0x4] sm:$0x1]
          %v1663 = vsel %vm1649, %v1465, %v1662
          %1664 = vst [vmem:[#allocation2 + $0x4] sm:$0x1] %v1663
          %v1665 = vld [vmem:[#allocation2 + $0x5] sm:$0x1]
          %v1666 = vsel %vm1649, %v1467, %v1665
          %1667 = vst [vmem:[#allocation2 + $0x5] sm:$0x1] %v1666
          %v1668 = vld [vmem:[#allocation2 + $0x6] sm:$0x1]
          %v1669 = vsel %vm1649, %v1469, %v1668
          %1670 = vst [vmem:[#allocation2 + $0x6] sm:$0x1] %v1669
          %v1671 = vld [vmem:[#allocation2 + $0x7] sm:$0x1]
          %v1672 = vsel %vm1649, %v1471, %v1671
          %1673 = vst [vmem:[#allocation2 + $0x7] sm:$0x1] %v1672
          %v1674 = vld [vmem:[#allocation2 + $0x8] sm:$0x1]
          %v1675 = vsel %vm1649, %v1473, %v1674
          %1676 = vst [vmem:[#allocation2 + $0x8] sm:$0x1] %v1675
          %v1677 = vld [vmem:[#allocation2 + $0x9] sm:$0x1]
          %v1678 = vsel %vm1649, %v1475, %v1677
          %1679 = vst [vmem:[#allocation2 + $0x9] sm:$0x1] %v1678
          %v1680 = vld [vmem:[#allocation2 + $0xa] sm:$0x1]
          %v1681 = vsel %vm1649, %v1477, %v1680
          %1682 = vst [vmem:[#allocation2 + $0xa] sm:$0x1] %v1681
          %v1683 = vld [vmem:[#allocation2 + $0xb] sm:$0x1]
          %v1684 = vsel %vm1649, %v1479, %v1683
          %1685 = vst [vmem:[#allocation2 + $0xb] sm:$0x1] %v1684
          %v1686 = vld [vmem:[#allocation2 + $0xc] sm:$0x1]
          %v1687 = vsel %vm1649, %v1481, %v1686
          %1688 = vst [vmem:[#allocation2 + $0xc] sm:$0x1] %v1687
          %v1689 = vld [vmem:[#allocation2 + $0xd] sm:$0x1]
          %v1690 = vsel %vm1649, %v1483, %v1689
          %1691 = vst [vmem:[#allocation2 + $0xd] sm:$0x1] %v1690
          %v1692 = vld [vmem:[#allocation2 + $0xe] sm:$0x1]
          %v1693 = vsel %vm1649, %v1485, %v1692
          %1694 = vst [vmem:[#allocation2 + $0xe] sm:$0x1] %v1693
          %v1695 = vld [vmem:[#allocation2 + $0xf] sm:$0x1]
          %v1696 = vsel %vm1649, %v1487, %v1695
          %1697 = vst [vmem:[#allocation2 + $0xf] sm:$0x1] %v1696
          %v1698 = vld [vmem:[#allocation2 + $0x10] sm:$0x1]
          %v1699 = vsel %vm1649, %v1489, %v1698
          %1700 = vst [vmem:[#allocation2 + $0x10] sm:$0x1] %v1699
          %v1701 = vld [vmem:[#allocation2 + $0x11] sm:$0x1]
          %v1702 = vsel %vm1649, %v1491, %v1701
          %1703 = vst [vmem:[#allocation2 + $0x11] sm:$0x1] %v1702
          %v1704 = vld [vmem:[#allocation2 + $0x12] sm:$0x1]
          %v1705 = vsel %vm1649, %v1493, %v1704
          %1706 = vst [vmem:[#allocation2 + $0x12] sm:$0x1] %v1705
          %v1707 = vld [vmem:[#allocation2 + $0x13] sm:$0x1]
          %v1708 = vsel %vm1649, %v1495, %v1707
          %1709 = vst [vmem:[#allocation2 + $0x13] sm:$0x1] %v1708
          %v1710 = vld [vmem:[#allocation2 + $0x14] sm:$0x1]
          %v1711 = vsel %vm1649, %v1497, %v1710
          %1712 = vst [vmem:[#allocation2 + $0x14] sm:$0x1] %v1711
          %v1713 = vld [vmem:[#allocation2 + $0x15] sm:$0x1]
          %v1714 = vsel %vm1649, %v1499, %v1713
          %1715 = vst [vmem:[#allocation2 + $0x15] sm:$0x1] %v1714
          %v1716 = vld [vmem:[#allocation2 + $0x16] sm:$0x1]
          %v1717 = vsel %vm1649, %v1501, %v1716
          %1718 = vst [vmem:[#allocation2 + $0x16] sm:$0x1] %v1717
          %v1719 = vld [vmem:[#allocation2 + $0x17] sm:$0x1]
          %v1720 = vsel %vm1649, %v1503, %v1719
          %1721 = vst [vmem:[#allocation2 + $0x17] sm:$0x1] %v1720
          %v1722 = vld [vmem:[#allocation2 + $0x18] sm:$0x1]
          %v1723 = vsel %vm1649, %v1505, %v1722
          %1724 = vst [vmem:[#allocation2 + $0x18] sm:$0x1] %v1723
          %v1725 = vld [vmem:[#allocation2 + $0x19] sm:$0x1]
          %v1726 = vsel %vm1649, %v1507, %v1725
          %1727 = vst [vmem:[#allocation2 + $0x19] sm:$0x1] %v1726
          %v1728 = vld [vmem:[#allocation2 + $0x1a] sm:$0x1]
          %v1729 = vsel %vm1649, %v1509, %v1728
          %1730 = vst [vmem:[#allocation2 + $0x1a] sm:$0x1] %v1729
          %v1731 = vld [vmem:[#allocation2 + $0x1b] sm:$0x1]
          %v1732 = vsel %vm1649, %v1511, %v1731
          %1733 = vst [vmem:[#allocation2 + $0x1b] sm:$0x1] %v1732
          %v1734 = vld [vmem:[#allocation2 + $0x1c] sm:$0x1]
          %v1735 = vsel %vm1649, %v1513, %v1734
          %1736 = vst [vmem:[#allocation2 + $0x1c] sm:$0x1] %v1735
          %v1737 = vld [vmem:[#allocation2 + $0x1d] sm:$0x1]
          %v1738 = vsel %vm1649, %v1515, %v1737
          %1739 = vst [vmem:[#allocation2 + $0x1d] sm:$0x1] %v1738
          %v1740 = vld [vmem:[#allocation2 + $0x1e] sm:$0x1]
          %v1741 = vsel %vm1649, %v1517, %v1740
          %1742 = vst [vmem:[#allocation2 + $0x1e] sm:$0x1] %v1741
          %v1743 = vld [vmem:[#allocation2 + $0x1f] sm:$0x1]
          %v1744 = vsel %vm1649, %v1519, %v1743
          %1745 = vst [vmem:[#allocation2 + $0x1f] sm:$0x1] %v1744
          %v1746 = vld [vmem:[#allocation2 + $0x20] sm:$0x1]
          %v1747 = vsel %vm1649, %v1521, %v1746
          %1748 = vst [vmem:[#allocation2 + $0x20] sm:$0x1] %v1747
          %v1749 = vld [vmem:[#allocation2 + $0x21] sm:$0x1]
          %v1750 = vsel %vm1649, %v1523, %v1749
          %1751 = vst [vmem:[#allocation2 + $0x21] sm:$0x1] %v1750
          %v1752 = vld [vmem:[#allocation2 + $0x22] sm:$0x1]
          %v1753 = vsel %vm1649, %v1525, %v1752
          %1754 = vst [vmem:[#allocation2 + $0x22] sm:$0x1] %v1753
          %v1755 = vld [vmem:[#allocation2 + $0x23] sm:$0x1]
          %v1756 = vsel %vm1649, %v1527, %v1755
          %1757 = vst [vmem:[#allocation2 + $0x23] sm:$0x1] %v1756
          %v1758 = vld [vmem:[#allocation2 + $0x24] sm:$0x1]
          %v1759 = vsel %vm1649, %v1529, %v1758
          %1760 = vst [vmem:[#allocation2 + $0x24] sm:$0x1] %v1759
          %v1761 = vld [vmem:[#allocation2 + $0x25] sm:$0x1]
          %v1762 = vsel %vm1649, %v1531, %v1761
          %1763 = vst [vmem:[#allocation2 + $0x25] sm:$0x1] %v1762
          %v1764 = vld [vmem:[#allocation2 + $0x26] sm:$0x1]
          %v1765 = vsel %vm1649, %v1533, %v1764
          %1766 = vst [vmem:[#allocation2 + $0x26] sm:$0x1] %v1765
          %v1767 = vld [vmem:[#allocation2 + $0x27] sm:$0x1]
          %v1768 = vsel %vm1649, %v1535, %v1767
          %1769 = vst [vmem:[#allocation2 + $0x27] sm:$0x1] %v1768
          %v1770 = vld [vmem:[#allocation2 + $0x28] sm:$0x1]
          %v1771 = vsel %vm1649, %v1537, %v1770
          %1772 = vst [vmem:[#allocation2 + $0x28] sm:$0x1] %v1771
          %v1773 = vld [vmem:[#allocation2 + $0x29] sm:$0x1]
          %v1774 = vsel %vm1649, %v1539, %v1773
          %1775 = vst [vmem:[#allocation2 + $0x29] sm:$0x1] %v1774
          %v1776 = vld [vmem:[#allocation2 + $0x2a] sm:$0x1]
          %v1777 = vsel %vm1649, %v1541, %v1776
          %1778 = vst [vmem:[#allocation2 + $0x2a] sm:$0x1] %v1777
          %v1779 = vld [vmem:[#allocation2 + $0x2b] sm:$0x1]
          %v1780 = vsel %vm1649, %v1543, %v1779
          %1781 = vst [vmem:[#allocation2 + $0x2b] sm:$0x1] %v1780
          %v1782 = vld [vmem:[#allocation2 + $0x2c] sm:$0x1]
          %v1783 = vsel %vm1649, %v1545, %v1782
          %1784 = vst [vmem:[#allocation2 + $0x2c] sm:$0x1] %v1783
          %v1785 = vld [vmem:[#allocation2 + $0x2d] sm:$0x1]
          %v1786 = vsel %vm1649, %v1547, %v1785
          %1787 = vst [vmem:[#allocation2 + $0x2d] sm:$0x1] %v1786
          %v1788 = vld [vmem:[#allocation2 + $0x2e] sm:$0x1]
          %v1789 = vsel %vm1649, %v1549, %v1788
          %1790 = vst [vmem:[#allocation2 + $0x2e] sm:$0x1] %v1789
          %v1791 = vld [vmem:[#allocation2 + $0x2f] sm:$0x1]
          %v1792 = vsel %vm1649, %v1551, %v1791
          %1793 = vst [vmem:[#allocation2 + $0x2f] sm:$0x1] %v1792
          %v1794 = vld [vmem:[#allocation2 + $0x30] sm:$0x1]
          %v1795 = vsel %vm1649, %v1553, %v1794
          %1796 = vst [vmem:[#allocation2 + $0x30] sm:$0x1] %v1795
          %v1797 = vld [vmem:[#allocation2 + $0x31] sm:$0x1]
          %v1798 = vsel %vm1649, %v1555, %v1797
          %1799 = vst [vmem:[#allocation2 + $0x31] sm:$0x1] %v1798
          %v1800 = vld [vmem:[#allocation2 + $0x32] sm:$0x1]
          %v1801 = vsel %vm1649, %v1557, %v1800
          %1802 = vst [vmem:[#allocation2 + $0x32] sm:$0x1] %v1801
          %v1803 = vld [vmem:[#allocation2 + $0x33] sm:$0x1]
          %v1804 = vsel %vm1649, %v1559, %v1803
          %1805 = vst [vmem:[#allocation2 + $0x33] sm:$0x1] %v1804
          %v1806 = vld [vmem:[#allocation2 + $0x34] sm:$0x1]
          %v1807 = vsel %vm1649, %v1561, %v1806
          %1808 = vst [vmem:[#allocation2 + $0x34] sm:$0x1] %v1807
          %v1809 = vld [vmem:[#allocation2 + $0x35] sm:$0x1]
          %v1810 = vsel %vm1649, %v1563, %v1809
          %1811 = vst [vmem:[#allocation2 + $0x35] sm:$0x1] %v1810
          %v1812 = vld [vmem:[#allocation2 + $0x36] sm:$0x1]
          %v1813 = vsel %vm1649, %v1565, %v1812
          %1814 = vst [vmem:[#allocation2 + $0x36] sm:$0x1] %v1813
          %v1815 = vld [vmem:[#allocation2 + $0x37] sm:$0x1]
          %v1816 = vsel %vm1649, %v1567, %v1815
          %1817 = vst [vmem:[#allocation2 + $0x37] sm:$0x1] %v1816
          %v1818 = vld [vmem:[#allocation2 + $0x38] sm:$0x1]
          %v1819 = vsel %vm1649, %v1569, %v1818
          %1820 = vst [vmem:[#allocation2 + $0x38] sm:$0x1] %v1819
          %v1821 = vld [vmem:[#allocation2 + $0x39] sm:$0x1]
          %v1822 = vsel %vm1649, %v1571, %v1821
          %1823 = vst [vmem:[#allocation2 + $0x39] sm:$0x1] %v1822
          %v1824 = vld [vmem:[#allocation2 + $0x3a] sm:$0x1]
          %v1825 = vsel %vm1649, %v1573, %v1824
          %1826 = vst [vmem:[#allocation2 + $0x3a] sm:$0x1] %v1825
          %v1827 = vld [vmem:[#allocation2 + $0x3b] sm:$0x1]
          %v1828 = vsel %vm1649, %v1575, %v1827
          %1829 = vst [vmem:[#allocation2 + $0x3b] sm:$0x1] %v1828
          %v1830 = vld [vmem:[#allocation2 + $0x3c] sm:$0x1]
          %v1831 = vsel %vm1649, %v1577, %v1830
          %1832 = vst [vmem:[#allocation2 + $0x3c] sm:$0x1] %v1831
          %v1833 = vld [vmem:[#allocation2 + $0x3d] sm:$0x1]
          %v1834 = vsel %vm1649, %v1579, %v1833
          %1835 = vst [vmem:[#allocation2 + $0x3d] sm:$0x1] %v1834
          %v1836 = vld [vmem:[#allocation2 + $0x3e] sm:$0x1]
          %v1837 = vsel %vm1649, %v1581, %v1836
          %1838 = vst [vmem:[#allocation2 + $0x3e] sm:$0x1] %v1837
          %v1839 = vld [vmem:[#allocation2 + $0x3f] sm:$0x1]
          %v1840 = vsel %vm1649, %v1583, %v1839
          %1841 = vst [vmem:[#allocation2 + $0x3f] sm:$0x1] %v1840
        $region80: #{tpu_custom_call.1} parent=55 // pred_fallthru
          _
        %v1842 = vld [vmem:[#allocation2] sm:$0x1]
        %v1843 = vld [vmem:[#allocation2 + $0x1] sm:$0x1]
        %v1844 = vld [vmem:[#allocation2 + $0x2] sm:$0x1]
        %v1845 = vld [vmem:[#allocation2 + $0x3] sm:$0x1]
        %v1846 = vld [vmem:[#allocation2 + $0x4] sm:$0x1]
        %v1847 = vld [vmem:[#allocation2 + $0x5] sm:$0x1]
        %v1848 = vld [vmem:[#allocation2 + $0x6] sm:$0x1]
        %v1849 = vld [vmem:[#allocation2 + $0x7] sm:$0x1]
        %v1850 = vld [vmem:[#allocation2 + $0x8] sm:$0x1]
        %v1851 = vld [vmem:[#allocation2 + $0x9] sm:$0x1]
        %v1852 = vld [vmem:[#allocation2 + $0xa] sm:$0x1]
        %v1853 = vld [vmem:[#allocation2 + $0xb] sm:$0x1]
        %v1854 = vld [vmem:[#allocation2 + $0xc] sm:$0x1]
        %v1855 = vld [vmem:[#allocation2 + $0xd] sm:$0x1]
        %v1856 = vld [vmem:[#allocation2 + $0xe] sm:$0x1]
        %v1857 = vld [vmem:[#allocation2 + $0xf] sm:$0x1]
        %v1858 = vld [vmem:[#allocation2 + $0x10] sm:$0x1]
        %v1859 = vld [vmem:[#allocation2 + $0x11] sm:$0x1]
        %v1860 = vld [vmem:[#allocation2 + $0x12] sm:$0x1]
        %v1861 = vld [vmem:[#allocation2 + $0x13] sm:$0x1]
        %v1862 = vld [vmem:[#allocation2 + $0x14] sm:$0x1]
        %v1863 = vld [vmem:[#allocation2 + $0x15] sm:$0x1]
        %v1864 = vld [vmem:[#allocation2 + $0x16] sm:$0x1]
        %v1865 = vld [vmem:[#allocation2 + $0x17] sm:$0x1]
        %v1866 = vld [vmem:[#allocation2 + $0x18] sm:$0x1]
        %v1867 = vld [vmem:[#allocation2 + $0x19] sm:$0x1]
        %v1868 = vld [vmem:[#allocation2 + $0x1a] sm:$0x1]
        %v1869 = vld [vmem:[#allocation2 + $0x1b] sm:$0x1]
        %v1870 = vld [vmem:[#allocation2 + $0x1c] sm:$0x1]
        %v1871 = vld [vmem:[#allocation2 + $0x1d] sm:$0x1]
        %v1872 = vld [vmem:[#allocation2 + $0x1e] sm:$0x1]
        %v1873 = vld [vmem:[#allocation2 + $0x1f] sm:$0x1]
        %v1874 = vld [vmem:[#allocation2 + $0x20] sm:$0x1]
        %v1875 = vld [vmem:[#allocation2 + $0x21] sm:$0x1]
        %v1876 = vld [vmem:[#allocation2 + $0x22] sm:$0x1]
        %v1877 = vld [vmem:[#allocation2 + $0x23] sm:$0x1]
        %v1878 = vld [vmem:[#allocation2 + $0x24] sm:$0x1]
        %v1879 = vld [vmem:[#allocation2 + $0x25] sm:$0x1]
        %v1880 = vld [vmem:[#allocation2 + $0x26] sm:$0x1]
        %v1881 = vld [vmem:[#allocation2 + $0x27] sm:$0x1]
        %v1882 = vld [vmem:[#allocation2 + $0x28] sm:$0x1]
        %v1883 = vld [vmem:[#allocation2 + $0x29] sm:$0x1]
        %v1884 = vld [vmem:[#allocation2 + $0x2a] sm:$0x1]
        %v1885 = vld [vmem:[#allocation2 + $0x2b] sm:$0x1]
        %v1886 = vld [vmem:[#allocation2 + $0x2c] sm:$0x1]
        %v1887 = vld [vmem:[#allocation2 + $0x2d] sm:$0x1]
        %v1888 = vld [vmem:[#allocation2 + $0x2e] sm:$0x1]
        %v1889 = vld [vmem:[#allocation2 + $0x2f] sm:$0x1]
        %v1890 = vld [vmem:[#allocation2 + $0x30] sm:$0x1]
        %v1891 = vld [vmem:[#allocation2 + $0x31] sm:$0x1]
        %v1892 = vld [vmem:[#allocation2 + $0x32] sm:$0x1]
        %v1893 = vld [vmem:[#allocation2 + $0x33] sm:$0x1]
        %v1894 = vld [vmem:[#allocation2 + $0x34] sm:$0x1]
        %v1895 = vld [vmem:[#allocation2 + $0x35] sm:$0x1]
        %v1896 = vld [vmem:[#allocation2 + $0x36] sm:$0x1]
        %v1897 = vld [vmem:[#allocation2 + $0x37] sm:$0x1]
        %v1898 = vld [vmem:[#allocation2 + $0x38] sm:$0x1]
        %v1899 = vld [vmem:[#allocation2 + $0x39] sm:$0x1]
        %v1900 = vld [vmem:[#allocation2 + $0x3a] sm:$0x1]
        %v1901 = vld [vmem:[#allocation2 + $0x3b] sm:$0x1]
        %v1902 = vld [vmem:[#allocation2 + $0x3c] sm:$0x1]
        %v1903 = vld [vmem:[#allocation2 + $0x3d] sm:$0x1]
        %v1904 = vld [vmem:[#allocation2 + $0x3e] sm:$0x1]
        %v1905 = vld [vmem:[#allocation2 + $0x3f] sm:$0x1]
        %v1906 = vld [vmem:[%s385] sm:$0xf]
        %v1907 = vld [vmem:[%s385 + $0x4] sm:$0xf]
        %v1908 = vld [vmem:[%s385 + $0x8] sm:$0xf]
        %v1909 = vld [vmem:[%s385 + $0xc] sm:$0xf]
        %v1910 = vld [vmem:[%s385 + $0x10] sm:$0xf]
        %v1911 = vld [vmem:[%s385 + $0x14] sm:$0xf]
        %v1912 = vld [vmem:[%s385 + $0x18] sm:$0xf]
        %v1913 = vld [vmem:[%s385 + $0x1c] sm:$0xf]
        %v1914 = vld [vmem:[%s385 + $0x20] sm:$0xf]
        %v1915 = vld [vmem:[%s385 + $0x24] sm:$0xf]
        %v1916 = vld [vmem:[%s385 + $0x28] sm:$0xf]
        %v1917 = vld [vmem:[%s385 + $0x2c] sm:$0xf]
        %v1918 = vld [vmem:[%s385 + $0x30] sm:$0xf]
        %v1919 = vld [vmem:[%s385 + $0x34] sm:$0xf]
        %v1920 = vld [vmem:[%s385 + $0x38] sm:$0xf]
        %v1921 = vld [vmem:[%s385 + $0x3c] sm:$0xf]
        %v1922 = vld [vmem:[%s385 + $0x40] sm:$0xf]
        %v1923 = vld [vmem:[%s385 + $0x44] sm:$0xf]
        %v1924 = vld [vmem:[%s385 + $0x48] sm:$0xf]
        %v1925 = vld [vmem:[%s385 + $0x4c] sm:$0xf]
        %v1926 = vld [vmem:[%s385 + $0x50] sm:$0xf]
        %v1927 = vld [vmem:[%s385 + $0x54] sm:$0xf]
        %v1928 = vld [vmem:[%s385 + $0x58] sm:$0xf]
        %v1929 = vld [vmem:[%s385 + $0x5c] sm:$0xf]
        %v1930 = vld [vmem:[%s385 + $0x60] sm:$0xf]
        %v1931 = vld [vmem:[%s385 + $0x64] sm:$0xf]
        %v1932 = vld [vmem:[%s385 + $0x68] sm:$0xf]
        %v1933 = vld [vmem:[%s385 + $0x6c] sm:$0xf]
        %v1934 = vld [vmem:[%s385 + $0x70] sm:$0xf]
        %v1935 = vld [vmem:[%s385 + $0x74] sm:$0xf]
        %v1936 = vld [vmem:[%s385 + $0x78] sm:$0xf]
        %v1937 = vld [vmem:[%s385 + $0x7c] sm:$0xf]
        %v1938 = vld [vmem:[%s385 + $0x80] sm:$0xf]
        %v1939 = vld [vmem:[%s385 + $0x84] sm:$0xf]
        %v1940 = vld [vmem:[%s385 + $0x88] sm:$0xf]
        %v1941 = vld [vmem:[%s385 + $0x8c] sm:$0xf]
        %v1942 = vld [vmem:[%s385 + $0x90] sm:$0xf]
        %v1943 = vld [vmem:[%s385 + $0x94] sm:$0xf]
        %v1944 = vld [vmem:[%s385 + $0x98] sm:$0xf]
        %v1945 = vld [vmem:[%s385 + $0x9c] sm:$0xf]
        %v1946 = vld [vmem:[%s385 + $0xa0] sm:$0xf]
        %v1947 = vld [vmem:[%s385 + $0xa4] sm:$0xf]
        %v1948 = vld [vmem:[%s385 + $0xa8] sm:$0xf]
        %v1949 = vld [vmem:[%s385 + $0xac] sm:$0xf]
        %v1950 = vld [vmem:[%s385 + $0xb0] sm:$0xf]
        %v1951 = vld [vmem:[%s385 + $0xb4] sm:$0xf]
        %v1952 = vld [vmem:[%s385 + $0xb8] sm:$0xf]
        %v1953 = vld [vmem:[%s385 + $0xbc] sm:$0xf]
        %v1954 = vld [vmem:[%s385 + $0xc0] sm:$0xf]
        %v1955 = vld [vmem:[%s385 + $0xc4] sm:$0xf]
        %v1956 = vld [vmem:[%s385 + $0xc8] sm:$0xf]
        %v1957 = vld [vmem:[%s385 + $0xcc] sm:$0xf]
        %v1958 = vld [vmem:[%s385 + $0xd0] sm:$0xf]
        %v1959 = vld [vmem:[%s385 + $0xd4] sm:$0xf]
        %v1960 = vld [vmem:[%s385 + $0xd8] sm:$0xf]
        %v1961 = vld [vmem:[%s385 + $0xdc] sm:$0xf]
        %v1962 = vld [vmem:[%s385 + $0xe0] sm:$0xf]
        %v1963 = vld [vmem:[%s385 + $0xe4] sm:$0xf]
        %v1964 = vld [vmem:[%s385 + $0xe8] sm:$0xf]
        %v1965 = vld [vmem:[%s385 + $0xec] sm:$0xf]
        %v1966 = vld [vmem:[%s385 + $0xf0] sm:$0xf]
        %v1967 = vld [vmem:[%s385 + $0xf4] sm:$0xf]
        %v1968 = vld [vmem:[%s385 + $0xf8] sm:$0xf]
        %v1969 = vld [vmem:[%s385 + $0xfc] sm:$0xf]
        %v1970 = vld [vmem:[%s385 + $0x100] sm:$0xf]
        %v1971 = vld [vmem:[%s385 + $0x104] sm:$0xf]
        %v1972 = vld [vmem:[%s385 + $0x108] sm:$0xf]
        %v1973 = vld [vmem:[%s385 + $0x10c] sm:$0xf]
        %v1974 = vld [vmem:[%s385 + $0x110] sm:$0xf]
        %v1975 = vld [vmem:[%s385 + $0x114] sm:$0xf]
        %v1976 = vld [vmem:[%s385 + $0x118] sm:$0xf]
        %v1977 = vld [vmem:[%s385 + $0x11c] sm:$0xf]
        %v1978 = vld [vmem:[%s385 + $0x120] sm:$0xf]
        %v1979 = vld [vmem:[%s385 + $0x124] sm:$0xf]
        %v1980 = vld [vmem:[%s385 + $0x128] sm:$0xf]
        %v1981 = vld [vmem:[%s385 + $0x12c] sm:$0xf]
        %v1982 = vld [vmem:[%s385 + $0x130] sm:$0xf]
        %v1983 = vld [vmem:[%s385 + $0x134] sm:$0xf]
        %v1984 = vld [vmem:[%s385 + $0x138] sm:$0xf]
        %v1985 = vld [vmem:[%s385 + $0x13c] sm:$0xf]
        %v1986 = vld [vmem:[%s385 + $0x140] sm:$0xf]
        %v1987 = vld [vmem:[%s385 + $0x144] sm:$0xf]
        %v1988 = vld [vmem:[%s385 + $0x148] sm:$0xf]
        %v1989 = vld [vmem:[%s385 + $0x14c] sm:$0xf]
        %v1990 = vld [vmem:[%s385 + $0x150] sm:$0xf]
        %v1991 = vld [vmem:[%s385 + $0x154] sm:$0xf]
        %v1992 = vld [vmem:[%s385 + $0x158] sm:$0xf]
        %v1993 = vld [vmem:[%s385 + $0x15c] sm:$0xf]
        %v1994 = vld [vmem:[%s385 + $0x160] sm:$0xf]
        %v1995 = vld [vmem:[%s385 + $0x164] sm:$0xf]
        %v1996 = vld [vmem:[%s385 + $0x168] sm:$0xf]
        %v1997 = vld [vmem:[%s385 + $0x16c] sm:$0xf]
        %v1998 = vld [vmem:[%s385 + $0x170] sm:$0xf]
        %v1999 = vld [vmem:[%s385 + $0x174] sm:$0xf]
        %v2000 = vld [vmem:[%s385 + $0x178] sm:$0xf]
        %v2001 = vld [vmem:[%s385 + $0x17c] sm:$0xf]
        %v2002 = vld [vmem:[%s385 + $0x180] sm:$0xf]
        %v2003 = vld [vmem:[%s385 + $0x184] sm:$0xf]
        %v2004 = vld [vmem:[%s385 + $0x188] sm:$0xf]
        %v2005 = vld [vmem:[%s385 + $0x18c] sm:$0xf]
        %v2006 = vld [vmem:[%s385 + $0x190] sm:$0xf]
        %v2007 = vld [vmem:[%s385 + $0x194] sm:$0xf]
        %v2008 = vld [vmem:[%s385 + $0x198] sm:$0xf]
        %v2009 = vld [vmem:[%s385 + $0x19c] sm:$0xf]
        %v2010 = vld [vmem:[%s385 + $0x1a0] sm:$0xf]
        %v2011 = vld [vmem:[%s385 + $0x1a4] sm:$0xf]
        %v2012 = vld [vmem:[%s385 + $0x1a8] sm:$0xf]
        %v2013 = vld [vmem:[%s385 + $0x1ac] sm:$0xf]
        %v2014 = vld [vmem:[%s385 + $0x1b0] sm:$0xf]
        %v2015 = vld [vmem:[%s385 + $0x1b4] sm:$0xf]
        %v2016 = vld [vmem:[%s385 + $0x1b8] sm:$0xf]
        %v2017 = vld [vmem:[%s385 + $0x1bc] sm:$0xf]
        %v2018 = vld [vmem:[%s385 + $0x1c0] sm:$0xf]
        %v2019 = vld [vmem:[%s385 + $0x1c4] sm:$0xf]
        %v2020 = vld [vmem:[%s385 + $0x1c8] sm:$0xf]
        %v2021 = vld [vmem:[%s385 + $0x1cc] sm:$0xf]
        %v2022 = vld [vmem:[%s385 + $0x1d0] sm:$0xf]
        %v2023 = vld [vmem:[%s385 + $0x1d4] sm:$0xf]
        %v2024 = vld [vmem:[%s385 + $0x1d8] sm:$0xf]
        %v2025 = vld [vmem:[%s385 + $0x1dc] sm:$0xf]
        %v2026 = vld [vmem:[%s385 + $0x1e0] sm:$0xf]
        %v2027 = vld [vmem:[%s385 + $0x1e4] sm:$0xf]
        %v2028 = vld [vmem:[%s385 + $0x1e8] sm:$0xf]
        %v2029 = vld [vmem:[%s385 + $0x1ec] sm:$0xf]
        %v2030 = vld [vmem:[%s385 + $0x1f0] sm:$0xf]
        %v2031 = vld [vmem:[%s385 + $0x1f4] sm:$0xf]
        %v2032 = vld [vmem:[%s385 + $0x1f8] sm:$0xf]
        %v2033 = vld [vmem:[%s385 + $0x1fc] sm:$0xf]
        %v2034 = vld [vmem:[%s385 + $0x200] sm:$0xf]
        %v2035 = vld [vmem:[%s385 + $0x204] sm:$0xf]
        %v2036 = vld [vmem:[%s385 + $0x208] sm:$0xf]
        %v2037 = vld [vmem:[%s385 + $0x20c] sm:$0xf]
        %v2038 = vld [vmem:[%s385 + $0x210] sm:$0xf]
        %v2039 = vld [vmem:[%s385 + $0x214] sm:$0xf]
        %v2040 = vld [vmem:[%s385 + $0x218] sm:$0xf]
        %v2041 = vld [vmem:[%s385 + $0x21c] sm:$0xf]
        %v2042 = vld [vmem:[%s385 + $0x220] sm:$0xf]
        %v2043 = vld [vmem:[%s385 + $0x224] sm:$0xf]
        %v2044 = vld [vmem:[%s385 + $0x228] sm:$0xf]
        %v2045 = vld [vmem:[%s385 + $0x22c] sm:$0xf]
        %v2046 = vld [vmem:[%s385 + $0x230] sm:$0xf]
        %v2047 = vld [vmem:[%s385 + $0x234] sm:$0xf]
        %v2048 = vld [vmem:[%s385 + $0x238] sm:$0xf]
        %v2049 = vld [vmem:[%s385 + $0x23c] sm:$0xf]
        %v2050 = vld [vmem:[%s385 + $0x240] sm:$0xf]
        %v2051 = vld [vmem:[%s385 + $0x244] sm:$0xf]
        %v2052 = vld [vmem:[%s385 + $0x248] sm:$0xf]
        %v2053 = vld [vmem:[%s385 + $0x24c] sm:$0xf]
        %v2054 = vld [vmem:[%s385 + $0x250] sm:$0xf]
        %v2055 = vld [vmem:[%s385 + $0x254] sm:$0xf]
        %v2056 = vld [vmem:[%s385 + $0x258] sm:$0xf]
        %v2057 = vld [vmem:[%s385 + $0x25c] sm:$0xf]
        %v2058 = vld [vmem:[%s385 + $0x260] sm:$0xf]
        %v2059 = vld [vmem:[%s385 + $0x264] sm:$0xf]
        %v2060 = vld [vmem:[%s385 + $0x268] sm:$0xf]
        %v2061 = vld [vmem:[%s385 + $0x26c] sm:$0xf]
        %v2062 = vld [vmem:[%s385 + $0x270] sm:$0xf]
        %v2063 = vld [vmem:[%s385 + $0x274] sm:$0xf]
        %v2064 = vld [vmem:[%s385 + $0x278] sm:$0xf]
        %v2065 = vld [vmem:[%s385 + $0x27c] sm:$0xf]
        %v2066 = vld [vmem:[%s385 + $0x280] sm:$0xf]
        %v2067 = vld [vmem:[%s385 + $0x284] sm:$0xf]
        %v2068 = vld [vmem:[%s385 + $0x288] sm:$0xf]
        %v2069 = vld [vmem:[%s385 + $0x28c] sm:$0xf]
        %v2070 = vld [vmem:[%s385 + $0x290] sm:$0xf]
        %v2071 = vld [vmem:[%s385 + $0x294] sm:$0xf]
        %v2072 = vld [vmem:[%s385 + $0x298] sm:$0xf]
        %v2073 = vld [vmem:[%s385 + $0x29c] sm:$0xf]
        %v2074 = vld [vmem:[%s385 + $0x2a0] sm:$0xf]
        %v2075 = vld [vmem:[%s385 + $0x2a4] sm:$0xf]
        %v2076 = vld [vmem:[%s385 + $0x2a8] sm:$0xf]
        %v2077 = vld [vmem:[%s385 + $0x2ac] sm:$0xf]
        %v2078 = vld [vmem:[%s385 + $0x2b0] sm:$0xf]
        %v2079 = vld [vmem:[%s385 + $0x2b4] sm:$0xf]
        %v2080 = vld [vmem:[%s385 + $0x2b8] sm:$0xf]
        %v2081 = vld [vmem:[%s385 + $0x2bc] sm:$0xf]
        %v2082 = vld [vmem:[%s385 + $0x2c0] sm:$0xf]
        %v2083 = vld [vmem:[%s385 + $0x2c4] sm:$0xf]
        %v2084 = vld [vmem:[%s385 + $0x2c8] sm:$0xf]
        %v2085 = vld [vmem:[%s385 + $0x2cc] sm:$0xf]
        %v2086 = vld [vmem:[%s385 + $0x2d0] sm:$0xf]
        %v2087 = vld [vmem:[%s385 + $0x2d4] sm:$0xf]
        %v2088 = vld [vmem:[%s385 + $0x2d8] sm:$0xf]
        %v2089 = vld [vmem:[%s385 + $0x2dc] sm:$0xf]
        %v2090 = vld [vmem:[%s385 + $0x2e0] sm:$0xf]
        %v2091 = vld [vmem:[%s385 + $0x2e4] sm:$0xf]
        %v2092 = vld [vmem:[%s385 + $0x2e8] sm:$0xf]
        %v2093 = vld [vmem:[%s385 + $0x2ec] sm:$0xf]
        %v2094 = vld [vmem:[%s385 + $0x2f0] sm:$0xf]
        %v2095 = vld [vmem:[%s385 + $0x2f4] sm:$0xf]
        %v2096 = vld [vmem:[%s385 + $0x2f8] sm:$0xf]
        %v2097 = vld [vmem:[%s385 + $0x2fc] sm:$0xf]
        %v2098 = vld [vmem:[%s385 + $0x300] sm:$0xf]
        %v2099 = vld [vmem:[%s385 + $0x304] sm:$0xf]
        %v2100 = vld [vmem:[%s385 + $0x308] sm:$0xf]
        %v2101 = vld [vmem:[%s385 + $0x30c] sm:$0xf]
        %v2102 = vld [vmem:[%s385 + $0x310] sm:$0xf]
        %v2103 = vld [vmem:[%s385 + $0x314] sm:$0xf]
        %v2104 = vld [vmem:[%s385 + $0x318] sm:$0xf]
        %v2105 = vld [vmem:[%s385 + $0x31c] sm:$0xf]
        %v2106 = vld [vmem:[%s385 + $0x320] sm:$0xf]
        %v2107 = vld [vmem:[%s385 + $0x324] sm:$0xf]
        %v2108 = vld [vmem:[%s385 + $0x328] sm:$0xf]
        %v2109 = vld [vmem:[%s385 + $0x32c] sm:$0xf]
        %v2110 = vld [vmem:[%s385 + $0x330] sm:$0xf]
        %v2111 = vld [vmem:[%s385 + $0x334] sm:$0xf]
        %v2112 = vld [vmem:[%s385 + $0x338] sm:$0xf]
        %v2113 = vld [vmem:[%s385 + $0x33c] sm:$0xf]
        %v2114 = vld [vmem:[%s385 + $0x340] sm:$0xf]
        %v2115 = vld [vmem:[%s385 + $0x344] sm:$0xf]
        %v2116 = vld [vmem:[%s385 + $0x348] sm:$0xf]
        %v2117 = vld [vmem:[%s385 + $0x34c] sm:$0xf]
        %v2118 = vld [vmem:[%s385 + $0x350] sm:$0xf]
        %v2119 = vld [vmem:[%s385 + $0x354] sm:$0xf]
        %v2120 = vld [vmem:[%s385 + $0x358] sm:$0xf]
        %v2121 = vld [vmem:[%s385 + $0x35c] sm:$0xf]
        %v2122 = vld [vmem:[%s385 + $0x360] sm:$0xf]
        %v2123 = vld [vmem:[%s385 + $0x364] sm:$0xf]
        %v2124 = vld [vmem:[%s385 + $0x368] sm:$0xf]
        %v2125 = vld [vmem:[%s385 + $0x36c] sm:$0xf]
        %v2126 = vld [vmem:[%s385 + $0x370] sm:$0xf]
        %v2127 = vld [vmem:[%s385 + $0x374] sm:$0xf]
        %v2128 = vld [vmem:[%s385 + $0x378] sm:$0xf]
        %v2129 = vld [vmem:[%s385 + $0x37c] sm:$0xf]
        %v2130 = vld [vmem:[%s385 + $0x380] sm:$0xf]
        %v2131 = vld [vmem:[%s385 + $0x384] sm:$0xf]
        %v2132 = vld [vmem:[%s385 + $0x388] sm:$0xf]
        %v2133 = vld [vmem:[%s385 + $0x38c] sm:$0xf]
        %v2134 = vld [vmem:[%s385 + $0x390] sm:$0xf]
        %v2135 = vld [vmem:[%s385 + $0x394] sm:$0xf]
        %v2136 = vld [vmem:[%s385 + $0x398] sm:$0xf]
        %v2137 = vld [vmem:[%s385 + $0x39c] sm:$0xf]
        %v2138 = vld [vmem:[%s385 + $0x3a0] sm:$0xf]
        %v2139 = vld [vmem:[%s385 + $0x3a4] sm:$0xf]
        %v2140 = vld [vmem:[%s385 + $0x3a8] sm:$0xf]
        %v2141 = vld [vmem:[%s385 + $0x3ac] sm:$0xf]
        %v2142 = vld [vmem:[%s385 + $0x3b0] sm:$0xf]
        %v2143 = vld [vmem:[%s385 + $0x3b4] sm:$0xf]
        %v2144 = vld [vmem:[%s385 + $0x3b8] sm:$0xf]
        %v2145 = vld [vmem:[%s385 + $0x3bc] sm:$0xf]
        %v2146 = vld [vmem:[%s385 + $0x3c0] sm:$0xf]
        %v2147 = vld [vmem:[%s385 + $0x3c4] sm:$0xf]
        %v2148 = vld [vmem:[%s385 + $0x3c8] sm:$0xf]
        %v2149 = vld [vmem:[%s385 + $0x3cc] sm:$0xf]
        %v2150 = vld [vmem:[%s385 + $0x3d0] sm:$0xf]
        %v2151 = vld [vmem:[%s385 + $0x3d4] sm:$0xf]
        %v2152 = vld [vmem:[%s385 + $0x3d8] sm:$0xf]
        %v2153 = vld [vmem:[%s385 + $0x3dc] sm:$0xf]
        %v2154 = vld [vmem:[%s385 + $0x3e0] sm:$0xf]
        %v2155 = vld [vmem:[%s385 + $0x3e4] sm:$0xf]
        %v2156 = vld [vmem:[%s385 + $0x3e8] sm:$0xf]
        %v2157 = vld [vmem:[%s385 + $0x3ec] sm:$0xf]
        %v2158 = vld [vmem:[%s385 + $0x3f0] sm:$0xf]
        %v2159 = vld [vmem:[%s385 + $0x3f4] sm:$0xf]
        %v2160 = vld [vmem:[%s385 + $0x3f8] sm:$0xf]
        %v2161 = vld [vmem:[%s385 + $0x3fc] sm:$0xf]
        %v2162 = vld [vmem:[%s385 + $0x400] sm:$0xf]
        %v2163 = vld [vmem:[%s385 + $0x404] sm:$0xf]
        %v2164 = vld [vmem:[%s385 + $0x408] sm:$0xf]
        %v2165 = vld [vmem:[%s385 + $0x40c] sm:$0xf]
        %v2166 = vld [vmem:[%s385 + $0x410] sm:$0xf]
        %v2167 = vld [vmem:[%s385 + $0x414] sm:$0xf]
        %v2168 = vld [vmem:[%s385 + $0x418] sm:$0xf]
        %v2169 = vld [vmem:[%s385 + $0x41c] sm:$0xf]
        %v2170 = vld [vmem:[%s385 + $0x420] sm:$0xf]
        %v2171 = vld [vmem:[%s385 + $0x424] sm:$0xf]
        %v2172 = vld [vmem:[%s385 + $0x428] sm:$0xf]
        %v2173 = vld [vmem:[%s385 + $0x42c] sm:$0xf]
        %v2174 = vld [vmem:[%s385 + $0x430] sm:$0xf]
        %v2175 = vld [vmem:[%s385 + $0x434] sm:$0xf]
        %v2176 = vld [vmem:[%s385 + $0x438] sm:$0xf]
        %v2177 = vld [vmem:[%s385 + $0x43c] sm:$0xf]
        %v2178 = vld [vmem:[%s385 + $0x440] sm:$0xf]
        %v2179 = vld [vmem:[%s385 + $0x444] sm:$0xf]
        %v2180 = vld [vmem:[%s385 + $0x448] sm:$0xf]
        %v2181 = vld [vmem:[%s385 + $0x44c] sm:$0xf]
        %v2182 = vld [vmem:[%s385 + $0x450] sm:$0xf]
        %v2183 = vld [vmem:[%s385 + $0x454] sm:$0xf]
        %v2184 = vld [vmem:[%s385 + $0x458] sm:$0xf]
        %v2185 = vld [vmem:[%s385 + $0x45c] sm:$0xf]
        %v2186 = vld [vmem:[%s385 + $0x460] sm:$0xf]
        %v2187 = vld [vmem:[%s385 + $0x464] sm:$0xf]
        %v2188 = vld [vmem:[%s385 + $0x468] sm:$0xf]
        %v2189 = vld [vmem:[%s385 + $0x46c] sm:$0xf]
        %v2190 = vld [vmem:[%s385 + $0x470] sm:$0xf]
        %v2191 = vld [vmem:[%s385 + $0x474] sm:$0xf]
        %v2192 = vld [vmem:[%s385 + $0x478] sm:$0xf]
        %v2193 = vld [vmem:[%s385 + $0x47c] sm:$0xf]
        %v2194 = vld [vmem:[%s385 + $0x480] sm:$0xf]
        %v2195 = vld [vmem:[%s385 + $0x484] sm:$0xf]
        %v2196 = vld [vmem:[%s385 + $0x488] sm:$0xf]
        %v2197 = vld [vmem:[%s385 + $0x48c] sm:$0xf]
        %v2198 = vld [vmem:[%s385 + $0x490] sm:$0xf]
        %v2199 = vld [vmem:[%s385 + $0x494] sm:$0xf]
        %v2200 = vld [vmem:[%s385 + $0x498] sm:$0xf]
        %v2201 = vld [vmem:[%s385 + $0x49c] sm:$0xf]
        %v2202 = vld [vmem:[%s385 + $0x4a0] sm:$0xf]
        %v2203 = vld [vmem:[%s385 + $0x4a4] sm:$0xf]
        %v2204 = vld [vmem:[%s385 + $0x4a8] sm:$0xf]
        %v2205 = vld [vmem:[%s385 + $0x4ac] sm:$0xf]
        %v2206 = vld [vmem:[%s385 + $0x4b0] sm:$0xf]
        %v2207 = vld [vmem:[%s385 + $0x4b4] sm:$0xf]
        %v2208 = vld [vmem:[%s385 + $0x4b8] sm:$0xf]
        %v2209 = vld [vmem:[%s385 + $0x4bc] sm:$0xf]
        %v2210 = vld [vmem:[%s385 + $0x4c0] sm:$0xf]
        %v2211 = vld [vmem:[%s385 + $0x4c4] sm:$0xf]
        %v2212 = vld [vmem:[%s385 + $0x4c8] sm:$0xf]
        %v2213 = vld [vmem:[%s385 + $0x4cc] sm:$0xf]
        %v2214 = vld [vmem:[%s385 + $0x4d0] sm:$0xf]
        %v2215 = vld [vmem:[%s385 + $0x4d4] sm:$0xf]
        %v2216 = vld [vmem:[%s385 + $0x4d8] sm:$0xf]
        %v2217 = vld [vmem:[%s385 + $0x4dc] sm:$0xf]
        %v2218 = vld [vmem:[%s385 + $0x4e0] sm:$0xf]
        %v2219 = vld [vmem:[%s385 + $0x4e4] sm:$0xf]
        %v2220 = vld [vmem:[%s385 + $0x4e8] sm:$0xf]
        %v2221 = vld [vmem:[%s385 + $0x4ec] sm:$0xf]
        %v2222 = vld [vmem:[%s385 + $0x4f0] sm:$0xf]
        %v2223 = vld [vmem:[%s385 + $0x4f4] sm:$0xf]
        %v2224 = vld [vmem:[%s385 + $0x4f8] sm:$0xf]
        %v2225 = vld [vmem:[%s385 + $0x4fc] sm:$0xf]
        %v2226 = vld [vmem:[%s385 + $0x500] sm:$0xf]
        %v2227 = vld [vmem:[%s385 + $0x504] sm:$0xf]
        %v2228 = vld [vmem:[%s385 + $0x508] sm:$0xf]
        %v2229 = vld [vmem:[%s385 + $0x50c] sm:$0xf]
        %v2230 = vld [vmem:[%s385 + $0x510] sm:$0xf]
        %v2231 = vld [vmem:[%s385 + $0x514] sm:$0xf]
        %v2232 = vld [vmem:[%s385 + $0x518] sm:$0xf]
        %v2233 = vld [vmem:[%s385 + $0x51c] sm:$0xf]
        %v2234 = vld [vmem:[%s385 + $0x520] sm:$0xf]
        %v2235 = vld [vmem:[%s385 + $0x524] sm:$0xf]
        %v2236 = vld [vmem:[%s385 + $0x528] sm:$0xf]
        %v2237 = vld [vmem:[%s385 + $0x52c] sm:$0xf]
        %v2238 = vld [vmem:[%s385 + $0x530] sm:$0xf]
        %v2239 = vld [vmem:[%s385 + $0x534] sm:$0xf]
        %v2240 = vld [vmem:[%s385 + $0x538] sm:$0xf]
        %v2241 = vld [vmem:[%s385 + $0x53c] sm:$0xf]
        %v2242 = vld [vmem:[%s385 + $0x540] sm:$0xf]
        %v2243 = vld [vmem:[%s385 + $0x544] sm:$0xf]
        %v2244 = vld [vmem:[%s385 + $0x548] sm:$0xf]
        %v2245 = vld [vmem:[%s385 + $0x54c] sm:$0xf]
        %v2246 = vld [vmem:[%s385 + $0x550] sm:$0xf]
        %v2247 = vld [vmem:[%s385 + $0x554] sm:$0xf]
        %v2248 = vld [vmem:[%s385 + $0x558] sm:$0xf]
        %v2249 = vld [vmem:[%s385 + $0x55c] sm:$0xf]
        %v2250 = vld [vmem:[%s385 + $0x560] sm:$0xf]
        %v2251 = vld [vmem:[%s385 + $0x564] sm:$0xf]
        %v2252 = vld [vmem:[%s385 + $0x568] sm:$0xf]
        %v2253 = vld [vmem:[%s385 + $0x56c] sm:$0xf]
        %v2254 = vld [vmem:[%s385 + $0x570] sm:$0xf]
        %v2255 = vld [vmem:[%s385 + $0x574] sm:$0xf]
        %v2256 = vld [vmem:[%s385 + $0x578] sm:$0xf]
        %v2257 = vld [vmem:[%s385 + $0x57c] sm:$0xf]
        %v2258 = vld [vmem:[%s385 + $0x580] sm:$0xf]
        %v2259 = vld [vmem:[%s385 + $0x584] sm:$0xf]
        %v2260 = vld [vmem:[%s385 + $0x588] sm:$0xf]
        %v2261 = vld [vmem:[%s385 + $0x58c] sm:$0xf]
        %v2262 = vld [vmem:[%s385 + $0x590] sm:$0xf]
        %v2263 = vld [vmem:[%s385 + $0x594] sm:$0xf]
        %v2264 = vld [vmem:[%s385 + $0x598] sm:$0xf]
        %v2265 = vld [vmem:[%s385 + $0x59c] sm:$0xf]
        %v2266 = vld [vmem:[%s385 + $0x5a0] sm:$0xf]
        %v2267 = vld [vmem:[%s385 + $0x5a4] sm:$0xf]
        %v2268 = vld [vmem:[%s385 + $0x5a8] sm:$0xf]
        %v2269 = vld [vmem:[%s385 + $0x5ac] sm:$0xf]
        %v2270 = vld [vmem:[%s385 + $0x5b0] sm:$0xf]
        %v2271 = vld [vmem:[%s385 + $0x5b4] sm:$0xf]
        %v2272 = vld [vmem:[%s385 + $0x5b8] sm:$0xf]
        %v2273 = vld [vmem:[%s385 + $0x5bc] sm:$0xf]
        %v2274 = vld [vmem:[%s385 + $0x5c0] sm:$0xf]
        %v2275 = vld [vmem:[%s385 + $0x5c4] sm:$0xf]
        %v2276 = vld [vmem:[%s385 + $0x5c8] sm:$0xf]
        %v2277 = vld [vmem:[%s385 + $0x5cc] sm:$0xf]
        %v2278 = vld [vmem:[%s385 + $0x5d0] sm:$0xf]
        %v2279 = vld [vmem:[%s385 + $0x5d4] sm:$0xf]
        %v2280 = vld [vmem:[%s385 + $0x5d8] sm:$0xf]
        %v2281 = vld [vmem:[%s385 + $0x5dc] sm:$0xf]
        %v2282 = vld [vmem:[%s385 + $0x5e0] sm:$0xf]
        %v2283 = vld [vmem:[%s385 + $0x5e4] sm:$0xf]
        %v2284 = vld [vmem:[%s385 + $0x5e8] sm:$0xf]
        %v2285 = vld [vmem:[%s385 + $0x5ec] sm:$0xf]
        %v2286 = vld [vmem:[%s385 + $0x5f0] sm:$0xf]
        %v2287 = vld [vmem:[%s385 + $0x5f4] sm:$0xf]
        %v2288 = vld [vmem:[%s385 + $0x5f8] sm:$0xf]
        %v2289 = vld [vmem:[%s385 + $0x5fc] sm:$0xf]
        %v2290 = vld [vmem:[%s385 + $0x600] sm:$0xf]
        %v2291 = vld [vmem:[%s385 + $0x604] sm:$0xf]
        %v2292 = vld [vmem:[%s385 + $0x608] sm:$0xf]
        %v2293 = vld [vmem:[%s385 + $0x60c] sm:$0xf]
        %v2294 = vld [vmem:[%s385 + $0x610] sm:$0xf]
        %v2295 = vld [vmem:[%s385 + $0x614] sm:$0xf]
        %v2296 = vld [vmem:[%s385 + $0x618] sm:$0xf]
        %v2297 = vld [vmem:[%s385 + $0x61c] sm:$0xf]
        %v2298 = vld [vmem:[%s385 + $0x620] sm:$0xf]
        %v2299 = vld [vmem:[%s385 + $0x624] sm:$0xf]
        %v2300 = vld [vmem:[%s385 + $0x628] sm:$0xf]
        %v2301 = vld [vmem:[%s385 + $0x62c] sm:$0xf]
        %v2302 = vld [vmem:[%s385 + $0x630] sm:$0xf]
        %v2303 = vld [vmem:[%s385 + $0x634] sm:$0xf]
        %v2304 = vld [vmem:[%s385 + $0x638] sm:$0xf]
        %v2305 = vld [vmem:[%s385 + $0x63c] sm:$0xf]
        %v2306 = vld [vmem:[%s385 + $0x640] sm:$0xf]
        %v2307 = vld [vmem:[%s385 + $0x644] sm:$0xf]
        %v2308 = vld [vmem:[%s385 + $0x648] sm:$0xf]
        %v2309 = vld [vmem:[%s385 + $0x64c] sm:$0xf]
        %v2310 = vld [vmem:[%s385 + $0x650] sm:$0xf]
        %v2311 = vld [vmem:[%s385 + $0x654] sm:$0xf]
        %v2312 = vld [vmem:[%s385 + $0x658] sm:$0xf]
        %v2313 = vld [vmem:[%s385 + $0x65c] sm:$0xf]
        %v2314 = vld [vmem:[%s385 + $0x660] sm:$0xf]
        %v2315 = vld [vmem:[%s385 + $0x664] sm:$0xf]
        %v2316 = vld [vmem:[%s385 + $0x668] sm:$0xf]
        %v2317 = vld [vmem:[%s385 + $0x66c] sm:$0xf]
        %v2318 = vld [vmem:[%s385 + $0x670] sm:$0xf]
        %v2319 = vld [vmem:[%s385 + $0x674] sm:$0xf]
        %v2320 = vld [vmem:[%s385 + $0x678] sm:$0xf]
        %v2321 = vld [vmem:[%s385 + $0x67c] sm:$0xf]
        %v2322 = vld [vmem:[%s385 + $0x680] sm:$0xf]
        %v2323 = vld [vmem:[%s385 + $0x684] sm:$0xf]
        %v2324 = vld [vmem:[%s385 + $0x688] sm:$0xf]
        %v2325 = vld [vmem:[%s385 + $0x68c] sm:$0xf]
        %v2326 = vld [vmem:[%s385 + $0x690] sm:$0xf]
        %v2327 = vld [vmem:[%s385 + $0x694] sm:$0xf]
        %v2328 = vld [vmem:[%s385 + $0x698] sm:$0xf]
        %v2329 = vld [vmem:[%s385 + $0x69c] sm:$0xf]
        %v2330 = vld [vmem:[%s385 + $0x6a0] sm:$0xf]
        %v2331 = vld [vmem:[%s385 + $0x6a4] sm:$0xf]
        %v2332 = vld [vmem:[%s385 + $0x6a8] sm:$0xf]
        %v2333 = vld [vmem:[%s385 + $0x6ac] sm:$0xf]
        %v2334 = vld [vmem:[%s385 + $0x6b0] sm:$0xf]
        %v2335 = vld [vmem:[%s385 + $0x6b4] sm:$0xf]
        %v2336 = vld [vmem:[%s385 + $0x6b8] sm:$0xf]
        %v2337 = vld [vmem:[%s385 + $0x6bc] sm:$0xf]
        %v2338 = vld [vmem:[%s385 + $0x6c0] sm:$0xf]
        %v2339 = vld [vmem:[%s385 + $0x6c4] sm:$0xf]
        %v2340 = vld [vmem:[%s385 + $0x6c8] sm:$0xf]
        %v2341 = vld [vmem:[%s385 + $0x6cc] sm:$0xf]
        %v2342 = vld [vmem:[%s385 + $0x6d0] sm:$0xf]
        %v2343 = vld [vmem:[%s385 + $0x6d4] sm:$0xf]
        %v2344 = vld [vmem:[%s385 + $0x6d8] sm:$0xf]
        %v2345 = vld [vmem:[%s385 + $0x6dc] sm:$0xf]
        %v2346 = vld [vmem:[%s385 + $0x6e0] sm:$0xf]
        %v2347 = vld [vmem:[%s385 + $0x6e4] sm:$0xf]
        %v2348 = vld [vmem:[%s385 + $0x6e8] sm:$0xf]
        %v2349 = vld [vmem:[%s385 + $0x6ec] sm:$0xf]
        %v2350 = vld [vmem:[%s385 + $0x6f0] sm:$0xf]
        %v2351 = vld [vmem:[%s385 + $0x6f4] sm:$0xf]
        %v2352 = vld [vmem:[%s385 + $0x6f8] sm:$0xf]
        %v2353 = vld [vmem:[%s385 + $0x6fc] sm:$0xf]
        %v2354 = vld [vmem:[%s385 + $0x700] sm:$0xf]
        %v2355 = vld [vmem:[%s385 + $0x704] sm:$0xf]
        %v2356 = vld [vmem:[%s385 + $0x708] sm:$0xf]
        %v2357 = vld [vmem:[%s385 + $0x70c] sm:$0xf]
        %v2358 = vld [vmem:[%s385 + $0x710] sm:$0xf]
        %v2359 = vld [vmem:[%s385 + $0x714] sm:$0xf]
        %v2360 = vld [vmem:[%s385 + $0x718] sm:$0xf]
        %v2361 = vld [vmem:[%s385 + $0x71c] sm:$0xf]
        %v2362 = vld [vmem:[%s385 + $0x720] sm:$0xf]
        %v2363 = vld [vmem:[%s385 + $0x724] sm:$0xf]
        %v2364 = vld [vmem:[%s385 + $0x728] sm:$0xf]
        %v2365 = vld [vmem:[%s385 + $0x72c] sm:$0xf]
        %v2366 = vld [vmem:[%s385 + $0x730] sm:$0xf]
        %v2367 = vld [vmem:[%s385 + $0x734] sm:$0xf]
        %v2368 = vld [vmem:[%s385 + $0x738] sm:$0xf]
        %v2369 = vld [vmem:[%s385 + $0x73c] sm:$0xf]
        %v2370 = vld [vmem:[%s385 + $0x740] sm:$0xf]
        %v2371 = vld [vmem:[%s385 + $0x744] sm:$0xf]
        %v2372 = vld [vmem:[%s385 + $0x748] sm:$0xf]
        %v2373 = vld [vmem:[%s385 + $0x74c] sm:$0xf]
        %v2374 = vld [vmem:[%s385 + $0x750] sm:$0xf]
        %v2375 = vld [vmem:[%s385 + $0x754] sm:$0xf]
        %v2376 = vld [vmem:[%s385 + $0x758] sm:$0xf]
        %v2377 = vld [vmem:[%s385 + $0x75c] sm:$0xf]
        %v2378 = vld [vmem:[%s385 + $0x760] sm:$0xf]
        %v2379 = vld [vmem:[%s385 + $0x764] sm:$0xf]
        %v2380 = vld [vmem:[%s385 + $0x768] sm:$0xf]
        %v2381 = vld [vmem:[%s385 + $0x76c] sm:$0xf]
        %v2382 = vld [vmem:[%s385 + $0x770] sm:$0xf]
        %v2383 = vld [vmem:[%s385 + $0x774] sm:$0xf]
        %v2384 = vld [vmem:[%s385 + $0x778] sm:$0xf]
        %v2385 = vld [vmem:[%s385 + $0x77c] sm:$0xf]
        %v2386 = vld [vmem:[%s385 + $0x780] sm:$0xf]
        %v2387 = vld [vmem:[%s385 + $0x784] sm:$0xf]
        %v2388 = vld [vmem:[%s385 + $0x788] sm:$0xf]
        %v2389 = vld [vmem:[%s385 + $0x78c] sm:$0xf]
        %v2390 = vld [vmem:[%s385 + $0x790] sm:$0xf]
        %v2391 = vld [vmem:[%s385 + $0x794] sm:$0xf]
        %v2392 = vld [vmem:[%s385 + $0x798] sm:$0xf]
        %v2393 = vld [vmem:[%s385 + $0x79c] sm:$0xf]
        %v2394 = vld [vmem:[%s385 + $0x7a0] sm:$0xf]
        %v2395 = vld [vmem:[%s385 + $0x7a4] sm:$0xf]
        %v2396 = vld [vmem:[%s385 + $0x7a8] sm:$0xf]
        %v2397 = vld [vmem:[%s385 + $0x7ac] sm:$0xf]
        %v2398 = vld [vmem:[%s385 + $0x7b0] sm:$0xf]
        %v2399 = vld [vmem:[%s385 + $0x7b4] sm:$0xf]
        %v2400 = vld [vmem:[%s385 + $0x7b8] sm:$0xf]
        %v2401 = vld [vmem:[%s385 + $0x7bc] sm:$0xf]
        %v2402 = vld [vmem:[%s385 + $0x7c0] sm:$0xf]
        %v2403 = vld [vmem:[%s385 + $0x7c4] sm:$0xf]
        %v2404 = vld [vmem:[%s385 + $0x7c8] sm:$0xf]
        %v2405 = vld [vmem:[%s385 + $0x7cc] sm:$0xf]
        %v2406 = vld [vmem:[%s385 + $0x7d0] sm:$0xf]
        %v2407 = vld [vmem:[%s385 + $0x7d4] sm:$0xf]
        %v2408 = vld [vmem:[%s385 + $0x7d8] sm:$0xf]
        %v2409 = vld [vmem:[%s385 + $0x7dc] sm:$0xf]
        %v2410 = vld [vmem:[%s385 + $0x7e0] sm:$0xf]
        %v2411 = vld [vmem:[%s385 + $0x7e4] sm:$0xf]
        %v2412 = vld [vmem:[%s385 + $0x7e8] sm:$0xf]
        %v2413 = vld [vmem:[%s385 + $0x7ec] sm:$0xf]
        %v2414 = vld [vmem:[%s385 + $0x7f0] sm:$0xf]
        %v2415 = vld [vmem:[%s385 + $0x7f4] sm:$0xf]
        %v2416 = vld [vmem:[%s385 + $0x7f8] sm:$0xf]
        %v2417 = vld [vmem:[%s385 + $0x7fc] sm:$0xf]
        %v2426 = vunpack.c.l.b16 %v1906
        %v2427 = vunpack.c.l.b16 %v1907
        %v2428 = vunpack.c.l.b16 %v1908
        %v2429 = vunpack.c.l.b16 %v1909
        %v2430 = vunpack.c.l.b16 %v1910
        %v2431 = vunpack.c.l.b16 %v1911
        %v2432 = vunpack.c.l.b16 %v1912
        %v2433 = vunpack.c.l.b16 %v1913
        %v2434 = vpack.c.b16 %v2427, %v2426
        %v2435 = vpack.c.b16 %v2429, %v2428
        %v2436 = vpack.c.b16 %v2431, %v2430
        %v2437 = vpack.c.b16 %v2433, %v2432
        %vm2442 = vcmask 523264
        %v2444 = vsel %vm2442, %v1842, 0
        %2446 = vmatprep.subr.bf16.mxu0 0
        %2447 = vmatpush1.bf16.msra.mxu0 %v2434
        %2448 = vmatprep.subr.bf16.mxu0 0
        %2449 = vmatpush1.bf16.msra.mxu0 %v2435
        %2450 = vmatprep.subr.bf16.mxu0 0
        %2451 = vmatpush1.bf16.msra.mxu0 %v2436
        %2452 = vmatprep.subr.bf16.mxu0 0
        %2453 = vmatpush1.bf16.msra.mxu0 %v2437
        %2454 = vmatprep.subr.bf16.mxu0 0
        %2455 = vmatpush1.bf16.msra.mxu0 0
        %2456 = vmatprep.subr.bf16.mxu0 0
        %2457 = vmatpush1.bf16.msra.mxu0 0
        %2458 = vmatprep.subr.bf16.mxu0 0
        %2459 = vmatpush1.bf16.msra.mxu0 0
        %2460 = vmatprep.subr.bf16.mxu0 0
        %2461 = vmatpush1.bf16.msra.mxu0 0
        %2462 = vmatprep.subr.bf16.mxu0 0
        %2463 = vmatpush1.bf16.msra.mxu0 0
        %2464 = vmatprep.subr.bf16.mxu0 0
        %2465 = vmatpush1.bf16.msra.mxu0 0
        %2466 = vmatprep.subr.bf16.mxu0 0
        %2467 = vmatpush1.bf16.msra.mxu0 0
        %2468 = vmatprep.subr.bf16.mxu0 0
        %2469 = vmatpush1.bf16.msra.mxu0 0
        %2470 = vmatprep.subr.bf16.mxu0 0
        %2471 = vmatpush1.bf16.msra.mxu0 0
        %2472 = vmatprep.subr.bf16.mxu0 0
        %2473 = vmatpush1.bf16.msra.mxu0 0
        %2474 = vmatprep.subr.bf16.mxu0 0
        %2475 = vmatpush1.bf16.msra.mxu0 0
        %2476 = vmatprep.subr.bf16.mxu0 0
        %2477 = vmatpush1.bf16.msra.mxu0 0
        %2478 = vmatprep.mubr.bf16.mxu0 0
        %2479 = vmatmul.mubr.bf16.gmra.mrb[0].mxu0 %v2444
        %v2480 = vpop.f32.mrb[0].mxu0
        %v2481 = vadd.f32 0.0, %v2480
        %v2482 = vpop.f32.mrb[0].mxu0
        %v2483 = vpop.f32.mrb[0].mxu0
        %v2484 = vpop.f32.mrb[0].mxu0
        %2485 = vdwg.mxu0
        %v2494 = vunpack.c.l.b16 %v1914
        %v2495 = vunpack.c.l.b16 %v1915
        %v2496 = vunpack.c.l.b16 %v1916
        %v2497 = vunpack.c.l.b16 %v1917
        %v2498 = vunpack.c.l.b16 %v1918
        %v2499 = vunpack.c.l.b16 %v1919
        %v2500 = vunpack.c.l.b16 %v1920
        %v2501 = vunpack.c.l.b16 %v1921
        %v2502 = vpack.c.b16 %v2495, %v2494
        %v2503 = vpack.c.b16 %v2497, %v2496
        %v2504 = vpack.c.b16 %v2499, %v2498
        %v2505 = vpack.c.b16 %v2501, %v2500
        %v2511 = vsel %vm2442, %v1843, 0
        %2513 = vmatprep.subr.bf16.mxu0 0
        %2514 = vmatpush1.bf16.msra.mxu0 %v2502
        %2515 = vmatprep.subr.bf16.mxu0 0
        %2516 = vmatpush1.bf16.msra.mxu0 %v2503
        %2517 = vmatprep.subr.bf16.mxu0 0
        %2518 = vmatpush1.bf16.msra.mxu0 %v2504
        %2519 = vmatprep.subr.bf16.mxu0 0
        %2520 = vmatpush1.bf16.msra.mxu0 %v2505
        %2521 = vmatprep.subr.bf16.mxu0 0
        %2522 = vmatpush1.bf16.msra.mxu0 0
        %2523 = vmatprep.subr.bf16.mxu0 0
        %2524 = vmatpush1.bf16.msra.mxu0 0
        %2525 = vmatprep.subr.bf16.mxu0 0
        %2526 = vmatpush1.bf16.msra.mxu0 0
        %2527 = vmatprep.subr.bf16.mxu0 0
        %2528 = vmatpush1.bf16.msra.mxu0 0
        %2529 = vmatprep.subr.bf16.mxu0 0
        %2530 = vmatpush1.bf16.msra.mxu0 0
        %2531 = vmatprep.subr.bf16.mxu0 0
        %2532 = vmatpush1.bf16.msra.mxu0 0
        %2533 = vmatprep.subr.bf16.mxu0 0
        %2534 = vmatpush1.bf16.msra.mxu0 0
        %2535 = vmatprep.subr.bf16.mxu0 0
        %2536 = vmatpush1.bf16.msra.mxu0 0
        %2537 = vmatprep.subr.bf16.mxu0 0
        %2538 = vmatpush1.bf16.msra.mxu0 0
        %2539 = vmatprep.subr.bf16.mxu0 0
        %2540 = vmatpush1.bf16.msra.mxu0 0
        %2541 = vmatprep.subr.bf16.mxu0 0
        %2542 = vmatpush1.bf16.msra.mxu0 0
        %2543 = vmatprep.subr.bf16.mxu0 0
        %2544 = vmatpush1.bf16.msra.mxu0 0
        %2545 = vmatprep.mubr.bf16.mxu0 0
        %2546 = vmatmul.mubr.bf16.gmra.mrb[0].mxu0 %v2511
        %v2547 = vpop.f32.mrb[0].mxu0
        %v2548 = vadd.f32 0.0, %v2547
        %v2549 = vpop.f32.mrb[0].mxu0
        %v2550 = vpop.f32.mrb[0].mxu0
        %v2551 = vpop.f32.mrb[0].mxu0
        %2552 = vdwg.mxu0
        %v2561 = vunpack.c.l.b16 %v1922
        %v2562 = vunpack.c.l.b16 %v1923
        %v2563 = vunpack.c.l.b16 %v1924
        %v2564 = vunpack.c.l.b16 %v1925
        %v2565 = vunpack.c.l.b16 %v1926
        %v2566 = vunpack.c.l.b16 %v1927
        %v2567 = vunpack.c.l.b16 %v1928
        %v2568 = vunpack.c.l.b16 %v1929
        %v2569 = vpack.c.b16 %v2562, %v2561
        %v2570 = vpack.c.b16 %v2564, %v2563
        %v2571 = vpack.c.b16 %v2566, %v2565
        %v2572 = vpack.c.b16 %v2568, %v2567
        %v2578 = vsel %vm2442, %v1844, 0
        %2580 = vmatprep.subr.bf16.mxu0 0
        %2581 = vmatpush1.bf16.msra.mxu0 %v2569
        %2582 = vmatprep.subr.bf16.mxu0 0
        %2583 = vmatpush1.bf16.msra.mxu0 %v2570
        %2584 = vmatprep.subr.bf16.mxu0 0
        %2585 = vmatpush1.bf16.msra.mxu0 %v2571
        %2586 = vmatprep.subr.bf16.mxu0 0
        %2587 = vmatpush1.bf16.msra.mxu0 %v2572
        %2588 = vmatprep.subr.bf16.mxu0 0
        %2589 = vmatpush1.bf16.msra.mxu0 0
        %2590 = vmatprep.subr.bf16.mxu0 0
        %2591 = vmatpush1.bf16.msra.mxu0 0
        %2592 = vmatprep.subr.bf16.mxu0 0
        %2593 = vmatpush1.bf16.msra.mxu0 0
        %2594 = vmatprep.subr.bf16.mxu0 0
        %2595 = vmatpush1.bf16.msra.mxu0 0
        %2596 = vmatprep.subr.bf16.mxu0 0
        %2597 = vmatpush1.bf16.msra.mxu0 0
        %2598 = vmatprep.subr.bf16.mxu0 0
        %2599 = vmatpush1.bf16.msra.mxu0 0
        %2600 = vmatprep.subr.bf16.mxu0 0
        %2601 = vmatpush1.bf16.msra.mxu0 0
        %2602 = vmatprep.subr.bf16.mxu0 0
        %2603 = vmatpush1.bf16.msra.mxu0 0
        %2604 = vmatprep.subr.bf16.mxu0 0
        %2605 = vmatpush1.bf16.msra.mxu0 0
        %2606 = vmatprep.subr.bf16.mxu0 0
        %2607 = vmatpush1.bf16.msra.mxu0 0
        %2608 = vmatprep.subr.bf16.mxu0 0
        %2609 = vmatpush1.bf16.msra.mxu0 0
        %2610 = vmatprep.subr.bf16.mxu0 0
        %2611 = vmatpush1.bf16.msra.mxu0 0
        %2612 = vmatprep.mubr.bf16.mxu0 0
        %2613 = vmatmul.mubr.bf16.gmra.mrb[0].mxu0 %v2578
        %v2614 = vpop.f32.mrb[0].mxu0
        %v2615 = vadd.f32 0.0, %v2614
        %v2616 = vpop.f32.mrb[0].mxu0
        %v2617 = vpop.f32.mrb[0].mxu0
        %v2618 = vpop.f32.mrb[0].mxu0
        %2619 = vdwg.mxu0
        %v2628 = vunpack.c.l.b16 %v1930
        %v2629 = vunpack.c.l.b16 %v1931
        %v2630 = vunpack.c.l.b16 %v1932
        %v2631 = vunpack.c.l.b16 %v1933
        %v2632 = vunpack.c.l.b16 %v1934
        %v2633 = vunpack.c.l.b16 %v1935
        %v2634 = vunpack.c.l.b16 %v1936
        %v2635 = vunpack.c.l.b16 %v1937
        %v2636 = vpack.c.b16 %v2629, %v2628
        %v2637 = vpack.c.b16 %v2631, %v2630
        %v2638 = vpack.c.b16 %v2633, %v2632
        %v2639 = vpack.c.b16 %v2635, %v2634
        %v2645 = vsel %vm2442, %v1845, 0
        %2647 = vmatprep.subr.bf16.mxu0 0
        %2648 = vmatpush1.bf16.msra.mxu0 %v2636
        %2649 = vmatprep.subr.bf16.mxu0 0
        %2650 = vmatpush1.bf16.msra.mxu0 %v2637
        %2651 = vmatprep.subr.bf16.mxu0 0
        %2652 = vmatpush1.bf16.msra.mxu0 %v2638
        %2653 = vmatprep.subr.bf16.mxu0 0
        %2654 = vmatpush1.bf16.msra.mxu0 %v2639
        %2655 = vmatprep.subr.bf16.mxu0 0
        %2656 = vmatpush1.bf16.msra.mxu0 0
        %2657 = vmatprep.subr.bf16.mxu0 0
        %2658 = vmatpush1.bf16.msra.mxu0 0
        %2659 = vmatprep.subr.bf16.mxu0 0
        %2660 = vmatpush1.bf16.msra.mxu0 0
        %2661 = vmatprep.subr.bf16.mxu0 0
        %2662 = vmatpush1.bf16.msra.mxu0 0
        %2663 = vmatprep.subr.bf16.mxu0 0
        %2664 = vmatpush1.bf16.msra.mxu0 0
        %2665 = vmatprep.subr.bf16.mxu0 0
        %2666 = vmatpush1.bf16.msra.mxu0 0
        %2667 = vmatprep.subr.bf16.mxu0 0
        %2668 = vmatpush1.bf16.msra.mxu0 0
        %2669 = vmatprep.subr.bf16.mxu0 0
        %2670 = vmatpush1.bf16.msra.mxu0 0
        %2671 = vmatprep.subr.bf16.mxu0 0
        %2672 = vmatpush1.bf16.msra.mxu0 0
        %2673 = vmatprep.subr.bf16.mxu0 0
        %2674 = vmatpush1.bf16.msra.mxu0 0
        %2675 = vmatprep.subr.bf16.mxu0 0
        %2676 = vmatpush1.bf16.msra.mxu0 0
        %2677 = vmatprep.subr.bf16.mxu0 0
        %2678 = vmatpush1.bf16.msra.mxu0 0
        %2679 = vmatprep.mubr.bf16.mxu0 0
        %2680 = vmatmul.mubr.bf16.gmra.mrb[0].mxu0 %v2645
        %v2681 = vpop.f32.mrb[0].mxu0
        %v2682 = vadd.f32 0.0, %v2681
        %v2683 = vpop.f32.mrb[0].mxu0
        %v2684 = vpop.f32.mrb[0].mxu0
        %v2685 = vpop.f32.mrb[0].mxu0
        %2686 = vdwg.mxu0
        %v2695 = vunpack.c.l.b16 %v1938
        %v2696 = vunpack.c.l.b16 %v1939
        %v2697 = vunpack.c.l.b16 %v1940
        %v2698 = vunpack.c.l.b16 %v1941
        %v2699 = vunpack.c.l.b16 %v1942
        %v2700 = vunpack.c.l.b16 %v1943
        %v2701 = vunpack.c.l.b16 %v1944
        %v2702 = vunpack.c.l.b16 %v1945
        %v2703 = vpack.c.b16 %v2696, %v2695
        %v2704 = vpack.c.b16 %v2698, %v2697
        %v2705 = vpack.c.b16 %v2700, %v2699
        %v2706 = vpack.c.b16 %v2702, %v2701
        %v2712 = vsel %vm2442, %v1846, 0
        %2714 = vmatprep.subr.bf16.mxu0 0
        %2715 = vmatpush1.bf16.msra.mxu0 %v2703
        %2716 = vmatprep.subr.bf16.mxu0 0
        %2717 = vmatpush1.bf16.msra.mxu0 %v2704
        %2718 = vmatprep.subr.bf16.mxu0 0
        %2719 = vmatpush1.bf16.msra.mxu0 %v2705
        %2720 = vmatprep.subr.bf16.mxu0 0
        %2721 = vmatpush1.bf16.msra.mxu0 %v2706
        %2722 = vmatprep.subr.bf16.mxu0 0
        %2723 = vmatpush1.bf16.msra.mxu0 0
        %2724 = vmatprep.subr.bf16.mxu0 0
        %2725 = vmatpush1.bf16.msra.mxu0 0
        %2726 = vmatprep.subr.bf16.mxu0 0
        %2727 = vmatpush1.bf16.msra.mxu0 0
        %2728 = vmatprep.subr.bf16.mxu0 0
        %2729 = vmatpush1.bf16.msra.mxu0 0
        %2730 = vmatprep.subr.bf16.mxu0 0
        %2731 = vmatpush1.bf16.msra.mxu0 0
        %2732 = vmatprep.subr.bf16.mxu0 0
        %2733 = vmatpush1.bf16.msra.mxu0 0
        %2734 = vmatprep.subr.bf16.mxu0 0
        %2735 = vmatpush1.bf16.msra.mxu0 0
        %2736 = vmatprep.subr.bf16.mxu0 0
        %2737 = vmatpush1.bf16.msra.mxu0 0
        %2738 = vmatprep.subr.bf16.mxu0 0
        %2739 = vmatpush1.bf16.msra.mxu0 0
        %2740 = vmatprep.subr.bf16.mxu0 0
        %2741 = vmatpush1.bf16.msra.mxu0 0
        %2742 = vmatprep.subr.bf16.mxu0 0
        %2743 = vmatpush1.bf16.msra.mxu0 0
        %2744 = vmatprep.subr.bf16.mxu0 0
        %2745 = vmatpush1.bf16.msra.mxu0 0
        %2746 = vmatprep.mubr.bf16.mxu0 0
        %2747 = vmatmul.mubr.bf16.gmra.mrb[0].mxu0 %v2712
        %v2748 = vpop.f32.mrb[0].mxu0
        %v2749 = vadd.f32 0.0, %v2748
        %v2750 = vpop.f32.mrb[0].mxu0
        %v2751 = vpop.f32.mrb[0].mxu0
        %v2752 = vpop.f32.mrb[0].mxu0
        %2753 = vdwg.mxu0
        %v2762 = vunpack.c.l.b16 %v1946
        %v2763 = vunpack.c.l.b16 %v1947
        %v2764 = vunpack.c.l.b16 %v1948
        %v2765 = vunpack.c.l.b16 %v1949
        %v2766 = vunpack.c.l.b16 %v1950
        %v2767 = vunpack.c.l.b16 %v1951
        %v2768 = vunpack.c.l.b16 %v1952
        %v2769 = vunpack.c.l.b16 %v1953
        %v2770 = vpack.c.b16 %v2763, %v2762
        %v2771 = vpack.c.b16 %v2765, %v2764
        %v2772 = vpack.c.b16 %v2767, %v2766
        %v2773 = vpack.c.b16 %v2769, %v2768
        %v2779 = vsel %vm2442, %v1847, 0
        %2781 = vmatprep.subr.bf16.mxu0 0
        %2782 = vmatpush1.bf16.msra.mxu0 %v2770
        %2783 = vmatprep.subr.bf16.mxu0 0
        %2784 = vmatpush1.bf16.msra.mxu0 %v2771
        %2785 = vmatprep.subr.bf16.mxu0 0
        %2786 = vmatpush1.bf16.msra.mxu0 %v2772
        %2787 = vmatprep.subr.bf16.mxu0 0
        %2788 = vmatpush1.bf16.msra.mxu0 %v2773
        %2789 = vmatprep.subr.bf16.mxu0 0
        %2790 = vmatpush1.bf16.msra.mxu0 0
        %2791 = vmatprep.subr.bf16.mxu0 0
        %2792 = vmatpush1.bf16.msra.mxu0 0
        %2793 = vmatprep.subr.bf16.mxu0 0
        %2794 = vmatpush1.bf16.msra.mxu0 0
        %2795 = vmatprep.subr.bf16.mxu0 0
        %2796 = vmatpush1.bf16.msra.mxu0 0
        %2797 = vmatprep.subr.bf16.mxu0 0
        %2798 = vmatpush1.bf16.msra.mxu0 0
        %2799 = vmatprep.subr.bf16.mxu0 0
        %2800 = vmatpush1.bf16.msra.mxu0 0
        %2801 = vmatprep.subr.bf16.mxu0 0
        %2802 = vmatpush1.bf16.msra.mxu0 0
        %2803 = vmatprep.subr.bf16.mxu0 0
        %2804 = vmatpush1.bf16.msra.mxu0 0
        %2805 = vmatprep.subr.bf16.mxu0 0
        %2806 = vmatpush1.bf16.msra.mxu0 0
        %2807 = vmatprep.subr.bf16.mxu0 0
        %2808 = vmatpush1.bf16.msra.mxu0 0
        %2809 = vmatprep.subr.bf16.mxu0 0
        %2810 = vmatpush1.bf16.msra.mxu0 0
        %2811 = vmatprep.subr.bf16.mxu0 0
        %2812 = vmatpush1.bf16.msra.mxu0 0
        %2813 = vmatprep.mubr.bf16.mxu0 0
        %2814 = vmatmul.mubr.bf16.gmra.mrb[0].mxu0 %v2779
        %v2815 = vpop.f32.mrb[0].mxu0
        %v2816 = vadd.f32 0.0, %v2815
        %v2817 = vpop.f32.mrb[0].mxu0
        %v2818 = vpop.f32.mrb[0].mxu0
        %v2819 = vpop.f32.mrb[0].mxu0
        %2820 = vdwg.mxu0
        %v2829 = vunpack.c.l.b16 %v1954
        %v2830 = vunpack.c.l.b16 %v1955
        %v2831 = vunpack.c.l.b16 %v1956
        %v2832 = vunpack.c.l.b16 %v1957
        %v2833 = vunpack.c.l.b16 %v1958
        %v2834 = vunpack.c.l.b16 %v1959
        %v2835 = vunpack.c.l.b16 %v1960
        %v2836 = vunpack.c.l.b16 %v1961
        %v2837 = vpack.c.b16 %v2830, %v2829
        %v2838 = vpack.c.b16 %v2832, %v2831
        %v2839 = vpack.c.b16 %v2834, %v2833
        %v2840 = vpack.c.b16 %v2836, %v2835
        %v2846 = vsel %vm2442, %v1848, 0
        %2848 = vmatprep.subr.bf16.mxu0 0
        %2849 = vmatpush1.bf16.msra.mxu0 %v2837
        %2850 = vmatprep.subr.bf16.mxu0 0
        %2851 = vmatpush1.bf16.msra.mxu0 %v2838
        %2852 = vmatprep.subr.bf16.mxu0 0
        %2853 = vmatpush1.bf16.msra.mxu0 %v2839
        %2854 = vmatprep.subr.bf16.mxu0 0
        %2855 = vmatpush1.bf16.msra.mxu0 %v2840
        %2856 = vmatprep.subr.bf16.mxu0 0
        %2857 = vmatpush1.bf16.msra.mxu0 0
        %2858 = vmatprep.subr.bf16.mxu0 0
        %2859 = vmatpush1.bf16.msra.mxu0 0
        %2860 = vmatprep.subr.bf16.mxu0 0
        %2861 = vmatpush1.bf16.msra.mxu0 0
        %2862 = vmatprep.subr.bf16.mxu0 0
        %2863 = vmatpush1.bf16.msra.mxu0 0
        %2864 = vmatprep.subr.bf16.mxu0 0
        %2865 = vmatpush1.bf16.msra.mxu0 0
        %2866 = vmatprep.subr.bf16.mxu0 0
        %2867 = vmatpush1.bf16.msra.mxu0 0
        %2868 = vmatprep.subr.bf16.mxu0 0
        %2869 = vmatpush1.bf16.msra.mxu0 0
        %2870 = vmatprep.subr.bf16.mxu0 0
        %2871 = vmatpush1.bf16.msra.mxu0 0
        %2872 = vmatprep.subr.bf16.mxu0 0
        %2873 = vmatpush1.bf16.msra.mxu0 0
        %2874 = vmatprep.subr.bf16.mxu0 0
        %2875 = vmatpush1.bf16.msra.mxu0 0
        %2876 = vmatprep.subr.bf16.mxu0 0
        %2877 = vmatpush1.bf16.msra.mxu0 0
        %2878 = vmatprep.subr.bf16.mxu0 0
        %2879 = vmatpush1.bf16.msra.mxu0 0
        %2880 = vmatprep.mubr.bf16.mxu0 0
        %2881 = vmatmul.mubr.bf16.gmra.mrb[0].mxu0 %v2846
        %v2882 = vpop.f32.mrb[0].mxu0
        %v2883 = vadd.f32 0.0, %v2882
        %v2884 = vpop.f32.mrb[0].mxu0
        %v2885 = vpop.f32.mrb[0].mxu0
        %v2886 = vpop.f32.mrb[0].mxu0
        %2887 = vdwg.mxu0
        %v2896 = vunpack.c.l.b16 %v1962
        %v2897 = vunpack.c.l.b16 %v1963
        %v2898 = vunpack.c.l.b16 %v1964
        %v2899 = vunpack.c.l.b16 %v1965
        %v2900 = vunpack.c.l.b16 %v1966
        %v2901 = vunpack.c.l.b16 %v1967
        %v2902 = vunpack.c.l.b16 %v1968
        %v2903 = vunpack.c.l.b16 %v1969
        %v2904 = vpack.c.b16 %v2897, %v2896
        %v2905 = vpack.c.b16 %v2899, %v2898
        %v2906 = vpack.c.b16 %v2901, %v2900
        %v2907 = vpack.c.b16 %v2903, %v2902
        %v2913 = vsel %vm2442, %v1849, 0
        %2915 = vmatprep.subr.bf16.mxu0 0
        %2916 = vmatpush1.bf16.msra.mxu0 %v2904
        %2917 = vmatprep.subr.bf16.mxu0 0
        %2918 = vmatpush1.bf16.msra.mxu0 %v2905
        %2919 = vmatprep.subr.bf16.mxu0 0
        %2920 = vmatpush1.bf16.msra.mxu0 %v2906
        %2921 = vmatprep.subr.bf16.mxu0 0
        %2922 = vmatpush1.bf16.msra.mxu0 %v2907
        %2923 = vmatprep.subr.bf16.mxu0 0
        %2924 = vmatpush1.bf16.msra.mxu0 0
        %2925 = vmatprep.subr.bf16.mxu0 0
        %2926 = vmatpush1.bf16.msra.mxu0 0
        %2927 = vmatprep.subr.bf16.mxu0 0
        %2928 = vmatpush1.bf16.msra.mxu0 0
        %2929 = vmatprep.subr.bf16.mxu0 0
        %2930 = vmatpush1.bf16.msra.mxu0 0
        %2931 = vmatprep.subr.bf16.mxu0 0
        %2932 = vmatpush1.bf16.msra.mxu0 0
        %2933 = vmatprep.subr.bf16.mxu0 0
        %2934 = vmatpush1.bf16.msra.mxu0 0
        %2935 = vmatprep.subr.bf16.mxu0 0
        %2936 = vmatpush1.bf16.msra.mxu0 0
        %2937 = vmatprep.subr.bf16.mxu0 0
        %2938 = vmatpush1.bf16.msra.mxu0 0
        %2939 = vmatprep.subr.bf16.mxu0 0
        %2940 = vmatpush1.bf16.msra.mxu0 0
        %2941 = vmatprep.subr.bf16.mxu0 0
        %2942 = vmatpush1.bf16.msra.mxu0 0
        %2943 = vmatprep.subr.bf16.mxu0 0
        %2944 = vmatpush1.bf16.msra.mxu0 0
        %2945 = vmatprep.subr.bf16.mxu0 0
        %2946 = vmatpush1.bf16.msra.mxu0 0
        %2947 = vmatprep.mubr.bf16.mxu0 0
        %2948 = vmatmul.mubr.bf16.gmra.mrb[0].mxu0 %v2913
        %v2949 = vpop.f32.mrb[0].mxu0
        %v2950 = vadd.f32 0.0, %v2949
        %v2951 = vpop.f32.mrb[0].mxu0
        %v2952 = vpop.f32.mrb[0].mxu0
        %v2953 = vpop.f32.mrb[0].mxu0
        %2954 = vdwg.mxu0
        %v2963 = vunpack.c.l.b16 %v1970
        %v2964 = vunpack.c.l.b16 %v1971
        %v2965 = vunpack.c.l.b16 %v1972
        %v2966 = vunpack.c.l.b16 %v1973
        %v2967 = vunpack.c.l.b16 %v1974
        %v2968 = vunpack.c.l.b16 %v1975
        %v2969 = vunpack.c.l.b16 %v1976
        %v2970 = vunpack.c.l.b16 %v1977
        %v2971 = vpack.c.b16 %v2964, %v2963
        %v2972 = vpack.c.b16 %v2966, %v2965
        %v2973 = vpack.c.b16 %v2968, %v2967
        %v2974 = vpack.c.b16 %v2970, %v2969
        %v2980 = vsel %vm2442, %v1850, 0
        %2982 = vmatprep.subr.bf16.mxu0 0
        %2983 = vmatpush1.bf16.msra.mxu0 %v2971
        %2984 = vmatprep.subr.bf16.mxu0 0
        %2985 = vmatpush1.bf16.msra.mxu0 %v2972
        %2986 = vmatprep.subr.bf16.mxu0 0
        %2987 = vmatpush1.bf16.msra.mxu0 %v2973
        %2988 = vmatprep.subr.bf16.mxu0 0
        %2989 = vmatpush1.bf16.msra.mxu0 %v2974
        %2990 = vmatprep.subr.bf16.mxu0 0
        %2991 = vmatpush1.bf16.msra.mxu0 0
        %2992 = vmatprep.subr.bf16.mxu0 0
        %2993 = vmatpush1.bf16.msra.mxu0 0
        %2994 = vmatprep.subr.bf16.mxu0 0
        %2995 = vmatpush1.bf16.msra.mxu0 0
        %2996 = vmatprep.subr.bf16.mxu0 0
        %2997 = vmatpush1.bf16.msra.mxu0 0
        %2998 = vmatprep.subr.bf16.mxu0 0
        %2999 = vmatpush1.bf16.msra.mxu0 0
        %3000 = vmatprep.subr.bf16.mxu0 0
        %3001 = vmatpush1.bf16.msra.mxu0 0
        %3002 = vmatprep.subr.bf16.mxu0 0
        %3003 = vmatpush1.bf16.msra.mxu0 0
        %3004 = vmatprep.subr.bf16.mxu0 0
        %3005 = vmatpush1.bf16.msra.mxu0 0
        %3006 = vmatprep.subr.bf16.mxu0 0
        %3007 = vmatpush1.bf16.msra.mxu0 0
        %3008 = vmatprep.subr.bf16.mxu0 0
        %3009 = vmatpush1.bf16.msra.mxu0 0
        %3010 = vmatprep.subr.bf16.mxu0 0
        %3011 = vmatpush1.bf16.msra.mxu0 0
        %3012 = vmatprep.subr.bf16.mxu0 0
        %3013 = vmatpush1.bf16.msra.mxu0 0
        %3014 = vmatprep.mubr.bf16.mxu0 0
        %3015 = vmatmul.mubr.bf16.gmra.mrb[0].mxu0 %v2980
        %v3016 = vpop.f32.mrb[0].mxu0
        %v3017 = vadd.f32 0.0, %v3016
        %v3018 = vpop.f32.mrb[0].mxu0
        %v3019 = vpop.f32.mrb[0].mxu0
        %v3020 = vpop.f32.mrb[0].mxu0
        %3021 = vdwg.mxu0
        %v3030 = vunpack.c.l.b16 %v1978
        %v3031 = vunpack.c.l.b16 %v1979
        %v3032 = vunpack.c.l.b16 %v1980
        %v3033 = vunpack.c.l.b16 %v1981
        %v3034 = vunpack.c.l.b16 %v1982
        %v3035 = vunpack.c.l.b16 %v1983
        %v3036 = vunpack.c.l.b16 %v1984
        %v3037 = vunpack.c.l.b16 %v1985
        %v3038 = vpack.c.b16 %v3031, %v3030
        %v3039 = vpack.c.b16 %v3033, %v3032
        %v3040 = vpack.c.b16 %v3035, %v3034
        %v3041 = vpack.c.b16 %v3037, %v3036
        %v3047 = vsel %vm2442, %v1851, 0
        %3049 = vmatprep.subr.bf16.mxu0 0
        %3050 = vmatpush1.bf16.msra.mxu0 %v3038
        %3051 = vmatprep.subr.bf16.mxu0 0
        %3052 = vmatpush1.bf16.msra.mxu0 %v3039
        %3053 = vmatprep.subr.bf16.mxu0 0
        %3054 = vmatpush1.bf16.msra.mxu0 %v3040
        %3055 = vmatprep.subr.bf16.mxu0 0
        %3056 = vmatpush1.bf16.msra.mxu0 %v3041
        %3057 = vmatprep.subr.bf16.mxu0 0
        %3058 = vmatpush1.bf16.msra.mxu0 0
        %3059 = vmatprep.subr.bf16.mxu0 0
        %3060 = vmatpush1.bf16.msra.mxu0 0
        %3061 = vmatprep.subr.bf16.mxu0 0
        %3062 = vmatpush1.bf16.msra.mxu0 0
        %3063 = vmatprep.subr.bf16.mxu0 0
        %3064 = vmatpush1.bf16.msra.mxu0 0
        %3065 = vmatprep.subr.bf16.mxu0 0
        %3066 = vmatpush1.bf16.msra.mxu0 0
        %3067 = vmatprep.subr.bf16.mxu0 0
        %3068 = vmatpush1.bf16.msra.mxu0 0
        %3069 = vmatprep.subr.bf16.mxu0 0
        %3070 = vmatpush1.bf16.msra.mxu0 0
        %3071 = vmatprep.subr.bf16.mxu0 0
        %3072 = vmatpush1.bf16.msra.mxu0 0
        %3073 = vmatprep.subr.bf16.mxu0 0
        %3074 = vmatpush1.bf16.msra.mxu0 0
        %3075 = vmatprep.subr.bf16.mxu0 0
        %3076 = vmatpush1.bf16.msra.mxu0 0
        %3077 = vmatprep.subr.bf16.mxu0 0
        %3078 = vmatpush1.bf16.msra.mxu0 0
        %3079 = vmatprep.subr.bf16.mxu0 0
        %3080 = vmatpush1.bf16.msra.mxu0 0
        %3081 = vmatprep.mubr.bf16.mxu0 0
        %3082 = vmatmul.mubr.bf16.gmra.mrb[0].mxu0 %v3047
        %v3083 = vpop.f32.mrb[0].mxu0
        %v3084 = vadd.f32 0.0, %v3083
        %v3085 = vpop.f32.mrb[0].mxu0
        %v3086 = vpop.f32.mrb[0].mxu0
        %v3087 = vpop.f32.mrb[0].mxu0
        %3088 = vdwg.mxu0
        %v3097 = vunpack.c.l.b16 %v1986
        %v3098 = vunpack.c.l.b16 %v1987
        %v3099 = vunpack.c.l.b16 %v1988
        %v3100 = vunpack.c.l.b16 %v1989
        %v3101 = vunpack.c.l.b16 %v1990
        %v3102 = vunpack.c.l.b16 %v1991
        %v3103 = vunpack.c.l.b16 %v1992
        %v3104 = vunpack.c.l.b16 %v1993
        %v3105 = vpack.c.b16 %v3098, %v3097
        %v3106 = vpack.c.b16 %v3100, %v3099
        %v3107 = vpack.c.b16 %v3102, %v3101
        %v3108 = vpack.c.b16 %v3104, %v3103
        %v3114 = vsel %vm2442, %v1852, 0
        %3116 = vmatprep.subr.bf16.mxu0 0
        %3117 = vmatpush1.bf16.msra.mxu0 %v3105
        %3118 = vmatprep.subr.bf16.mxu0 0
        %3119 = vmatpush1.bf16.msra.mxu0 %v3106
        %3120 = vmatprep.subr.bf16.mxu0 0
        %3121 = vmatpush1.bf16.msra.mxu0 %v3107
        %3122 = vmatprep.subr.bf16.mxu0 0
        %3123 = vmatpush1.bf16.msra.mxu0 %v3108
        %3124 = vmatprep.subr.bf16.mxu0 0
        %3125 = vmatpush1.bf16.msra.mxu0 0
        %3126 = vmatprep.subr.bf16.mxu0 0
        %3127 = vmatpush1.bf16.msra.mxu0 0
        %3128 = vmatprep.subr.bf16.mxu0 0
        %3129 = vmatpush1.bf16.msra.mxu0 0
        %3130 = vmatprep.subr.bf16.mxu0 0
        %3131 = vmatpush1.bf16.msra.mxu0 0
        %3132 = vmatprep.subr.bf16.mxu0 0
        %3133 = vmatpush1.bf16.msra.mxu0 0
        %3134 = vmatprep.subr.bf16.mxu0 0
        %3135 = vmatpush1.bf16.msra.mxu0 0
        %3136 = vmatprep.subr.bf16.mxu0 0
        %3137 = vmatpush1.bf16.msra.mxu0 0
        %3138 = vmatprep.subr.bf16.mxu0 0
        %3139 = vmatpush1.bf16.msra.mxu0 0
        %3140 = vmatprep.subr.bf16.mxu0 0
        %3141 = vmatpush1.bf16.msra.mxu0 0
        %3142 = vmatprep.subr.bf16.mxu0 0
        %3143 = vmatpush1.bf16.msra.mxu0 0
        %3144 = vmatprep.subr.bf16.mxu0 0
        %3145 = vmatpush1.bf16.msra.mxu0 0
        %3146 = vmatprep.subr.bf16.mxu0 0
        %3147 = vmatpush1.bf16.msra.mxu0 0
        %3148 = vmatprep.mubr.bf16.mxu0 0
        %3149 = vmatmul.mubr.bf16.gmra.mrb[0].mxu0 %v3114
        %v3150 = vpop.f32.mrb[0].mxu0
        %v3151 = vadd.f32 0.0, %v3150
        %v3152 = vpop.f32.mrb[0].mxu0
        %v3153 = vpop.f32.mrb[0].mxu0
        %v3154 = vpop.f32.mrb[0].mxu0
        %3155 = vdwg.mxu0
        %v3164 = vunpack.c.l.b16 %v1994
        %v3165 = vunpack.c.l.b16 %v1995
        %v3166 = vunpack.c.l.b16 %v1996
        %v3167 = vunpack.c.l.b16 %v1997
        %v3168 = vunpack.c.l.b16 %v1998
        %v3169 = vunpack.c.l.b16 %v1999
        %v3170 = vunpack.c.l.b16 %v2000
        %v3171 = vunpack.c.l.b16 %v2001
        %v3172 = vpack.c.b16 %v3165, %v3164
        %v3173 = vpack.c.b16 %v3167, %v3166
        %v3174 = vpack.c.b16 %v3169, %v3168
        %v3175 = vpack.c.b16 %v3171, %v3170
        %v3181 = vsel %vm2442, %v1853, 0
        %3183 = vmatprep.subr.bf16.mxu0 0
        %3184 = vmatpush1.bf16.msra.mxu0 %v3172
        %3185 = vmatprep.subr.bf16.mxu0 0
        %3186 = vmatpush1.bf16.msra.mxu0 %v3173
        %3187 = vmatprep.subr.bf16.mxu0 0
        %3188 = vmatpush1.bf16.msra.mxu0 %v3174
        %3189 = vmatprep.subr.bf16.mxu0 0
        %3190 = vmatpush1.bf16.msra.mxu0 %v3175
        %3191 = vmatprep.subr.bf16.mxu0 0
        %3192 = vmatpush1.bf16.msra.mxu0 0
        %3193 = vmatprep.subr.bf16.mxu0 0
        %3194 = vmatpush1.bf16.msra.mxu0 0
        %3195 = vmatprep.subr.bf16.mxu0 0
        %3196 = vmatpush1.bf16.msra.mxu0 0
        %3197 = vmatprep.subr.bf16.mxu0 0
        %3198 = vmatpush1.bf16.msra.mxu0 0
        %3199 = vmatprep.subr.bf16.mxu0 0
        %3200 = vmatpush1.bf16.msra.mxu0 0
        %3201 = vmatprep.subr.bf16.mxu0 0
        %3202 = vmatpush1.bf16.msra.mxu0 0
        %3203 = vmatprep.subr.bf16.mxu0 0
        %3204 = vmatpush1.bf16.msra.mxu0 0
        %3205 = vmatprep.subr.bf16.mxu0 0
        %3206 = vmatpush1.bf16.msra.mxu0 0
        %3207 = vmatprep.subr.bf16.mxu0 0
        %3208 = vmatpush1.bf16.msra.mxu0 0
        %3209 = vmatprep.subr.bf16.mxu0 0
        %3210 = vmatpush1.bf16.msra.mxu0 0
        %3211 = vmatprep.subr.bf16.mxu0 0
        %3212 = vmatpush1.bf16.msra.mxu0 0
        %3213 = vmatprep.subr.bf16.mxu0 0
        %3214 = vmatpush1.bf16.msra.mxu0 0
        %3215 = vmatprep.mubr.bf16.mxu0 0
        %3216 = vmatmul.mubr.bf16.gmra.mrb[0].mxu0 %v3181
        %v3217 = vpop.f32.mrb[0].mxu0
        %v3218 = vadd.f32 0.0, %v3217
        %v3219 = vpop.f32.mrb[0].mxu0
        %v3220 = vpop.f32.mrb[0].mxu0
        %v3221 = vpop.f32.mrb[0].mxu0
        %3222 = vdwg.mxu0
        %v3231 = vunpack.c.l.b16 %v2002
        %v3232 = vunpack.c.l.b16 %v2003
        %v3233 = vunpack.c.l.b16 %v2004
        %v3234 = vunpack.c.l.b16 %v2005
        %v3235 = vunpack.c.l.b16 %v2006
        %v3236 = vunpack.c.l.b16 %v2007
        %v3237 = vunpack.c.l.b16 %v2008
        %v3238 = vunpack.c.l.b16 %v2009
        %v3239 = vpack.c.b16 %v3232, %v3231
        %v3240 = vpack.c.b16 %v3234, %v3233
        %v3241 = vpack.c.b16 %v3236, %v3235
        %v3242 = vpack.c.b16 %v3238, %v3237
        %v3248 = vsel %vm2442, %v1854, 0
        %3250 = vmatprep.subr.bf16.mxu0 0
        %3251 = vmatpush1.bf16.msra.mxu0 %v3239
        %3252 = vmatprep.subr.bf16.mxu0 0
        %3253 = vmatpush1.bf16.msra.mxu0 %v3240
        %3254 = vmatprep.subr.bf16.mxu0 0
        %3255 = vmatpush1.bf16.msra.mxu0 %v3241
        %3256 = vmatprep.subr.bf16.mxu0 0
        %3257 = vmatpush1.bf16.msra.mxu0 %v3242
        %3258 = vmatprep.subr.bf16.mxu0 0
        %3259 = vmatpush1.bf16.msra.mxu0 0
        %3260 = vmatprep.subr.bf16.mxu0 0
        %3261 = vmatpush1.bf16.msra.mxu0 0
        %3262 = vmatprep.subr.bf16.mxu0 0
        %3263 = vmatpush1.bf16.msra.mxu0 0
        %3264 = vmatprep.subr.bf16.mxu0 0
        %3265 = vmatpush1.bf16.msra.mxu0 0
        %3266 = vmatprep.subr.bf16.mxu0 0
        %3267 = vmatpush1.bf16.msra.mxu0 0
        %3268 = vmatprep.subr.bf16.mxu0 0
        %3269 = vmatpush1.bf16.msra.mxu0 0
        %3270 = vmatprep.subr.bf16.mxu0 0
        %3271 = vmatpush1.bf16.msra.mxu0 0
        %3272 = vmatprep.subr.bf16.mxu0 0
        %3273 = vmatpush1.bf16.msra.mxu0 0
        %3274 = vmatprep.subr.bf16.mxu0 0
        %3275 = vmatpush1.bf16.msra.mxu0 0
        %3276 = vmatprep.subr.bf16.mxu0 0
        %3277 = vmatpush1.bf16.msra.mxu0 0
        %3278 = vmatprep.subr.bf16.mxu0 0
        %3279 = vmatpush1.bf16.msra.mxu0 0
        %3280 = vmatprep.subr.bf16.mxu0 0
        %3281 = vmatpush1.bf16.msra.mxu0 0
        %3282 = vmatprep.mubr.bf16.mxu0 0
        %3283 = vmatmul.mubr.bf16.gmra.mrb[0].mxu0 %v3248
        %v3284 = vpop.f32.mrb[0].mxu0
        %v3285 = vadd.f32 0.0, %v3284
        %v3286 = vpop.f32.mrb[0].mxu0
        %v3287 = vpop.f32.mrb[0].mxu0
        %v3288 = vpop.f32.mrb[0].mxu0
        %3289 = vdwg.mxu0
        %v3298 = vunpack.c.l.b16 %v2010
        %v3299 = vunpack.c.l.b16 %v2011
        %v3300 = vunpack.c.l.b16 %v2012
        %v3301 = vunpack.c.l.b16 %v2013
        %v3302 = vunpack.c.l.b16 %v2014
        %v3303 = vunpack.c.l.b16 %v2015
        %v3304 = vunpack.c.l.b16 %v2016
        %v3305 = vunpack.c.l.b16 %v2017
        %v3306 = vpack.c.b16 %v3299, %v3298
        %v3307 = vpack.c.b16 %v3301, %v3300
        %v3308 = vpack.c.b16 %v3303, %v3302
        %v3309 = vpack.c.b16 %v3305, %v3304
        %v3315 = vsel %vm2442, %v1855, 0
        %3317 = vmatprep.subr.bf16.mxu0 0
        %3318 = vmatpush1.bf16.msra.mxu0 %v3306
        %3319 = vmatprep.subr.bf16.mxu0 0
        %3320 = vmatpush1.bf16.msra.mxu0 %v3307
        %3321 = vmatprep.subr.bf16.mxu0 0
        %3322 = vmatpush1.bf16.msra.mxu0 %v3308
        %3323 = vmatprep.subr.bf16.mxu0 0
        %3324 = vmatpush1.bf16.msra.mxu0 %v3309
        %3325 = vmatprep.subr.bf16.mxu0 0
        %3326 = vmatpush1.bf16.msra.mxu0 0
        %3327 = vmatprep.subr.bf16.mxu0 0
        %3328 = vmatpush1.bf16.msra.mxu0 0
        %3329 = vmatprep.subr.bf16.mxu0 0
        %3330 = vmatpush1.bf16.msra.mxu0 0
        %3331 = vmatprep.subr.bf16.mxu0 0
        %3332 = vmatpush1.bf16.msra.mxu0 0
        %3333 = vmatprep.subr.bf16.mxu0 0
        %3334 = vmatpush1.bf16.msra.mxu0 0
        %3335 = vmatprep.subr.bf16.mxu0 0
        %3336 = vmatpush1.bf16.msra.mxu0 0
        %3337 = vmatprep.subr.bf16.mxu0 0
        %3338 = vmatpush1.bf16.msra.mxu0 0
        %3339 = vmatprep.subr.bf16.mxu0 0
        %3340 = vmatpush1.bf16.msra.mxu0 0
        %3341 = vmatprep.subr.bf16.mxu0 0
        %3342 = vmatpush1.bf16.msra.mxu0 0
        %3343 = vmatprep.subr.bf16.mxu0 0
        %3344 = vmatpush1.bf16.msra.mxu0 0
        %3345 = vmatprep.subr.bf16.mxu0 0
        %3346 = vmatpush1.bf16.msra.mxu0 0
        %3347 = vmatprep.subr.bf16.mxu0 0
        %3348 = vmatpush1.bf16.msra.mxu0 0
        %3349 = vmatprep.mubr.bf16.mxu0 0
        %3350 = vmatmul.mubr.bf16.gmra.mrb[0].mxu0 %v3315
        %v3351 = vpop.f32.mrb[0].mxu0
        %v3352 = vadd.f32 0.0, %v3351
        %v3353 = vpop.f32.mrb[0].mxu0
        %v3354 = vpop.f32.mrb[0].mxu0
        %v3355 = vpop.f32.mrb[0].mxu0
        %3356 = vdwg.mxu0
        %v3365 = vunpack.c.l.b16 %v2018
        %v3366 = vunpack.c.l.b16 %v2019
        %v3367 = vunpack.c.l.b16 %v2020
        %v3368 = vunpack.c.l.b16 %v2021
        %v3369 = vunpack.c.l.b16 %v2022
        %v3370 = vunpack.c.l.b16 %v2023
        %v3371 = vunpack.c.l.b16 %v2024
        %v3372 = vunpack.c.l.b16 %v2025
        %v3373 = vpack.c.b16 %v3366, %v3365
        %v3374 = vpack.c.b16 %v3368, %v3367
        %v3375 = vpack.c.b16 %v3370, %v3369
        %v3376 = vpack.c.b16 %v3372, %v3371
        %v3382 = vsel %vm2442, %v1856, 0
        %3384 = vmatprep.subr.bf16.mxu0 0
        %3385 = vmatpush1.bf16.msra.mxu0 %v3373
        %3386 = vmatprep.subr.bf16.mxu0 0
        %3387 = vmatpush1.bf16.msra.mxu0 %v3374
        %3388 = vmatprep.subr.bf16.mxu0 0
        %3389 = vmatpush1.bf16.msra.mxu0 %v3375
        %3390 = vmatprep.subr.bf16.mxu0 0
        %3391 = vmatpush1.bf16.msra.mxu0 %v3376
        %3392 = vmatprep.subr.bf16.mxu0 0
        %3393 = vmatpush1.bf16.msra.mxu0 0
        %3394 = vmatprep.subr.bf16.mxu0 0
        %3395 = vmatpush1.bf16.msra.mxu0 0
        %3396 = vmatprep.subr.bf16.mxu0 0
        %3397 = vmatpush1.bf16.msra.mxu0 0
        %3398 = vmatprep.subr.bf16.mxu0 0
        %3399 = vmatpush1.bf16.msra.mxu0 0
        %3400 = vmatprep.subr.bf16.mxu0 0
        %3401 = vmatpush1.bf16.msra.mxu0 0
        %3402 = vmatprep.subr.bf16.mxu0 0
        %3403 = vmatpush1.bf16.msra.mxu0 0
        %3404 = vmatprep.subr.bf16.mxu0 0
        %3405 = vmatpush1.bf16.msra.mxu0 0
        %3406 = vmatprep.subr.bf16.mxu0 0
        %3407 = vmatpush1.bf16.msra.mxu0 0
        %3408 = vmatprep.subr.bf16.mxu0 0
        %3409 = vmatpush1.bf16.msra.mxu0 0
        %3410 = vmatprep.subr.bf16.mxu0 0
        %3411 = vmatpush1.bf16.msra.mxu0 0
        %3412 = vmatprep.subr.bf16.mxu0 0
        %3413 = vmatpush1.bf16.msra.mxu0 0
        %3414 = vmatprep.subr.bf16.mxu0 0
        %3415 = vmatpush1.bf16.msra.mxu0 0
        %3416 = vmatprep.mubr.bf16.mxu0 0
        %3417 = vmatmul.mubr.bf16.gmra.mrb[0].mxu0 %v3382
        %v3418 = vpop.f32.mrb[0].mxu0
        %v3419 = vadd.f32 0.0, %v3418
        %v3420 = vpop.f32.mrb[0].mxu0
        %v3421 = vpop.f32.mrb[0].mxu0
        %v3422 = vpop.f32.mrb[0].mxu0
        %3423 = vdwg.mxu0
        %v3432 = vunpack.c.l.b16 %v2026
        %v3433 = vunpack.c.l.b16 %v2027
        %v3434 = vunpack.c.l.b16 %v2028
        %v3435 = vunpack.c.l.b16 %v2029
        %v3436 = vunpack.c.l.b16 %v2030
        %v3437 = vunpack.c.l.b16 %v2031
        %v3438 = vunpack.c.l.b16 %v2032
        %v3439 = vunpack.c.l.b16 %v2033
        %v3440 = vpack.c.b16 %v3433, %v3432
        %v3441 = vpack.c.b16 %v3435, %v3434
        %v3442 = vpack.c.b16 %v3437, %v3436
        %v3443 = vpack.c.b16 %v3439, %v3438
        %v3449 = vsel %vm2442, %v1857, 0
        %3451 = vmatprep.subr.bf16.mxu0 0
        %3452 = vmatpush1.bf16.msra.mxu0 %v3440
        %3453 = vmatprep.subr.bf16.mxu0 0
        %3454 = vmatpush1.bf16.msra.mxu0 %v3441
        %3455 = vmatprep.subr.bf16.mxu0 0
        %3456 = vmatpush1.bf16.msra.mxu0 %v3442
        %3457 = vmatprep.subr.bf16.mxu0 0
        %3458 = vmatpush1.bf16.msra.mxu0 %v3443
        %3459 = vmatprep.subr.bf16.mxu0 0
        %3460 = vmatpush1.bf16.msra.mxu0 0
        %3461 = vmatprep.subr.bf16.mxu0 0
        %3462 = vmatpush1.bf16.msra.mxu0 0
        %3463 = vmatprep.subr.bf16.mxu0 0
        %3464 = vmatpush1.bf16.msra.mxu0 0
        %3465 = vmatprep.subr.bf16.mxu0 0
        %3466 = vmatpush1.bf16.msra.mxu0 0
        %3467 = vmatprep.subr.bf16.mxu0 0
        %3468 = vmatpush1.bf16.msra.mxu0 0
        %3469 = vmatprep.subr.bf16.mxu0 0
        %3470 = vmatpush1.bf16.msra.mxu0 0
        %3471 = vmatprep.subr.bf16.mxu0 0
        %3472 = vmatpush1.bf16.msra.mxu0 0
        %3473 = vmatprep.subr.bf16.mxu0 0
        %3474 = vmatpush1.bf16.msra.mxu0 0
        %3475 = vmatprep.subr.bf16.mxu0 0
        %3476 = vmatpush1.bf16.msra.mxu0 0
        %3477 = vmatprep.subr.bf16.mxu0 0
        %3478 = vmatpush1.bf16.msra.mxu0 0
        %3479 = vmatprep.subr.bf16.mxu0 0
        %3480 = vmatpush1.bf16.msra.mxu0 0
        %3481 = vmatprep.subr.bf16.mxu0 0
        %3482 = vmatpush1.bf16.msra.mxu0 0
        %3483 = vmatprep.mubr.bf16.mxu0 0
        %3484 = vmatmul.mubr.bf16.gmra.mrb[0].mxu0 %v3449
        %v3485 = vpop.f32.mrb[0].mxu0
        %v3486 = vadd.f32 0.0, %v3485
        %v3487 = vpop.f32.mrb[0].mxu0
        %v3488 = vpop.f32.mrb[0].mxu0
        %v3489 = vpop.f32.mrb[0].mxu0
        %3490 = vdwg.mxu0
        %v3499 = vunpack.c.l.b16 %v2034
        %v3500 = vunpack.c.l.b16 %v2035
        %v3501 = vunpack.c.l.b16 %v2036
        %v3502 = vunpack.c.l.b16 %v2037
        %v3503 = vunpack.c.l.b16 %v2038
        %v3504 = vunpack.c.l.b16 %v2039
        %v3505 = vunpack.c.l.b16 %v2040
        %v3506 = vunpack.c.l.b16 %v2041
        %v3507 = vpack.c.b16 %v3500, %v3499
        %v3508 = vpack.c.b16 %v3502, %v3501
        %v3509 = vpack.c.b16 %v3504, %v3503
        %v3510 = vpack.c.b16 %v3506, %v3505
        %v3516 = vsel %vm2442, %v1858, 0
        %3518 = vmatprep.subr.bf16.mxu0 0
        %3519 = vmatpush1.bf16.msra.mxu0 %v3507
        %3520 = vmatprep.subr.bf16.mxu0 0
        %3521 = vmatpush1.bf16.msra.mxu0 %v3508
        %3522 = vmatprep.subr.bf16.mxu0 0
        %3523 = vmatpush1.bf16.msra.mxu0 %v3509
        %3524 = vmatprep.subr.bf16.mxu0 0
        %3525 = vmatpush1.bf16.msra.mxu0 %v3510
        %3526 = vmatprep.subr.bf16.mxu0 0
        %3527 = vmatpush1.bf16.msra.mxu0 0
        %3528 = vmatprep.subr.bf16.mxu0 0
        %3529 = vmatpush1.bf16.msra.mxu0 0
        %3530 = vmatprep.subr.bf16.mxu0 0
        %3531 = vmatpush1.bf16.msra.mxu0 0
        %3532 = vmatprep.subr.bf16.mxu0 0
        %3533 = vmatpush1.bf16.msra.mxu0 0
        %3534 = vmatprep.subr.bf16.mxu0 0
        %3535 = vmatpush1.bf16.msra.mxu0 0
        %3536 = vmatprep.subr.bf16.mxu0 0
        %3537 = vmatpush1.bf16.msra.mxu0 0
        %3538 = vmatprep.subr.bf16.mxu0 0
        %3539 = vmatpush1.bf16.msra.mxu0 0
        %3540 = vmatprep.subr.bf16.mxu0 0
        %3541 = vmatpush1.bf16.msra.mxu0 0
        %3542 = vmatprep.subr.bf16.mxu0 0
        %3543 = vmatpush1.bf16.msra.mxu0 0
        %3544 = vmatprep.subr.bf16.mxu0 0
        %3545 = vmatpush1.bf16.msra.mxu0 0
        %3546 = vmatprep.subr.bf16.mxu0 0
        %3547 = vmatpush1.bf16.msra.mxu0 0
        %3548 = vmatprep.subr.bf16.mxu0 0
        %3549 = vmatpush1.bf16.msra.mxu0 0
        %3550 = vmatprep.mubr.bf16.mxu0 0
        %3551 = vmatmul.mubr.bf16.gmra.mrb[0].mxu0 %v3516
        %v3552 = vpop.f32.mrb[0].mxu0
        %v3553 = vadd.f32 0.0, %v3552
        %v3554 = vpop.f32.mrb[0].mxu0
        %v3555 = vpop.f32.mrb[0].mxu0
        %v3556 = vpop.f32.mrb[0].mxu0
        %3557 = vdwg.mxu0
        %v3566 = vunpack.c.l.b16 %v2042
        %v3567 = vunpack.c.l.b16 %v2043
        %v3568 = vunpack.c.l.b16 %v2044
        %v3569 = vunpack.c.l.b16 %v2045
        %v3570 = vunpack.c.l.b16 %v2046
        %v3571 = vunpack.c.l.b16 %v2047
        %v3572 = vunpack.c.l.b16 %v2048
        %v3573 = vunpack.c.l.b16 %v2049
        %v3574 = vpack.c.b16 %v3567, %v3566
        %v3575 = vpack.c.b16 %v3569, %v3568
        %v3576 = vpack.c.b16 %v3571, %v3570
        %v3577 = vpack.c.b16 %v3573, %v3572
        %v3583 = vsel %vm2442, %v1859, 0
        %3585 = vmatprep.subr.bf16.mxu0 0
        %3586 = vmatpush1.bf16.msra.mxu0 %v3574
        %3587 = vmatprep.subr.bf16.mxu0 0
        %3588 = vmatpush1.bf16.msra.mxu0 %v3575
        %3589 = vmatprep.subr.bf16.mxu0 0
        %3590 = vmatpush1.bf16.msra.mxu0 %v3576
        %3591 = vmatprep.subr.bf16.mxu0 0
        %3592 = vmatpush1.bf16.msra.mxu0 %v3577
        %3593 = vmatprep.subr.bf16.mxu0 0
        %3594 = vmatpush1.bf16.msra.mxu0 0
        %3595 = vmatprep.subr.bf16.mxu0 0
        %3596 = vmatpush1.bf16.msra.mxu0 0
        %3597 = vmatprep.subr.bf16.mxu0 0
        %3598 = vmatpush1.bf16.msra.mxu0 0
        %3599 = vmatprep.subr.bf16.mxu0 0
        %3600 = vmatpush1.bf16.msra.mxu0 0
        %3601 = vmatprep.subr.bf16.mxu0 0
        %3602 = vmatpush1.bf16.msra.mxu0 0
        %3603 = vmatprep.subr.bf16.mxu0 0
        %3604 = vmatpush1.bf16.msra.mxu0 0
        %3605 = vmatprep.subr.bf16.mxu0 0
        %3606 = vmatpush1.bf16.msra.mxu0 0
        %3607 = vmatprep.subr.bf16.mxu0 0
        %3608 = vmatpush1.bf16.msra.mxu0 0
        %3609 = vmatprep.subr.bf16.mxu0 0
        %3610 = vmatpush1.bf16.msra.mxu0 0
        %3611 = vmatprep.subr.bf16.mxu0 0
        %3612 = vmatpush1.bf16.msra.mxu0 0
        %3613 = vmatprep.subr.bf16.mxu0 0
        %3614 = vmatpush1.bf16.msra.mxu0 0
        %3615 = vmatprep.subr.bf16.mxu0 0
        %3616 = vmatpush1.bf16.msra.mxu0 0
        %3617 = vmatprep.mubr.bf16.mxu0 0
        %3618 = vmatmul.mubr.bf16.gmra.mrb[0].mxu0 %v3583
        %v3619 = vpop.f32.mrb[0].mxu0
        %v3620 = vadd.f32 0.0, %v3619
        %v3621 = vpop.f32.mrb[0].mxu0
        %v3622 = vpop.f32.mrb[0].mxu0
        %v3623 = vpop.f32.mrb[0].mxu0
        %3624 = vdwg.mxu0
        %v3633 = vunpack.c.l.b16 %v2050
        %v3634 = vunpack.c.l.b16 %v2051
        %v3635 = vunpack.c.l.b16 %v2052
        %v3636 = vunpack.c.l.b16 %v2053
        %v3637 = vunpack.c.l.b16 %v2054
        %v3638 = vunpack.c.l.b16 %v2055
        %v3639 = vunpack.c.l.b16 %v2056
        %v3640 = vunpack.c.l.b16 %v2057
        %v3641 = vpack.c.b16 %v3634, %v3633
        %v3642 = vpack.c.b16 %v3636, %v3635
        %v3643 = vpack.c.b16 %v3638, %v3637
        %v3644 = vpack.c.b16 %v3640, %v3639
        %v3650 = vsel %vm2442, %v1860, 0
        %3652 = vmatprep.subr.bf16.mxu0 0
        %3653 = vmatpush1.bf16.msra.mxu0 %v3641
        %3654 = vmatprep.subr.bf16.mxu0 0
        %3655 = vmatpush1.bf16.msra.mxu0 %v3642
        %3656 = vmatprep.subr.bf16.mxu0 0
        %3657 = vmatpush1.bf16.msra.mxu0 %v3643
        %3658 = vmatprep.subr.bf16.mxu0 0
        %3659 = vmatpush1.bf16.msra.mxu0 %v3644
        %3660 = vmatprep.subr.bf16.mxu0 0
        %3661 = vmatpush1.bf16.msra.mxu0 0
        %3662 = vmatprep.subr.bf16.mxu0 0
        %3663 = vmatpush1.bf16.msra.mxu0 0
        %3664 = vmatprep.subr.bf16.mxu0 0
        %3665 = vmatpush1.bf16.msra.mxu0 0
        %3666 = vmatprep.subr.bf16.mxu0 0
        %3667 = vmatpush1.bf16.msra.mxu0 0
        %3668 = vmatprep.subr.bf16.mxu0 0
        %3669 = vmatpush1.bf16.msra.mxu0 0
        %3670 = vmatprep.subr.bf16.mxu0 0
        %3671 = vmatpush1.bf16.msra.mxu0 0
        %3672 = vmatprep.subr.bf16.mxu0 0
        %3673 = vmatpush1.bf16.msra.mxu0 0
        %3674 = vmatprep.subr.bf16.mxu0 0
        %3675 = vmatpush1.bf16.msra.mxu0 0
        %3676 = vmatprep.subr.bf16.mxu0 0
        %3677 = vmatpush1.bf16.msra.mxu0 0
        %3678 = vmatprep.subr.bf16.mxu0 0
        %3679 = vmatpush1.bf16.msra.mxu0 0
        %3680 = vmatprep.subr.bf16.mxu0 0
        %3681 = vmatpush1.bf16.msra.mxu0 0
        %3682 = vmatprep.subr.bf16.mxu0 0
        %3683 = vmatpush1.bf16.msra.mxu0 0
        %3684 = vmatprep.mubr.bf16.mxu0 0
        %3685 = vmatmul.mubr.bf16.gmra.mrb[0].mxu0 %v3650
        %v3686 = vpop.f32.mrb[0].mxu0
        %v3687 = vadd.f32 0.0, %v3686
        %v3688 = vpop.f32.mrb[0].mxu0
        %v3689 = vpop.f32.mrb[0].mxu0
        %v3690 = vpop.f32.mrb[0].mxu0
        %3691 = vdwg.mxu0
        %v3700 = vunpack.c.l.b16 %v2058
        %v3701 = vunpack.c.l.b16 %v2059
        %v3702 = vunpack.c.l.b16 %v2060
        %v3703 = vunpack.c.l.b16 %v2061
        %v3704 = vunpack.c.l.b16 %v2062
        %v3705 = vunpack.c.l.b16 %v2063
        %v3706 = vunpack.c.l.b16 %v2064
        %v3707 = vunpack.c.l.b16 %v2065
        %v3708 = vpack.c.b16 %v3701, %v3700
        %v3709 = vpack.c.b16 %v3703, %v3702
        %v3710 = vpack.c.b16 %v3705, %v3704
        %v3711 = vpack.c.b16 %v3707, %v3706
        %v3717 = vsel %vm2442, %v1861, 0
        %3719 = vmatprep.subr.bf16.mxu0 0
        %3720 = vmatpush1.bf16.msra.mxu0 %v3708
        %3721 = vmatprep.subr.bf16.mxu0 0
        %3722 = vmatpush1.bf16.msra.mxu0 %v3709
        %3723 = vmatprep.subr.bf16.mxu0 0
        %3724 = vmatpush1.bf16.msra.mxu0 %v3710
        %3725 = vmatprep.subr.bf16.mxu0 0
        %3726 = vmatpush1.bf16.msra.mxu0 %v3711
        %3727 = vmatprep.subr.bf16.mxu0 0
        %3728 = vmatpush1.bf16.msra.mxu0 0
        %3729 = vmatprep.subr.bf16.mxu0 0
        %3730 = vmatpush1.bf16.msra.mxu0 0
        %3731 = vmatprep.subr.bf16.mxu0 0
        %3732 = vmatpush1.bf16.msra.mxu0 0
        %3733 = vmatprep.subr.bf16.mxu0 0
        %3734 = vmatpush1.bf16.msra.mxu0 0
        %3735 = vmatprep.subr.bf16.mxu0 0
        %3736 = vmatpush1.bf16.msra.mxu0 0
        %3737 = vmatprep.subr.bf16.mxu0 0
        %3738 = vmatpush1.bf16.msra.mxu0 0
        %3739 = vmatprep.subr.bf16.mxu0 0
        %3740 = vmatpush1.bf16.msra.mxu0 0
        %3741 = vmatprep.subr.bf16.mxu0 0
        %3742 = vmatpush1.bf16.msra.mxu0 0
        %3743 = vmatprep.subr.bf16.mxu0 0
        %3744 = vmatpush1.bf16.msra.mxu0 0
        %3745 = vmatprep.subr.bf16.mxu0 0
        %3746 = vmatpush1.bf16.msra.mxu0 0
        %3747 = vmatprep.subr.bf16.mxu0 0
        %3748 = vmatpush1.bf16.msra.mxu0 0
        %3749 = vmatprep.subr.bf16.mxu0 0
        %3750 = vmatpush1.bf16.msra.mxu0 0
        %3751 = vmatprep.mubr.bf16.mxu0 0
        %3752 = vmatmul.mubr.bf16.gmra.mrb[0].mxu0 %v3717
        %v3753 = vpop.f32.mrb[0].mxu0
        %v3754 = vadd.f32 0.0, %v3753
        %v3755 = vpop.f32.mrb[0].mxu0
        %v3756 = vpop.f32.mrb[0].mxu0
        %v3757 = vpop.f32.mrb[0].mxu0
        %3758 = vdwg.mxu0
        %v3767 = vunpack.c.l.b16 %v2066
        %v3768 = vunpack.c.l.b16 %v2067
        %v3769 = vunpack.c.l.b16 %v2068
        %v3770 = vunpack.c.l.b16 %v2069
        %v3771 = vunpack.c.l.b16 %v2070
        %v3772 = vunpack.c.l.b16 %v2071
        %v3773 = vunpack.c.l.b16 %v2072
        %v3774 = vunpack.c.l.b16 %v2073
        %v3775 = vpack.c.b16 %v3768, %v3767
        %v3776 = vpack.c.b16 %v3770, %v3769
        %v3777 = vpack.c.b16 %v3772, %v3771
        %v3778 = vpack.c.b16 %v3774, %v3773
        %v3784 = vsel %vm2442, %v1862, 0
        %3786 = vmatprep.subr.bf16.mxu0 0
        %3787 = vmatpush1.bf16.msra.mxu0 %v3775
        %3788 = vmatprep.subr.bf16.mxu0 0
        %3789 = vmatpush1.bf16.msra.mxu0 %v3776
        %3790 = vmatprep.subr.bf16.mxu0 0
        %3791 = vmatpush1.bf16.msra.mxu0 %v3777
        %3792 = vmatprep.subr.bf16.mxu0 0
        %3793 = vmatpush1.bf16.msra.mxu0 %v3778
        %3794 = vmatprep.subr.bf16.mxu0 0
        %3795 = vmatpush1.bf16.msra.mxu0 0
        %3796 = vmatprep.subr.bf16.mxu0 0
        %3797 = vmatpush1.bf16.msra.mxu0 0
        %3798 = vmatprep.subr.bf16.mxu0 0
        %3799 = vmatpush1.bf16.msra.mxu0 0
        %3800 = vmatprep.subr.bf16.mxu0 0
        %3801 = vmatpush1.bf16.msra.mxu0 0
        %3802 = vmatprep.subr.bf16.mxu0 0
        %3803 = vmatpush1.bf16.msra.mxu0 0
        %3804 = vmatprep.subr.bf16.mxu0 0
        %3805 = vmatpush1.bf16.msra.mxu0 0
        %3806 = vmatprep.subr.bf16.mxu0 0
        %3807 = vmatpush1.bf16.msra.mxu0 0
        %3808 = vmatprep.subr.bf16.mxu0 0
        %3809 = vmatpush1.bf16.msra.mxu0 0
        %3810 = vmatprep.subr.bf16.mxu0 0
        %3811 = vmatpush1.bf16.msra.mxu0 0
        %3812 = vmatprep.subr.bf16.mxu0 0
        %3813 = vmatpush1.bf16.msra.mxu0 0
        %3814 = vmatprep.subr.bf16.mxu0 0
        %3815 = vmatpush1.bf16.msra.mxu0 0
        %3816 = vmatprep.subr.bf16.mxu0 0
        %3817 = vmatpush1.bf16.msra.mxu0 0
        %3818 = vmatprep.mubr.bf16.mxu0 0
        %3819 = vmatmul.mubr.bf16.gmra.mrb[0].mxu0 %v3784
        %v3820 = vpop.f32.mrb[0].mxu0
        %v3821 = vadd.f32 0.0, %v3820
        %v3822 = vpop.f32.mrb[0].mxu0
        %v3823 = vpop.f32.mrb[0].mxu0
        %v3824 = vpop.f32.mrb[0].mxu0
        %3825 = vdwg.mxu0
        %v3834 = vunpack.c.l.b16 %v2074
        %v3835 = vunpack.c.l.b16 %v2075
        %v3836 = vunpack.c.l.b16 %v2076
        %v3837 = vunpack.c.l.b16 %v2077
        %v3838 = vunpack.c.l.b16 %v2078
        %v3839 = vunpack.c.l.b16 %v2079
        %v3840 = vunpack.c.l.b16 %v2080
        %v3841 = vunpack.c.l.b16 %v2081
        %v3842 = vpack.c.b16 %v3835, %v3834
        %v3843 = vpack.c.b16 %v3837, %v3836
        %v3844 = vpack.c.b16 %v3839, %v3838
        %v3845 = vpack.c.b16 %v3841, %v3840
        %v3851 = vsel %vm2442, %v1863, 0
        %3853 = vmatprep.subr.bf16.mxu0 0
        %3854 = vmatpush1.bf16.msra.mxu0 %v3842
        %3855 = vmatprep.subr.bf16.mxu0 0
        %3856 = vmatpush1.bf16.msra.mxu0 %v3843
        %3857 = vmatprep.subr.bf16.mxu0 0
        %3858 = vmatpush1.bf16.msra.mxu0 %v3844
        %3859 = vmatprep.subr.bf16.mxu0 0
        %3860 = vmatpush1.bf16.msra.mxu0 %v3845
        %3861 = vmatprep.subr.bf16.mxu0 0
        %3862 = vmatpush1.bf16.msra.mxu0 0
        %3863 = vmatprep.subr.bf16.mxu0 0
        %3864 = vmatpush1.bf16.msra.mxu0 0
        %3865 = vmatprep.subr.bf16.mxu0 0
        %3866 = vmatpush1.bf16.msra.mxu0 0
        %3867 = vmatprep.subr.bf16.mxu0 0
        %3868 = vmatpush1.bf16.msra.mxu0 0
        %3869 = vmatprep.subr.bf16.mxu0 0
        %3870 = vmatpush1.bf16.msra.mxu0 0
        %3871 = vmatprep.subr.bf16.mxu0 0
        %3872 = vmatpush1.bf16.msra.mxu0 0
        %3873 = vmatprep.subr.bf16.mxu0 0
        %3874 = vmatpush1.bf16.msra.mxu0 0
        %3875 = vmatprep.subr.bf16.mxu0 0
        %3876 = vmatpush1.bf16.msra.mxu0 0
        %3877 = vmatprep.subr.bf16.mxu0 0
        %3878 = vmatpush1.bf16.msra.mxu0 0
        %3879 = vmatprep.subr.bf16.mxu0 0
        %3880 = vmatpush1.bf16.msra.mxu0 0
        %3881 = vmatprep.subr.bf16.mxu0 0
        %3882 = vmatpush1.bf16.msra.mxu0 0
        %3883 = vmatprep.subr.bf16.mxu0 0
        %3884 = vmatpush1.bf16.msra.mxu0 0
        %3885 = vmatprep.mubr.bf16.mxu0 0
        %3886 = vmatmul.mubr.bf16.gmra.mrb[0].mxu0 %v3851
        %v3887 = vpop.f32.mrb[0].mxu0
        %v3888 = vadd.f32 0.0, %v3887
        %v3889 = vpop.f32.mrb[0].mxu0
        %v3890 = vpop.f32.mrb[0].mxu0
        %v3891 = vpop.f32.mrb[0].mxu0
        %3892 = vdwg.mxu0
        %v3901 = vunpack.c.l.b16 %v2082
        %v3902 = vunpack.c.l.b16 %v2083
        %v3903 = vunpack.c.l.b16 %v2084
        %v3904 = vunpack.c.l.b16 %v2085
        %v3905 = vunpack.c.l.b16 %v2086
        %v3906 = vunpack.c.l.b16 %v2087
        %v3907 = vunpack.c.l.b16 %v2088
        %v3908 = vunpack.c.l.b16 %v2089
        %v3909 = vpack.c.b16 %v3902, %v3901
        %v3910 = vpack.c.b16 %v3904, %v3903
        %v3911 = vpack.c.b16 %v3906, %v3905
        %v3912 = vpack.c.b16 %v3908, %v3907
        %v3918 = vsel %vm2442, %v1864, 0
        %3920 = vmatprep.subr.bf16.mxu0 0
        %3921 = vmatpush1.bf16.msra.mxu0 %v3909
        %3922 = vmatprep.subr.bf16.mxu0 0
        %3923 = vmatpush1.bf16.msra.mxu0 %v3910
        %3924 = vmatprep.subr.bf16.mxu0 0
        %3925 = vmatpush1.bf16.msra.mxu0 %v3911
        %3926 = vmatprep.subr.bf16.mxu0 0
        %3927 = vmatpush1.bf16.msra.mxu0 %v3912
        %3928 = vmatprep.subr.bf16.mxu0 0
        %3929 = vmatpush1.bf16.msra.mxu0 0
        %3930 = vmatprep.subr.bf16.mxu0 0
        %3931 = vmatpush1.bf16.msra.mxu0 0
        %3932 = vmatprep.subr.bf16.mxu0 0
        %3933 = vmatpush1.bf16.msra.mxu0 0
        %3934 = vmatprep.subr.bf16.mxu0 0
        %3935 = vmatpush1.bf16.msra.mxu0 0
        %3936 = vmatprep.subr.bf16.mxu0 0
        %3937 = vmatpush1.bf16.msra.mxu0 0
        %3938 = vmatprep.subr.bf16.mxu0 0
        %3939 = vmatpush1.bf16.msra.mxu0 0
        %3940 = vmatprep.subr.bf16.mxu0 0
        %3941 = vmatpush1.bf16.msra.mxu0 0
        %3942 = vmatprep.subr.bf16.mxu0 0
        %3943 = vmatpush1.bf16.msra.mxu0 0
        %3944 = vmatprep.subr.bf16.mxu0 0
        %3945 = vmatpush1.bf16.msra.mxu0 0
        %3946 = vmatprep.subr.bf16.mxu0 0
        %3947 = vmatpush1.bf16.msra.mxu0 0
        %3948 = vmatprep.subr.bf16.mxu0 0
        %3949 = vmatpush1.bf16.msra.mxu0 0
        %3950 = vmatprep.subr.bf16.mxu0 0
        %3951 = vmatpush1.bf16.msra.mxu0 0
        %3952 = vmatprep.mubr.bf16.mxu0 0
        %3953 = vmatmul.mubr.bf16.gmra.mrb[0].mxu0 %v3918
        %v3954 = vpop.f32.mrb[0].mxu0
        %v3955 = vadd.f32 0.0, %v3954
        %v3956 = vpop.f32.mrb[0].mxu0
        %v3957 = vpop.f32.mrb[0].mxu0
        %v3958 = vpop.f32.mrb[0].mxu0
        %3959 = vdwg.mxu0
        %v3968 = vunpack.c.l.b16 %v2090
        %v3969 = vunpack.c.l.b16 %v2091
        %v3970 = vunpack.c.l.b16 %v2092
        %v3971 = vunpack.c.l.b16 %v2093
        %v3972 = vunpack.c.l.b16 %v2094
        %v3973 = vunpack.c.l.b16 %v2095
        %v3974 = vunpack.c.l.b16 %v2096
        %v3975 = vunpack.c.l.b16 %v2097
        %v3976 = vpack.c.b16 %v3969, %v3968
        %v3977 = vpack.c.b16 %v3971, %v3970
        %v3978 = vpack.c.b16 %v3973, %v3972
        %v3979 = vpack.c.b16 %v3975, %v3974
        %v3985 = vsel %vm2442, %v1865, 0
        %3987 = vmatprep.subr.bf16.mxu0 0
        %3988 = vmatpush1.bf16.msra.mxu0 %v3976
        %3989 = vmatprep.subr.bf16.mxu0 0
        %3990 = vmatpush1.bf16.msra.mxu0 %v3977
        %3991 = vmatprep.subr.bf16.mxu0 0
        %3992 = vmatpush1.bf16.msra.mxu0 %v3978
        %3993 = vmatprep.subr.bf16.mxu0 0
        %3994 = vmatpush1.bf16.msra.mxu0 %v3979
        %3995 = vmatprep.subr.bf16.mxu0 0
        %3996 = vmatpush1.bf16.msra.mxu0 0
        %3997 = vmatprep.subr.bf16.mxu0 0
        %3998 = vmatpush1.bf16.msra.mxu0 0
        %3999 = vmatprep.subr.bf16.mxu0 0
        %4000 = vmatpush1.bf16.msra.mxu0 0
        %4001 = vmatprep.subr.bf16.mxu0 0
        %4002 = vmatpush1.bf16.msra.mxu0 0
        %4003 = vmatprep.subr.bf16.mxu0 0
        %4004 = vmatpush1.bf16.msra.mxu0 0
        %4005 = vmatprep.subr.bf16.mxu0 0
        %4006 = vmatpush1.bf16.msra.mxu0 0
        %4007 = vmatprep.subr.bf16.mxu0 0
        %4008 = vmatpush1.bf16.msra.mxu0 0
        %4009 = vmatprep.subr.bf16.mxu0 0
        %4010 = vmatpush1.bf16.msra.mxu0 0
        %4011 = vmatprep.subr.bf16.mxu0 0
        %4012 = vmatpush1.bf16.msra.mxu0 0
        %4013 = vmatprep.subr.bf16.mxu0 0
        %4014 = vmatpush1.bf16.msra.mxu0 0
        %4015 = vmatprep.subr.bf16.mxu0 0
        %4016 = vmatpush1.bf16.msra.mxu0 0
        %4017 = vmatprep.subr.bf16.mxu0 0
        %4018 = vmatpush1.bf16.msra.mxu0 0
        %4019 = vmatprep.mubr.bf16.mxu0 0
        %4020 = vmatmul.mubr.bf16.gmra.mrb[0].mxu0 %v3985
        %v4021 = vpop.f32.mrb[0].mxu0
        %v4022 = vadd.f32 0.0, %v4021
        %v4023 = vpop.f32.mrb[0].mxu0
        %v4024 = vpop.f32.mrb[0].mxu0
        %v4025 = vpop.f32.mrb[0].mxu0
        %4026 = vdwg.mxu0
        %v4035 = vunpack.c.l.b16 %v2098
        %v4036 = vunpack.c.l.b16 %v2099
        %v4037 = vunpack.c.l.b16 %v2100
        %v4038 = vunpack.c.l.b16 %v2101
        %v4039 = vunpack.c.l.b16 %v2102
        %v4040 = vunpack.c.l.b16 %v2103
        %v4041 = vunpack.c.l.b16 %v2104
        %v4042 = vunpack.c.l.b16 %v2105
        %v4043 = vpack.c.b16 %v4036, %v4035
        %v4044 = vpack.c.b16 %v4038, %v4037
        %v4045 = vpack.c.b16 %v4040, %v4039
        %v4046 = vpack.c.b16 %v4042, %v4041
        %v4052 = vsel %vm2442, %v1866, 0
        %4054 = vmatprep.subr.bf16.mxu0 0
        %4055 = vmatpush1.bf16.msra.mxu0 %v4043
        %4056 = vmatprep.subr.bf16.mxu0 0
        %4057 = vmatpush1.bf16.msra.mxu0 %v4044
        %4058 = vmatprep.subr.bf16.mxu0 0
        %4059 = vmatpush1.bf16.msra.mxu0 %v4045
        %4060 = vmatprep.subr.bf16.mxu0 0
        %4061 = vmatpush1.bf16.msra.mxu0 %v4046
        %4062 = vmatprep.subr.bf16.mxu0 0
        %4063 = vmatpush1.bf16.msra.mxu0 0
        %4064 = vmatprep.subr.bf16.mxu0 0
        %4065 = vmatpush1.bf16.msra.mxu0 0
        %4066 = vmatprep.subr.bf16.mxu0 0
        %4067 = vmatpush1.bf16.msra.mxu0 0
        %4068 = vmatprep.subr.bf16.mxu0 0
        %4069 = vmatpush1.bf16.msra.mxu0 0
        %4070 = vmatprep.subr.bf16.mxu0 0
        %4071 = vmatpush1.bf16.msra.mxu0 0
        %4072 = vmatprep.subr.bf16.mxu0 0
        %4073 = vmatpush1.bf16.msra.mxu0 0
        %4074 = vmatprep.subr.bf16.mxu0 0
        %4075 = vmatpush1.bf16.msra.mxu0 0
        %4076 = vmatprep.subr.bf16.mxu0 0
        %4077 = vmatpush1.bf16.msra.mxu0 0
        %4078 = vmatprep.subr.bf16.mxu0 0
        %4079 = vmatpush1.bf16.msra.mxu0 0
        %4080 = vmatprep.subr.bf16.mxu0 0
        %4081 = vmatpush1.bf16.msra.mxu0 0
        %4082 = vmatprep.subr.bf16.mxu0 0
        %4083 = vmatpush1.bf16.msra.mxu0 0
        %4084 = vmatprep.subr.bf16.mxu0 0
        %4085 = vmatpush1.bf16.msra.mxu0 0
        %4086 = vmatprep.mubr.bf16.mxu0 0
        %4087 = vmatmul.mubr.bf16.gmra.mrb[0].mxu0 %v4052
        %v4088 = vpop.f32.mrb[0].mxu0
        %v4089 = vadd.f32 0.0, %v4088
        %v4090 = vpop.f32.mrb[0].mxu0
        %v4091 = vpop.f32.mrb[0].mxu0
        %v4092 = vpop.f32.mrb[0].mxu0
        %4093 = vdwg.mxu0
        %v4102 = vunpack.c.l.b16 %v2106
        %v4103 = vunpack.c.l.b16 %v2107
        %v4104 = vunpack.c.l.b16 %v2108
        %v4105 = vunpack.c.l.b16 %v2109
        %v4106 = vunpack.c.l.b16 %v2110
        %v4107 = vunpack.c.l.b16 %v2111
        %v4108 = vunpack.c.l.b16 %v2112
        %v4109 = vunpack.c.l.b16 %v2113
        %v4110 = vpack.c.b16 %v4103, %v4102
        %v4111 = vpack.c.b16 %v4105, %v4104
        %v4112 = vpack.c.b16 %v4107, %v4106
        %v4113 = vpack.c.b16 %v4109, %v4108
        %v4119 = vsel %vm2442, %v1867, 0
        %4121 = vmatprep.subr.bf16.mxu0 0
        %4122 = vmatpush1.bf16.msra.mxu0 %v4110
        %4123 = vmatprep.subr.bf16.mxu0 0
        %4124 = vmatpush1.bf16.msra.mxu0 %v4111
        %4125 = vmatprep.subr.bf16.mxu0 0
        %4126 = vmatpush1.bf16.msra.mxu0 %v4112
        %4127 = vmatprep.subr.bf16.mxu0 0
        %4128 = vmatpush1.bf16.msra.mxu0 %v4113
        %4129 = vmatprep.subr.bf16.mxu0 0
        %4130 = vmatpush1.bf16.msra.mxu0 0
        %4131 = vmatprep.subr.bf16.mxu0 0
        %4132 = vmatpush1.bf16.msra.mxu0 0
        %4133 = vmatprep.subr.bf16.mxu0 0
        %4134 = vmatpush1.bf16.msra.mxu0 0
        %4135 = vmatprep.subr.bf16.mxu0 0
        %4136 = vmatpush1.bf16.msra.mxu0 0
        %4137 = vmatprep.subr.bf16.mxu0 0
        %4138 = vmatpush1.bf16.msra.mxu0 0
        %4139 = vmatprep.subr.bf16.mxu0 0
        %4140 = vmatpush1.bf16.msra.mxu0 0
        %4141 = vmatprep.subr.bf16.mxu0 0
        %4142 = vmatpush1.bf16.msra.mxu0 0
        %4143 = vmatprep.subr.bf16.mxu0 0
        %4144 = vmatpush1.bf16.msra.mxu0 0
        %4145 = vmatprep.subr.bf16.mxu0 0
        %4146 = vmatpush1.bf16.msra.mxu0 0
        %4147 = vmatprep.subr.bf16.mxu0 0
        %4148 = vmatpush1.bf16.msra.mxu0 0
        %4149 = vmatprep.subr.bf16.mxu0 0
        %4150 = vmatpush1.bf16.msra.mxu0 0
        %4151 = vmatprep.subr.bf16.mxu0 0
        %4152 = vmatpush1.bf16.msra.mxu0 0
        %4153 = vmatprep.mubr.bf16.mxu0 0
        %4154 = vmatmul.mubr.bf16.gmra.mrb[0].mxu0 %v4119
        %v4155 = vpop.f32.mrb[0].mxu0
        %v4156 = vadd.f32 0.0, %v4155
        %v4157 = vpop.f32.mrb[0].mxu0
        %v4158 = vpop.f32.mrb[0].mxu0
        %v4159 = vpop.f32.mrb[0].mxu0
        %4160 = vdwg.mxu0
        %v4169 = vunpack.c.l.b16 %v2114
        %v4170 = vunpack.c.l.b16 %v2115
        %v4171 = vunpack.c.l.b16 %v2116
        %v4172 = vunpack.c.l.b16 %v2117
        %v4173 = vunpack.c.l.b16 %v2118
        %v4174 = vunpack.c.l.b16 %v2119
        %v4175 = vunpack.c.l.b16 %v2120
        %v4176 = vunpack.c.l.b16 %v2121
        %v4177 = vpack.c.b16 %v4170, %v4169
        %v4178 = vpack.c.b16 %v4172, %v4171
        %v4179 = vpack.c.b16 %v4174, %v4173
        %v4180 = vpack.c.b16 %v4176, %v4175
        %v4186 = vsel %vm2442, %v1868, 0
        %4188 = vmatprep.subr.bf16.mxu0 0
        %4189 = vmatpush1.bf16.msra.mxu0 %v4177
        %4190 = vmatprep.subr.bf16.mxu0 0
        %4191 = vmatpush1.bf16.msra.mxu0 %v4178
        %4192 = vmatprep.subr.bf16.mxu0 0
        %4193 = vmatpush1.bf16.msra.mxu0 %v4179
        %4194 = vmatprep.subr.bf16.mxu0 0
        %4195 = vmatpush1.bf16.msra.mxu0 %v4180
        %4196 = vmatprep.subr.bf16.mxu0 0
        %4197 = vmatpush1.bf16.msra.mxu0 0
        %4198 = vmatprep.subr.bf16.mxu0 0
        %4199 = vmatpush1.bf16.msra.mxu0 0
        %4200 = vmatprep.subr.bf16.mxu0 0
        %4201 = vmatpush1.bf16.msra.mxu0 0
        %4202 = vmatprep.subr.bf16.mxu0 0
        %4203 = vmatpush1.bf16.msra.mxu0 0
        %4204 = vmatprep.subr.bf16.mxu0 0
        %4205 = vmatpush1.bf16.msra.mxu0 0
        %4206 = vmatprep.subr.bf16.mxu0 0
        %4207 = vmatpush1.bf16.msra.mxu0 0
        %4208 = vmatprep.subr.bf16.mxu0 0
        %4209 = vmatpush1.bf16.msra.mxu0 0
        %4210 = vmatprep.subr.bf16.mxu0 0
        %4211 = vmatpush1.bf16.msra.mxu0 0
        %4212 = vmatprep.subr.bf16.mxu0 0
        %4213 = vmatpush1.bf16.msra.mxu0 0
        %4214 = vmatprep.subr.bf16.mxu0 0
        %4215 = vmatpush1.bf16.msra.mxu0 0
        %4216 = vmatprep.subr.bf16.mxu0 0
        %4217 = vmatpush1.bf16.msra.mxu0 0
        %4218 = vmatprep.subr.bf16.mxu0 0
        %4219 = vmatpush1.bf16.msra.mxu0 0
        %4220 = vmatprep.mubr.bf16.mxu0 0
        %4221 = vmatmul.mubr.bf16.gmra.mrb[0].mxu0 %v4186
        %v4222 = vpop.f32.mrb[0].mxu0
        %v4223 = vadd.f32 0.0, %v4222
        %v4224 = vpop.f32.mrb[0].mxu0
        %v4225 = vpop.f32.mrb[0].mxu0
        %v4226 = vpop.f32.mrb[0].mxu0
        %4227 = vdwg.mxu0
        %v4236 = vunpack.c.l.b16 %v2122
        %v4237 = vunpack.c.l.b16 %v2123
        %v4238 = vunpack.c.l.b16 %v2124
        %v4239 = vunpack.c.l.b16 %v2125
        %v4240 = vunpack.c.l.b16 %v2126
        %v4241 = vunpack.c.l.b16 %v2127
        %v4242 = vunpack.c.l.b16 %v2128
        %v4243 = vunpack.c.l.b16 %v2129
        %v4244 = vpack.c.b16 %v4237, %v4236
        %v4245 = vpack.c.b16 %v4239, %v4238
        %v4246 = vpack.c.b16 %v4241, %v4240
        %v4247 = vpack.c.b16 %v4243, %v4242
        %v4253 = vsel %vm2442, %v1869, 0
        %4255 = vmatprep.subr.bf16.mxu0 0
        %4256 = vmatpush1.bf16.msra.mxu0 %v4244
        %4257 = vmatprep.subr.bf16.mxu0 0
        %4258 = vmatpush1.bf16.msra.mxu0 %v4245
        %4259 = vmatprep.subr.bf16.mxu0 0
        %4260 = vmatpush1.bf16.msra.mxu0 %v4246
        %4261 = vmatprep.subr.bf16.mxu0 0
        %4262 = vmatpush1.bf16.msra.mxu0 %v4247
        %4263 = vmatprep.subr.bf16.mxu0 0
        %4264 = vmatpush1.bf16.msra.mxu0 0
        %4265 = vmatprep.subr.bf16.mxu0 0
        %4266 = vmatpush1.bf16.msra.mxu0 0
        %4267 = vmatprep.subr.bf16.mxu0 0
        %4268 = vmatpush1.bf16.msra.mxu0 0
        %4269 = vmatprep.subr.bf16.mxu0 0
        %4270 = vmatpush1.bf16.msra.mxu0 0
        %4271 = vmatprep.subr.bf16.mxu0 0
        %4272 = vmatpush1.bf16.msra.mxu0 0
        %4273 = vmatprep.subr.bf16.mxu0 0
        %4274 = vmatpush1.bf16.msra.mxu0 0
        %4275 = vmatprep.subr.bf16.mxu0 0
        %4276 = vmatpush1.bf16.msra.mxu0 0
        %4277 = vmatprep.subr.bf16.mxu0 0
        %4278 = vmatpush1.bf16.msra.mxu0 0
        %4279 = vmatprep.subr.bf16.mxu0 0
        %4280 = vmatpush1.bf16.msra.mxu0 0
        %4281 = vmatprep.subr.bf16.mxu0 0
        %4282 = vmatpush1.bf16.msra.mxu0 0
        %4283 = vmatprep.subr.bf16.mxu0 0
        %4284 = vmatpush1.bf16.msra.mxu0 0
        %4285 = vmatprep.subr.bf16.mxu0 0
        %4286 = vmatpush1.bf16.msra.mxu0 0
        %4287 = vmatprep.mubr.bf16.mxu0 0
        %4288 = vmatmul.mubr.bf16.gmra.mrb[0].mxu0 %v4253
        %v4289 = vpop.f32.mrb[0].mxu0
        %v4290 = vadd.f32 0.0, %v4289
        %v4291 = vpop.f32.mrb[0].mxu0
        %v4292 = vpop.f32.mrb[0].mxu0
        %v4293 = vpop.f32.mrb[0].mxu0
        %4294 = vdwg.mxu0
        %v4303 = vunpack.c.l.b16 %v2130
        %v4304 = vunpack.c.l.b16 %v2131
        %v4305 = vunpack.c.l.b16 %v2132
        %v4306 = vunpack.c.l.b16 %v2133
        %v4307 = vunpack.c.l.b16 %v2134
        %v4308 = vunpack.c.l.b16 %v2135
        %v4309 = vunpack.c.l.b16 %v2136
        %v4310 = vunpack.c.l.b16 %v2137
        %v4311 = vpack.c.b16 %v4304, %v4303
        %v4312 = vpack.c.b16 %v4306, %v4305
        %v4313 = vpack.c.b16 %v4308, %v4307
        %v4314 = vpack.c.b16 %v4310, %v4309
        %v4320 = vsel %vm2442, %v1870, 0
        %4322 = vmatprep.subr.bf16.mxu0 0
        %4323 = vmatpush1.bf16.msra.mxu0 %v4311
        %4324 = vmatprep.subr.bf16.mxu0 0
        %4325 = vmatpush1.bf16.msra.mxu0 %v4312
        %4326 = vmatprep.subr.bf16.mxu0 0
        %4327 = vmatpush1.bf16.msra.mxu0 %v4313
        %4328 = vmatprep.subr.bf16.mxu0 0
        %4329 = vmatpush1.bf16.msra.mxu0 %v4314
        %4330 = vmatprep.subr.bf16.mxu0 0
        %4331 = vmatpush1.bf16.msra.mxu0 0
        %4332 = vmatprep.subr.bf16.mxu0 0
        %4333 = vmatpush1.bf16.msra.mxu0 0
        %4334 = vmatprep.subr.bf16.mxu0 0
        %4335 = vmatpush1.bf16.msra.mxu0 0
        %4336 = vmatprep.subr.bf16.mxu0 0
        %4337 = vmatpush1.bf16.msra.mxu0 0
        %4338 = vmatprep.subr.bf16.mxu0 0
        %4339 = vmatpush1.bf16.msra.mxu0 0
        %4340 = vmatprep.subr.bf16.mxu0 0
        %4341 = vmatpush1.bf16.msra.mxu0 0
        %4342 = vmatprep.subr.bf16.mxu0 0
        %4343 = vmatpush1.bf16.msra.mxu0 0
        %4344 = vmatprep.subr.bf16.mxu0 0
        %4345 = vmatpush1.bf16.msra.mxu0 0
        %4346 = vmatprep.subr.bf16.mxu0 0
        %4347 = vmatpush1.bf16.msra.mxu0 0
        %4348 = vmatprep.subr.bf16.mxu0 0
        %4349 = vmatpush1.bf16.msra.mxu0 0
        %4350 = vmatprep.subr.bf16.mxu0 0
        %4351 = vmatpush1.bf16.msra.mxu0 0
        %4352 = vmatprep.subr.bf16.mxu0 0
        %4353 = vmatpush1.bf16.msra.mxu0 0
        %4354 = vmatprep.mubr.bf16.mxu0 0
        %4355 = vmatmul.mubr.bf16.gmra.mrb[0].mxu0 %v4320
        %v4356 = vpop.f32.mrb[0].mxu0
        %v4357 = vadd.f32 0.0, %v4356
        %v4358 = vpop.f32.mrb[0].mxu0
        %v4359 = vpop.f32.mrb[0].mxu0
        %v4360 = vpop.f32.mrb[0].mxu0
        %4361 = vdwg.mxu0
        %v4370 = vunpack.c.l.b16 %v2138
        %v4371 = vunpack.c.l.b16 %v2139
        %v4372 = vunpack.c.l.b16 %v2140
        %v4373 = vunpack.c.l.b16 %v2141
        %v4374 = vunpack.c.l.b16 %v2142
        %v4375 = vunpack.c.l.b16 %v2143
        %v4376 = vunpack.c.l.b16 %v2144
        %v4377 = vunpack.c.l.b16 %v2145
        %v4378 = vpack.c.b16 %v4371, %v4370
        %v4379 = vpack.c.b16 %v4373, %v4372
        %v4380 = vpack.c.b16 %v4375, %v4374
        %v4381 = vpack.c.b16 %v4377, %v4376
        %v4387 = vsel %vm2442, %v1871, 0
        %4389 = vmatprep.subr.bf16.mxu0 0
        %4390 = vmatpush1.bf16.msra.mxu0 %v4378
        %4391 = vmatprep.subr.bf16.mxu0 0
        %4392 = vmatpush1.bf16.msra.mxu0 %v4379
        %4393 = vmatprep.subr.bf16.mxu0 0
        %4394 = vmatpush1.bf16.msra.mxu0 %v4380
        %4395 = vmatprep.subr.bf16.mxu0 0
        %4396 = vmatpush1.bf16.msra.mxu0 %v4381
        %4397 = vmatprep.subr.bf16.mxu0 0
        %4398 = vmatpush1.bf16.msra.mxu0 0
        %4399 = vmatprep.subr.bf16.mxu0 0
        %4400 = vmatpush1.bf16.msra.mxu0 0
        %4401 = vmatprep.subr.bf16.mxu0 0
        %4402 = vmatpush1.bf16.msra.mxu0 0
        %4403 = vmatprep.subr.bf16.mxu0 0
        %4404 = vmatpush1.bf16.msra.mxu0 0
        %4405 = vmatprep.subr.bf16.mxu0 0
        %4406 = vmatpush1.bf16.msra.mxu0 0
        %4407 = vmatprep.subr.bf16.mxu0 0
        %4408 = vmatpush1.bf16.msra.mxu0 0
        %4409 = vmatprep.subr.bf16.mxu0 0
        %4410 = vmatpush1.bf16.msra.mxu0 0
        %4411 = vmatprep.subr.bf16.mxu0 0
        %4412 = vmatpush1.bf16.msra.mxu0 0
        %4413 = vmatprep.subr.bf16.mxu0 0
        %4414 = vmatpush1.bf16.msra.mxu0 0
        %4415 = vmatprep.subr.bf16.mxu0 0
        %4416 = vmatpush1.bf16.msra.mxu0 0
        %4417 = vmatprep.subr.bf16.mxu0 0
        %4418 = vmatpush1.bf16.msra.mxu0 0
        %4419 = vmatprep.subr.bf16.mxu0 0
        %4420 = vmatpush1.bf16.msra.mxu0 0
        %4421 = vmatprep.mubr.bf16.mxu0 0
        %4422 = vmatmul.mubr.bf16.gmra.mrb[0].mxu0 %v4387
        %v4423 = vpop.f32.mrb[0].mxu0
        %v4424 = vadd.f32 0.0, %v4423
        %v4425 = vpop.f32.mrb[0].mxu0
        %v4426 = vpop.f32.mrb[0].mxu0
        %v4427 = vpop.f32.mrb[0].mxu0
        %4428 = vdwg.mxu0
        %v4437 = vunpack.c.l.b16 %v2146
        %v4438 = vunpack.c.l.b16 %v2147
        %v4439 = vunpack.c.l.b16 %v2148
        %v4440 = vunpack.c.l.b16 %v2149
        %v4441 = vunpack.c.l.b16 %v2150
        %v4442 = vunpack.c.l.b16 %v2151
        %v4443 = vunpack.c.l.b16 %v2152
        %v4444 = vunpack.c.l.b16 %v2153
        %v4445 = vpack.c.b16 %v4438, %v4437
        %v4446 = vpack.c.b16 %v4440, %v4439
        %v4447 = vpack.c.b16 %v4442, %v4441
        %v4448 = vpack.c.b16 %v4444, %v4443
        %v4454 = vsel %vm2442, %v1872, 0
        %4456 = vmatprep.subr.bf16.mxu0 0
        %4457 = vmatpush1.bf16.msra.mxu0 %v4445
        %4458 = vmatprep.subr.bf16.mxu0 0
        %4459 = vmatpush1.bf16.msra.mxu0 %v4446
        %4460 = vmatprep.subr.bf16.mxu0 0
        %4461 = vmatpush1.bf16.msra.mxu0 %v4447
        %4462 = vmatprep.subr.bf16.mxu0 0
        %4463 = vmatpush1.bf16.msra.mxu0 %v4448
        %4464 = vmatprep.subr.bf16.mxu0 0
        %4465 = vmatpush1.bf16.msra.mxu0 0
        %4466 = vmatprep.subr.bf16.mxu0 0
        %4467 = vmatpush1.bf16.msra.mxu0 0
        %4468 = vmatprep.subr.bf16.mxu0 0
        %4469 = vmatpush1.bf16.msra.mxu0 0
        %4470 = vmatprep.subr.bf16.mxu0 0
        %4471 = vmatpush1.bf16.msra.mxu0 0
        %4472 = vmatprep.subr.bf16.mxu0 0
        %4473 = vmatpush1.bf16.msra.mxu0 0
        %4474 = vmatprep.subr.bf16.mxu0 0
        %4475 = vmatpush1.bf16.msra.mxu0 0
        %4476 = vmatprep.subr.bf16.mxu0 0
        %4477 = vmatpush1.bf16.msra.mxu0 0
        %4478 = vmatprep.subr.bf16.mxu0 0
        %4479 = vmatpush1.bf16.msra.mxu0 0
        %4480 = vmatprep.subr.bf16.mxu0 0
        %4481 = vmatpush1.bf16.msra.mxu0 0
        %4482 = vmatprep.subr.bf16.mxu0 0
        %4483 = vmatpush1.bf16.msra.mxu0 0
        %4484 = vmatprep.subr.bf16.mxu0 0
        %4485 = vmatpush1.bf16.msra.mxu0 0
        %4486 = vmatprep.subr.bf16.mxu0 0
        %4487 = vmatpush1.bf16.msra.mxu0 0
        %4488 = vmatprep.mubr.bf16.mxu0 0
        %4489 = vmatmul.mubr.bf16.gmra.mrb[0].mxu0 %v4454
        %v4490 = vpop.f32.mrb[0].mxu0
        %v4491 = vadd.f32 0.0, %v4490
        %v4492 = vpop.f32.mrb[0].mxu0
        %v4493 = vpop.f32.mrb[0].mxu0
        %v4494 = vpop.f32.mrb[0].mxu0
        %4495 = vdwg.mxu0
        %v4504 = vunpack.c.l.b16 %v2154
        %v4505 = vunpack.c.l.b16 %v2155
        %v4506 = vunpack.c.l.b16 %v2156
        %v4507 = vunpack.c.l.b16 %v2157
        %v4508 = vunpack.c.l.b16 %v2158
        %v4509 = vunpack.c.l.b16 %v2159
        %v4510 = vunpack.c.l.b16 %v2160
        %v4511 = vunpack.c.l.b16 %v2161
        %v4512 = vpack.c.b16 %v4505, %v4504
        %v4513 = vpack.c.b16 %v4507, %v4506
        %v4514 = vpack.c.b16 %v4509, %v4508
        %v4515 = vpack.c.b16 %v4511, %v4510
        %v4521 = vsel %vm2442, %v1873, 0
        %4523 = vmatprep.subr.bf16.mxu0 0
        %4524 = vmatpush1.bf16.msra.mxu0 %v4512
        %4525 = vmatprep.subr.bf16.mxu0 0
        %4526 = vmatpush1.bf16.msra.mxu0 %v4513
        %4527 = vmatprep.subr.bf16.mxu0 0
        %4528 = vmatpush1.bf16.msra.mxu0 %v4514
        %4529 = vmatprep.subr.bf16.mxu0 0
        %4530 = vmatpush1.bf16.msra.mxu0 %v4515
        %4531 = vmatprep.subr.bf16.mxu0 0
        %4532 = vmatpush1.bf16.msra.mxu0 0
        %4533 = vmatprep.subr.bf16.mxu0 0
        %4534 = vmatpush1.bf16.msra.mxu0 0
        %4535 = vmatprep.subr.bf16.mxu0 0
        %4536 = vmatpush1.bf16.msra.mxu0 0
        %4537 = vmatprep.subr.bf16.mxu0 0
        %4538 = vmatpush1.bf16.msra.mxu0 0
        %4539 = vmatprep.subr.bf16.mxu0 0
        %4540 = vmatpush1.bf16.msra.mxu0 0
        %4541 = vmatprep.subr.bf16.mxu0 0
        %4542 = vmatpush1.bf16.msra.mxu0 0
        %4543 = vmatprep.subr.bf16.mxu0 0
        %4544 = vmatpush1.bf16.msra.mxu0 0
        %4545 = vmatprep.subr.bf16.mxu0 0
        %4546 = vmatpush1.bf16.msra.mxu0 0
        %4547 = vmatprep.subr.bf16.mxu0 0
        %4548 = vmatpush1.bf16.msra.mxu0 0
        %4549 = vmatprep.subr.bf16.mxu0 0
        %4550 = vmatpush1.bf16.msra.mxu0 0
        %4551 = vmatprep.subr.bf16.mxu0 0
        %4552 = vmatpush1.bf16.msra.mxu0 0
        %4553 = vmatprep.subr.bf16.mxu0 0
        %4554 = vmatpush1.bf16.msra.mxu0 0
        %4555 = vmatprep.mubr.bf16.mxu0 0
        %4556 = vmatmul.mubr.bf16.gmra.mrb[0].mxu0 %v4521
        %v4557 = vpop.f32.mrb[0].mxu0
        %v4558 = vadd.f32 0.0, %v4557
        %v4559 = vpop.f32.mrb[0].mxu0
        %v4560 = vpop.f32.mrb[0].mxu0
        %v4561 = vpop.f32.mrb[0].mxu0
        %4562 = vdwg.mxu0
        %v4571 = vunpack.c.l.b16 %v2162
        %v4572 = vunpack.c.l.b16 %v2163
        %v4573 = vunpack.c.l.b16 %v2164
        %v4574 = vunpack.c.l.b16 %v2165
        %v4575 = vunpack.c.l.b16 %v2166
        %v4576 = vunpack.c.l.b16 %v2167
        %v4577 = vunpack.c.l.b16 %v2168
        %v4578 = vunpack.c.l.b16 %v2169
        %v4579 = vpack.c.b16 %v4572, %v4571
        %v4580 = vpack.c.b16 %v4574, %v4573
        %v4581 = vpack.c.b16 %v4576, %v4575
        %v4582 = vpack.c.b16 %v4578, %v4577
        %v4588 = vsel %vm2442, %v1874, 0
        %4590 = vmatprep.subr.bf16.mxu0 0
        %4591 = vmatpush1.bf16.msra.mxu0 %v4579
        %4592 = vmatprep.subr.bf16.mxu0 0
        %4593 = vmatpush1.bf16.msra.mxu0 %v4580
        %4594 = vmatprep.subr.bf16.mxu0 0
        %4595 = vmatpush1.bf16.msra.mxu0 %v4581
        %4596 = vmatprep.subr.bf16.mxu0 0
        %4597 = vmatpush1.bf16.msra.mxu0 %v4582
        %4598 = vmatprep.subr.bf16.mxu0 0
        %4599 = vmatpush1.bf16.msra.mxu0 0
        %4600 = vmatprep.subr.bf16.mxu0 0
        %4601 = vmatpush1.bf16.msra.mxu0 0
        %4602 = vmatprep.subr.bf16.mxu0 0
        %4603 = vmatpush1.bf16.msra.mxu0 0
        %4604 = vmatprep.subr.bf16.mxu0 0
        %4605 = vmatpush1.bf16.msra.mxu0 0
        %4606 = vmatprep.subr.bf16.mxu0 0
        %4607 = vmatpush1.bf16.msra.mxu0 0
        %4608 = vmatprep.subr.bf16.mxu0 0
        %4609 = vmatpush1.bf16.msra.mxu0 0
        %4610 = vmatprep.subr.bf16.mxu0 0
        %4611 = vmatpush1.bf16.msra.mxu0 0
        %4612 = vmatprep.subr.bf16.mxu0 0
        %4613 = vmatpush1.bf16.msra.mxu0 0
        %4614 = vmatprep.subr.bf16.mxu0 0
        %4615 = vmatpush1.bf16.msra.mxu0 0
        %4616 = vmatprep.subr.bf16.mxu0 0
        %4617 = vmatpush1.bf16.msra.mxu0 0
        %4618 = vmatprep.subr.bf16.mxu0 0
        %4619 = vmatpush1.bf16.msra.mxu0 0
        %4620 = vmatprep.subr.bf16.mxu0 0
        %4621 = vmatpush1.bf16.msra.mxu0 0
        %4622 = vmatprep.mubr.bf16.mxu0 0
        %4623 = vmatmul.mubr.bf16.gmra.mrb[0].mxu0 %v4588
        %v4624 = vpop.f32.mrb[0].mxu0
        %v4625 = vadd.f32 0.0, %v4624
        %v4626 = vpop.f32.mrb[0].mxu0
        %v4627 = vpop.f32.mrb[0].mxu0
        %v4628 = vpop.f32.mrb[0].mxu0
        %4629 = vdwg.mxu0
        %v4638 = vunpack.c.l.b16 %v2170
        %v4639 = vunpack.c.l.b16 %v2171
        %v4640 = vunpack.c.l.b16 %v2172
        %v4641 = vunpack.c.l.b16 %v2173
        %v4642 = vunpack.c.l.b16 %v2174
        %v4643 = vunpack.c.l.b16 %v2175
        %v4644 = vunpack.c.l.b16 %v2176
        %v4645 = vunpack.c.l.b16 %v2177
        %v4646 = vpack.c.b16 %v4639, %v4638
        %v4647 = vpack.c.b16 %v4641, %v4640
        %v4648 = vpack.c.b16 %v4643, %v4642
        %v4649 = vpack.c.b16 %v4645, %v4644
        %v4655 = vsel %vm2442, %v1875, 0
        %4657 = vmatprep.subr.bf16.mxu0 0
        %4658 = vmatpush1.bf16.msra.mxu0 %v4646
        %4659 = vmatprep.subr.bf16.mxu0 0
        %4660 = vmatpush1.bf16.msra.mxu0 %v4647
        %4661 = vmatprep.subr.bf16.mxu0 0
        %4662 = vmatpush1.bf16.msra.mxu0 %v4648
        %4663 = vmatprep.subr.bf16.mxu0 0
        %4664 = vmatpush1.bf16.msra.mxu0 %v4649
        %4665 = vmatprep.subr.bf16.mxu0 0
        %4666 = vmatpush1.bf16.msra.mxu0 0
        %4667 = vmatprep.subr.bf16.mxu0 0
        %4668 = vmatpush1.bf16.msra.mxu0 0
        %4669 = vmatprep.subr.bf16.mxu0 0
        %4670 = vmatpush1.bf16.msra.mxu0 0
        %4671 = vmatprep.subr.bf16.mxu0 0
        %4672 = vmatpush1.bf16.msra.mxu0 0
        %4673 = vmatprep.subr.bf16.mxu0 0
        %4674 = vmatpush1.bf16.msra.mxu0 0
        %4675 = vmatprep.subr.bf16.mxu0 0
        %4676 = vmatpush1.bf16.msra.mxu0 0
        %4677 = vmatprep.subr.bf16.mxu0 0
        %4678 = vmatpush1.bf16.msra.mxu0 0
        %4679 = vmatprep.subr.bf16.mxu0 0
        %4680 = vmatpush1.bf16.msra.mxu0 0
        %4681 = vmatprep.subr.bf16.mxu0 0
        %4682 = vmatpush1.bf16.msra.mxu0 0
        %4683 = vmatprep.subr.bf16.mxu0 0
        %4684 = vmatpush1.bf16.msra.mxu0 0
        %4685 = vmatprep.subr.bf16.mxu0 0
        %4686 = vmatpush1.bf16.msra.mxu0 0
        %4687 = vmatprep.subr.bf16.mxu0 0
        %4688 = vmatpush1.bf16.msra.mxu0 0
        %4689 = vmatprep.mubr.bf16.mxu0 0
        %4690 = vmatmul.mubr.bf16.gmra.mrb[0].mxu0 %v4655
        %v4691 = vpop.f32.mrb[0].mxu0
        %v4692 = vadd.f32 0.0, %v4691
        %v4693 = vpop.f32.mrb[0].mxu0
        %v4694 = vpop.f32.mrb[0].mxu0
        %v4695 = vpop.f32.mrb[0].mxu0
        %4696 = vdwg.mxu0
        %v4705 = vunpack.c.l.b16 %v2178
        %v4706 = vunpack.c.l.b16 %v2179
        %v4707 = vunpack.c.l.b16 %v2180
        %v4708 = vunpack.c.l.b16 %v2181
        %v4709 = vunpack.c.l.b16 %v2182
        %v4710 = vunpack.c.l.b16 %v2183
        %v4711 = vunpack.c.l.b16 %v2184
        %v4712 = vunpack.c.l.b16 %v2185
        %v4713 = vpack.c.b16 %v4706, %v4705
        %v4714 = vpack.c.b16 %v4708, %v4707
        %v4715 = vpack.c.b16 %v4710, %v4709
        %v4716 = vpack.c.b16 %v4712, %v4711
        %v4722 = vsel %vm2442, %v1876, 0
        %4724 = vmatprep.subr.bf16.mxu0 0
        %4725 = vmatpush1.bf16.msra.mxu0 %v4713
        %4726 = vmatprep.subr.bf16.mxu0 0
        %4727 = vmatpush1.bf16.msra.mxu0 %v4714
        %4728 = vmatprep.subr.bf16.mxu0 0
        %4729 = vmatpush1.bf16.msra.mxu0 %v4715
        %4730 = vmatprep.subr.bf16.mxu0 0
        %4731 = vmatpush1.bf16.msra.mxu0 %v4716
        %4732 = vmatprep.subr.bf16.mxu0 0
        %4733 = vmatpush1.bf16.msra.mxu0 0
        %4734 = vmatprep.subr.bf16.mxu0 0
        %4735 = vmatpush1.bf16.msra.mxu0 0
        %4736 = vmatprep.subr.bf16.mxu0 0
        %4737 = vmatpush1.bf16.msra.mxu0 0
        %4738 = vmatprep.subr.bf16.mxu0 0
        %4739 = vmatpush1.bf16.msra.mxu0 0
        %4740 = vmatprep.subr.bf16.mxu0 0
        %4741 = vmatpush1.bf16.msra.mxu0 0
        %4742 = vmatprep.subr.bf16.mxu0 0
        %4743 = vmatpush1.bf16.msra.mxu0 0
        %4744 = vmatprep.subr.bf16.mxu0 0
        %4745 = vmatpush1.bf16.msra.mxu0 0
        %4746 = vmatprep.subr.bf16.mxu0 0
        %4747 = vmatpush1.bf16.msra.mxu0 0
        %4748 = vmatprep.subr.bf16.mxu0 0
        %4749 = vmatpush1.bf16.msra.mxu0 0
        %4750 = vmatprep.subr.bf16.mxu0 0
        %4751 = vmatpush1.bf16.msra.mxu0 0
        %4752 = vmatprep.subr.bf16.mxu0 0
        %4753 = vmatpush1.bf16.msra.mxu0 0
        %4754 = vmatprep.subr.bf16.mxu0 0
        %4755 = vmatpush1.bf16.msra.mxu0 0
        %4756 = vmatprep.mubr.bf16.mxu0 0
        %4757 = vmatmul.mubr.bf16.gmra.mrb[0].mxu0 %v4722
        %v4758 = vpop.f32.mrb[0].mxu0
        %v4759 = vadd.f32 0.0, %v4758
        %v4760 = vpop.f32.mrb[0].mxu0
        %v4761 = vpop.f32.mrb[0].mxu0
        %v4762 = vpop.f32.mrb[0].mxu0
        %4763 = vdwg.mxu0
        %v4772 = vunpack.c.l.b16 %v2186
        %v4773 = vunpack.c.l.b16 %v2187
        %v4774 = vunpack.c.l.b16 %v2188
        %v4775 = vunpack.c.l.b16 %v2189
        %v4776 = vunpack.c.l.b16 %v2190
        %v4777 = vunpack.c.l.b16 %v2191
        %v4778 = vunpack.c.l.b16 %v2192
        %v4779 = vunpack.c.l.b16 %v2193
        %v4780 = vpack.c.b16 %v4773, %v4772
        %v4781 = vpack.c.b16 %v4775, %v4774
        %v4782 = vpack.c.b16 %v4777, %v4776
        %v4783 = vpack.c.b16 %v4779, %v4778
        %v4789 = vsel %vm2442, %v1877, 0
        %4791 = vmatprep.subr.bf16.mxu0 0
        %4792 = vmatpush1.bf16.msra.mxu0 %v4780
        %4793 = vmatprep.subr.bf16.mxu0 0
        %4794 = vmatpush1.bf16.msra.mxu0 %v4781
        %4795 = vmatprep.subr.bf16.mxu0 0
        %4796 = vmatpush1.bf16.msra.mxu0 %v4782
        %4797 = vmatprep.subr.bf16.mxu0 0
        %4798 = vmatpush1.bf16.msra.mxu0 %v4783
        %4799 = vmatprep.subr.bf16.mxu0 0
        %4800 = vmatpush1.bf16.msra.mxu0 0
        %4801 = vmatprep.subr.bf16.mxu0 0
        %4802 = vmatpush1.bf16.msra.mxu0 0
        %4803 = vmatprep.subr.bf16.mxu0 0
        %4804 = vmatpush1.bf16.msra.mxu0 0
        %4805 = vmatprep.subr.bf16.mxu0 0
        %4806 = vmatpush1.bf16.msra.mxu0 0
        %4807 = vmatprep.subr.bf16.mxu0 0
        %4808 = vmatpush1.bf16.msra.mxu0 0
        %4809 = vmatprep.subr.bf16.mxu0 0
        %4810 = vmatpush1.bf16.msra.mxu0 0
        %4811 = vmatprep.subr.bf16.mxu0 0
        %4812 = vmatpush1.bf16.msra.mxu0 0
        %4813 = vmatprep.subr.bf16.mxu0 0
        %4814 = vmatpush1.bf16.msra.mxu0 0
        %4815 = vmatprep.subr.bf16.mxu0 0
        %4816 = vmatpush1.bf16.msra.mxu0 0
        %4817 = vmatprep.subr.bf16.mxu0 0
        %4818 = vmatpush1.bf16.msra.mxu0 0
        %4819 = vmatprep.subr.bf16.mxu0 0
        %4820 = vmatpush1.bf16.msra.mxu0 0
        %4821 = vmatprep.subr.bf16.mxu0 0
        %4822 = vmatpush1.bf16.msra.mxu0 0
        %4823 = vmatprep.mubr.bf16.mxu0 0
        %4824 = vmatmul.mubr.bf16.gmra.mrb[0].mxu0 %v4789
        %v4825 = vpop.f32.mrb[0].mxu0
        %v4826 = vadd.f32 0.0, %v4825
        %v4827 = vpop.f32.mrb[0].mxu0
        %v4828 = vpop.f32.mrb[0].mxu0
        %v4829 = vpop.f32.mrb[0].mxu0
        %4830 = vdwg.mxu0
        %v4839 = vunpack.c.l.b16 %v2194
        %v4840 = vunpack.c.l.b16 %v2195
        %v4841 = vunpack.c.l.b16 %v2196
        %v4842 = vunpack.c.l.b16 %v2197
        %v4843 = vunpack.c.l.b16 %v2198
        %v4844 = vunpack.c.l.b16 %v2199
        %v4845 = vunpack.c.l.b16 %v2200
        %v4846 = vunpack.c.l.b16 %v2201
        %v4847 = vpack.c.b16 %v4840, %v4839
        %v4848 = vpack.c.b16 %v4842, %v4841
        %v4849 = vpack.c.b16 %v4844, %v4843
        %v4850 = vpack.c.b16 %v4846, %v4845
        %v4856 = vsel %vm2442, %v1878, 0
        %4858 = vmatprep.subr.bf16.mxu0 0
        %4859 = vmatpush1.bf16.msra.mxu0 %v4847
        %4860 = vmatprep.subr.bf16.mxu0 0
        %4861 = vmatpush1.bf16.msra.mxu0 %v4848
        %4862 = vmatprep.subr.bf16.mxu0 0
        %4863 = vmatpush1.bf16.msra.mxu0 %v4849
        %4864 = vmatprep.subr.bf16.mxu0 0
        %4865 = vmatpush1.bf16.msra.mxu0 %v4850
        %4866 = vmatprep.subr.bf16.mxu0 0
        %4867 = vmatpush1.bf16.msra.mxu0 0
        %4868 = vmatprep.subr.bf16.mxu0 0
        %4869 = vmatpush1.bf16.msra.mxu0 0
        %4870 = vmatprep.subr.bf16.mxu0 0
        %4871 = vmatpush1.bf16.msra.mxu0 0
        %4872 = vmatprep.subr.bf16.mxu0 0
        %4873 = vmatpush1.bf16.msra.mxu0 0
        %4874 = vmatprep.subr.bf16.mxu0 0
        %4875 = vmatpush1.bf16.msra.mxu0 0
        %4876 = vmatprep.subr.bf16.mxu0 0
        %4877 = vmatpush1.bf16.msra.mxu0 0
        %4878 = vmatprep.subr.bf16.mxu0 0
        %4879 = vmatpush1.bf16.msra.mxu0 0
        %4880 = vmatprep.subr.bf16.mxu0 0
        %4881 = vmatpush1.bf16.msra.mxu0 0
        %4882 = vmatprep.subr.bf16.mxu0 0
        %4883 = vmatpush1.bf16.msra.mxu0 0
        %4884 = vmatprep.subr.bf16.mxu0 0
        %4885 = vmatpush1.bf16.msra.mxu0 0
        %4886 = vmatprep.subr.bf16.mxu0 0
        %4887 = vmatpush1.bf16.msra.mxu0 0
        %4888 = vmatprep.subr.bf16.mxu0 0
        %4889 = vmatpush1.bf16.msra.mxu0 0
        %4890 = vmatprep.mubr.bf16.mxu0 0
        %4891 = vmatmul.mubr.bf16.gmra.mrb[0].mxu0 %v4856
        %v4892 = vpop.f32.mrb[0].mxu0
        %v4893 = vadd.f32 0.0, %v4892
        %v4894 = vpop.f32.mrb[0].mxu0
        %v4895 = vpop.f32.mrb[0].mxu0
        %v4896 = vpop.f32.mrb[0].mxu0
        %4897 = vdwg.mxu0
        %v4906 = vunpack.c.l.b16 %v2202
        %v4907 = vunpack.c.l.b16 %v2203
        %v4908 = vunpack.c.l.b16 %v2204
        %v4909 = vunpack.c.l.b16 %v2205
        %v4910 = vunpack.c.l.b16 %v2206
        %v4911 = vunpack.c.l.b16 %v2207
        %v4912 = vunpack.c.l.b16 %v2208
        %v4913 = vunpack.c.l.b16 %v2209
        %v4914 = vpack.c.b16 %v4907, %v4906
        %v4915 = vpack.c.b16 %v4909, %v4908
        %v4916 = vpack.c.b16 %v4911, %v4910
        %v4917 = vpack.c.b16 %v4913, %v4912
        %v4923 = vsel %vm2442, %v1879, 0
        %4925 = vmatprep.subr.bf16.mxu0 0
        %4926 = vmatpush1.bf16.msra.mxu0 %v4914
        %4927 = vmatprep.subr.bf16.mxu0 0
        %4928 = vmatpush1.bf16.msra.mxu0 %v4915
        %4929 = vmatprep.subr.bf16.mxu0 0
        %4930 = vmatpush1.bf16.msra.mxu0 %v4916
        %4931 = vmatprep.subr.bf16.mxu0 0
        %4932 = vmatpush1.bf16.msra.mxu0 %v4917
        %4933 = vmatprep.subr.bf16.mxu0 0
        %4934 = vmatpush1.bf16.msra.mxu0 0
        %4935 = vmatprep.subr.bf16.mxu0 0
        %4936 = vmatpush1.bf16.msra.mxu0 0
        %4937 = vmatprep.subr.bf16.mxu0 0
        %4938 = vmatpush1.bf16.msra.mxu0 0
        %4939 = vmatprep.subr.bf16.mxu0 0
        %4940 = vmatpush1.bf16.msra.mxu0 0
        %4941 = vmatprep.subr.bf16.mxu0 0
        %4942 = vmatpush1.bf16.msra.mxu0 0
        %4943 = vmatprep.subr.bf16.mxu0 0
        %4944 = vmatpush1.bf16.msra.mxu0 0
        %4945 = vmatprep.subr.bf16.mxu0 0
        %4946 = vmatpush1.bf16.msra.mxu0 0
        %4947 = vmatprep.subr.bf16.mxu0 0
        %4948 = vmatpush1.bf16.msra.mxu0 0
        %4949 = vmatprep.subr.bf16.mxu0 0
        %4950 = vmatpush1.bf16.msra.mxu0 0
        %4951 = vmatprep.subr.bf16.mxu0 0
        %4952 = vmatpush1.bf16.msra.mxu0 0
        %4953 = vmatprep.subr.bf16.mxu0 0
        %4954 = vmatpush1.bf16.msra.mxu0 0
        %4955 = vmatprep.subr.bf16.mxu0 0
        %4956 = vmatpush1.bf16.msra.mxu0 0
        %4957 = vmatprep.mubr.bf16.mxu0 0
        %4958 = vmatmul.mubr.bf16.gmra.mrb[0].mxu0 %v4923
        %v4959 = vpop.f32.mrb[0].mxu0
        %v4960 = vadd.f32 0.0, %v4959
        %v4961 = vpop.f32.mrb[0].mxu0
        %v4962 = vpop.f32.mrb[0].mxu0
        %v4963 = vpop.f32.mrb[0].mxu0
        %4964 = vdwg.mxu0
        %v4973 = vunpack.c.l.b16 %v2210
        %v4974 = vunpack.c.l.b16 %v2211
        %v4975 = vunpack.c.l.b16 %v2212
        %v4976 = vunpack.c.l.b16 %v2213
        %v4977 = vunpack.c.l.b16 %v2214
        %v4978 = vunpack.c.l.b16 %v2215
        %v4979 = vunpack.c.l.b16 %v2216
        %v4980 = vunpack.c.l.b16 %v2217
        %v4981 = vpack.c.b16 %v4974, %v4973
        %v4982 = vpack.c.b16 %v4976, %v4975
        %v4983 = vpack.c.b16 %v4978, %v4977
        %v4984 = vpack.c.b16 %v4980, %v4979
        %v4990 = vsel %vm2442, %v1880, 0
        %4992 = vmatprep.subr.bf16.mxu0 0
        %4993 = vmatpush1.bf16.msra.mxu0 %v4981
        %4994 = vmatprep.subr.bf16.mxu0 0
        %4995 = vmatpush1.bf16.msra.mxu0 %v4982
        %4996 = vmatprep.subr.bf16.mxu0 0
        %4997 = vmatpush1.bf16.msra.mxu0 %v4983
        %4998 = vmatprep.subr.bf16.mxu0 0
        %4999 = vmatpush1.bf16.msra.mxu0 %v4984
        %5000 = vmatprep.subr.bf16.mxu0 0
        %5001 = vmatpush1.bf16.msra.mxu0 0
        %5002 = vmatprep.subr.bf16.mxu0 0
        %5003 = vmatpush1.bf16.msra.mxu0 0
        %5004 = vmatprep.subr.bf16.mxu0 0
        %5005 = vmatpush1.bf16.msra.mxu0 0
        %5006 = vmatprep.subr.bf16.mxu0 0
        %5007 = vmatpush1.bf16.msra.mxu0 0
        %5008 = vmatprep.subr.bf16.mxu0 0
        %5009 = vmatpush1.bf16.msra.mxu0 0
        %5010 = vmatprep.subr.bf16.mxu0 0
        %5011 = vmatpush1.bf16.msra.mxu0 0
        %5012 = vmatprep.subr.bf16.mxu0 0
        %5013 = vmatpush1.bf16.msra.mxu0 0
        %5014 = vmatprep.subr.bf16.mxu0 0
        %5015 = vmatpush1.bf16.msra.mxu0 0
        %5016 = vmatprep.subr.bf16.mxu0 0
        %5017 = vmatpush1.bf16.msra.mxu0 0
        %5018 = vmatprep.subr.bf16.mxu0 0
        %5019 = vmatpush1.bf16.msra.mxu0 0
        %5020 = vmatprep.subr.bf16.mxu0 0
        %5021 = vmatpush1.bf16.msra.mxu0 0
        %5022 = vmatprep.subr.bf16.mxu0 0
        %5023 = vmatpush1.bf16.msra.mxu0 0
        %5024 = vmatprep.mubr.bf16.mxu0 0
        %5025 = vmatmul.mubr.bf16.gmra.mrb[0].mxu0 %v4990
        %v5026 = vpop.f32.mrb[0].mxu0
        %v5027 = vadd.f32 0.0, %v5026
        %v5028 = vpop.f32.mrb[0].mxu0
        %v5029 = vpop.f32.mrb[0].mxu0
        %v5030 = vpop.f32.mrb[0].mxu0
        %5031 = vdwg.mxu0
        %v5040 = vunpack.c.l.b16 %v2218
        %v5041 = vunpack.c.l.b16 %v2219
        %v5042 = vunpack.c.l.b16 %v2220
        %v5043 = vunpack.c.l.b16 %v2221
        %v5044 = vunpack.c.l.b16 %v2222
        %v5045 = vunpack.c.l.b16 %v2223
        %v5046 = vunpack.c.l.b16 %v2224
        %v5047 = vunpack.c.l.b16 %v2225
        %v5048 = vpack.c.b16 %v5041, %v5040
        %v5049 = vpack.c.b16 %v5043, %v5042
        %v5050 = vpack.c.b16 %v5045, %v5044
        %v5051 = vpack.c.b16 %v5047, %v5046
        %v5057 = vsel %vm2442, %v1881, 0
        %5059 = vmatprep.subr.bf16.mxu0 0
        %5060 = vmatpush1.bf16.msra.mxu0 %v5048
        %5061 = vmatprep.subr.bf16.mxu0 0
        %5062 = vmatpush1.bf16.msra.mxu0 %v5049
        %5063 = vmatprep.subr.bf16.mxu0 0
        %5064 = vmatpush1.bf16.msra.mxu0 %v5050
        %5065 = vmatprep.subr.bf16.mxu0 0
        %5066 = vmatpush1.bf16.msra.mxu0 %v5051
        %5067 = vmatprep.subr.bf16.mxu0 0
        %5068 = vmatpush1.bf16.msra.mxu0 0
        %5069 = vmatprep.subr.bf16.mxu0 0
        %5070 = vmatpush1.bf16.msra.mxu0 0
        %5071 = vmatprep.subr.bf16.mxu0 0
        %5072 = vmatpush1.bf16.msra.mxu0 0
        %5073 = vmatprep.subr.bf16.mxu0 0
        %5074 = vmatpush1.bf16.msra.mxu0 0
        %5075 = vmatprep.subr.bf16.mxu0 0
        %5076 = vmatpush1.bf16.msra.mxu0 0
        %5077 = vmatprep.subr.bf16.mxu0 0
        %5078 = vmatpush1.bf16.msra.mxu0 0
        %5079 = vmatprep.subr.bf16.mxu0 0
        %5080 = vmatpush1.bf16.msra.mxu0 0
        %5081 = vmatprep.subr.bf16.mxu0 0
        %5082 = vmatpush1.bf16.msra.mxu0 0
        %5083 = vmatprep.subr.bf16.mxu0 0
        %5084 = vmatpush1.bf16.msra.mxu0 0
        %5085 = vmatprep.subr.bf16.mxu0 0
        %5086 = vmatpush1.bf16.msra.mxu0 0
        %5087 = vmatprep.subr.bf16.mxu0 0
        %5088 = vmatpush1.bf16.msra.mxu0 0
        %5089 = vmatprep.subr.bf16.mxu0 0
        %5090 = vmatpush1.bf16.msra.mxu0 0
        %5091 = vmatprep.mubr.bf16.mxu0 0
        %5092 = vmatmul.mubr.bf16.gmra.mrb[0].mxu0 %v5057
        %v5093 = vpop.f32.mrb[0].mxu0
        %v5094 = vadd.f32 0.0, %v5093
        %v5095 = vpop.f32.mrb[0].mxu0
        %v5096 = vpop.f32.mrb[0].mxu0
        %v5097 = vpop.f32.mrb[0].mxu0
        %5098 = vdwg.mxu0
        %v5107 = vunpack.c.l.b16 %v2226
        %v5108 = vunpack.c.l.b16 %v2227
        %v5109 = vunpack.c.l.b16 %v2228
        %v5110 = vunpack.c.l.b16 %v2229
        %v5111 = vunpack.c.l.b16 %v2230
        %v5112 = vunpack.c.l.b16 %v2231
        %v5113 = vunpack.c.l.b16 %v2232
        %v5114 = vunpack.c.l.b16 %v2233
        %v5115 = vpack.c.b16 %v5108, %v5107
        %v5116 = vpack.c.b16 %v5110, %v5109
        %v5117 = vpack.c.b16 %v5112, %v5111
        %v5118 = vpack.c.b16 %v5114, %v5113
        %v5124 = vsel %vm2442, %v1882, 0
        %5126 = vmatprep.subr.bf16.mxu0 0
        %5127 = vmatpush1.bf16.msra.mxu0 %v5115
        %5128 = vmatprep.subr.bf16.mxu0 0
        %5129 = vmatpush1.bf16.msra.mxu0 %v5116
        %5130 = vmatprep.subr.bf16.mxu0 0
        %5131 = vmatpush1.bf16.msra.mxu0 %v5117
        %5132 = vmatprep.subr.bf16.mxu0 0
        %5133 = vmatpush1.bf16.msra.mxu0 %v5118
        %5134 = vmatprep.subr.bf16.mxu0 0
        %5135 = vmatpush1.bf16.msra.mxu0 0
        %5136 = vmatprep.subr.bf16.mxu0 0
        %5137 = vmatpush1.bf16.msra.mxu0 0
        %5138 = vmatprep.subr.bf16.mxu0 0
        %5139 = vmatpush1.bf16.msra.mxu0 0
        %5140 = vmatprep.subr.bf16.mxu0 0
        %5141 = vmatpush1.bf16.msra.mxu0 0
        %5142 = vmatprep.subr.bf16.mxu0 0
        %5143 = vmatpush1.bf16.msra.mxu0 0
        %5144 = vmatprep.subr.bf16.mxu0 0
        %5145 = vmatpush1.bf16.msra.mxu0 0
        %5146 = vmatprep.subr.bf16.mxu0 0
        %5147 = vmatpush1.bf16.msra.mxu0 0
        %5148 = vmatprep.subr.bf16.mxu0 0
        %5149 = vmatpush1.bf16.msra.mxu0 0
        %5150 = vmatprep.subr.bf16.mxu0 0
        %5151 = vmatpush1.bf16.msra.mxu0 0
        %5152 = vmatprep.subr.bf16.mxu0 0
        %5153 = vmatpush1.bf16.msra.mxu0 0
        %5154 = vmatprep.subr.bf16.mxu0 0
        %5155 = vmatpush1.bf16.msra.mxu0 0
        %5156 = vmatprep.subr.bf16.mxu0 0
        %5157 = vmatpush1.bf16.msra.mxu0 0
        %5158 = vmatprep.mubr.bf16.mxu0 0
        %5159 = vmatmul.mubr.bf16.gmra.mrb[0].mxu0 %v5124
        %v5160 = vpop.f32.mrb[0].mxu0
        %v5161 = vadd.f32 0.0, %v5160
        %v5162 = vpop.f32.mrb[0].mxu0
        %v5163 = vpop.f32.mrb[0].mxu0
        %v5164 = vpop.f32.mrb[0].mxu0
        %5165 = vdwg.mxu0
        %v5174 = vunpack.c.l.b16 %v2234
        %v5175 = vunpack.c.l.b16 %v2235
        %v5176 = vunpack.c.l.b16 %v2236
        %v5177 = vunpack.c.l.b16 %v2237
        %v5178 = vunpack.c.l.b16 %v2238
        %v5179 = vunpack.c.l.b16 %v2239
        %v5180 = vunpack.c.l.b16 %v2240
        %v5181 = vunpack.c.l.b16 %v2241
        %v5182 = vpack.c.b16 %v5175, %v5174
        %v5183 = vpack.c.b16 %v5177, %v5176
        %v5184 = vpack.c.b16 %v5179, %v5178
        %v5185 = vpack.c.b16 %v5181, %v5180
        %v5191 = vsel %vm2442, %v1883, 0
        %5193 = vmatprep.subr.bf16.mxu0 0
        %5194 = vmatpush1.bf16.msra.mxu0 %v5182
        %5195 = vmatprep.subr.bf16.mxu0 0
        %5196 = vmatpush1.bf16.msra.mxu0 %v5183
        %5197 = vmatprep.subr.bf16.mxu0 0
        %5198 = vmatpush1.bf16.msra.mxu0 %v5184
        %5199 = vmatprep.subr.bf16.mxu0 0
        %5200 = vmatpush1.bf16.msra.mxu0 %v5185
        %5201 = vmatprep.subr.bf16.mxu0 0
        %5202 = vmatpush1.bf16.msra.mxu0 0
        %5203 = vmatprep.subr.bf16.mxu0 0
        %5204 = vmatpush1.bf16.msra.mxu0 0
        %5205 = vmatprep.subr.bf16.mxu0 0
        %5206 = vmatpush1.bf16.msra.mxu0 0
        %5207 = vmatprep.subr.bf16.mxu0 0
        %5208 = vmatpush1.bf16.msra.mxu0 0
        %5209 = vmatprep.subr.bf16.mxu0 0
        %5210 = vmatpush1.bf16.msra.mxu0 0
        %5211 = vmatprep.subr.bf16.mxu0 0
        %5212 = vmatpush1.bf16.msra.mxu0 0
        %5213 = vmatprep.subr.bf16.mxu0 0
        %5214 = vmatpush1.bf16.msra.mxu0 0
        %5215 = vmatprep.subr.bf16.mxu0 0
        %5216 = vmatpush1.bf16.msra.mxu0 0
        %5217 = vmatprep.subr.bf16.mxu0 0
        %5218 = vmatpush1.bf16.msra.mxu0 0
        %5219 = vmatprep.subr.bf16.mxu0 0
        %5220 = vmatpush1.bf16.msra.mxu0 0
        %5221 = vmatprep.subr.bf16.mxu0 0
        %5222 = vmatpush1.bf16.msra.mxu0 0
        %5223 = vmatprep.subr.bf16.mxu0 0
        %5224 = vmatpush1.bf16.msra.mxu0 0
        %5225 = vmatprep.mubr.bf16.mxu0 0
        %5226 = vmatmul.mubr.bf16.gmra.mrb[0].mxu0 %v5191
        %v5227 = vpop.f32.mrb[0].mxu0
        %v5228 = vadd.f32 0.0, %v5227
        %v5229 = vpop.f32.mrb[0].mxu0
        %v5230 = vpop.f32.mrb[0].mxu0
        %v5231 = vpop.f32.mrb[0].mxu0
        %5232 = vdwg.mxu0
        %v5241 = vunpack.c.l.b16 %v2242
        %v5242 = vunpack.c.l.b16 %v2243
        %v5243 = vunpack.c.l.b16 %v2244
        %v5244 = vunpack.c.l.b16 %v2245
        %v5245 = vunpack.c.l.b16 %v2246
        %v5246 = vunpack.c.l.b16 %v2247
        %v5247 = vunpack.c.l.b16 %v2248
        %v5248 = vunpack.c.l.b16 %v2249
        %v5249 = vpack.c.b16 %v5242, %v5241
        %v5250 = vpack.c.b16 %v5244, %v5243
        %v5251 = vpack.c.b16 %v5246, %v5245
        %v5252 = vpack.c.b16 %v5248, %v5247
        %v5258 = vsel %vm2442, %v1884, 0
        %5260 = vmatprep.subr.bf16.mxu0 0
        %5261 = vmatpush1.bf16.msra.mxu0 %v5249
        %5262 = vmatprep.subr.bf16.mxu0 0
        %5263 = vmatpush1.bf16.msra.mxu0 %v5250
        %5264 = vmatprep.subr.bf16.mxu0 0
        %5265 = vmatpush1.bf16.msra.mxu0 %v5251
        %5266 = vmatprep.subr.bf16.mxu0 0
        %5267 = vmatpush1.bf16.msra.mxu0 %v5252
        %5268 = vmatprep.subr.bf16.mxu0 0
        %5269 = vmatpush1.bf16.msra.mxu0 0
        %5270 = vmatprep.subr.bf16.mxu0 0
        %5271 = vmatpush1.bf16.msra.mxu0 0
        %5272 = vmatprep.subr.bf16.mxu0 0
        %5273 = vmatpush1.bf16.msra.mxu0 0
        %5274 = vmatprep.subr.bf16.mxu0 0
        %5275 = vmatpush1.bf16.msra.mxu0 0
        %5276 = vmatprep.subr.bf16.mxu0 0
        %5277 = vmatpush1.bf16.msra.mxu0 0
        %5278 = vmatprep.subr.bf16.mxu0 0
        %5279 = vmatpush1.bf16.msra.mxu0 0
        %5280 = vmatprep.subr.bf16.mxu0 0
        %5281 = vmatpush1.bf16.msra.mxu0 0
        %5282 = vmatprep.subr.bf16.mxu0 0
        %5283 = vmatpush1.bf16.msra.mxu0 0
        %5284 = vmatprep.subr.bf16.mxu0 0
        %5285 = vmatpush1.bf16.msra.mxu0 0
        %5286 = vmatprep.subr.bf16.mxu0 0
        %5287 = vmatpush1.bf16.msra.mxu0 0
        %5288 = vmatprep.subr.bf16.mxu0 0
        %5289 = vmatpush1.bf16.msra.mxu0 0
        %5290 = vmatprep.subr.bf16.mxu0 0
        %5291 = vmatpush1.bf16.msra.mxu0 0
        %5292 = vmatprep.mubr.bf16.mxu0 0
        %5293 = vmatmul.mubr.bf16.gmra.mrb[0].mxu0 %v5258
        %v5294 = vpop.f32.mrb[0].mxu0
        %v5295 = vadd.f32 0.0, %v5294
        %v5296 = vpop.f32.mrb[0].mxu0
        %v5297 = vpop.f32.mrb[0].mxu0
        %v5298 = vpop.f32.mrb[0].mxu0
        %5299 = vdwg.mxu0
        %v5308 = vunpack.c.l.b16 %v2250
        %v5309 = vunpack.c.l.b16 %v2251
        %v5310 = vunpack.c.l.b16 %v2252
        %v5311 = vunpack.c.l.b16 %v2253
        %v5312 = vunpack.c.l.b16 %v2254
        %v5313 = vunpack.c.l.b16 %v2255
        %v5314 = vunpack.c.l.b16 %v2256
        %v5315 = vunpack.c.l.b16 %v2257
        %v5316 = vpack.c.b16 %v5309, %v5308
        %v5317 = vpack.c.b16 %v5311, %v5310
        %v5318 = vpack.c.b16 %v5313, %v5312
        %v5319 = vpack.c.b16 %v5315, %v5314
        %v5325 = vsel %vm2442, %v1885, 0
        %5327 = vmatprep.subr.bf16.mxu0 0
        %5328 = vmatpush1.bf16.msra.mxu0 %v5316
        %5329 = vmatprep.subr.bf16.mxu0 0
        %5330 = vmatpush1.bf16.msra.mxu0 %v5317
        %5331 = vmatprep.subr.bf16.mxu0 0
        %5332 = vmatpush1.bf16.msra.mxu0 %v5318
        %5333 = vmatprep.subr.bf16.mxu0 0
        %5334 = vmatpush1.bf16.msra.mxu0 %v5319
        %5335 = vmatprep.subr.bf16.mxu0 0
        %5336 = vmatpush1.bf16.msra.mxu0 0
        %5337 = vmatprep.subr.bf16.mxu0 0
        %5338 = vmatpush1.bf16.msra.mxu0 0
        %5339 = vmatprep.subr.bf16.mxu0 0
        %5340 = vmatpush1.bf16.msra.mxu0 0
        %5341 = vmatprep.subr.bf16.mxu0 0
        %5342 = vmatpush1.bf16.msra.mxu0 0
        %5343 = vmatprep.subr.bf16.mxu0 0
        %5344 = vmatpush1.bf16.msra.mxu0 0
        %5345 = vmatprep.subr.bf16.mxu0 0
        %5346 = vmatpush1.bf16.msra.mxu0 0
        %5347 = vmatprep.subr.bf16.mxu0 0
        %5348 = vmatpush1.bf16.msra.mxu0 0
        %5349 = vmatprep.subr.bf16.mxu0 0
        %5350 = vmatpush1.bf16.msra.mxu0 0
        %5351 = vmatprep.subr.bf16.mxu0 0
        %5352 = vmatpush1.bf16.msra.mxu0 0
        %5353 = vmatprep.subr.bf16.mxu0 0
        %5354 = vmatpush1.bf16.msra.mxu0 0
        %5355 = vmatprep.subr.bf16.mxu0 0
        %5356 = vmatpush1.bf16.msra.mxu0 0
        %5357 = vmatprep.subr.bf16.mxu0 0
        %5358 = vmatpush1.bf16.msra.mxu0 0
        %5359 = vmatprep.mubr.bf16.mxu0 0
        %5360 = vmatmul.mubr.bf16.gmra.mrb[0].mxu0 %v5325
        %v5361 = vpop.f32.mrb[0].mxu0
        %v5362 = vadd.f32 0.0, %v5361
        %v5363 = vpop.f32.mrb[0].mxu0
        %v5364 = vpop.f32.mrb[0].mxu0
        %v5365 = vpop.f32.mrb[0].mxu0
        %5366 = vdwg.mxu0
        %v5375 = vunpack.c.l.b16 %v2258
        %v5376 = vunpack.c.l.b16 %v2259
        %v5377 = vunpack.c.l.b16 %v2260
        %v5378 = vunpack.c.l.b16 %v2261
        %v5379 = vunpack.c.l.b16 %v2262
        %v5380 = vunpack.c.l.b16 %v2263
        %v5381 = vunpack.c.l.b16 %v2264
        %v5382 = vunpack.c.l.b16 %v2265
        %v5383 = vpack.c.b16 %v5376, %v5375
        %v5384 = vpack.c.b16 %v5378, %v5377
        %v5385 = vpack.c.b16 %v5380, %v5379
        %v5386 = vpack.c.b16 %v5382, %v5381
        %v5392 = vsel %vm2442, %v1886, 0
        %5394 = vmatprep.subr.bf16.mxu0 0
        %5395 = vmatpush1.bf16.msra.mxu0 %v5383
        %5396 = vmatprep.subr.bf16.mxu0 0
        %5397 = vmatpush1.bf16.msra.mxu0 %v5384
        %5398 = vmatprep.subr.bf16.mxu0 0
        %5399 = vmatpush1.bf16.msra.mxu0 %v5385
        %5400 = vmatprep.subr.bf16.mxu0 0
        %5401 = vmatpush1.bf16.msra.mxu0 %v5386
        %5402 = vmatprep.subr.bf16.mxu0 0
        %5403 = vmatpush1.bf16.msra.mxu0 0
        %5404 = vmatprep.subr.bf16.mxu0 0
        %5405 = vmatpush1.bf16.msra.mxu0 0
        %5406 = vmatprep.subr.bf16.mxu0 0
        %5407 = vmatpush1.bf16.msra.mxu0 0
        %5408 = vmatprep.subr.bf16.mxu0 0
        %5409 = vmatpush1.bf16.msra.mxu0 0
        %5410 = vmatprep.subr.bf16.mxu0 0
        %5411 = vmatpush1.bf16.msra.mxu0 0
        %5412 = vmatprep.subr.bf16.mxu0 0
        %5413 = vmatpush1.bf16.msra.mxu0 0
        %5414 = vmatprep.subr.bf16.mxu0 0
        %5415 = vmatpush1.bf16.msra.mxu0 0
        %5416 = vmatprep.subr.bf16.mxu0 0
        %5417 = vmatpush1.bf16.msra.mxu0 0
        %5418 = vmatprep.subr.bf16.mxu0 0
        %5419 = vmatpush1.bf16.msra.mxu0 0
        %5420 = vmatprep.subr.bf16.mxu0 0
        %5421 = vmatpush1.bf16.msra.mxu0 0
        %5422 = vmatprep.subr.bf16.mxu0 0
        %5423 = vmatpush1.bf16.msra.mxu0 0
        %5424 = vmatprep.subr.bf16.mxu0 0
        %5425 = vmatpush1.bf16.msra.mxu0 0
        %5426 = vmatprep.mubr.bf16.mxu0 0
        %5427 = vmatmul.mubr.bf16.gmra.mrb[0].mxu0 %v5392
        %v5428 = vpop.f32.mrb[0].mxu0
        %v5429 = vadd.f32 0.0, %v5428
        %v5430 = vpop.f32.mrb[0].mxu0
        %v5431 = vpop.f32.mrb[0].mxu0
        %v5432 = vpop.f32.mrb[0].mxu0
        %5433 = vdwg.mxu0
        %v5442 = vunpack.c.l.b16 %v2266
        %v5443 = vunpack.c.l.b16 %v2267
        %v5444 = vunpack.c.l.b16 %v2268
        %v5445 = vunpack.c.l.b16 %v2269
        %v5446 = vunpack.c.l.b16 %v2270
        %v5447 = vunpack.c.l.b16 %v2271
        %v5448 = vunpack.c.l.b16 %v2272
        %v5449 = vunpack.c.l.b16 %v2273
        %v5450 = vpack.c.b16 %v5443, %v5442
        %v5451 = vpack.c.b16 %v5445, %v5444
        %v5452 = vpack.c.b16 %v5447, %v5446
        %v5453 = vpack.c.b16 %v5449, %v5448
        %v5459 = vsel %vm2442, %v1887, 0
        %5461 = vmatprep.subr.bf16.mxu0 0
        %5462 = vmatpush1.bf16.msra.mxu0 %v5450
        %5463 = vmatprep.subr.bf16.mxu0 0
        %5464 = vmatpush1.bf16.msra.mxu0 %v5451
        %5465 = vmatprep.subr.bf16.mxu0 0
        %5466 = vmatpush1.bf16.msra.mxu0 %v5452
        %5467 = vmatprep.subr.bf16.mxu0 0
        %5468 = vmatpush1.bf16.msra.mxu0 %v5453
        %5469 = vmatprep.subr.bf16.mxu0 0
        %5470 = vmatpush1.bf16.msra.mxu0 0
        %5471 = vmatprep.subr.bf16.mxu0 0
        %5472 = vmatpush1.bf16.msra.mxu0 0
        %5473 = vmatprep.subr.bf16.mxu0 0
        %5474 = vmatpush1.bf16.msra.mxu0 0
        %5475 = vmatprep.subr.bf16.mxu0 0
        %5476 = vmatpush1.bf16.msra.mxu0 0
        %5477 = vmatprep.subr.bf16.mxu0 0
        %5478 = vmatpush1.bf16.msra.mxu0 0
        %5479 = vmatprep.subr.bf16.mxu0 0
        %5480 = vmatpush1.bf16.msra.mxu0 0
        %5481 = vmatprep.subr.bf16.mxu0 0
        %5482 = vmatpush1.bf16.msra.mxu0 0
        %5483 = vmatprep.subr.bf16.mxu0 0
        %5484 = vmatpush1.bf16.msra.mxu0 0
        %5485 = vmatprep.subr.bf16.mxu0 0
        %5486 = vmatpush1.bf16.msra.mxu0 0
        %5487 = vmatprep.subr.bf16.mxu0 0
        %5488 = vmatpush1.bf16.msra.mxu0 0
        %5489 = vmatprep.subr.bf16.mxu0 0
        %5490 = vmatpush1.bf16.msra.mxu0 0
        %5491 = vmatprep.subr.bf16.mxu0 0
        %5492 = vmatpush1.bf16.msra.mxu0 0
        %5493 = vmatprep.mubr.bf16.mxu0 0
        %5494 = vmatmul.mubr.bf16.gmra.mrb[0].mxu0 %v5459
        %v5495 = vpop.f32.mrb[0].mxu0
        %v5496 = vadd.f32 0.0, %v5495
        %v5497 = vpop.f32.mrb[0].mxu0
        %v5498 = vpop.f32.mrb[0].mxu0
        %v5499 = vpop.f32.mrb[0].mxu0
        %5500 = vdwg.mxu0
        %v5509 = vunpack.c.l.b16 %v2274
        %v5510 = vunpack.c.l.b16 %v2275
        %v5511 = vunpack.c.l.b16 %v2276
        %v5512 = vunpack.c.l.b16 %v2277
        %v5513 = vunpack.c.l.b16 %v2278
        %v5514 = vunpack.c.l.b16 %v2279
        %v5515 = vunpack.c.l.b16 %v2280
        %v5516 = vunpack.c.l.b16 %v2281
        %v5517 = vpack.c.b16 %v5510, %v5509
        %v5518 = vpack.c.b16 %v5512, %v5511
        %v5519 = vpack.c.b16 %v5514, %v5513
        %v5520 = vpack.c.b16 %v5516, %v5515
        %v5526 = vsel %vm2442, %v1888, 0
        %5528 = vmatprep.subr.bf16.mxu0 0
        %5529 = vmatpush1.bf16.msra.mxu0 %v5517
        %5530 = vmatprep.subr.bf16.mxu0 0
        %5531 = vmatpush1.bf16.msra.mxu0 %v5518
        %5532 = vmatprep.subr.bf16.mxu0 0
        %5533 = vmatpush1.bf16.msra.mxu0 %v5519
        %5534 = vmatprep.subr.bf16.mxu0 0
        %5535 = vmatpush1.bf16.msra.mxu0 %v5520
        %5536 = vmatprep.subr.bf16.mxu0 0
        %5537 = vmatpush1.bf16.msra.mxu0 0
        %5538 = vmatprep.subr.bf16.mxu0 0
        %5539 = vmatpush1.bf16.msra.mxu0 0
        %5540 = vmatprep.subr.bf16.mxu0 0
        %5541 = vmatpush1.bf16.msra.mxu0 0
        %5542 = vmatprep.subr.bf16.mxu0 0
        %5543 = vmatpush1.bf16.msra.mxu0 0
        %5544 = vmatprep.subr.bf16.mxu0 0
        %5545 = vmatpush1.bf16.msra.mxu0 0
        %5546 = vmatprep.subr.bf16.mxu0 0
        %5547 = vmatpush1.bf16.msra.mxu0 0
        %5548 = vmatprep.subr.bf16.mxu0 0
        %5549 = vmatpush1.bf16.msra.mxu0 0
        %5550 = vmatprep.subr.bf16.mxu0 0
        %5551 = vmatpush1.bf16.msra.mxu0 0
        %5552 = vmatprep.subr.bf16.mxu0 0
        %5553 = vmatpush1.bf16.msra.mxu0 0
        %5554 = vmatprep.subr.bf16.mxu0 0
        %5555 = vmatpush1.bf16.msra.mxu0 0
        %5556 = vmatprep.subr.bf16.mxu0 0
        %5557 = vmatpush1.bf16.msra.mxu0 0
        %5558 = vmatprep.subr.bf16.mxu0 0
        %5559 = vmatpush1.bf16.msra.mxu0 0
        %5560 = vmatprep.mubr.bf16.mxu0 0
        %5561 = vmatmul.mubr.bf16.gmra.mrb[0].mxu0 %v5526
        %v5562 = vpop.f32.mrb[0].mxu0
        %v5563 = vadd.f32 0.0, %v5562
        %v5564 = vpop.f32.mrb[0].mxu0
        %v5565 = vpop.f32.mrb[0].mxu0
        %v5566 = vpop.f32.mrb[0].mxu0
        %5567 = vdwg.mxu0
        %v5576 = vunpack.c.l.b16 %v2282
        %v5577 = vunpack.c.l.b16 %v2283
        %v5578 = vunpack.c.l.b16 %v2284
        %v5579 = vunpack.c.l.b16 %v2285
        %v5580 = vunpack.c.l.b16 %v2286
        %v5581 = vunpack.c.l.b16 %v2287
        %v5582 = vunpack.c.l.b16 %v2288
        %v5583 = vunpack.c.l.b16 %v2289
        %v5584 = vpack.c.b16 %v5577, %v5576
        %v5585 = vpack.c.b16 %v5579, %v5578
        %v5586 = vpack.c.b16 %v5581, %v5580
        %v5587 = vpack.c.b16 %v5583, %v5582
        %v5593 = vsel %vm2442, %v1889, 0
        %5595 = vmatprep.subr.bf16.mxu0 0
        %5596 = vmatpush1.bf16.msra.mxu0 %v5584
        %5597 = vmatprep.subr.bf16.mxu0 0
        %5598 = vmatpush1.bf16.msra.mxu0 %v5585
        %5599 = vmatprep.subr.bf16.mxu0 0
        %5600 = vmatpush1.bf16.msra.mxu0 %v5586
        %5601 = vmatprep.subr.bf16.mxu0 0
        %5602 = vmatpush1.bf16.msra.mxu0 %v5587
        %5603 = vmatprep.subr.bf16.mxu0 0
        %5604 = vmatpush1.bf16.msra.mxu0 0
        %5605 = vmatprep.subr.bf16.mxu0 0
        %5606 = vmatpush1.bf16.msra.mxu0 0
        %5607 = vmatprep.subr.bf16.mxu0 0
        %5608 = vmatpush1.bf16.msra.mxu0 0
        %5609 = vmatprep.subr.bf16.mxu0 0
        %5610 = vmatpush1.bf16.msra.mxu0 0
        %5611 = vmatprep.subr.bf16.mxu0 0
        %5612 = vmatpush1.bf16.msra.mxu0 0
        %5613 = vmatprep.subr.bf16.mxu0 0
        %5614 = vmatpush1.bf16.msra.mxu0 0
        %5615 = vmatprep.subr.bf16.mxu0 0
        %5616 = vmatpush1.bf16.msra.mxu0 0
        %5617 = vmatprep.subr.bf16.mxu0 0
        %5618 = vmatpush1.bf16.msra.mxu0 0
        %5619 = vmatprep.subr.bf16.mxu0 0
        %5620 = vmatpush1.bf16.msra.mxu0 0
        %5621 = vmatprep.subr.bf16.mxu0 0
        %5622 = vmatpush1.bf16.msra.mxu0 0
        %5623 = vmatprep.subr.bf16.mxu0 0
        %5624 = vmatpush1.bf16.msra.mxu0 0
        %5625 = vmatprep.subr.bf16.mxu0 0
        %5626 = vmatpush1.bf16.msra.mxu0 0
        %5627 = vmatprep.mubr.bf16.mxu0 0
        %5628 = vmatmul.mubr.bf16.gmra.mrb[0].mxu0 %v5593
        %v5629 = vpop.f32.mrb[0].mxu0
        %v5630 = vadd.f32 0.0, %v5629
        %v5631 = vpop.f32.mrb[0].mxu0
        %v5632 = vpop.f32.mrb[0].mxu0
        %v5633 = vpop.f32.mrb[0].mxu0
        %5634 = vdwg.mxu0
        %v5643 = vunpack.c.l.b16 %v2290
        %v5644 = vunpack.c.l.b16 %v2291
        %v5645 = vunpack.c.l.b16 %v2292
        %v5646 = vunpack.c.l.b16 %v2293
        %v5647 = vunpack.c.l.b16 %v2294
        %v5648 = vunpack.c.l.b16 %v2295
        %v5649 = vunpack.c.l.b16 %v2296
        %v5650 = vunpack.c.l.b16 %v2297
        %v5651 = vpack.c.b16 %v5644, %v5643
        %v5652 = vpack.c.b16 %v5646, %v5645
        %v5653 = vpack.c.b16 %v5648, %v5647
        %v5654 = vpack.c.b16 %v5650, %v5649
        %v5660 = vsel %vm2442, %v1890, 0
        %5662 = vmatprep.subr.bf16.mxu0 0
        %5663 = vmatpush1.bf16.msra.mxu0 %v5651
        %5664 = vmatprep.subr.bf16.mxu0 0
        %5665 = vmatpush1.bf16.msra.mxu0 %v5652
        %5666 = vmatprep.subr.bf16.mxu0 0
        %5667 = vmatpush1.bf16.msra.mxu0 %v5653
        %5668 = vmatprep.subr.bf16.mxu0 0
        %5669 = vmatpush1.bf16.msra.mxu0 %v5654
        %5670 = vmatprep.subr.bf16.mxu0 0
        %5671 = vmatpush1.bf16.msra.mxu0 0
        %5672 = vmatprep.subr.bf16.mxu0 0
        %5673 = vmatpush1.bf16.msra.mxu0 0
        %5674 = vmatprep.subr.bf16.mxu0 0
        %5675 = vmatpush1.bf16.msra.mxu0 0
        %5676 = vmatprep.subr.bf16.mxu0 0
        %5677 = vmatpush1.bf16.msra.mxu0 0
        %5678 = vmatprep.subr.bf16.mxu0 0
        %5679 = vmatpush1.bf16.msra.mxu0 0
        %5680 = vmatprep.subr.bf16.mxu0 0
        %5681 = vmatpush1.bf16.msra.mxu0 0
        %5682 = vmatprep.subr.bf16.mxu0 0
        %5683 = vmatpush1.bf16.msra.mxu0 0
        %5684 = vmatprep.subr.bf16.mxu0 0
        %5685 = vmatpush1.bf16.msra.mxu0 0
        %5686 = vmatprep.subr.bf16.mxu0 0
        %5687 = vmatpush1.bf16.msra.mxu0 0
        %5688 = vmatprep.subr.bf16.mxu0 0
        %5689 = vmatpush1.bf16.msra.mxu0 0
        %5690 = vmatprep.subr.bf16.mxu0 0
        %5691 = vmatpush1.bf16.msra.mxu0 0
        %5692 = vmatprep.subr.bf16.mxu0 0
        %5693 = vmatpush1.bf16.msra.mxu0 0
        %5694 = vmatprep.mubr.bf16.mxu0 0
        %5695 = vmatmul.mubr.bf16.gmra.mrb[0].mxu0 %v5660
        %v5696 = vpop.f32.mrb[0].mxu0
        %v5697 = vadd.f32 0.0, %v5696
        %v5698 = vpop.f32.mrb[0].mxu0
        %v5699 = vpop.f32.mrb[0].mxu0
        %v5700 = vpop.f32.mrb[0].mxu0
        %5701 = vdwg.mxu0
        %v5710 = vunpack.c.l.b16 %v2298
        %v5711 = vunpack.c.l.b16 %v2299
        %v5712 = vunpack.c.l.b16 %v2300
        %v5713 = vunpack.c.l.b16 %v2301
        %v5714 = vunpack.c.l.b16 %v2302
        %v5715 = vunpack.c.l.b16 %v2303
        %v5716 = vunpack.c.l.b16 %v2304
        %v5717 = vunpack.c.l.b16 %v2305
        %v5718 = vpack.c.b16 %v5711, %v5710
        %v5719 = vpack.c.b16 %v5713, %v5712
        %v5720 = vpack.c.b16 %v5715, %v5714
        %v5721 = vpack.c.b16 %v5717, %v5716
        %v5727 = vsel %vm2442, %v1891, 0
        %5729 = vmatprep.subr.bf16.mxu0 0
        %5730 = vmatpush1.bf16.msra.mxu0 %v5718
        %5731 = vmatprep.subr.bf16.mxu0 0
        %5732 = vmatpush1.bf16.msra.mxu0 %v5719
        %5733 = vmatprep.subr.bf16.mxu0 0
        %5734 = vmatpush1.bf16.msra.mxu0 %v5720
        %5735 = vmatprep.subr.bf16.mxu0 0
        %5736 = vmatpush1.bf16.msra.mxu0 %v5721
        %5737 = vmatprep.subr.bf16.mxu0 0
        %5738 = vmatpush1.bf16.msra.mxu0 0
        %5739 = vmatprep.subr.bf16.mxu0 0
        %5740 = vmatpush1.bf16.msra.mxu0 0
        %5741 = vmatprep.subr.bf16.mxu0 0
        %5742 = vmatpush1.bf16.msra.mxu0 0
        %5743 = vmatprep.subr.bf16.mxu0 0
        %5744 = vmatpush1.bf16.msra.mxu0 0
        %5745 = vmatprep.subr.bf16.mxu0 0
        %5746 = vmatpush1.bf16.msra.mxu0 0
        %5747 = vmatprep.subr.bf16.mxu0 0
        %5748 = vmatpush1.bf16.msra.mxu0 0
        %5749 = vmatprep.subr.bf16.mxu0 0
        %5750 = vmatpush1.bf16.msra.mxu0 0
        %5751 = vmatprep.subr.bf16.mxu0 0
        %5752 = vmatpush1.bf16.msra.mxu0 0
        %5753 = vmatprep.subr.bf16.mxu0 0
        %5754 = vmatpush1.bf16.msra.mxu0 0
        %5755 = vmatprep.subr.bf16.mxu0 0
        %5756 = vmatpush1.bf16.msra.mxu0 0
        %5757 = vmatprep.subr.bf16.mxu0 0
        %5758 = vmatpush1.bf16.msra.mxu0 0
        %5759 = vmatprep.subr.bf16.mxu0 0
        %5760 = vmatpush1.bf16.msra.mxu0 0
        %5761 = vmatprep.mubr.bf16.mxu0 0
        %5762 = vmatmul.mubr.bf16.gmra.mrb[0].mxu0 %v5727
        %v5763 = vpop.f32.mrb[0].mxu0
        %v5764 = vadd.f32 0.0, %v5763
        %v5765 = vpop.f32.mrb[0].mxu0
        %v5766 = vpop.f32.mrb[0].mxu0
        %v5767 = vpop.f32.mrb[0].mxu0
        %5768 = vdwg.mxu0
        %v5777 = vunpack.c.l.b16 %v2306
        %v5778 = vunpack.c.l.b16 %v2307
        %v5779 = vunpack.c.l.b16 %v2308
        %v5780 = vunpack.c.l.b16 %v2309
        %v5781 = vunpack.c.l.b16 %v2310
        %v5782 = vunpack.c.l.b16 %v2311
        %v5783 = vunpack.c.l.b16 %v2312
        %v5784 = vunpack.c.l.b16 %v2313
        %v5785 = vpack.c.b16 %v5778, %v5777
        %v5786 = vpack.c.b16 %v5780, %v5779
        %v5787 = vpack.c.b16 %v5782, %v5781
        %v5788 = vpack.c.b16 %v5784, %v5783
        %v5794 = vsel %vm2442, %v1892, 0
        %5796 = vmatprep.subr.bf16.mxu0 0
        %5797 = vmatpush1.bf16.msra.mxu0 %v5785
        %5798 = vmatprep.subr.bf16.mxu0 0
        %5799 = vmatpush1.bf16.msra.mxu0 %v5786
        %5800 = vmatprep.subr.bf16.mxu0 0
        %5801 = vmatpush1.bf16.msra.mxu0 %v5787
        %5802 = vmatprep.subr.bf16.mxu0 0
        %5803 = vmatpush1.bf16.msra.mxu0 %v5788
        %5804 = vmatprep.subr.bf16.mxu0 0
        %5805 = vmatpush1.bf16.msra.mxu0 0
        %5806 = vmatprep.subr.bf16.mxu0 0
        %5807 = vmatpush1.bf16.msra.mxu0 0
        %5808 = vmatprep.subr.bf16.mxu0 0
        %5809 = vmatpush1.bf16.msra.mxu0 0
        %5810 = vmatprep.subr.bf16.mxu0 0
        %5811 = vmatpush1.bf16.msra.mxu0 0
        %5812 = vmatprep.subr.bf16.mxu0 0
        %5813 = vmatpush1.bf16.msra.mxu0 0
        %5814 = vmatprep.subr.bf16.mxu0 0
        %5815 = vmatpush1.bf16.msra.mxu0 0
        %5816 = vmatprep.subr.bf16.mxu0 0
        %5817 = vmatpush1.bf16.msra.mxu0 0
        %5818 = vmatprep.subr.bf16.mxu0 0
        %5819 = vmatpush1.bf16.msra.mxu0 0
        %5820 = vmatprep.subr.bf16.mxu0 0
        %5821 = vmatpush1.bf16.msra.mxu0 0
        %5822 = vmatprep.subr.bf16.mxu0 0
        %5823 = vmatpush1.bf16.msra.mxu0 0
        %5824 = vmatprep.subr.bf16.mxu0 0
        %5825 = vmatpush1.bf16.msra.mxu0 0
        %5826 = vmatprep.subr.bf16.mxu0 0
        %5827 = vmatpush1.bf16.msra.mxu0 0
        %5828 = vmatprep.mubr.bf16.mxu0 0
        %5829 = vmatmul.mubr.bf16.gmra.mrb[0].mxu0 %v5794
        %v5830 = vpop.f32.mrb[0].mxu0
        %v5831 = vadd.f32 0.0, %v5830
        %v5832 = vpop.f32.mrb[0].mxu0
        %v5833 = vpop.f32.mrb[0].mxu0
        %v5834 = vpop.f32.mrb[0].mxu0
        %5835 = vdwg.mxu0
        %v5844 = vunpack.c.l.b16 %v2314
        %v5845 = vunpack.c.l.b16 %v2315
        %v5846 = vunpack.c.l.b16 %v2316
        %v5847 = vunpack.c.l.b16 %v2317
        %v5848 = vunpack.c.l.b16 %v2318
        %v5849 = vunpack.c.l.b16 %v2319
        %v5850 = vunpack.c.l.b16 %v2320
        %v5851 = vunpack.c.l.b16 %v2321
        %v5852 = vpack.c.b16 %v5845, %v5844
        %v5853 = vpack.c.b16 %v5847, %v5846
        %v5854 = vpack.c.b16 %v5849, %v5848
        %v5855 = vpack.c.b16 %v5851, %v5850
        %v5861 = vsel %vm2442, %v1893, 0
        %5863 = vmatprep.subr.bf16.mxu0 0
        %5864 = vmatpush1.bf16.msra.mxu0 %v5852
        %5865 = vmatprep.subr.bf16.mxu0 0
        %5866 = vmatpush1.bf16.msra.mxu0 %v5853
        %5867 = vmatprep.subr.bf16.mxu0 0
        %5868 = vmatpush1.bf16.msra.mxu0 %v5854
        %5869 = vmatprep.subr.bf16.mxu0 0
        %5870 = vmatpush1.bf16.msra.mxu0 %v5855
        %5871 = vmatprep.subr.bf16.mxu0 0
        %5872 = vmatpush1.bf16.msra.mxu0 0
        %5873 = vmatprep.subr.bf16.mxu0 0
        %5874 = vmatpush1.bf16.msra.mxu0 0
        %5875 = vmatprep.subr.bf16.mxu0 0
        %5876 = vmatpush1.bf16.msra.mxu0 0
        %5877 = vmatprep.subr.bf16.mxu0 0
        %5878 = vmatpush1.bf16.msra.mxu0 0
        %5879 = vmatprep.subr.bf16.mxu0 0
        %5880 = vmatpush1.bf16.msra.mxu0 0
        %5881 = vmatprep.subr.bf16.mxu0 0
        %5882 = vmatpush1.bf16.msra.mxu0 0
        %5883 = vmatprep.subr.bf16.mxu0 0
        %5884 = vmatpush1.bf16.msra.mxu0 0
        %5885 = vmatprep.subr.bf16.mxu0 0
        %5886 = vmatpush1.bf16.msra.mxu0 0
        %5887 = vmatprep.subr.bf16.mxu0 0
        %5888 = vmatpush1.bf16.msra.mxu0 0
        %5889 = vmatprep.subr.bf16.mxu0 0
        %5890 = vmatpush1.bf16.msra.mxu0 0
        %5891 = vmatprep.subr.bf16.mxu0 0
        %5892 = vmatpush1.bf16.msra.mxu0 0
        %5893 = vmatprep.subr.bf16.mxu0 0
        %5894 = vmatpush1.bf16.msra.mxu0 0
        %5895 = vmatprep.mubr.bf16.mxu0 0
        %5896 = vmatmul.mubr.bf16.gmra.mrb[0].mxu0 %v5861
        %v5897 = vpop.f32.mrb[0].mxu0
        %v5898 = vadd.f32 0.0, %v5897
        %v5899 = vpop.f32.mrb[0].mxu0
        %v5900 = vpop.f32.mrb[0].mxu0
        %v5901 = vpop.f32.mrb[0].mxu0
        %5902 = vdwg.mxu0
        %v5911 = vunpack.c.l.b16 %v2322
        %v5912 = vunpack.c.l.b16 %v2323
        %v5913 = vunpack.c.l.b16 %v2324
        %v5914 = vunpack.c.l.b16 %v2325
        %v5915 = vunpack.c.l.b16 %v2326
        %v5916 = vunpack.c.l.b16 %v2327
        %v5917 = vunpack.c.l.b16 %v2328
        %v5918 = vunpack.c.l.b16 %v2329
        %v5919 = vpack.c.b16 %v5912, %v5911
        %v5920 = vpack.c.b16 %v5914, %v5913
        %v5921 = vpack.c.b16 %v5916, %v5915
        %v5922 = vpack.c.b16 %v5918, %v5917
        %v5928 = vsel %vm2442, %v1894, 0
        %5930 = vmatprep.subr.bf16.mxu0 0
        %5931 = vmatpush1.bf16.msra.mxu0 %v5919
        %5932 = vmatprep.subr.bf16.mxu0 0
        %5933 = vmatpush1.bf16.msra.mxu0 %v5920
        %5934 = vmatprep.subr.bf16.mxu0 0
        %5935 = vmatpush1.bf16.msra.mxu0 %v5921
        %5936 = vmatprep.subr.bf16.mxu0 0
        %5937 = vmatpush1.bf16.msra.mxu0 %v5922
        %5938 = vmatprep.subr.bf16.mxu0 0
        %5939 = vmatpush1.bf16.msra.mxu0 0
        %5940 = vmatprep.subr.bf16.mxu0 0
        %5941 = vmatpush1.bf16.msra.mxu0 0
        %5942 = vmatprep.subr.bf16.mxu0 0
        %5943 = vmatpush1.bf16.msra.mxu0 0
        %5944 = vmatprep.subr.bf16.mxu0 0
        %5945 = vmatpush1.bf16.msra.mxu0 0
        %5946 = vmatprep.subr.bf16.mxu0 0
        %5947 = vmatpush1.bf16.msra.mxu0 0
        %5948 = vmatprep.subr.bf16.mxu0 0
        %5949 = vmatpush1.bf16.msra.mxu0 0
        %5950 = vmatprep.subr.bf16.mxu0 0
        %5951 = vmatpush1.bf16.msra.mxu0 0
        %5952 = vmatprep.subr.bf16.mxu0 0
        %5953 = vmatpush1.bf16.msra.mxu0 0
        %5954 = vmatprep.subr.bf16.mxu0 0
        %5955 = vmatpush1.bf16.msra.mxu0 0
        %5956 = vmatprep.subr.bf16.mxu0 0
        %5957 = vmatpush1.bf16.msra.mxu0 0
        %5958 = vmatprep.subr.bf16.mxu0 0
        %5959 = vmatpush1.bf16.msra.mxu0 0
        %5960 = vmatprep.subr.bf16.mxu0 0
        %5961 = vmatpush1.bf16.msra.mxu0 0
        %5962 = vmatprep.mubr.bf16.mxu0 0
        %5963 = vmatmul.mubr.bf16.gmra.mrb[0].mxu0 %v5928
        %v5964 = vpop.f32.mrb[0].mxu0
        %v5965 = vadd.f32 0.0, %v5964
        %v5966 = vpop.f32.mrb[0].mxu0
        %v5967 = vpop.f32.mrb[0].mxu0
        %v5968 = vpop.f32.mrb[0].mxu0
        %5969 = vdwg.mxu0
        %v5978 = vunpack.c.l.b16 %v2330
        %v5979 = vunpack.c.l.b16 %v2331
        %v5980 = vunpack.c.l.b16 %v2332
        %v5981 = vunpack.c.l.b16 %v2333
        %v5982 = vunpack.c.l.b16 %v2334
        %v5983 = vunpack.c.l.b16 %v2335
        %v5984 = vunpack.c.l.b16 %v2336
        %v5985 = vunpack.c.l.b16 %v2337
        %v5986 = vpack.c.b16 %v5979, %v5978
        %v5987 = vpack.c.b16 %v5981, %v5980
        %v5988 = vpack.c.b16 %v5983, %v5982
        %v5989 = vpack.c.b16 %v5985, %v5984
        %v5995 = vsel %vm2442, %v1895, 0
        %5997 = vmatprep.subr.bf16.mxu0 0
        %5998 = vmatpush1.bf16.msra.mxu0 %v5986
        %5999 = vmatprep.subr.bf16.mxu0 0
        %6000 = vmatpush1.bf16.msra.mxu0 %v5987
        %6001 = vmatprep.subr.bf16.mxu0 0
        %6002 = vmatpush1.bf16.msra.mxu0 %v5988
        %6003 = vmatprep.subr.bf16.mxu0 0
        %6004 = vmatpush1.bf16.msra.mxu0 %v5989
        %6005 = vmatprep.subr.bf16.mxu0 0
        %6006 = vmatpush1.bf16.msra.mxu0 0
        %6007 = vmatprep.subr.bf16.mxu0 0
        %6008 = vmatpush1.bf16.msra.mxu0 0
        %6009 = vmatprep.subr.bf16.mxu0 0
        %6010 = vmatpush1.bf16.msra.mxu0 0
        %6011 = vmatprep.subr.bf16.mxu0 0
        %6012 = vmatpush1.bf16.msra.mxu0 0
        %6013 = vmatprep.subr.bf16.mxu0 0
        %6014 = vmatpush1.bf16.msra.mxu0 0
        %6015 = vmatprep.subr.bf16.mxu0 0
        %6016 = vmatpush1.bf16.msra.mxu0 0
        %6017 = vmatprep.subr.bf16.mxu0 0
        %6018 = vmatpush1.bf16.msra.mxu0 0
        %6019 = vmatprep.subr.bf16.mxu0 0
        %6020 = vmatpush1.bf16.msra.mxu0 0
        %6021 = vmatprep.subr.bf16.mxu0 0
        %6022 = vmatpush1.bf16.msra.mxu0 0
        %6023 = vmatprep.subr.bf16.mxu0 0
        %6024 = vmatpush1.bf16.msra.mxu0 0
        %6025 = vmatprep.subr.bf16.mxu0 0
        %6026 = vmatpush1.bf16.msra.mxu0 0
        %6027 = vmatprep.subr.bf16.mxu0 0
        %6028 = vmatpush1.bf16.msra.mxu0 0
        %6029 = vmatprep.mubr.bf16.mxu0 0
        %6030 = vmatmul.mubr.bf16.gmra.mrb[0].mxu0 %v5995
        %v6031 = vpop.f32.mrb[0].mxu0
        %v6032 = vadd.f32 0.0, %v6031
        %v6033 = vpop.f32.mrb[0].mxu0
        %v6034 = vpop.f32.mrb[0].mxu0
        %v6035 = vpop.f32.mrb[0].mxu0
        %6036 = vdwg.mxu0
        %v6045 = vunpack.c.l.b16 %v2338
        %v6046 = vunpack.c.l.b16 %v2339
        %v6047 = vunpack.c.l.b16 %v2340
        %v6048 = vunpack.c.l.b16 %v2341
        %v6049 = vunpack.c.l.b16 %v2342
        %v6050 = vunpack.c.l.b16 %v2343
        %v6051 = vunpack.c.l.b16 %v2344
        %v6052 = vunpack.c.l.b16 %v2345
        %v6053 = vpack.c.b16 %v6046, %v6045
        %v6054 = vpack.c.b16 %v6048, %v6047
        %v6055 = vpack.c.b16 %v6050, %v6049
        %v6056 = vpack.c.b16 %v6052, %v6051
        %v6062 = vsel %vm2442, %v1896, 0
        %6064 = vmatprep.subr.bf16.mxu0 0
        %6065 = vmatpush1.bf16.msra.mxu0 %v6053
        %6066 = vmatprep.subr.bf16.mxu0 0
        %6067 = vmatpush1.bf16.msra.mxu0 %v6054
        %6068 = vmatprep.subr.bf16.mxu0 0
        %6069 = vmatpush1.bf16.msra.mxu0 %v6055
        %6070 = vmatprep.subr.bf16.mxu0 0
        %6071 = vmatpush1.bf16.msra.mxu0 %v6056
        %6072 = vmatprep.subr.bf16.mxu0 0
        %6073 = vmatpush1.bf16.msra.mxu0 0
        %6074 = vmatprep.subr.bf16.mxu0 0
        %6075 = vmatpush1.bf16.msra.mxu0 0
        %6076 = vmatprep.subr.bf16.mxu0 0
        %6077 = vmatpush1.bf16.msra.mxu0 0
        %6078 = vmatprep.subr.bf16.mxu0 0
        %6079 = vmatpush1.bf16.msra.mxu0 0
        %6080 = vmatprep.subr.bf16.mxu0 0
        %6081 = vmatpush1.bf16.msra.mxu0 0
        %6082 = vmatprep.subr.bf16.mxu0 0
        %6083 = vmatpush1.bf16.msra.mxu0 0
        %6084 = vmatprep.subr.bf16.mxu0 0
        %6085 = vmatpush1.bf16.msra.mxu0 0
        %6086 = vmatprep.subr.bf16.mxu0 0
        %6087 = vmatpush1.bf16.msra.mxu0 0
        %6088 = vmatprep.subr.bf16.mxu0 0
        %6089 = vmatpush1.bf16.msra.mxu0 0
        %6090 = vmatprep.subr.bf16.mxu0 0
        %6091 = vmatpush1.bf16.msra.mxu0 0
        %6092 = vmatprep.subr.bf16.mxu0 0
        %6093 = vmatpush1.bf16.msra.mxu0 0
        %6094 = vmatprep.subr.bf16.mxu0 0
        %6095 = vmatpush1.bf16.msra.mxu0 0
        %6096 = vmatprep.mubr.bf16.mxu0 0
        %6097 = vmatmul.mubr.bf16.gmra.mrb[0].mxu0 %v6062
        %v6098 = vpop.f32.mrb[0].mxu0
        %v6099 = vadd.f32 0.0, %v6098
        %v6100 = vpop.f32.mrb[0].mxu0
        %v6101 = vpop.f32.mrb[0].mxu0
        %v6102 = vpop.f32.mrb[0].mxu0
        %6103 = vdwg.mxu0
        %v6112 = vunpack.c.l.b16 %v2346
        %v6113 = vunpack.c.l.b16 %v2347
        %v6114 = vunpack.c.l.b16 %v2348
        %v6115 = vunpack.c.l.b16 %v2349
        %v6116 = vunpack.c.l.b16 %v2350
        %v6117 = vunpack.c.l.b16 %v2351
        %v6118 = vunpack.c.l.b16 %v2352
        %v6119 = vunpack.c.l.b16 %v2353
        %v6120 = vpack.c.b16 %v6113, %v6112
        %v6121 = vpack.c.b16 %v6115, %v6114
        %v6122 = vpack.c.b16 %v6117, %v6116
        %v6123 = vpack.c.b16 %v6119, %v6118
        %v6129 = vsel %vm2442, %v1897, 0
        %6131 = vmatprep.subr.bf16.mxu0 0
        %6132 = vmatpush1.bf16.msra.mxu0 %v6120
        %6133 = vmatprep.subr.bf16.mxu0 0
        %6134 = vmatpush1.bf16.msra.mxu0 %v6121
        %6135 = vmatprep.subr.bf16.mxu0 0
        %6136 = vmatpush1.bf16.msra.mxu0 %v6122
        %6137 = vmatprep.subr.bf16.mxu0 0
        %6138 = vmatpush1.bf16.msra.mxu0 %v6123
        %6139 = vmatprep.subr.bf16.mxu0 0
        %6140 = vmatpush1.bf16.msra.mxu0 0
        %6141 = vmatprep.subr.bf16.mxu0 0
        %6142 = vmatpush1.bf16.msra.mxu0 0
        %6143 = vmatprep.subr.bf16.mxu0 0
        %6144 = vmatpush1.bf16.msra.mxu0 0
        %6145 = vmatprep.subr.bf16.mxu0 0
        %6146 = vmatpush1.bf16.msra.mxu0 0
        %6147 = vmatprep.subr.bf16.mxu0 0
        %6148 = vmatpush1.bf16.msra.mxu0 0
        %6149 = vmatprep.subr.bf16.mxu0 0
        %6150 = vmatpush1.bf16.msra.mxu0 0
        %6151 = vmatprep.subr.bf16.mxu0 0
        %6152 = vmatpush1.bf16.msra.mxu0 0
        %6153 = vmatprep.subr.bf16.mxu0 0
        %6154 = vmatpush1.bf16.msra.mxu0 0
        %6155 = vmatprep.subr.bf16.mxu0 0
        %6156 = vmatpush1.bf16.msra.mxu0 0
        %6157 = vmatprep.subr.bf16.mxu0 0
        %6158 = vmatpush1.bf16.msra.mxu0 0
        %6159 = vmatprep.subr.bf16.mxu0 0
        %6160 = vmatpush1.bf16.msra.mxu0 0
        %6161 = vmatprep.subr.bf16.mxu0 0
        %6162 = vmatpush1.bf16.msra.mxu0 0
        %6163 = vmatprep.mubr.bf16.mxu0 0
        %6164 = vmatmul.mubr.bf16.gmra.mrb[0].mxu0 %v6129
        %v6165 = vpop.f32.mrb[0].mxu0
        %v6166 = vadd.f32 0.0, %v6165
        %v6167 = vpop.f32.mrb[0].mxu0
        %v6168 = vpop.f32.mrb[0].mxu0
        %v6169 = vpop.f32.mrb[0].mxu0
        %6170 = vdwg.mxu0
        %v6179 = vunpack.c.l.b16 %v2354
        %v6180 = vunpack.c.l.b16 %v2355
        %v6181 = vunpack.c.l.b16 %v2356
        %v6182 = vunpack.c.l.b16 %v2357
        %v6183 = vunpack.c.l.b16 %v2358
        %v6184 = vunpack.c.l.b16 %v2359
        %v6185 = vunpack.c.l.b16 %v2360
        %v6186 = vunpack.c.l.b16 %v2361
        %v6187 = vpack.c.b16 %v6180, %v6179
        %v6188 = vpack.c.b16 %v6182, %v6181
        %v6189 = vpack.c.b16 %v6184, %v6183
        %v6190 = vpack.c.b16 %v6186, %v6185
        %v6196 = vsel %vm2442, %v1898, 0
        %6198 = vmatprep.subr.bf16.mxu0 0
        %6199 = vmatpush1.bf16.msra.mxu0 %v6187
        %6200 = vmatprep.subr.bf16.mxu0 0
        %6201 = vmatpush1.bf16.msra.mxu0 %v6188
        %6202 = vmatprep.subr.bf16.mxu0 0
        %6203 = vmatpush1.bf16.msra.mxu0 %v6189
        %6204 = vmatprep.subr.bf16.mxu0 0
        %6205 = vmatpush1.bf16.msra.mxu0 %v6190
        %6206 = vmatprep.subr.bf16.mxu0 0
        %6207 = vmatpush1.bf16.msra.mxu0 0
        %6208 = vmatprep.subr.bf16.mxu0 0
        %6209 = vmatpush1.bf16.msra.mxu0 0
        %6210 = vmatprep.subr.bf16.mxu0 0
        %6211 = vmatpush1.bf16.msra.mxu0 0
        %6212 = vmatprep.subr.bf16.mxu0 0
        %6213 = vmatpush1.bf16.msra.mxu0 0
        %6214 = vmatprep.subr.bf16.mxu0 0
        %6215 = vmatpush1.bf16.msra.mxu0 0
        %6216 = vmatprep.subr.bf16.mxu0 0
        %6217 = vmatpush1.bf16.msra.mxu0 0
        %6218 = vmatprep.subr.bf16.mxu0 0
        %6219 = vmatpush1.bf16.msra.mxu0 0
        %6220 = vmatprep.subr.bf16.mxu0 0
        %6221 = vmatpush1.bf16.msra.mxu0 0
        %6222 = vmatprep.subr.bf16.mxu0 0
        %6223 = vmatpush1.bf16.msra.mxu0 0
        %6224 = vmatprep.subr.bf16.mxu0 0
        %6225 = vmatpush1.bf16.msra.mxu0 0
        %6226 = vmatprep.subr.bf16.mxu0 0
        %6227 = vmatpush1.bf16.msra.mxu0 0
        %6228 = vmatprep.subr.bf16.mxu0 0
        %6229 = vmatpush1.bf16.msra.mxu0 0
        %6230 = vmatprep.mubr.bf16.mxu0 0
        %6231 = vmatmul.mubr.bf16.gmra.mrb[0].mxu0 %v6196
        %v6232 = vpop.f32.mrb[0].mxu0
        %v6233 = vadd.f32 0.0, %v6232
        %v6234 = vpop.f32.mrb[0].mxu0
        %v6235 = vpop.f32.mrb[0].mxu0
        %v6236 = vpop.f32.mrb[0].mxu0
        %6237 = vdwg.mxu0
        %v6246 = vunpack.c.l.b16 %v2362
        %v6247 = vunpack.c.l.b16 %v2363
        %v6248 = vunpack.c.l.b16 %v2364
        %v6249 = vunpack.c.l.b16 %v2365
        %v6250 = vunpack.c.l.b16 %v2366
        %v6251 = vunpack.c.l.b16 %v2367
        %v6252 = vunpack.c.l.b16 %v2368
        %v6253 = vunpack.c.l.b16 %v2369
        %v6254 = vpack.c.b16 %v6247, %v6246
        %v6255 = vpack.c.b16 %v6249, %v6248
        %v6256 = vpack.c.b16 %v6251, %v6250
        %v6257 = vpack.c.b16 %v6253, %v6252
        %v6263 = vsel %vm2442, %v1899, 0
        %6265 = vmatprep.subr.bf16.mxu0 0
        %6266 = vmatpush1.bf16.msra.mxu0 %v6254
        %6267 = vmatprep.subr.bf16.mxu0 0
        %6268 = vmatpush1.bf16.msra.mxu0 %v6255
        %6269 = vmatprep.subr.bf16.mxu0 0
        %6270 = vmatpush1.bf16.msra.mxu0 %v6256
        %6271 = vmatprep.subr.bf16.mxu0 0
        %6272 = vmatpush1.bf16.msra.mxu0 %v6257
        %6273 = vmatprep.subr.bf16.mxu0 0
        %6274 = vmatpush1.bf16.msra.mxu0 0
        %6275 = vmatprep.subr.bf16.mxu0 0
        %6276 = vmatpush1.bf16.msra.mxu0 0
        %6277 = vmatprep.subr.bf16.mxu0 0
        %6278 = vmatpush1.bf16.msra.mxu0 0
        %6279 = vmatprep.subr.bf16.mxu0 0
        %6280 = vmatpush1.bf16.msra.mxu0 0
        %6281 = vmatprep.subr.bf16.mxu0 0
        %6282 = vmatpush1.bf16.msra.mxu0 0
        %6283 = vmatprep.subr.bf16.mxu0 0
        %6284 = vmatpush1.bf16.msra.mxu0 0
        %6285 = vmatprep.subr.bf16.mxu0 0
        %6286 = vmatpush1.bf16.msra.mxu0 0
        %6287 = vmatprep.subr.bf16.mxu0 0
        %6288 = vmatpush1.bf16.msra.mxu0 0
        %6289 = vmatprep.subr.bf16.mxu0 0
        %6290 = vmatpush1.bf16.msra.mxu0 0
        %6291 = vmatprep.subr.bf16.mxu0 0
        %6292 = vmatpush1.bf16.msra.mxu0 0
        %6293 = vmatprep.subr.bf16.mxu0 0
        %6294 = vmatpush1.bf16.msra.mxu0 0
        %6295 = vmatprep.subr.bf16.mxu0 0
        %6296 = vmatpush1.bf16.msra.mxu0 0
        %6297 = vmatprep.mubr.bf16.mxu0 0
        %6298 = vmatmul.mubr.bf16.gmra.mrb[0].mxu0 %v6263
        %v6299 = vpop.f32.mrb[0].mxu0
        %v6300 = vadd.f32 0.0, %v6299
        %v6301 = vpop.f32.mrb[0].mxu0
        %v6302 = vpop.f32.mrb[0].mxu0
        %v6303 = vpop.f32.mrb[0].mxu0
        %6304 = vdwg.mxu0
        %v6313 = vunpack.c.l.b16 %v2370
        %v6314 = vunpack.c.l.b16 %v2371
        %v6315 = vunpack.c.l.b16 %v2372
        %v6316 = vunpack.c.l.b16 %v2373
        %v6317 = vunpack.c.l.b16 %v2374
        %v6318 = vunpack.c.l.b16 %v2375
        %v6319 = vunpack.c.l.b16 %v2376
        %v6320 = vunpack.c.l.b16 %v2377
        %v6321 = vpack.c.b16 %v6314, %v6313
        %v6322 = vpack.c.b16 %v6316, %v6315
        %v6323 = vpack.c.b16 %v6318, %v6317
        %v6324 = vpack.c.b16 %v6320, %v6319
        %v6330 = vsel %vm2442, %v1900, 0
        %6332 = vmatprep.subr.bf16.mxu0 0
        %6333 = vmatpush1.bf16.msra.mxu0 %v6321
        %6334 = vmatprep.subr.bf16.mxu0 0
        %6335 = vmatpush1.bf16.msra.mxu0 %v6322
        %6336 = vmatprep.subr.bf16.mxu0 0
        %6337 = vmatpush1.bf16.msra.mxu0 %v6323
        %6338 = vmatprep.subr.bf16.mxu0 0
        %6339 = vmatpush1.bf16.msra.mxu0 %v6324
        %6340 = vmatprep.subr.bf16.mxu0 0
        %6341 = vmatpush1.bf16.msra.mxu0 0
        %6342 = vmatprep.subr.bf16.mxu0 0
        %6343 = vmatpush1.bf16.msra.mxu0 0
        %6344 = vmatprep.subr.bf16.mxu0 0
        %6345 = vmatpush1.bf16.msra.mxu0 0
        %6346 = vmatprep.subr.bf16.mxu0 0
        %6347 = vmatpush1.bf16.msra.mxu0 0
        %6348 = vmatprep.subr.bf16.mxu0 0
        %6349 = vmatpush1.bf16.msra.mxu0 0
        %6350 = vmatprep.subr.bf16.mxu0 0
        %6351 = vmatpush1.bf16.msra.mxu0 0
        %6352 = vmatprep.subr.bf16.mxu0 0
        %6353 = vmatpush1.bf16.msra.mxu0 0
        %6354 = vmatprep.subr.bf16.mxu0 0
        %6355 = vmatpush1.bf16.msra.mxu0 0
        %6356 = vmatprep.subr.bf16.mxu0 0
        %6357 = vmatpush1.bf16.msra.mxu0 0
        %6358 = vmatprep.subr.bf16.mxu0 0
        %6359 = vmatpush1.bf16.msra.mxu0 0
        %6360 = vmatprep.subr.bf16.mxu0 0
        %6361 = vmatpush1.bf16.msra.mxu0 0
        %6362 = vmatprep.subr.bf16.mxu0 0
        %6363 = vmatpush1.bf16.msra.mxu0 0
        %6364 = vmatprep.mubr.bf16.mxu0 0
        %6365 = vmatmul.mubr.bf16.gmra.mrb[0].mxu0 %v6330
        %v6366 = vpop.f32.mrb[0].mxu0
        %v6367 = vadd.f32 0.0, %v6366
        %v6368 = vpop.f32.mrb[0].mxu0
        %v6369 = vpop.f32.mrb[0].mxu0
        %v6370 = vpop.f32.mrb[0].mxu0
        %6371 = vdwg.mxu0
        %v6380 = vunpack.c.l.b16 %v2378
        %v6381 = vunpack.c.l.b16 %v2379
        %v6382 = vunpack.c.l.b16 %v2380
        %v6383 = vunpack.c.l.b16 %v2381
        %v6384 = vunpack.c.l.b16 %v2382
        %v6385 = vunpack.c.l.b16 %v2383
        %v6386 = vunpack.c.l.b16 %v2384
        %v6387 = vunpack.c.l.b16 %v2385
        %v6388 = vpack.c.b16 %v6381, %v6380
        %v6389 = vpack.c.b16 %v6383, %v6382
        %v6390 = vpack.c.b16 %v6385, %v6384
        %v6391 = vpack.c.b16 %v6387, %v6386
        %v6397 = vsel %vm2442, %v1901, 0
        %6399 = vmatprep.subr.bf16.mxu0 0
        %6400 = vmatpush1.bf16.msra.mxu0 %v6388
        %6401 = vmatprep.subr.bf16.mxu0 0
        %6402 = vmatpush1.bf16.msra.mxu0 %v6389
        %6403 = vmatprep.subr.bf16.mxu0 0
        %6404 = vmatpush1.bf16.msra.mxu0 %v6390
        %6405 = vmatprep.subr.bf16.mxu0 0
        %6406 = vmatpush1.bf16.msra.mxu0 %v6391
        %6407 = vmatprep.subr.bf16.mxu0 0
        %6408 = vmatpush1.bf16.msra.mxu0 0
        %6409 = vmatprep.subr.bf16.mxu0 0
        %6410 = vmatpush1.bf16.msra.mxu0 0
        %6411 = vmatprep.subr.bf16.mxu0 0
        %6412 = vmatpush1.bf16.msra.mxu0 0
        %6413 = vmatprep.subr.bf16.mxu0 0
        %6414 = vmatpush1.bf16.msra.mxu0 0
        %6415 = vmatprep.subr.bf16.mxu0 0
        %6416 = vmatpush1.bf16.msra.mxu0 0
        %6417 = vmatprep.subr.bf16.mxu0 0
        %6418 = vmatpush1.bf16.msra.mxu0 0
        %6419 = vmatprep.subr.bf16.mxu0 0
        %6420 = vmatpush1.bf16.msra.mxu0 0
        %6421 = vmatprep.subr.bf16.mxu0 0
        %6422 = vmatpush1.bf16.msra.mxu0 0
        %6423 = vmatprep.subr.bf16.mxu0 0
        %6424 = vmatpush1.bf16.msra.mxu0 0
        %6425 = vmatprep.subr.bf16.mxu0 0
        %6426 = vmatpush1.bf16.msra.mxu0 0
        %6427 = vmatprep.subr.bf16.mxu0 0
        %6428 = vmatpush1.bf16.msra.mxu0 0
        %6429 = vmatprep.subr.bf16.mxu0 0
        %6430 = vmatpush1.bf16.msra.mxu0 0
        %6431 = vmatprep.mubr.bf16.mxu0 0
        %6432 = vmatmul.mubr.bf16.gmra.mrb[0].mxu0 %v6397
        %v6433 = vpop.f32.mrb[0].mxu0
        %v6434 = vadd.f32 0.0, %v6433
        %v6435 = vpop.f32.mrb[0].mxu0
        %v6436 = vpop.f32.mrb[0].mxu0
        %v6437 = vpop.f32.mrb[0].mxu0
        %6438 = vdwg.mxu0
        %v6447 = vunpack.c.l.b16 %v2386
        %v6448 = vunpack.c.l.b16 %v2387
        %v6449 = vunpack.c.l.b16 %v2388
        %v6450 = vunpack.c.l.b16 %v2389
        %v6451 = vunpack.c.l.b16 %v2390
        %v6452 = vunpack.c.l.b16 %v2391
        %v6453 = vunpack.c.l.b16 %v2392
        %v6454 = vunpack.c.l.b16 %v2393
        %v6455 = vpack.c.b16 %v6448, %v6447
        %v6456 = vpack.c.b16 %v6450, %v6449
        %v6457 = vpack.c.b16 %v6452, %v6451
        %v6458 = vpack.c.b16 %v6454, %v6453
        %v6464 = vsel %vm2442, %v1902, 0
        %6466 = vmatprep.subr.bf16.mxu0 0
        %6467 = vmatpush1.bf16.msra.mxu0 %v6455
        %6468 = vmatprep.subr.bf16.mxu0 0
        %6469 = vmatpush1.bf16.msra.mxu0 %v6456
        %6470 = vmatprep.subr.bf16.mxu0 0
        %6471 = vmatpush1.bf16.msra.mxu0 %v6457
        %6472 = vmatprep.subr.bf16.mxu0 0
        %6473 = vmatpush1.bf16.msra.mxu0 %v6458
        %6474 = vmatprep.subr.bf16.mxu0 0
        %6475 = vmatpush1.bf16.msra.mxu0 0
        %6476 = vmatprep.subr.bf16.mxu0 0
        %6477 = vmatpush1.bf16.msra.mxu0 0
        %6478 = vmatprep.subr.bf16.mxu0 0
        %6479 = vmatpush1.bf16.msra.mxu0 0
        %6480 = vmatprep.subr.bf16.mxu0 0
        %6481 = vmatpush1.bf16.msra.mxu0 0
        %6482 = vmatprep.subr.bf16.mxu0 0
        %6483 = vmatpush1.bf16.msra.mxu0 0
        %6484 = vmatprep.subr.bf16.mxu0 0
        %6485 = vmatpush1.bf16.msra.mxu0 0
        %6486 = vmatprep.subr.bf16.mxu0 0
        %6487 = vmatpush1.bf16.msra.mxu0 0
        %6488 = vmatprep.subr.bf16.mxu0 0
        %6489 = vmatpush1.bf16.msra.mxu0 0
        %6490 = vmatprep.subr.bf16.mxu0 0
        %6491 = vmatpush1.bf16.msra.mxu0 0
        %6492 = vmatprep.subr.bf16.mxu0 0
        %6493 = vmatpush1.bf16.msra.mxu0 0
        %6494 = vmatprep.subr.bf16.mxu0 0
        %6495 = vmatpush1.bf16.msra.mxu0 0
        %6496 = vmatprep.subr.bf16.mxu0 0
        %6497 = vmatpush1.bf16.msra.mxu0 0
        %6498 = vmatprep.mubr.bf16.mxu0 0
        %6499 = vmatmul.mubr.bf16.gmra.mrb[0].mxu0 %v6464
        %v6500 = vpop.f32.mrb[0].mxu0
        %v6501 = vadd.f32 0.0, %v6500
        %v6502 = vpop.f32.mrb[0].mxu0
        %v6503 = vpop.f32.mrb[0].mxu0
        %v6504 = vpop.f32.mrb[0].mxu0
        %6505 = vdwg.mxu0
        %v6514 = vunpack.c.l.b16 %v2394
        %v6515 = vunpack.c.l.b16 %v2395
        %v6516 = vunpack.c.l.b16 %v2396
        %v6517 = vunpack.c.l.b16 %v2397
        %v6518 = vunpack.c.l.b16 %v2398
        %v6519 = vunpack.c.l.b16 %v2399
        %v6520 = vunpack.c.l.b16 %v2400
        %v6521 = vunpack.c.l.b16 %v2401
        %v6522 = vpack.c.b16 %v6515, %v6514
        %v6523 = vpack.c.b16 %v6517, %v6516
        %v6524 = vpack.c.b16 %v6519, %v6518
        %v6525 = vpack.c.b16 %v6521, %v6520
        %v6531 = vsel %vm2442, %v1903, 0
        %6533 = vmatprep.subr.bf16.mxu0 0
        %6534 = vmatpush1.bf16.msra.mxu0 %v6522
        %6535 = vmatprep.subr.bf16.mxu0 0
        %6536 = vmatpush1.bf16.msra.mxu0 %v6523
        %6537 = vmatprep.subr.bf16.mxu0 0
        %6538 = vmatpush1.bf16.msra.mxu0 %v6524
        %6539 = vmatprep.subr.bf16.mxu0 0
        %6540 = vmatpush1.bf16.msra.mxu0 %v6525
        %6541 = vmatprep.subr.bf16.mxu0 0
        %6542 = vmatpush1.bf16.msra.mxu0 0
        %6543 = vmatprep.subr.bf16.mxu0 0
        %6544 = vmatpush1.bf16.msra.mxu0 0
        %6545 = vmatprep.subr.bf16.mxu0 0
        %6546 = vmatpush1.bf16.msra.mxu0 0
        %6547 = vmatprep.subr.bf16.mxu0 0
        %6548 = vmatpush1.bf16.msra.mxu0 0
        %6549 = vmatprep.subr.bf16.mxu0 0
        %6550 = vmatpush1.bf16.msra.mxu0 0
        %6551 = vmatprep.subr.bf16.mxu0 0
        %6552 = vmatpush1.bf16.msra.mxu0 0
        %6553 = vmatprep.subr.bf16.mxu0 0
        %6554 = vmatpush1.bf16.msra.mxu0 0
        %6555 = vmatprep.subr.bf16.mxu0 0
        %6556 = vmatpush1.bf16.msra.mxu0 0
        %6557 = vmatprep.subr.bf16.mxu0 0
        %6558 = vmatpush1.bf16.msra.mxu0 0
        %6559 = vmatprep.subr.bf16.mxu0 0
        %6560 = vmatpush1.bf16.msra.mxu0 0
        %6561 = vmatprep.subr.bf16.mxu0 0
        %6562 = vmatpush1.bf16.msra.mxu0 0
        %6563 = vmatprep.subr.bf16.mxu0 0
        %6564 = vmatpush1.bf16.msra.mxu0 0
        %6565 = vmatprep.mubr.bf16.mxu0 0
        %6566 = vmatmul.mubr.bf16.gmra.mrb[0].mxu0 %v6531
        %v6567 = vpop.f32.mrb[0].mxu0
        %v6568 = vadd.f32 0.0, %v6567
        %v6569 = vpop.f32.mrb[0].mxu0
        %v6570 = vpop.f32.mrb[0].mxu0
        %v6571 = vpop.f32.mrb[0].mxu0
        %6572 = vdwg.mxu0
        %v6581 = vunpack.c.l.b16 %v2402
        %v6582 = vunpack.c.l.b16 %v2403
        %v6583 = vunpack.c.l.b16 %v2404
        %v6584 = vunpack.c.l.b16 %v2405
        %v6585 = vunpack.c.l.b16 %v2406
        %v6586 = vunpack.c.l.b16 %v2407
        %v6587 = vunpack.c.l.b16 %v2408
        %v6588 = vunpack.c.l.b16 %v2409
        %v6589 = vpack.c.b16 %v6582, %v6581
        %v6590 = vpack.c.b16 %v6584, %v6583
        %v6591 = vpack.c.b16 %v6586, %v6585
        %v6592 = vpack.c.b16 %v6588, %v6587
        %v6598 = vsel %vm2442, %v1904, 0
        %6600 = vmatprep.subr.bf16.mxu0 0
        %6601 = vmatpush1.bf16.msra.mxu0 %v6589
        %6602 = vmatprep.subr.bf16.mxu0 0
        %6603 = vmatpush1.bf16.msra.mxu0 %v6590
        %6604 = vmatprep.subr.bf16.mxu0 0
        %6605 = vmatpush1.bf16.msra.mxu0 %v6591
        %6606 = vmatprep.subr.bf16.mxu0 0
        %6607 = vmatpush1.bf16.msra.mxu0 %v6592
        %6608 = vmatprep.subr.bf16.mxu0 0
        %6609 = vmatpush1.bf16.msra.mxu0 0
        %6610 = vmatprep.subr.bf16.mxu0 0
        %6611 = vmatpush1.bf16.msra.mxu0 0
        %6612 = vmatprep.subr.bf16.mxu0 0
        %6613 = vmatpush1.bf16.msra.mxu0 0
        %6614 = vmatprep.subr.bf16.mxu0 0
        %6615 = vmatpush1.bf16.msra.mxu0 0
        %6616 = vmatprep.subr.bf16.mxu0 0
        %6617 = vmatpush1.bf16.msra.mxu0 0
        %6618 = vmatprep.subr.bf16.mxu0 0
        %6619 = vmatpush1.bf16.msra.mxu0 0
        %6620 = vmatprep.subr.bf16.mxu0 0
        %6621 = vmatpush1.bf16.msra.mxu0 0
        %6622 = vmatprep.subr.bf16.mxu0 0
        %6623 = vmatpush1.bf16.msra.mxu0 0
        %6624 = vmatprep.subr.bf16.mxu0 0
        %6625 = vmatpush1.bf16.msra.mxu0 0
        %6626 = vmatprep.subr.bf16.mxu0 0
        %6627 = vmatpush1.bf16.msra.mxu0 0
        %6628 = vmatprep.subr.bf16.mxu0 0
        %6629 = vmatpush1.bf16.msra.mxu0 0
        %6630 = vmatprep.subr.bf16.mxu0 0
        %6631 = vmatpush1.bf16.msra.mxu0 0
        %6632 = vmatprep.mubr.bf16.mxu0 0
        %6633 = vmatmul.mubr.bf16.gmra.mrb[0].mxu0 %v6598
        %v6634 = vpop.f32.mrb[0].mxu0
        %v6635 = vadd.f32 0.0, %v6634
        %v6636 = vpop.f32.mrb[0].mxu0
        %v6637 = vpop.f32.mrb[0].mxu0
        %v6638 = vpop.f32.mrb[0].mxu0
        %6639 = vdwg.mxu0
        %v6648 = vunpack.c.l.b16 %v2410
        %v6649 = vunpack.c.l.b16 %v2411
        %v6650 = vunpack.c.l.b16 %v2412
        %v6651 = vunpack.c.l.b16 %v2413
        %v6652 = vunpack.c.l.b16 %v2414
        %v6653 = vunpack.c.l.b16 %v2415
        %v6654 = vunpack.c.l.b16 %v2416
        %v6655 = vunpack.c.l.b16 %v2417
        %v6656 = vpack.c.b16 %v6649, %v6648
        %v6657 = vpack.c.b16 %v6651, %v6650
        %v6658 = vpack.c.b16 %v6653, %v6652
        %v6659 = vpack.c.b16 %v6655, %v6654
        %v6665 = vsel %vm2442, %v1905, 0
        %6667 = vmatprep.subr.bf16.mxu0 0
        %6668 = vmatpush1.bf16.msra.mxu0 %v6656
        %6669 = vmatprep.subr.bf16.mxu0 0
        %6670 = vmatpush1.bf16.msra.mxu0 %v6657
        %6671 = vmatprep.subr.bf16.mxu0 0
        %6672 = vmatpush1.bf16.msra.mxu0 %v6658
        %6673 = vmatprep.subr.bf16.mxu0 0
        %6674 = vmatpush1.bf16.msra.mxu0 %v6659
        %6675 = vmatprep.subr.bf16.mxu0 0
        %6676 = vmatpush1.bf16.msra.mxu0 0
        %6677 = vmatprep.subr.bf16.mxu0 0
        %6678 = vmatpush1.bf16.msra.mxu0 0
        %6679 = vmatprep.subr.bf16.mxu0 0
        %6680 = vmatpush1.bf16.msra.mxu0 0
        %6681 = vmatprep.subr.bf16.mxu0 0
        %6682 = vmatpush1.bf16.msra.mxu0 0
        %6683 = vmatprep.subr.bf16.mxu0 0
        %6684 = vmatpush1.bf16.msra.mxu0 0
        %6685 = vmatprep.subr.bf16.mxu0 0
        %6686 = vmatpush1.bf16.msra.mxu0 0
        %6687 = vmatprep.subr.bf16.mxu0 0
        %6688 = vmatpush1.bf16.msra.mxu0 0
        %6689 = vmatprep.subr.bf16.mxu0 0
        %6690 = vmatpush1.bf16.msra.mxu0 0
        %6691 = vmatprep.subr.bf16.mxu0 0
        %6692 = vmatpush1.bf16.msra.mxu0 0
        %6693 = vmatprep.subr.bf16.mxu0 0
        %6694 = vmatpush1.bf16.msra.mxu0 0
        %6695 = vmatprep.subr.bf16.mxu0 0
        %6696 = vmatpush1.bf16.msra.mxu0 0
        %6697 = vmatprep.subr.bf16.mxu0 0
        %6698 = vmatpush1.bf16.msra.mxu0 0
        %6699 = vmatprep.mubr.bf16.mxu0 0
        %6700 = vmatmul.mubr.bf16.gmra.mrb[0].mxu0 %v6665
        %v6701 = vpop.f32.mrb[0].mxu0
        %v6702 = vadd.f32 0.0, %v6701
        %v6703 = vpop.f32.mrb[0].mxu0
        %v6704 = vpop.f32.mrb[0].mxu0
        %v6705 = vpop.f32.mrb[0].mxu0
        %6706 = vdwg.mxu0
        %vm6707 = vcmask 1041408
        %v6708 = vsel %vm6707, %v2481, 0.0
        %v6709 = vsel %vm6707, %v2548, 0.0
        %v6710 = vadd.f32 %v6708, %v6709
        %v6711 = vsel %vm6707, %v2615, 0.0
        %v6712 = vadd.f32 %v6710, %v6711
        %v6713 = vsel %vm6707, %v2682, 0.0
        %v6714 = vadd.f32 %v6712, %v6713
        %v6715 = vsel %vm6707, %v2749, 0.0
        %v6716 = vadd.f32 %v6714, %v6715
        %v6717 = vsel %vm6707, %v2816, 0.0
        %v6718 = vadd.f32 %v6716, %v6717
        %v6719 = vsel %vm6707, %v2883, 0.0
        %v6720 = vadd.f32 %v6718, %v6719
        %v6721 = vsel %vm6707, %v2950, 0.0
        %v6722 = vadd.f32 %v6720, %v6721
        %v6723 = vsel %vm6707, %v3017, 0.0
        %v6724 = vadd.f32 %v6722, %v6723
        %v6725 = vsel %vm6707, %v3084, 0.0
        %v6726 = vadd.f32 %v6724, %v6725
        %v6727 = vsel %vm6707, %v3151, 0.0
        %v6728 = vadd.f32 %v6726, %v6727
        %v6729 = vsel %vm6707, %v3218, 0.0
        %v6730 = vadd.f32 %v6728, %v6729
        %v6731 = vsel %vm6707, %v3285, 0.0
        %v6732 = vadd.f32 %v6730, %v6731
        %v6733 = vsel %vm6707, %v3352, 0.0
        %v6734 = vadd.f32 %v6732, %v6733
        %v6735 = vsel %vm6707, %v3419, 0.0
        %v6736 = vadd.f32 %v6734, %v6735
        %v6737 = vsel %vm6707, %v3486, 0.0
        %v6738 = vadd.f32 %v6736, %v6737
        %v6739 = vsel %vm6707, %v3553, 0.0
        %v6740 = vadd.f32 %v6738, %v6739
        %v6741 = vsel %vm6707, %v3620, 0.0
        %v6742 = vadd.f32 %v6740, %v6741
        %v6743 = vsel %vm6707, %v3687, 0.0
        %v6744 = vadd.f32 %v6742, %v6743
        %v6745 = vsel %vm6707, %v3754, 0.0
        %v6746 = vadd.f32 %v6744, %v6745
        %v6747 = vsel %vm6707, %v3821, 0.0
        %v6748 = vadd.f32 %v6746, %v6747
        %v6749 = vsel %vm6707, %v3888, 0.0
        %v6750 = vadd.f32 %v6748, %v6749
        %v6751 = vsel %vm6707, %v3955, 0.0
        %v6752 = vadd.f32 %v6750, %v6751
        %v6753 = vsel %vm6707, %v4022, 0.0
        %v6754 = vadd.f32 %v6752, %v6753
        %v6755 = vsel %vm6707, %v4089, 0.0
        %v6756 = vadd.f32 %v6754, %v6755
        %v6757 = vsel %vm6707, %v4156, 0.0
        %v6758 = vadd.f32 %v6756, %v6757
        %v6759 = vsel %vm6707, %v4223, 0.0
        %v6760 = vadd.f32 %v6758, %v6759
        %v6761 = vsel %vm6707, %v4290, 0.0
        %v6762 = vadd.f32 %v6760, %v6761
        %v6763 = vsel %vm6707, %v4357, 0.0
        %v6764 = vadd.f32 %v6762, %v6763
        %v6765 = vsel %vm6707, %v4424, 0.0
        %v6766 = vadd.f32 %v6764, %v6765
        %v6767 = vsel %vm6707, %v4491, 0.0
        %v6768 = vadd.f32 %v6766, %v6767
        %v6769 = vsel %vm6707, %v4558, 0.0
        %v6770 = vadd.f32 %v6768, %v6769
        %v6771 = vsel %vm6707, %v4625, 0.0
        %v6772 = vadd.f32 %v6770, %v6771
        %v6773 = vsel %vm6707, %v4692, 0.0
        %v6774 = vadd.f32 %v6772, %v6773
        %v6775 = vsel %vm6707, %v4759, 0.0
        %v6776 = vadd.f32 %v6774, %v6775
        %v6777 = vsel %vm6707, %v4826, 0.0
        %v6778 = vadd.f32 %v6776, %v6777
        %v6779 = vsel %vm6707, %v4893, 0.0
        %v6780 = vadd.f32 %v6778, %v6779
        %v6781 = vsel %vm6707, %v4960, 0.0
        %v6782 = vadd.f32 %v6780, %v6781
        %v6783 = vsel %vm6707, %v5027, 0.0
        %v6784 = vadd.f32 %v6782, %v6783
        %v6785 = vsel %vm6707, %v5094, 0.0
        %v6786 = vadd.f32 %v6784, %v6785
        %v6787 = vsel %vm6707, %v5161, 0.0
        %v6788 = vadd.f32 %v6786, %v6787
        %v6789 = vsel %vm6707, %v5228, 0.0
        %v6790 = vadd.f32 %v6788, %v6789
        %v6791 = vsel %vm6707, %v5295, 0.0
        %v6792 = vadd.f32 %v6790, %v6791
        %v6793 = vsel %vm6707, %v5362, 0.0
        %v6794 = vadd.f32 %v6792, %v6793
        %v6795 = vsel %vm6707, %v5429, 0.0
        %v6796 = vadd.f32 %v6794, %v6795
        %v6797 = vsel %vm6707, %v5496, 0.0
        %v6798 = vadd.f32 %v6796, %v6797
        %v6799 = vsel %vm6707, %v5563, 0.0
        %v6800 = vadd.f32 %v6798, %v6799
        %v6801 = vsel %vm6707, %v5630, 0.0
        %v6802 = vadd.f32 %v6800, %v6801
        %v6803 = vsel %vm6707, %v5697, 0.0
        %v6804 = vadd.f32 %v6802, %v6803
        %v6805 = vsel %vm6707, %v5764, 0.0
        %v6806 = vadd.f32 %v6804, %v6805
        %v6807 = vsel %vm6707, %v5831, 0.0
        %v6808 = vadd.f32 %v6806, %v6807
        %v6809 = vsel %vm6707, %v5898, 0.0
        %v6810 = vadd.f32 %v6808, %v6809
        %v6811 = vsel %vm6707, %v5965, 0.0
        %v6812 = vadd.f32 %v6810, %v6811
        %v6813 = vsel %vm6707, %v6032, 0.0
        %v6814 = vadd.f32 %v6812, %v6813
        %v6815 = vsel %vm6707, %v6099, 0.0
        %v6816 = vadd.f32 %v6814, %v6815
        %v6817 = vsel %vm6707, %v6166, 0.0
        %v6818 = vadd.f32 %v6816, %v6817
        %v6819 = vsel %vm6707, %v6233, 0.0
        %v6820 = vadd.f32 %v6818, %v6819
        %v6821 = vsel %vm6707, %v6300, 0.0
        %v6822 = vadd.f32 %v6820, %v6821
        %v6823 = vsel %vm6707, %v6367, 0.0
        %v6824 = vadd.f32 %v6822, %v6823
        %v6825 = vsel %vm6707, %v6434, 0.0
        %v6826 = vadd.f32 %v6824, %v6825
        %v6827 = vsel %vm6707, %v6501, 0.0
        %v6828 = vadd.f32 %v6826, %v6827
        %v6829 = vsel %vm6707, %v6568, 0.0
        %v6830 = vadd.f32 %v6828, %v6829
        %v6831 = vsel %vm6707, %v6635, 0.0
        %v6832 = vadd.f32 %v6830, %v6831
        %v6833 = vsel %vm6707, %v6702, 0.0
        %v6834 = vadd.f32 %v6832, %v6833
        %v6835 = vld [vmem:[%s393] sm:$0x1]
        %v6837 = vlaneseq
        %v6838 = vshrl.u32 %v6837, 7
        %v6839 = vsub.s32 0, %v6838
        %v6840 = vrot.slane %v6835, %v6839
        %v6842 = vadd.f32 %v6834, %v6840
        %v6843 = vmax.f32 %v6842, 0.0
        %s6844 = smul.u32 %s25, 128
        %s6845 = sshra.s32 %s6844, 7
        %s6846 = sand.u32 %s6844, 127
        %s6847 = smul.addr %s6845, 2
        %s6848 = scalar_lea.vmem [#allocation3], %s6847
        %6849 = vst [vmem:[%s6848] sm:$0x3] %v6843
        %p6850 = scmp.eq.s32.totalorder %s25, 1
        // Predicated region
        $region81: #{tpu_custom_call.1} parent=55 // pred_check
          %p6851 = pneg %p6850
        $region82: #{tpu_custom_call.1} parent=55 // pred_check_branch
          %6853 = sbr.rel (%p6851) target = $region84
        $region83: #{tpu_custom_call.1} parent=55 // pred_region
          %v6854 = vld [vmem:[#allocation3] sm:$0xf]
          %v6857 = vunpack.c.l.s4 1983009808
          %v6858 = vunpack.c.0.s8 %v6857
          %v6859 = vlaneseq
          %v6860 = vshrl.u32 %v6859, 7
          %v6861 = vsub.s32 %v6858, %v6860
          %v6862 = vrot.slane %v6854, %v6861
          %v6863 = vcombine.high %v6862, %v6862
          %v6866 = vpack.c.bf16 %v6862, %v6862
          %v6867 = vpack.c.bf16 %v6863, %v6863
          %v6868 = vld [vmem:[%s7] sm:$0xf]
          %v6869 = vld [vmem:[%s7 + $0x4] sm:$0xf]
          %v6870 = vld [vmem:[%s7 + $0x8] sm:$0xf]
          %v6871 = vld [vmem:[%s7 + $0xc] sm:$0xf]
          %v6872 = vld [vmem:[%s7 + $0x10] sm:$0xf]
          %v6873 = vld [vmem:[%s7 + $0x14] sm:$0xf]
          %v6874 = vld [vmem:[%s7 + $0x18] sm:$0xf]
          %v6875 = vld [vmem:[%s7 + $0x1c] sm:$0xf]
          %v6876 = vld [vmem:[%s7 + $0x20] sm:$0xf]
          %v6877 = vld [vmem:[%s7 + $0x24] sm:$0xf]
          %v6878 = vld [vmem:[%s7 + $0x28] sm:$0xf]
          %v6879 = vld [vmem:[%s7 + $0x2c] sm:$0xf]
          %v6880 = vld [vmem:[%s7 + $0x30] sm:$0xf]
          %v6881 = vld [vmem:[%s7 + $0x34] sm:$0xf]
          %v6882 = vld [vmem:[%s7 + $0x38] sm:$0xf]
          %v6883 = vld [vmem:[%s7 + $0x3c] sm:$0xf]
          %v6884 = vld [vmem:[%s7 + $0x40] sm:$0xf]
          %v6885 = vld [vmem:[%s7 + $0x44] sm:$0xf]
          %v6886 = vld [vmem:[%s7 + $0x48] sm:$0xf]
          %v6887 = vld [vmem:[%s7 + $0x4c] sm:$0xf]
          %v6888 = vld [vmem:[%s7 + $0x50] sm:$0xf]
          %v6889 = vld [vmem:[%s7 + $0x54] sm:$0xf]
          %v6890 = vld [vmem:[%s7 + $0x58] sm:$0xf]
          %v6891 = vld [vmem:[%s7 + $0x5c] sm:$0xf]
          %v6892 = vld [vmem:[%s7 + $0x60] sm:$0xf]
          %v6893 = vld [vmem:[%s7 + $0x64] sm:$0xf]
          %v6894 = vld [vmem:[%s7 + $0x68] sm:$0xf]
          %v6895 = vld [vmem:[%s7 + $0x6c] sm:$0xf]
          %v6896 = vld [vmem:[%s7 + $0x70] sm:$0xf]
          %v6897 = vld [vmem:[%s7 + $0x74] sm:$0xf]
          %v6898 = vld [vmem:[%s7 + $0x78] sm:$0xf]
          %v6899 = vld [vmem:[%s7 + $0x7c] sm:$0xf]
          %v6900 = vld [vmem:[#allocation11] sm:$0x1]
          %v6902 = vlaneseq
          %v6903 = vshrl.u32 %v6902, 7
          %v6904 = vsub.s32 0, %v6903
          %v6905 = vrot.slane %v6900, %v6904
          %v6939 = vunpack.c.l.b16 %v6868
          %v6940 = vunpack.c.l.b16 %v6869
          %v6941 = vunpack.c.l.b16 %v6870
          %v6942 = vunpack.c.l.b16 %v6871
          %v6943 = vunpack.c.l.b16 %v6872
          %v6944 = vunpack.c.l.b16 %v6873
          %v6945 = vunpack.c.l.b16 %v6874
          %v6946 = vunpack.c.l.b16 %v6875
          %v6947 = vunpack.c.l.b16 %v6876
          %v6948 = vunpack.c.l.b16 %v6877
          %v6949 = vunpack.c.l.b16 %v6878
          %v6950 = vunpack.c.l.b16 %v6879
          %v6951 = vunpack.c.l.b16 %v6880
          %v6952 = vunpack.c.l.b16 %v6881
          %v6953 = vunpack.c.l.b16 %v6882
          %v6954 = vunpack.c.l.b16 %v6883
          %v6955 = vunpack.c.l.b16 %v6884
          %v6956 = vunpack.c.l.b16 %v6885
          %v6957 = vunpack.c.l.b16 %v6886
          %v6958 = vunpack.c.l.b16 %v6887
          %v6959 = vunpack.c.l.b16 %v6888
          %v6960 = vunpack.c.l.b16 %v6889
          %v6961 = vunpack.c.l.b16 %v6890
          %v6962 = vunpack.c.l.b16 %v6891
          %v6963 = vunpack.c.l.b16 %v6892
          %v6964 = vunpack.c.l.b16 %v6893
          %v6965 = vunpack.c.l.b16 %v6894
          %v6966 = vunpack.c.l.b16 %v6895
          %v6967 = vunpack.c.l.b16 %v6896
          %v6968 = vunpack.c.l.b16 %v6897
          %v6969 = vunpack.c.l.b16 %v6898
          %v6970 = vunpack.c.l.b16 %v6899
          %v6971 = vpack.c.b16 %v6940, %v6939
          %v6972 = vpack.c.b16 %v6942, %v6941
          %v6973 = vpack.c.b16 %v6944, %v6943
          %v6974 = vpack.c.b16 %v6946, %v6945
          %v6975 = vpack.c.b16 %v6948, %v6947
          %v6976 = vpack.c.b16 %v6950, %v6949
          %v6977 = vpack.c.b16 %v6952, %v6951
          %v6978 = vpack.c.b16 %v6954, %v6953
          %v6979 = vpack.c.b16 %v6956, %v6955
          %v6980 = vpack.c.b16 %v6958, %v6957
          %v6981 = vpack.c.b16 %v6960, %v6959
          %v6982 = vpack.c.b16 %v6962, %v6961
          %v6983 = vpack.c.b16 %v6964, %v6963
          %v6984 = vpack.c.b16 %v6966, %v6965
          %v6985 = vpack.c.b16 %v6968, %v6967
          %v6986 = vpack.c.b16 %v6970, %v6969
          %7003 = vmatprep.subr.bf16.mxu0 0
          %7004 = vmatpush1.bf16.msra.mxu0 %v6971
          %7005 = vmatprep.subr.bf16.mxu0 0
          %7006 = vmatpush1.bf16.msra.mxu0 %v6972
          %7007 = vmatprep.subr.bf16.mxu0 0
          %7008 = vmatpush1.bf16.msra.mxu0 %v6973
          %7009 = vmatprep.subr.bf16.mxu0 0
          %7010 = vmatpush1.bf16.msra.mxu0 %v6974
          %7011 = vmatprep.subr.bf16.mxu0 0
          %7012 = vmatpush1.bf16.msra.mxu0 %v6975
          %7013 = vmatprep.subr.bf16.mxu0 0
          %7014 = vmatpush1.bf16.msra.mxu0 %v6976
          %7015 = vmatprep.subr.bf16.mxu0 0
          %7016 = vmatpush1.bf16.msra.mxu0 %v6977
          %7017 = vmatprep.subr.bf16.mxu0 0
          %7018 = vmatpush1.bf16.msra.mxu0 %v6978
          %7019 = vmatprep.subr.bf16.mxu0 0
          %7020 = vmatpush1.bf16.msra.mxu0 %v6979
          %7021 = vmatprep.subr.bf16.mxu0 0
          %7022 = vmatpush1.bf16.msra.mxu0 %v6980
          %7023 = vmatprep.subr.bf16.mxu0 0
          %7024 = vmatpush1.bf16.msra.mxu0 %v6981
          %7025 = vmatprep.subr.bf16.mxu0 0
          %7026 = vmatpush1.bf16.msra.mxu0 %v6982
          %7027 = vmatprep.subr.bf16.mxu0 0
          %7028 = vmatpush1.bf16.msra.mxu0 %v6983
          %7029 = vmatprep.subr.bf16.mxu0 0
          %7030 = vmatpush1.bf16.msra.mxu0 %v6984
          %7031 = vmatprep.subr.bf16.mxu0 0
          %7032 = vmatpush1.bf16.msra.mxu0 %v6985
          %7033 = vmatprep.subr.bf16.mxu0 0
          %7034 = vmatpush1.bf16.msra.mxu0 %v6986
          %7035 = vmatprep.mubr.bf16.mxu0 %v6867
          %7036 = vmatmul.mubr.bf16.gmra.mrb[0].mxu0 %v6866
          %v7037 = vpop.f32.mrb[0].mxu0
          %v7038 = vadd.f32 %v6905, %v7037
          %v7039 = vpop.f32.mrb[0].mxu0
          %v7040 = vpop.f32.mrb[0].mxu0
          %v7041 = vpop.f32.mrb[0].mxu0
          %7042 = vdwg.mxu0
          %vm7043 = vcmask 25600
          %v7044 = vsel %vm7043, %v7038, -inf
          %7045 = vmax.xlane.f32.xlu0 %v7044
          %v7046 = vpop.xlane.xlu0 %7045
          %v7047 = vsub.f32 %v7038, %v7046
          %v7048 = vmul.f32 %v7047, 1.442695
          %v7049 = vpow.pop %v7048
          %v7050 = vsel %vm7043, %v7049, 0.0
          %7051 = vadd.xlane.f32.xlu0 %v7050
          %v7052 = vpop.xlane.xlu0 %7051
          %v7053 = vrcp.pop %v7052
          %v7054 = vmul.f32 %v7049, %v7053
          %7055 = vst.msk [vmem:[#allocation12] sm:$0x3] %vm7043, %v7054
          %v7056 = vtanh.pop %v7038
          %7058 = vrot.lane.b32.xlu0 %v7056, 124
          %v7059 = vpop.permute.xlu0 %7058
          %vm7061 = vcmask 1024
          %7062 = vst.msk [vmem:[%s10] sm:$0x3] %vm7061, %v7059
        $region84: #{tpu_custom_call.1} parent=55 // pred_fallthru
          _
        // Predicated region
        $region85: #{tpu_custom_call.1} parent=55 // pred_check
          %p7063 = pneg %p237
        $region86: #{tpu_custom_call.1} parent=55 // pred_check_branch
          %7065 = sbr.rel (%p7063) target = $region88
        $region87: #{tpu_custom_call.1} parent=55 // pred_region
          %s7067 = ssub.s32 32, 32
          %7068 = vsyncadd [#allocation6], %s7067
          %s7070 = sshll.u32 [#allocation12], 4
          %s7071 = int_to_ptr.vmem [resolvable:$true] %s7070
          %7073 = dma.vmem_to_hbm [thread:$0]  %s7071, 32, %s9, [#allocation6]
        $region88: #{tpu_custom_call.1} parent=55 // pred_fallthru
          _
        // Predicated region
        $region89: #{tpu_custom_call.1} parent=55 // pred_check
          %p7074 = pneg %p258
        $region90: #{tpu_custom_call.1} parent=55 // pred_check_branch
          %7076 = sbr.rel (%p7074) target = $region92
        $region91: #{tpu_custom_call.1} parent=55 // pred_region
          _
        $region92: #{tpu_custom_call.1} parent=55 // pred_fallthru
          _
        // Predicated region
        $region93: #{tpu_custom_call.1} parent=55 // pred_check
          %p7077 = pneg %p237
        $region94: #{tpu_custom_call.1} parent=55 // pred_check_branch
          %7079 = sbr.rel (%p7077) target = $region96
        $region95: #{tpu_custom_call.1} parent=55 // pred_region
          %7080 = dma.done [#allocation6], 32
        $region96: #{tpu_custom_call.1} parent=55 // pred_fallthru
          _
        // Predicated region
        $region97: #{tpu_custom_call.1} parent=55 // pred_check
          %p7081 = pneg %p258
        $region98: #{tpu_custom_call.1} parent=55 // pred_check_branch
          %7083 = sbr.rel (%p7081) target = $region100
        $region99: #{tpu_custom_call.1} parent=55 // pred_region
          _
        $region100: #{tpu_custom_call.1} parent=55 // pred_fallthru
          _
      $region56: #{tpu_custom_call.1} parent=5 // pred_fallthru
        _
      %p7084 = scmp.le.s32.totalorder 2, %s20
      // Predicated region
      $region101: #{tpu_custom_call.1} parent=5 // pred_check
        %p7085 = pneg %p7084
      $region102: #{tpu_custom_call.1} parent=5 // pred_check_branch
        %7087 = sbr.rel (%p7085) target = $region104
      $region103: #{tpu_custom_call.1} parent=5 // pred_region
        %s7088 = ssub.s32 %s20, 2
      $region104: #{tpu_custom_call.1} parent=5 // pred_fallthru
        _
    $region6: #{tpu_custom_call.1} parent=1 // loop_footer
      %s24 = sadd.s32 1, %s20
    $region7: #{tpu_custom_call.1} parent=1 // loop_footer_branch
      %19 = sbr.rel target = $region3
    $region8: #{tpu_custom_call.1} parent=1 // loop_exit
      _
    %7089 = vsyncpa [#allocation5], 1
    %s7090 = scalar_lea.sflag [#allocation5], 1
    %7091 = vsyncpa %s7090, 1
    %7092 = vsyncpa [#allocation8], 1
    %7093 = vsyncpa [#allocation6], 1
    %s7094 = scalar_lea.sflag [#allocation6], 1
    %7095 = vsyncpa %s7094, 1

</llo_original>
